<compile_context>
chip_gen: v6e
topology: v6e:2x2x1
jax: 0.10.0
libtpu: 0.0.40
codegen_flags: <defaults>
</compile_context>

<pallas_src>
import numpy as np
import jax
import jax.numpy as jnp
from jax import lax
from jax.experimental import pallas as pl
from jax.experimental.pallas import tpu as pltpu

# ---------------------------------------------------------------------------
# Static problem sizes (baked into the packed parameters / index tables).
# ---------------------------------------------------------------------------
BATCH = 2
H1, W1 = 14, 14            # conv1 output spatial
H2, W2 = 7, 7              # conv2 output spatial
S2 = H2 * W2               # 49 conv2 positions per sample
S2_PAD = 64                # per-sample conv2 position block (lane aligned)
M1 = BATCH * H1 * W1       # 392 conv1 output positions
M1_PAD = 512               # conv1 positions padded to a multiple of 128 lanes
M2_PAD = BATCH * S2_PAD    # 128 conv2 position lanes (both samples)
K1 = 16                    # conv1 im2col features (1*4*4)
C1_PAD = 8                 # conv1 out channels padded 4 -> 8 sublanes
C2 = 8                     # conv2 out channels
LANES = 128


# ---------------------------------------------------------------------------
# The fused Pallas kernel.
# ---------------------------------------------------------------------------
def _fused_kernel(p1t_ref, w1m_ref, b1bc_ref, tgt_ref, w2p_ref, b2bc_ref,
                  w3_ref, b1l_ref, w2l_ref, b2l_ref, out_ref):
    f32 = jnp.float32

    # ---- conv1 + relu1 : (8, 16) @ (16, 512) -> (8, 512) ----
    a1t = jnp.dot(w1m_ref[...], p1t_ref[...], preferred_element_type=f32)
    a1t = jnp.maximum(a1t + b1bc_ref[...], 0.0)       # rows=channels, lanes=positions

    # ---- conv2 + relu2 folded over the 16 kernel offsets ----
    # The im2col gather is a matmul against a one-hot selection built here from
    # a tiny (16, 128) int32 index table (tgt == -1 marks conv padding / lane
    # padding -> all-zero column).  No 4 MiB constant matrix in HBM.
    m1_ids = lax.broadcasted_iota(jnp.int32, (M1_PAD, M2_PAD), 0)
    acc2 = b2bc_ref[...]                                            # (8, 128)
    for p in range(16):
        sel = jnp.where(m1_ids == tgt_ref[p:p + 1, :], 1.0, 0.0)    # (512, 128)
        g = jnp.dot(a1t, sel, preferred_element_type=f32)           # (8, 128) taps
        acc2 = acc2 + jnp.dot(w2p_ref[p], g, preferred_element_type=f32)
    a2t = jnp.maximum(acc2, 0.0)                                    # (8, 128)

    # ---- linear1 + relu3, per sample (64-lane blocks), sum over 8 channels ----
    rows = []
    for n in range(BATCH):
        acc = b1l_ref[...]                                          # (1, 64)
        for c in range(C2):
            seg = a2t[c:c + 1, n * S2_PAD:(n + 1) * S2_PAD]         # (1, 64)
            acc = acc + jnp.dot(seg, w3_ref[c], preferred_element_type=f32)
        rows.append(jnp.maximum(acc, 0.0))
    h2 = jnp.concatenate(rows, axis=0)                              # (2, 64)

    # ---- linear2 : (2, 64) @ (64, 128) -> (2, 128) ----
    out = jnp.dot(h2, w2l_ref[...], preferred_element_type=f32) + b2l_ref[...]
    out_ref[...] = out


def _fused_forward_call(p1t, fp):
    arrays = [p1t, fp["w1m"], fp["b1bc"], fp["tgt"], fp["w2p"], fp["b2bc"],
              fp["w3"], fp["b1l"], fp["w2l"], fp["b2l"]]

    def full(shape):
        nd = len(shape)
        return pl.BlockSpec(tuple(shape), lambda i, _nd=nd: (0,) * _nd)

    in_specs = [full(a.shape) for a in arrays]

    return pl.pallas_call(
        _fused_kernel,
        out_shape=jax.ShapeDtypeStruct((BATCH, LANES), jnp.float32),
        grid=(1,),
        in_specs=in_specs,
        out_specs=pl.BlockSpec((BATCH, LANES), lambda i: (0, 0)),
        compiler_params=pltpu.CompilerParams(
            # Single step; with a larger batch the position axis would become a
            # "parallel" grid dimension (v7x: 2 TensorCores).
            dimension_semantics=("arbitrary",),
            vmem_limit_bytes=32 * 1024 * 1024,
        ),
    )(*arrays)


# ---------------------------------------------------------------------------
# One-time parameter packing (pre-transpose / pad / build index tables).
# ---------------------------------------------------------------------------
def init_params(key):
    ks = jax.random.split(key, 8)
    scale = 0.1
    return {
        "conv1_w": scale * jax.random.normal(ks[0], (4, 1, 4, 4), jnp.float32),
        "conv1_b": scale * jax.random.normal(ks[1], (4,), jnp.float32),
        "conv2_w": scale * jax.random.normal(ks[2], (8, 4, 4, 4), jnp.float32),
        "conv2_b": scale * jax.random.normal(ks[3], (8,), jnp.float32),
        "lin1_w": scale * jax.random.normal(ks[4], (50, 8 * 7 * 7), jnp.float32),
        "lin1_b": scale * jax.random.normal(ks[5], (50,), jnp.float32),
        "lin2_w": scale * jax.random.normal(ks[6], (10, 50), jnp.float32),
        "lin2_b": scale * jax.random.normal(ks[7], (10,), jnp.float32),
    }


def prepare_fused_params(params):
    cw1 = np.asarray(params["conv1_w"], np.float32)      # (4,1,4,4)
    cb1 = np.asarray(params["conv1_b"], np.float32)
    cw2 = np.asarray(params["conv2_w"], np.float32)      # (8,4,4,4)
    cb2 = np.asarray(params["conv2_b"], np.float32)
    lw1 = np.asarray(params["lin1_w"], np.float32)       # (50, 392)
    lb1 = np.asarray(params["lin1_b"], np.float32)
    lw2 = np.asarray(params["lin2_w"], np.float32)       # (10, 50)
    lb2 = np.asarray(params["lin2_b"], np.float32)

    # conv1 weight as (8, 16); rows 4..7 are zero padding.
    w1m = np.zeros((C1_PAD, K1), np.float32)
    w1m[:4] = cw1.reshape(4, K1)
    b1bc = np.zeros((C1_PAD, M1_PAD), np.float32)
    b1bc[:4, :M1] = cb1[:, None]

    # conv2 gather targets: tgt[p, n*64 + oh*7 + ow] = conv1 position index
    # (layout n*196 + ih*14 + iw) read by offset p = (ki, kj), or -1 for
    # conv padding / lane padding.
    tgt = np.full((16, M2_PAD), -1, np.int32)
    for p in range(16):
        ki, kj = divmod(p, 4)
        for n in range(BATCH):
            for oh in range(H2):
                for ow in range(W2):
                    ih = 2 * oh + ki - 1
                    iw = 2 * ow + kj - 1
                    if 0 <= ih < H1 and 0 <= iw < W1:
                        m2 = n * S2_PAD + oh * W2 + ow
                        tgt[p, m2] = n * (H1 * W1) + ih * W1 + iw

    # conv2 weights per kernel offset: w2p[p, co, ci] = cw2[co, ci, ki, kj].
    w2p = np.zeros((16, C2, C1_PAD), np.float32)
    for p in range(16):
        ki, kj = divmod(p, 4)
        w2p[p, :, :4] = cw2[:, :, ki, kj]
    b2bc = np.zeros((C2, M2_PAD), np.float32)
    for n in range(BATCH):
        b2bc[:, n * S2_PAD:n * S2_PAD + S2] = cb2[:, None]

    # linear1 packed per conv2 channel as (64, 64) tiles; encodes PyTorch's
    # NCHW .view() flatten order (feature = c*49 + s).
    w3 = np.zeros((C2, S2_PAD, S2_PAD), np.float32)
    for c in range(C2):
        for s in range(S2):
            w3[c, s, :50] = lw1[:, c * S2 + s]
    b1l = np.zeros((1, S2_PAD), np.float32)
    b1l[0, :50] = lb1

    # linear2 weight pre-transposed to (K, N) and zero-padded to (64, 128).
    w2l = np.zeros((S2_PAD, LANES), np.float32)
    w2l[:50, :10] = lw2.T
    b2l = np.zeros((BATCH, LANES), np.float32)
    b2l[:, :10] = lb2

    packed = dict(w1m=w1m, b1bc=b1bc, tgt=tgt, w2p=w2p, b2bc=b2bc,
                  w3=w3, b1l=b1l, w2l=w2l, b2l=b2l)
    return {k: jnp.asarray(v) for k, v in packed.items()}


# ---------------------------------------------------------------------------
# Forward: tiny XLA glue (conv1 im2col) + the single fused Pallas kernel.
# ---------------------------------------------------------------------------
@jax.jit
def forward(fused_params, x):
    n = x.shape[0]
    # conv1 im2col (pad + 2 gathers + transpose + reshape; (kh, kw) row-major
    # ordering matches the flattened PyTorch conv1 weight).
    xp = jnp.pad(x[:, 0], ((0, 0), (1, 1), (1, 1)))               # (N, 30, 30)
    idx = 2 * jnp.arange(H1)[:, None] + jnp.arange(4)[None, :]    # (14, 4)
    pt = xp[:, idx, :][:, :, :, idx]                              # (N,14,4,14,4)
    pt = jnp.transpose(pt, (2, 4, 0, 1, 3))                       # (4,4,N,14,14)
    p1t = pt.reshape(K1, n * H1 * W1)
    p1t = jnp.pad(p1t, ((0, 0), (0, M1_PAD - n * H1 * W1)))       # (16, 512)

    out = _fused_forward_call(p1t, fused_params)                  # (2, 128)
    return out[:, :10]


# ---------------------------------------------------------------------------
# Pure-JAX reference (mirrors the PyTorch module exactly) for a self-check.
# ---------------------------------------------------------------------------
def reference_forward(params, x):
    dn = ("NCHW", "OIHW", "NCHW")
    out = lax.conv_general_dilated(x, params["conv1_w"], (2, 2),
                                   ((1, 1), (1, 1)), dimension_numbers=dn)
    out = jnp.maximum(out + params["conv1_b"][None, :, None, None], 0.0)
    out = lax.conv_general_dilated(out, params["conv2_w"], (2, 2),
                                   ((1, 1), (1, 1)), dimension_numbers=dn)
    out = jnp.maximum(out + params["conv2_b"][None, :, None, None], 0.0)
    out = out.reshape(out.shape[0], -1)
    out = jnp.maximum(out @ params["lin1_w"].T + params["lin1_b"], 0.0)
    out = out @ params["lin2_w"].T + params["lin2_b"]
    return out


if __name__ == "__main__":
    key = jax.random.PRNGKey(0)
    pkey, xkey = jax.random.split(key)
    params = init_params(pkey)
    fused = prepare_fused_params(params)

    x = jax.random.normal(xkey, (BATCH, 1, 28, 28), jnp.float32)
    out = forward(fused, x)
    jax.block_until_ready(out)
    assert out.shape == (BATCH, 10)

    ref = reference_forward(params, x)
    np.testing.assert_allclose(np.asarray(out), np.asarray(ref),
                               rtol=3e-2, atol=3e-2)
    print("KERNEL_OK")
</pallas_src>

<mosaic_0001>
module attributes {stable_mosaic.version = 11 : i64} {
  func.func @_fused_kernel(%arg0: i32, %arg1: memref<16x512xf32, #tpu.memory_space<vmem>>, %arg2: memref<8x16xf32, #tpu.memory_space<vmem>>, %arg3: memref<8x512xf32, #tpu.memory_space<vmem>>, %arg4: memref<16x128xi32, #tpu.memory_space<vmem>>, %arg5: memref<16x8x8xf32, #tpu.memory_space<vmem>>, %arg6: memref<8x128xf32, #tpu.memory_space<vmem>>, %arg7: memref<8x64x64xf32, #tpu.memory_space<vmem>>, %arg8: memref<1x64xf32, #tpu.memory_space<vmem>>, %arg9: memref<64x128xf32, #tpu.memory_space<vmem>>, %arg10: memref<2x128xf32, #tpu.memory_space<vmem>>, %arg11: memref<2x128xf32, #tpu.memory_space<vmem>>) attributes {dimension_semantics = [#tpu.dimension_semantics<arbitrary>], iteration_bounds = array<i64: 1>, scalar_prefetch = 0 : i64, scratch_operands = 0 : i64, tpu.core_type = #tpu.core_type<tc>, window_params = [{pipeline_mode = #tpu.pipeline_mode<synchronous>, transform_indices = @transform_0, window_bounds = array<i64: 16, 512>}, {pipeline_mode = #tpu.pipeline_mode<synchronous>, transform_indices = @transform_1, window_bounds = array<i64: 8, 16>}, {pipeline_mode = #tpu.pipeline_mode<synchronous>, transform_indices = @transform_2, window_bounds = array<i64: 8, 512>}, {pipeline_mode = #tpu.pipeline_mode<synchronous>, transform_indices = @transform_3, window_bounds = array<i64: 16, 128>}, {pipeline_mode = #tpu.pipeline_mode<synchronous>, transform_indices = @transform_4, window_bounds = array<i64: 16, 8, 8>}, {pipeline_mode = #tpu.pipeline_mode<synchronous>, transform_indices = @transform_5, window_bounds = array<i64: 8, 128>}, {pipeline_mode = #tpu.pipeline_mode<synchronous>, transform_indices = @transform_6, window_bounds = array<i64: 8, 64, 64>}, {pipeline_mode = #tpu.pipeline_mode<synchronous>, transform_indices = @transform_7, window_bounds = array<i64: 1, 64>}, {pipeline_mode = #tpu.pipeline_mode<synchronous>, transform_indices = @transform_8, window_bounds = array<i64: 64, 128>}, {pipeline_mode = #tpu.pipeline_mode<synchronous>, transform_indices = @transform_9, window_bounds = array<i64: 2, 128>}, {pipeline_mode = #tpu.pipeline_mode<synchronous>, transform_indices = @transform_10, window_bounds = array<i64: 2, 128>}]} {
    %c0 = arith.constant 0 : index
    %c0_0 = arith.constant 0 : index
    %0 = vector.load %arg2[%c0, %c0_0] : memref<8x16xf32, #tpu.memory_space<vmem>>, vector<8x16xf32>
    %c0_1 = arith.constant 0 : index
    %c0_2 = arith.constant 0 : index
    %1 = vector.load %arg1[%c0_1, %c0_2] : memref<16x512xf32, #tpu.memory_space<vmem>>, vector<16x512xf32>
    %cst = arith.constant dense<0.000000e+00> : vector<8x512xf32>
    %2 = tpu.matmul %0, %1, %cst {dimension_numbers = #tpu.dot_dimension_numbers<[1], [0], [0], [1], [0, 0, 1, 1], [], []>} : vector<8x16xf32>, vector<16x512xf32>, vector<8x512xf32> -> vector<8x512xf32>
    %c0_3 = arith.constant 0 : index
    %c0_4 = arith.constant 0 : index
    %3 = vector.load %arg3[%c0_3, %c0_4] : memref<8x512xf32, #tpu.memory_space<vmem>>, vector<8x512xf32>
    %4 = arith.addf %2, %3 : vector<8x512xf32>
    %cst_5 = arith.constant 0.000000e+00 : f32
    %5 = vector.broadcast %cst_5 : f32 to vector<8x512xf32>
    %6 = arith.maximumf %4, %5 : vector<8x512xf32>
    %7 = tpu.iota {dimensions = array<i32: 0>} : vector<512x128xi32>
    %c0_6 = arith.constant 0 : index
    %c0_7 = arith.constant 0 : index
    %8 = vector.load %arg6[%c0_6, %c0_7] : memref<8x128xf32, #tpu.memory_space<vmem>>, vector<8x128xf32>
    %c0_8 = arith.constant 0 : index
    %c0_9 = arith.constant 0 : index
    %9 = vector.load %arg4[%c0_8, %c0_9] : memref<16x128xi32, #tpu.memory_space<vmem>>, vector<1x128xi32>
    %10 = vector.broadcast %9 : vector<1x128xi32> to vector<512x128xi32>
    %11 = arith.cmpi eq, %7, %10 : vector<512x128xi32>
    %cst_10 = arith.constant 1.000000e+00 : f32
    %cst_11 = arith.constant 0.000000e+00 : f32
    %12 = vector.broadcast %cst_10 : f32 to vector<512x128xf32>
    %13 = vector.broadcast %cst_11 : f32 to vector<512x128xf32>
    %14 = arith.select %11, %12, %13 : vector<512x128xi1>, vector<512x128xf32>
    %cst_12 = arith.constant dense<0.000000e+00> : vector<8x128xf32>
    %15 = tpu.matmul %6, %14, %cst_12 {dimension_numbers = #tpu.dot_dimension_numbers<[1], [0], [0], [1], [0, 0, 1, 1], [], []>} : vector<8x512xf32>, vector<512x128xf32>, vector<8x128xf32> -> vector<8x128xf32>
    %c0_13 = arith.constant 0 : index
    %c0_14 = arith.constant 0 : index
    %c0_15 = arith.constant 0 : index
    %16 = vector.load %arg5[%c0_13, %c0_14, %c0_15] : memref<16x8x8xf32, #tpu.memory_space<vmem>>, vector<1x8x8xf32>
    %17 = vector.shape_cast %16 : vector<1x8x8xf32> to vector<8x8xf32>
    %cst_16 = arith.constant dense<0.000000e+00> : vector<8x128xf32>
    %18 = tpu.matmul %17, %15, %cst_16 {dimension_numbers = #tpu.dot_dimension_numbers<[1], [0], [0], [1], [0, 0, 1, 1], [], []>} : vector<8x8xf32>, vector<8x128xf32>, vector<8x128xf32> -> vector<8x128xf32>
    %19 = arith.addf %8, %18 : vector<8x128xf32>
    %c1 = arith.constant 1 : index
    %c0_17 = arith.constant 0 : index
    %20 = vector.load %arg4[%c1, %c0_17] : memref<16x128xi32, #tpu.memory_space<vmem>>, vector<1x128xi32>
    %21 = vector.broadcast %20 : vector<1x128xi32> to vector<512x128xi32>
    %22 = arith.cmpi eq, %7, %21 : vector<512x128xi32>
    %cst_18 = arith.constant 1.000000e+00 : f32
    %cst_19 = arith.constant 0.000000e+00 : f32
    %23 = vector.broadcast %cst_18 : f32 to vector<512x128xf32>
    %24 = vector.broadcast %cst_19 : f32 to vector<512x128xf32>
    %25 = arith.select %22, %23, %24 : vector<512x128xi1>, vector<512x128xf32>
    %cst_20 = arith.constant dense<0.000000e+00> : vector<8x128xf32>
    %26 = tpu.matmul %6, %25, %cst_20 {dimension_numbers = #tpu.dot_dimension_numbers<[1], [0], [0], [1], [0, 0, 1, 1], [], []>} : vector<8x512xf32>, vector<512x128xf32>, vector<8x128xf32> -> vector<8x128xf32>
    %c1_21 = arith.constant 1 : index
    %c0_22 = arith.constant 0 : index
    %c0_23 = arith.constant 0 : index
    %27 = vector.load %arg5[%c1_21, %c0_22, %c0_23] : memref<16x8x8xf32, #tpu.memory_space<vmem>>, vector<1x8x8xf32>
    %28 = vector.shape_cast %27 : vector<1x8x8xf32> to vector<8x8xf32>
    %cst_24 = arith.constant dense<0.000000e+00> : vector<8x128xf32>
    %29 = tpu.matmul %28, %26, %cst_24 {dimension_numbers = #tpu.dot_dimension_numbers<[1], [0], [0], [1], [0, 0, 1, 1], [], []>} : vector<8x8xf32>, vector<8x128xf32>, vector<8x128xf32> -> vector<8x128xf32>
    %30 = arith.addf %19, %29 : vector<8x128xf32>
    %c2 = arith.constant 2 : index
    %c0_25 = arith.constant 0 : index
    %31 = vector.load %arg4[%c2, %c0_25] : memref<16x128xi32, #tpu.memory_space<vmem>>, vector<1x128xi32>
    %32 = vector.broadcast %31 : vector<1x128xi32> to vector<512x128xi32>
    %33 = arith.cmpi eq, %7, %32 : vector<512x128xi32>
    %cst_26 = arith.constant 1.000000e+00 : f32
    %cst_27 = arith.constant 0.000000e+00 : f32
    %34 = vector.broadcast %cst_26 : f32 to vector<512x128xf32>
    %35 = vector.broadcast %cst_27 : f32 to vector<512x128xf32>
    %36 = arith.select %33, %34, %35 : vector<512x128xi1>, vector<512x128xf32>
    %cst_28 = arith.constant dense<0.000000e+00> : vector<8x128xf32>
    %37 = tpu.matmul %6, %36, %cst_28 {dimension_numbers = #tpu.dot_dimension_numbers<[1], [0], [0], [1], [0, 0, 1, 1], [], []>} : vector<8x512xf32>, vector<512x128xf32>, vector<8x128xf32> -> vector<8x128xf32>
    %c2_29 = arith.constant 2 : index
    %c0_30 = arith.constant 0 : index
    %c0_31 = arith.constant 0 : index
    %38 = vector.load %arg5[%c2_29, %c0_30, %c0_31] : memref<16x8x8xf32, #tpu.memory_space<vmem>>, vector<1x8x8xf32>
    %39 = vector.shape_cast %38 : vector<1x8x8xf32> to vector<8x8xf32>
    %cst_32 = arith.constant dense<0.000000e+00> : vector<8x128xf32>
    %40 = tpu.matmul %39, %37, %cst_32 {dimension_numbers = #tpu.dot_dimension_numbers<[1], [0], [0], [1], [0, 0, 1, 1], [], []>} : vector<8x8xf32>, vector<8x128xf32>, vector<8x128xf32> -> vector<8x128xf32>
    %41 = arith.addf %30, %40 : vector<8x128xf32>
    %c3 = arith.constant 3 : index
    %c0_33 = arith.constant 0 : index
    %42 = vector.load %arg4[%c3, %c0_33] : memref<16x128xi32, #tpu.memory_space<vmem>>, vector<1x128xi32>
    %43 = vector.broadcast %42 : vector<1x128xi32> to vector<512x128xi32>
    %44 = arith.cmpi eq, %7, %43 : vector<512x128xi32>
    %cst_34 = arith.constant 1.000000e+00 : f32
    %cst_35 = arith.constant 0.000000e+00 : f32
    %45 = vector.broadcast %cst_34 : f32 to vector<512x128xf32>
    %46 = vector.broadcast %cst_35 : f32 to vector<512x128xf32>
    %47 = arith.select %44, %45, %46 : vector<512x128xi1>, vector<512x128xf32>
    %cst_36 = arith.constant dense<0.000000e+00> : vector<8x128xf32>
    %48 = tpu.matmul %6, %47, %cst_36 {dimension_numbers = #tpu.dot_dimension_numbers<[1], [0], [0], [1], [0, 0, 1, 1], [], []>} : vector<8x512xf32>, vector<512x128xf32>, vector<8x128xf32> -> vector<8x128xf32>
    %c3_37 = arith.constant 3 : index
    %c0_38 = arith.constant 0 : index
    %c0_39 = arith.constant 0 : index
    %49 = vector.load %arg5[%c3_37, %c0_38, %c0_39] : memref<16x8x8xf32, #tpu.memory_space<vmem>>, vector<1x8x8xf32>
    %50 = vector.shape_cast %49 : vector<1x8x8xf32> to vector<8x8xf32>
    %cst_40 = arith.constant dense<0.000000e+00> : vector<8x128xf32>
    %51 = tpu.matmul %50, %48, %cst_40 {dimension_numbers = #tpu.dot_dimension_numbers<[1], [0], [0], [1], [0, 0, 1, 1], [], []>} : vector<8x8xf32>, vector<8x128xf32>, vector<8x128xf32> -> vector<8x128xf32>
    %52 = arith.addf %41, %51 : vector<8x128xf32>
    %c4 = arith.constant 4 : index
    %c0_41 = arith.constant 0 : index
    %53 = vector.load %arg4[%c4, %c0_41] : memref<16x128xi32, #tpu.memory_space<vmem>>, vector<1x128xi32>
    %54 = vector.broadcast %53 : vector<1x128xi32> to vector<512x128xi32>
    %55 = arith.cmpi eq, %7, %54 : vector<512x128xi32>
    %cst_42 = arith.constant 1.000000e+00 : f32
    %cst_43 = arith.constant 0.000000e+00 : f32
    %56 = vector.broadcast %cst_42 : f32 to vector<512x128xf32>
    %57 = vector.broadcast %cst_43 : f32 to vector<512x128xf32>
    %58 = arith.select %55, %56, %57 : vector<512x128xi1>, vector<512x128xf32>
    %cst_44 = arith.constant dense<0.000000e+00> : vector<8x128xf32>
    %59 = tpu.matmul %6, %58, %cst_44 {dimension_numbers = #tpu.dot_dimension_numbers<[1], [0], [0], [1], [0, 0, 1, 1], [], []>} : vector<8x512xf32>, vector<512x128xf32>, vector<8x128xf32> -> vector<8x128xf32>
    %c4_45 = arith.constant 4 : index
    %c0_46 = arith.constant 0 : index
    %c0_47 = arith.constant 0 : index
    %60 = vector.load %arg5[%c4_45, %c0_46, %c0_47] : memref<16x8x8xf32, #tpu.memory_space<vmem>>, vector<1x8x8xf32>
    %61 = vector.shape_cast %60 : vector<1x8x8xf32> to vector<8x8xf32>
    %cst_48 = arith.constant dense<0.000000e+00> : vector<8x128xf32>
    %62 = tpu.matmul %61, %59, %cst_48 {dimension_numbers = #tpu.dot_dimension_numbers<[1], [0], [0], [1], [0, 0, 1, 1], [], []>} : vector<8x8xf32>, vector<8x128xf32>, vector<8x128xf32> -> vector<8x128xf32>
    %63 = arith.addf %52, %62 : vector<8x128xf32>
    %c5 = arith.constant 5 : index
    %c0_49 = arith.constant 0 : index
    %64 = vector.load %arg4[%c5, %c0_49] : memref<16x128xi32, #tpu.memory_space<vmem>>, vector<1x128xi32>
    %65 = vector.broadcast %64 : vector<1x128xi32> to vector<512x128xi32>
    %66 = arith.cmpi eq, %7, %65 : vector<512x128xi32>
    %cst_50 = arith.constant 1.000000e+00 : f32
    %cst_51 = arith.constant 0.000000e+00 : f32
    %67 = vector.broadcast %cst_50 : f32 to vector<512x128xf32>
    %68 = vector.broadcast %cst_51 : f32 to vector<512x128xf32>
    %69 = arith.select %66, %67, %68 : vector<512x128xi1>, vector<512x128xf32>
    %cst_52 = arith.constant dense<0.000000e+00> : vector<8x128xf32>
    %70 = tpu.matmul %6, %69, %cst_52 {dimension_numbers = #tpu.dot_dimension_numbers<[1], [0], [0], [1], [0, 0, 1, 1], [], []>} : vector<8x512xf32>, vector<512x128xf32>, vector<8x128xf32> -> vector<8x128xf32>
    %c5_53 = arith.constant 5 : index
    %c0_54 = arith.constant 0 : index
    %c0_55 = arith.constant 0 : index
    %71 = vector.load %arg5[%c5_53, %c0_54, %c0_55] : memref<16x8x8xf32, #tpu.memory_space<vmem>>, vector<1x8x8xf32>
    %72 = vector.shape_cast %71 : vector<1x8x8xf32> to vector<8x8xf32>
    %cst_56 = arith.constant dense<0.000000e+00> : vector<8x128xf32>
    %73 = tpu.matmul %72, %70, %cst_56 {dimension_numbers = #tpu.dot_dimension_numbers<[1], [0], [0], [1], [0, 0, 1, 1], [], []>} : vector<8x8xf32>, vector<8x128xf32>, vector<8x128xf32> -> vector<8x128xf32>
    %74 = arith.addf %63, %73 : vector<8x128xf32>
    %c6 = arith.constant 6 : index
    %c0_57 = arith.constant 0 : index
    %75 = vector.load %arg4[%c6, %c0_57] : memref<16x128xi32, #tpu.memory_space<vmem>>, vector<1x128xi32>
    %76 = vector.broadcast %75 : vector<1x128xi32> to vector<512x128xi32>
    %77 = arith.cmpi eq, %7, %76 : vector<512x128xi32>
    %cst_58 = arith.constant 1.000000e+00 : f32
    %cst_59 = arith.constant 0.000000e+00 : f32
    %78 = vector.broadcast %cst_58 : f32 to vector<512x128xf32>
    %79 = vector.broadcast %cst_59 : f32 to vector<512x128xf32>
    %80 = arith.select %77, %78, %79 : vector<512x128xi1>, vector<512x128xf32>
    %cst_60 = arith.constant dense<0.000000e+00> : vector<8x128xf32>
    %81 = tpu.matmul %6, %80, %cst_60 {dimension_numbers = #tpu.dot_dimension_numbers<[1], [0], [0], [1], [0, 0, 1, 1], [], []>} : vector<8x512xf32>, vector<512x128xf32>, vector<8x128xf32> -> vector<8x128xf32>
    %c6_61 = arith.constant 6 : index
    %c0_62 = arith.constant 0 : index
    %c0_63 = arith.constant 0 : index
    %82 = vector.load %arg5[%c6_61, %c0_62, %c0_63] : memref<16x8x8xf32, #tpu.memory_space<vmem>>, vector<1x8x8xf32>
    %83 = vector.shape_cast %82 : vector<1x8x8xf32> to vector<8x8xf32>
    %cst_64 = arith.constant dense<0.000000e+00> : vector<8x128xf32>
    %84 = tpu.matmul %83, %81, %cst_64 {dimension_numbers = #tpu.dot_dimension_numbers<[1], [0], [0], [1], [0, 0, 1, 1], [], []>} : vector<8x8xf32>, vector<8x128xf32>, vector<8x128xf32> -> vector<8x128xf32>
    %85 = arith.addf %74, %84 : vector<8x128xf32>
    %c7 = arith.constant 7 : index
    %c0_65 = arith.constant 0 : index
    %86 = vector.load %arg4[%c7, %c0_65] : memref<16x128xi32, #tpu.memory_space<vmem>>, vector<1x128xi32>
    %87 = vector.broadcast %86 : vector<1x128xi32> to vector<512x128xi32>
    %88 = arith.cmpi eq, %7, %87 : vector<512x128xi32>
    %cst_66 = arith.constant 1.000000e+00 : f32
    %cst_67 = arith.constant 0.000000e+00 : f32
    %89 = vector.broadcast %cst_66 : f32 to vector<512x128xf32>
    %90 = vector.broadcast %cst_67 : f32 to vector<512x128xf32>
    %91 = arith.select %88, %89, %90 : vector<512x128xi1>, vector<512x128xf32>
    %cst_68 = arith.constant dense<0.000000e+00> : vector<8x128xf32>
    %92 = tpu.matmul %6, %91, %cst_68 {dimension_numbers = #tpu.dot_dimension_numbers<[1], [0], [0], [1], [0, 0, 1, 1], [], []>} : vector<8x512xf32>, vector<512x128xf32>, vector<8x128xf32> -> vector<8x128xf32>
    %c7_69 = arith.constant 7 : index
    %c0_70 = arith.constant 0 : index
    %c0_71 = arith.constant 0 : index
    %93 = vector.load %arg5[%c7_69, %c0_70, %c0_71] : memref<16x8x8xf32, #tpu.memory_space<vmem>>, vector<1x8x8xf32>
    %94 = vector.shape_cast %93 : vector<1x8x8xf32> to vector<8x8xf32>
    %cst_72 = arith.constant dense<0.000000e+00> : vector<8x128xf32>
    %95 = tpu.matmul %94, %92, %cst_72 {dimension_numbers = #tpu.dot_dimension_numbers<[1], [0], [0], [1], [0, 0, 1, 1], [], []>} : vector<8x8xf32>, vector<8x128xf32>, vector<8x128xf32> -> vector<8x128xf32>
    %96 = arith.addf %85, %95 : vector<8x128xf32>
    %c8 = arith.constant 8 : index
    %c0_73 = arith.constant 0 : index
    %97 = vector.load %arg4[%c8, %c0_73] : memref<16x128xi32, #tpu.memory_space<vmem>>, vector<1x128xi32>
    %98 = vector.broadcast %97 : vector<1x128xi32> to vector<512x128xi32>
    %99 = arith.cmpi eq, %7, %98 : vector<512x128xi32>
    %cst_74 = arith.constant 1.000000e+00 : f32
    %cst_75 = arith.constant 0.000000e+00 : f32
    %100 = vector.broadcast %cst_74 : f32 to vector<512x128xf32>
    %101 = vector.broadcast %cst_75 : f32 to vector<512x128xf32>
    %102 = arith.select %99, %100, %101 : vector<512x128xi1>, vector<512x128xf32>
    %cst_76 = arith.constant dense<0.000000e+00> : vector<8x128xf32>
    %103 = tpu.matmul %6, %102, %cst_76 {dimension_numbers = #tpu.dot_dimension_numbers<[1], [0], [0], [1], [0, 0, 1, 1], [], []>} : vector<8x512xf32>, vector<512x128xf32>, vector<8x128xf32> -> vector<8x128xf32>
    %c8_77 = arith.constant 8 : index
    %c0_78 = arith.constant 0 : index
    %c0_79 = arith.constant 0 : index
    %104 = vector.load %arg5[%c8_77, %c0_78, %c0_79] : memref<16x8x8xf32, #tpu.memory_space<vmem>>, vector<1x8x8xf32>
    %105 = vector.shape_cast %104 : vector<1x8x8xf32> to vector<8x8xf32>
    %cst_80 = arith.constant dense<0.000000e+00> : vector<8x128xf32>
    %106 = tpu.matmul %105, %103, %cst_80 {dimension_numbers = #tpu.dot_dimension_numbers<[1], [0], [0], [1], [0, 0, 1, 1], [], []>} : vector<8x8xf32>, vector<8x128xf32>, vector<8x128xf32> -> vector<8x128xf32>
    %107 = arith.addf %96, %106 : vector<8x128xf32>
    %c9 = arith.constant 9 : index
    %c0_81 = arith.constant 0 : index
    %108 = vector.load %arg4[%c9, %c0_81] : memref<16x128xi32, #tpu.memory_space<vmem>>, vector<1x128xi32>
    %109 = vector.broadcast %108 : vector<1x128xi32> to vector<512x128xi32>
    %110 = arith.cmpi eq, %7, %109 : vector<512x128xi32>
    %cst_82 = arith.constant 1.000000e+00 : f32
    %cst_83 = arith.constant 0.000000e+00 : f32
    %111 = vector.broadcast %cst_82 : f32 to vector<512x128xf32>
    %112 = vector.broadcast %cst_83 : f32 to vector<512x128xf32>
    %113 = arith.select %110, %111, %112 : vector<512x128xi1>, vector<512x128xf32>
    %cst_84 = arith.constant dense<0.000000e+00> : vector<8x128xf32>
    %114 = tpu.matmul %6, %113, %cst_84 {dimension_numbers = #tpu.dot_dimension_numbers<[1], [0], [0], [1], [0, 0, 1, 1], [], []>} : vector<8x512xf32>, vector<512x128xf32>, vector<8x128xf32> -> vector<8x128xf32>
    %c9_85 = arith.constant 9 : index
    %c0_86 = arith.constant 0 : index
    %c0_87 = arith.constant 0 : index
    %115 = vector.load %arg5[%c9_85, %c0_86, %c0_87] : memref<16x8x8xf32, #tpu.memory_space<vmem>>, vector<1x8x8xf32>
    %116 = vector.shape_cast %115 : vector<1x8x8xf32> to vector<8x8xf32>
    %cst_88 = arith.constant dense<0.000000e+00> : vector<8x128xf32>
    %117 = tpu.matmul %116, %114, %cst_88 {dimension_numbers = #tpu.dot_dimension_numbers<[1], [0], [0], [1], [0, 0, 1, 1], [], []>} : vector<8x8xf32>, vector<8x128xf32>, vector<8x128xf32> -> vector<8x128xf32>
    %118 = arith.addf %107, %117 : vector<8x128xf32>
    %c10 = arith.constant 10 : index
    %c0_89 = arith.constant 0 : index
    %119 = vector.load %arg4[%c10, %c0_89] : memref<16x128xi32, #tpu.memory_space<vmem>>, vector<1x128xi32>
    %120 = vector.broadcast %119 : vector<1x128xi32> to vector<512x128xi32>
    %121 = arith.cmpi eq, %7, %120 : vector<512x128xi32>
    %cst_90 = arith.constant 1.000000e+00 : f32
    %cst_91 = arith.constant 0.000000e+00 : f32
    %122 = vector.broadcast %cst_90 : f32 to vector<512x128xf32>
    %123 = vector.broadcast %cst_91 : f32 to vector<512x128xf32>
    %124 = arith.select %121, %122, %123 : vector<512x128xi1>, vector<512x128xf32>
    %cst_92 = arith.constant dense<0.000000e+00> : vector<8x128xf32>
    %125 = tpu.matmul %6, %124, %cst_92 {dimension_numbers = #tpu.dot_dimension_numbers<[1], [0], [0], [1], [0, 0, 1, 1], [], []>} : vector<8x512xf32>, vector<512x128xf32>, vector<8x128xf32> -> vector<8x128xf32>
    %c10_93 = arith.constant 10 : index
    %c0_94 = arith.constant 0 : index
    %c0_95 = arith.constant 0 : index
    %126 = vector.load %arg5[%c10_93, %c0_94, %c0_95] : memref<16x8x8xf32, #tpu.memory_space<vmem>>, vector<1x8x8xf32>
    %127 = vector.shape_cast %126 : vector<1x8x8xf32> to vector<8x8xf32>
    %cst_96 = arith.constant dense<0.000000e+00> : vector<8x128xf32>
    %128 = tpu.matmul %127, %125, %cst_96 {dimension_numbers = #tpu.dot_dimension_numbers<[1], [0], [0], [1], [0, 0, 1, 1], [], []>} : vector<8x8xf32>, vector<8x128xf32>, vector<8x128xf32> -> vector<8x128xf32>
    %129 = arith.addf %118, %128 : vector<8x128xf32>
    %c11 = arith.constant 11 : index
    %c0_97 = arith.constant 0 : index
    %130 = vector.load %arg4[%c11, %c0_97] : memref<16x128xi32, #tpu.memory_space<vmem>>, vector<1x128xi32>
    %131 = vector.broadcast %130 : vector<1x128xi32> to vector<512x128xi32>
    %132 = arith.cmpi eq, %7, %131 : vector<512x128xi32>
    %cst_98 = arith.constant 1.000000e+00 : f32
    %cst_99 = arith.constant 0.000000e+00 : f32
    %133 = vector.broadcast %cst_98 : f32 to vector<512x128xf32>
    %134 = vector.broadcast %cst_99 : f32 to vector<512x128xf32>
    %135 = arith.select %132, %133, %134 : vector<512x128xi1>, vector<512x128xf32>
    %cst_100 = arith.constant dense<0.000000e+00> : vector<8x128xf32>
    %136 = tpu.matmul %6, %135, %cst_100 {dimension_numbers = #tpu.dot_dimension_numbers<[1], [0], [0], [1], [0, 0, 1, 1], [], []>} : vector<8x512xf32>, vector<512x128xf32>, vector<8x128xf32> -> vector<8x128xf32>
    %c11_101 = arith.constant 11 : index
    %c0_102 = arith.constant 0 : index
    %c0_103 = arith.constant 0 : index
    %137 = vector.load %arg5[%c11_101, %c0_102, %c0_103] : memref<16x8x8xf32, #tpu.memory_space<vmem>>, vector<1x8x8xf32>
    %138 = vector.shape_cast %137 : vector<1x8x8xf32> to vector<8x8xf32>
    %cst_104 = arith.constant dense<0.000000e+00> : vector<8x128xf32>
    %139 = tpu.matmul %138, %136, %cst_104 {dimension_numbers = #tpu.dot_dimension_numbers<[1], [0], [0], [1], [0, 0, 1, 1], [], []>} : vector<8x8xf32>, vector<8x128xf32>, vector<8x128xf32> -> vector<8x128xf32>
    %140 = arith.addf %129, %139 : vector<8x128xf32>
    %c12 = arith.constant 12 : index
    %c0_105 = arith.constant 0 : index
    %141 = vector.load %arg4[%c12, %c0_105] : memref<16x128xi32, #tpu.memory_space<vmem>>, vector<1x128xi32>
    %142 = vector.broadcast %141 : vector<1x128xi32> to vector<512x128xi32>
    %143 = arith.cmpi eq, %7, %142 : vector<512x128xi32>
    %cst_106 = arith.constant 1.000000e+00 : f32
    %cst_107 = arith.constant 0.000000e+00 : f32
    %144 = vector.broadcast %cst_106 : f32 to vector<512x128xf32>
    %145 = vector.broadcast %cst_107 : f32 to vector<512x128xf32>
    %146 = arith.select %143, %144, %145 : vector<512x128xi1>, vector<512x128xf32>
    %cst_108 = arith.constant dense<0.000000e+00> : vector<8x128xf32>
    %147 = tpu.matmul %6, %146, %cst_108 {dimension_numbers = #tpu.dot_dimension_numbers<[1], [0], [0], [1], [0, 0, 1, 1], [], []>} : vector<8x512xf32>, vector<512x128xf32>, vector<8x128xf32> -> vector<8x128xf32>
    %c12_109 = arith.constant 12 : index
    %c0_110 = arith.constant 0 : index
    %c0_111 = arith.constant 0 : index
    %148 = vector.load %arg5[%c12_109, %c0_110, %c0_111] : memref<16x8x8xf32, #tpu.memory_space<vmem>>, vector<1x8x8xf32>
    %149 = vector.shape_cast %148 : vector<1x8x8xf32> to vector<8x8xf32>
    %cst_112 = arith.constant dense<0.000000e+00> : vector<8x128xf32>
    %150 = tpu.matmul %149, %147, %cst_112 {dimension_numbers = #tpu.dot_dimension_numbers<[1], [0], [0], [1], [0, 0, 1, 1], [], []>} : vector<8x8xf32>, vector<8x128xf32>, vector<8x128xf32> -> vector<8x128xf32>
    %151 = arith.addf %140, %150 : vector<8x128xf32>
    %c13 = arith.constant 13 : index
    %c0_113 = arith.constant 0 : index
    %152 = vector.load %arg4[%c13, %c0_113] : memref<16x128xi32, #tpu.memory_space<vmem>>, vector<1x128xi32>
    %153 = vector.broadcast %152 : vector<1x128xi32> to vector<512x128xi32>
    %154 = arith.cmpi eq, %7, %153 : vector<512x128xi32>
    %cst_114 = arith.constant 1.000000e+00 : f32
    %cst_115 = arith.constant 0.000000e+00 : f32
    %155 = vector.broadcast %cst_114 : f32 to vector<512x128xf32>
    %156 = vector.broadcast %cst_115 : f32 to vector<512x128xf32>
    %157 = arith.select %154, %155, %156 : vector<512x128xi1>, vector<512x128xf32>
    %cst_116 = arith.constant dense<0.000000e+00> : vector<8x128xf32>
    %158 = tpu.matmul %6, %157, %cst_116 {dimension_numbers = #tpu.dot_dimension_numbers<[1], [0], [0], [1], [0, 0, 1, 1], [], []>} : vector<8x512xf32>, vector<512x128xf32>, vector<8x128xf32> -> vector<8x128xf32>
    %c13_117 = arith.constant 13 : index
    %c0_118 = arith.constant 0 : index
    %c0_119 = arith.constant 0 : index
    %159 = vector.load %arg5[%c13_117, %c0_118, %c0_119] : memref<16x8x8xf32, #tpu.memory_space<vmem>>, vector<1x8x8xf32>
    %160 = vector.shape_cast %159 : vector<1x8x8xf32> to vector<8x8xf32>
    %cst_120 = arith.constant dense<0.000000e+00> : vector<8x128xf32>
    %161 = tpu.matmul %160, %158, %cst_120 {dimension_numbers = #tpu.dot_dimension_numbers<[1], [0], [0], [1], [0, 0, 1, 1], [], []>} : vector<8x8xf32>, vector<8x128xf32>, vector<8x128xf32> -> vector<8x128xf32>
    %162 = arith.addf %151, %161 : vector<8x128xf32>
    %c14 = arith.constant 14 : index
    %c0_121 = arith.constant 0 : index
    %163 = vector.load %arg4[%c14, %c0_121] : memref<16x128xi32, #tpu.memory_space<vmem>>, vector<1x128xi32>
    %164 = vector.broadcast %163 : vector<1x128xi32> to vector<512x128xi32>
    %165 = arith.cmpi eq, %7, %164 : vector<512x128xi32>
    %cst_122 = arith.constant 1.000000e+00 : f32
    %cst_123 = arith.constant 0.000000e+00 : f32
    %166 = vector.broadcast %cst_122 : f32 to vector<512x128xf32>
    %167 = vector.broadcast %cst_123 : f32 to vector<512x128xf32>
    %168 = arith.select %165, %166, %167 : vector<512x128xi1>, vector<512x128xf32>
    %cst_124 = arith.constant dense<0.000000e+00> : vector<8x128xf32>
    %169 = tpu.matmul %6, %168, %cst_124 {dimension_numbers = #tpu.dot_dimension_numbers<[1], [0], [0], [1], [0, 0, 1, 1], [], []>} : vector<8x512xf32>, vector<512x128xf32>, vector<8x128xf32> -> vector<8x128xf32>
    %c14_125 = arith.constant 14 : index
    %c0_126 = arith.constant 0 : index
    %c0_127 = arith.constant 0 : index
    %170 = vector.load %arg5[%c14_125, %c0_126, %c0_127] : memref<16x8x8xf32, #tpu.memory_space<vmem>>, vector<1x8x8xf32>
    %171 = vector.shape_cast %170 : vector<1x8x8xf32> to vector<8x8xf32>
    %cst_128 = arith.constant dense<0.000000e+00> : vector<8x128xf32>
    %172 = tpu.matmul %171, %169, %cst_128 {dimension_numbers = #tpu.dot_dimension_numbers<[1], [0], [0], [1], [0, 0, 1, 1], [], []>} : vector<8x8xf32>, vector<8x128xf32>, vector<8x128xf32> -> vector<8x128xf32>
    %173 = arith.addf %162, %172 : vector<8x128xf32>
    %c15 = arith.constant 15 : index
    %c0_129 = arith.constant 0 : index
    %174 = vector.load %arg4[%c15, %c0_129] : memref<16x128xi32, #tpu.memory_space<vmem>>, vector<1x128xi32>
    %175 = vector.broadcast %174 : vector<1x128xi32> to vector<512x128xi32>
    %176 = arith.cmpi eq, %7, %175 : vector<512x128xi32>
    %cst_130 = arith.constant 1.000000e+00 : f32
    %cst_131 = arith.constant 0.000000e+00 : f32
    %177 = vector.broadcast %cst_130 : f32 to vector<512x128xf32>
    %178 = vector.broadcast %cst_131 : f32 to vector<512x128xf32>
    %179 = arith.select %176, %177, %178 : vector<512x128xi1>, vector<512x128xf32>
    %cst_132 = arith.constant dense<0.000000e+00> : vector<8x128xf32>
    %180 = tpu.matmul %6, %179, %cst_132 {dimension_numbers = #tpu.dot_dimension_numbers<[1], [0], [0], [1], [0, 0, 1, 1], [], []>} : vector<8x512xf32>, vector<512x128xf32>, vector<8x128xf32> -> vector<8x128xf32>
    %c15_133 = arith.constant 15 : index
    %c0_134 = arith.constant 0 : index
    %c0_135 = arith.constant 0 : index
    %181 = vector.load %arg5[%c15_133, %c0_134, %c0_135] : memref<16x8x8xf32, #tpu.memory_space<vmem>>, vector<1x8x8xf32>
    %182 = vector.shape_cast %181 : vector<1x8x8xf32> to vector<8x8xf32>
    %cst_136 = arith.constant dense<0.000000e+00> : vector<8x128xf32>
    %183 = tpu.matmul %182, %180, %cst_136 {dimension_numbers = #tpu.dot_dimension_numbers<[1], [0], [0], [1], [0, 0, 1, 1], [], []>} : vector<8x8xf32>, vector<8x128xf32>, vector<8x128xf32> -> vector<8x128xf32>
    %184 = arith.addf %173, %183 : vector<8x128xf32>
    %cst_137 = arith.constant 0.000000e+00 : f32
    %185 = vector.broadcast %cst_137 : f32 to vector<8x128xf32>
    %186 = arith.maximumf %184, %185 : vector<8x128xf32>
    %c0_138 = arith.constant 0 : index
    %c0_139 = arith.constant 0 : index
    %187 = vector.load %arg8[%c0_138, %c0_139] : memref<1x64xf32, #tpu.memory_space<vmem>>, vector<1x64xf32>
    %188 = vector.extract_strided_slice %186 {offsets = [0, 0], sizes = [1, 64], strides = [1, 1]} : vector<8x128xf32> to vector<1x64xf32>
    %c0_140 = arith.constant 0 : index
    %c0_141 = arith.constant 0 : index
    %c0_142 = arith.constant 0 : index
    %189 = vector.load %arg7[%c0_140, %c0_141, %c0_142] : memref<8x64x64xf32, #tpu.memory_space<vmem>>, vector<1x64x64xf32>
    %190 = vector.shape_cast %189 : vector<1x64x64xf32> to vector<64x64xf32>
    %cst_143 = arith.constant dense<0.000000e+00> : vector<1x64xf32>
    %191 = tpu.matmul %188, %190, %cst_143 {dimension_numbers = #tpu.dot_dimension_numbers<[1], [0], [0], [1], [0, 0, 1, 1], [], []>} : vector<1x64xf32>, vector<64x64xf32>, vector<1x64xf32> -> vector<1x64xf32>
    %192 = arith.addf %187, %191 : vector<1x64xf32>
    %193 = vector.extract_strided_slice %186 {offsets = [1, 0], sizes = [1, 64], strides = [1, 1]} : vector<8x128xf32> to vector<1x64xf32>
    %c1_144 = arith.constant 1 : index
    %c0_145 = arith.constant 0 : index
    %c0_146 = arith.constant 0 : index
    %194 = vector.load %arg7[%c1_144, %c0_145, %c0_146] : memref<8x64x64xf32, #tpu.memory_space<vmem>>, vector<1x64x64xf32>
    %195 = vector.shape_cast %194 : vector<1x64x64xf32> to vector<64x64xf32>
    %cst_147 = arith.constant dense<0.000000e+00> : vector<1x64xf32>
    %196 = tpu.matmul %193, %195, %cst_147 {dimension_numbers = #tpu.dot_dimension_numbers<[1], [0], [0], [1], [0, 0, 1, 1], [], []>} : vector<1x64xf32>, vector<64x64xf32>, vector<1x64xf32> -> vector<1x64xf32>
    %197 = arith.addf %192, %196 : vector<1x64xf32>
    %198 = vector.extract_strided_slice %186 {offsets = [2, 0], sizes = [1, 64], strides = [1, 1]} : vector<8x128xf32> to vector<1x64xf32>
    %c2_148 = arith.constant 2 : index
    %c0_149 = arith.constant 0 : index
    %c0_150 = arith.constant 0 : index
    %199 = vector.load %arg7[%c2_148, %c0_149, %c0_150] : memref<8x64x64xf32, #tpu.memory_space<vmem>>, vector<1x64x64xf32>
    %200 = vector.shape_cast %199 : vector<1x64x64xf32> to vector<64x64xf32>
    %cst_151 = arith.constant dense<0.000000e+00> : vector<1x64xf32>
    %201 = tpu.matmul %198, %200, %cst_151 {dimension_numbers = #tpu.dot_dimension_numbers<[1], [0], [0], [1], [0, 0, 1, 1], [], []>} : vector<1x64xf32>, vector<64x64xf32>, vector<1x64xf32> -> vector<1x64xf32>
    %202 = arith.addf %197, %201 : vector<1x64xf32>
    %203 = vector.extract_strided_slice %186 {offsets = [3, 0], sizes = [1, 64], strides = [1, 1]} : vector<8x128xf32> to vector<1x64xf32>
    %c3_152 = arith.constant 3 : index
    %c0_153 = arith.constant 0 : index
    %c0_154 = arith.constant 0 : index
    %204 = vector.load %arg7[%c3_152, %c0_153, %c0_154] : memref<8x64x64xf32, #tpu.memory_space<vmem>>, vector<1x64x64xf32>
    %205 = vector.shape_cast %204 : vector<1x64x64xf32> to vector<64x64xf32>
    %cst_155 = arith.constant dense<0.000000e+00> : vector<1x64xf32>
    %206 = tpu.matmul %203, %205, %cst_155 {dimension_numbers = #tpu.dot_dimension_numbers<[1], [0], [0], [1], [0, 0, 1, 1], [], []>} : vector<1x64xf32>, vector<64x64xf32>, vector<1x64xf32> -> vector<1x64xf32>
    %207 = arith.addf %202, %206 : vector<1x64xf32>
    %208 = vector.extract_strided_slice %186 {offsets = [4, 0], sizes = [1, 64], strides = [1, 1]} : vector<8x128xf32> to vector<1x64xf32>
    %c4_156 = arith.constant 4 : index
    %c0_157 = arith.constant 0 : index
    %c0_158 = arith.constant 0 : index
    %209 = vector.load %arg7[%c4_156, %c0_157, %c0_158] : memref<8x64x64xf32, #tpu.memory_space<vmem>>, vector<1x64x64xf32>
    %210 = vector.shape_cast %209 : vector<1x64x64xf32> to vector<64x64xf32>
    %cst_159 = arith.constant dense<0.000000e+00> : vector<1x64xf32>
    %211 = tpu.matmul %208, %210, %cst_159 {dimension_numbers = #tpu.dot_dimension_numbers<[1], [0], [0], [1], [0, 0, 1, 1], [], []>} : vector<1x64xf32>, vector<64x64xf32>, vector<1x64xf32> -> vector<1x64xf32>
    %212 = arith.addf %207, %211 : vector<1x64xf32>
    %213 = vector.extract_strided_slice %186 {offsets = [5, 0], sizes = [1, 64], strides = [1, 1]} : vector<8x128xf32> to vector<1x64xf32>
    %c5_160 = arith.constant 5 : index
    %c0_161 = arith.constant 0 : index
    %c0_162 = arith.constant 0 : index
    %214 = vector.load %arg7[%c5_160, %c0_161, %c0_162] : memref<8x64x64xf32, #tpu.memory_space<vmem>>, vector<1x64x64xf32>
    %215 = vector.shape_cast %214 : vector<1x64x64xf32> to vector<64x64xf32>
    %cst_163 = arith.constant dense<0.000000e+00> : vector<1x64xf32>
    %216 = tpu.matmul %213, %215, %cst_163 {dimension_numbers = #tpu.dot_dimension_numbers<[1], [0], [0], [1], [0, 0, 1, 1], [], []>} : vector<1x64xf32>, vector<64x64xf32>, vector<1x64xf32> -> vector<1x64xf32>
    %217 = arith.addf %212, %216 : vector<1x64xf32>
    %218 = vector.extract_strided_slice %186 {offsets = [6, 0], sizes = [1, 64], strides = [1, 1]} : vector<8x128xf32> to vector<1x64xf32>
    %c6_164 = arith.constant 6 : index
    %c0_165 = arith.constant 0 : index
    %c0_166 = arith.constant 0 : index
    %219 = vector.load %arg7[%c6_164, %c0_165, %c0_166] : memref<8x64x64xf32, #tpu.memory_space<vmem>>, vector<1x64x64xf32>
    %220 = vector.shape_cast %219 : vector<1x64x64xf32> to vector<64x64xf32>
    %cst_167 = arith.constant dense<0.000000e+00> : vector<1x64xf32>
    %221 = tpu.matmul %218, %220, %cst_167 {dimension_numbers = #tpu.dot_dimension_numbers<[1], [0], [0], [1], [0, 0, 1, 1], [], []>} : vector<1x64xf32>, vector<64x64xf32>, vector<1x64xf32> -> vector<1x64xf32>
    %222 = arith.addf %217, %221 : vector<1x64xf32>
    %223 = vector.extract_strided_slice %186 {offsets = [7, 0], sizes = [1, 64], strides = [1, 1]} : vector<8x128xf32> to vector<1x64xf32>
    %c7_168 = arith.constant 7 : index
    %c0_169 = arith.constant 0 : index
    %c0_170 = arith.constant 0 : index
    %224 = vector.load %arg7[%c7_168, %c0_169, %c0_170] : memref<8x64x64xf32, #tpu.memory_space<vmem>>, vector<1x64x64xf32>
    %225 = vector.shape_cast %224 : vector<1x64x64xf32> to vector<64x64xf32>
    %cst_171 = arith.constant dense<0.000000e+00> : vector<1x64xf32>
    %226 = tpu.matmul %223, %225, %cst_171 {dimension_numbers = #tpu.dot_dimension_numbers<[1], [0], [0], [1], [0, 0, 1, 1], [], []>} : vector<1x64xf32>, vector<64x64xf32>, vector<1x64xf32> -> vector<1x64xf32>
    %227 = arith.addf %222, %226 : vector<1x64xf32>
    %cst_172 = arith.constant 0.000000e+00 : f32
    %228 = vector.broadcast %cst_172 : f32 to vector<1x64xf32>
    %229 = arith.maximumf %227, %228 : vector<1x64xf32>
    %c0_173 = arith.constant 0 : index
    %c0_174 = arith.constant 0 : index
    %230 = vector.load %arg8[%c0_173, %c0_174] : memref<1x64xf32, #tpu.memory_space<vmem>>, vector<1x64xf32>
    %231 = vector.extract_strided_slice %186 {offsets = [0, 64], sizes = [1, 64], strides = [1, 1]} : vector<8x128xf32> to vector<1x64xf32>
    %c0_175 = arith.constant 0 : index
    %c0_176 = arith.constant 0 : index
    %c0_177 = arith.constant 0 : index
    %232 = vector.load %arg7[%c0_175, %c0_176, %c0_177] : memref<8x64x64xf32, #tpu.memory_space<vmem>>, vector<1x64x64xf32>
    %233 = vector.shape_cast %232 : vector<1x64x64xf32> to vector<64x64xf32>
    %cst_178 = arith.constant dense<0.000000e+00> : vector<1x64xf32>
    %234 = tpu.matmul %231, %233, %cst_178 {dimension_numbers = #tpu.dot_dimension_numbers<[1], [0], [0], [1], [0, 0, 1, 1], [], []>} : vector<1x64xf32>, vector<64x64xf32>, vector<1x64xf32> -> vector<1x64xf32>
    %235 = arith.addf %230, %234 : vector<1x64xf32>
    %236 = vector.extract_strided_slice %186 {offsets = [1, 64], sizes = [1, 64], strides = [1, 1]} : vector<8x128xf32> to vector<1x64xf32>
    %c1_179 = arith.constant 1 : index
    %c0_180 = arith.constant 0 : index
    %c0_181 = arith.constant 0 : index
    %237 = vector.load %arg7[%c1_179, %c0_180, %c0_181] : memref<8x64x64xf32, #tpu.memory_space<vmem>>, vector<1x64x64xf32>
    %238 = vector.shape_cast %237 : vector<1x64x64xf32> to vector<64x64xf32>
    %cst_182 = arith.constant dense<0.000000e+00> : vector<1x64xf32>
    %239 = tpu.matmul %236, %238, %cst_182 {dimension_numbers = #tpu.dot_dimension_numbers<[1], [0], [0], [1], [0, 0, 1, 1], [], []>} : vector<1x64xf32>, vector<64x64xf32>, vector<1x64xf32> -> vector<1x64xf32>
    %240 = arith.addf %235, %239 : vector<1x64xf32>
    %241 = vector.extract_strided_slice %186 {offsets = [2, 64], sizes = [1, 64], strides = [1, 1]} : vector<8x128xf32> to vector<1x64xf32>
    %c2_183 = arith.constant 2 : index
    %c0_184 = arith.constant 0 : index
    %c0_185 = arith.constant 0 : index
    %242 = vector.load %arg7[%c2_183, %c0_184, %c0_185] : memref<8x64x64xf32, #tpu.memory_space<vmem>>, vector<1x64x64xf32>
    %243 = vector.shape_cast %242 : vector<1x64x64xf32> to vector<64x64xf32>
    %cst_186 = arith.constant dense<0.000000e+00> : vector<1x64xf32>
    %244 = tpu.matmul %241, %243, %cst_186 {dimension_numbers = #tpu.dot_dimension_numbers<[1], [0], [0], [1], [0, 0, 1, 1], [], []>} : vector<1x64xf32>, vector<64x64xf32>, vector<1x64xf32> -> vector<1x64xf32>
    %245 = arith.addf %240, %244 : vector<1x64xf32>
    %246 = vector.extract_strided_slice %186 {offsets = [3, 64], sizes = [1, 64], strides = [1, 1]} : vector<8x128xf32> to vector<1x64xf32>
    %c3_187 = arith.constant 3 : index
    %c0_188 = arith.constant 0 : index
    %c0_189 = arith.constant 0 : index
    %247 = vector.load %arg7[%c3_187, %c0_188, %c0_189] : memref<8x64x64xf32, #tpu.memory_space<vmem>>, vector<1x64x64xf32>
    %248 = vector.shape_cast %247 : vector<1x64x64xf32> to vector<64x64xf32>
    %cst_190 = arith.constant dense<0.000000e+00> : vector<1x64xf32>
    %249 = tpu.matmul %246, %248, %cst_190 {dimension_numbers = #tpu.dot_dimension_numbers<[1], [0], [0], [1], [0, 0, 1, 1], [], []>} : vector<1x64xf32>, vector<64x64xf32>, vector<1x64xf32> -> vector<1x64xf32>
    %250 = arith.addf %245, %249 : vector<1x64xf32>
    %251 = vector.extract_strided_slice %186 {offsets = [4, 64], sizes = [1, 64], strides = [1, 1]} : vector<8x128xf32> to vector<1x64xf32>
    %c4_191 = arith.constant 4 : index
    %c0_192 = arith.constant 0 : index
    %c0_193 = arith.constant 0 : index
    %252 = vector.load %arg7[%c4_191, %c0_192, %c0_193] : memref<8x64x64xf32, #tpu.memory_space<vmem>>, vector<1x64x64xf32>
    %253 = vector.shape_cast %252 : vector<1x64x64xf32> to vector<64x64xf32>
    %cst_194 = arith.constant dense<0.000000e+00> : vector<1x64xf32>
    %254 = tpu.matmul %251, %253, %cst_194 {dimension_numbers = #tpu.dot_dimension_numbers<[1], [0], [0], [1], [0, 0, 1, 1], [], []>} : vector<1x64xf32>, vector<64x64xf32>, vector<1x64xf32> -> vector<1x64xf32>
    %255 = arith.addf %250, %254 : vector<1x64xf32>
    %256 = vector.extract_strided_slice %186 {offsets = [5, 64], sizes = [1, 64], strides = [1, 1]} : vector<8x128xf32> to vector<1x64xf32>
    %c5_195 = arith.constant 5 : index
    %c0_196 = arith.constant 0 : index
    %c0_197 = arith.constant 0 : index
    %257 = vector.load %arg7[%c5_195, %c0_196, %c0_197] : memref<8x64x64xf32, #tpu.memory_space<vmem>>, vector<1x64x64xf32>
    %258 = vector.shape_cast %257 : vector<1x64x64xf32> to vector<64x64xf32>
    %cst_198 = arith.constant dense<0.000000e+00> : vector<1x64xf32>
    %259 = tpu.matmul %256, %258, %cst_198 {dimension_numbers = #tpu.dot_dimension_numbers<[1], [0], [0], [1], [0, 0, 1, 1], [], []>} : vector<1x64xf32>, vector<64x64xf32>, vector<1x64xf32> -> vector<1x64xf32>
    %260 = arith.addf %255, %259 : vector<1x64xf32>
    %261 = vector.extract_strided_slice %186 {offsets = [6, 64], sizes = [1, 64], strides = [1, 1]} : vector<8x128xf32> to vector<1x64xf32>
    %c6_199 = arith.constant 6 : index
    %c0_200 = arith.constant 0 : index
    %c0_201 = arith.constant 0 : index
    %262 = vector.load %arg7[%c6_199, %c0_200, %c0_201] : memref<8x64x64xf32, #tpu.memory_space<vmem>>, vector<1x64x64xf32>
    %263 = vector.shape_cast %262 : vector<1x64x64xf32> to vector<64x64xf32>
    %cst_202 = arith.constant dense<0.000000e+00> : vector<1x64xf32>
    %264 = tpu.matmul %261, %263, %cst_202 {dimension_numbers = #tpu.dot_dimension_numbers<[1], [0], [0], [1], [0, 0, 1, 1], [], []>} : vector<1x64xf32>, vector<64x64xf32>, vector<1x64xf32> -> vector<1x64xf32>
    %265 = arith.addf %260, %264 : vector<1x64xf32>
    %266 = vector.extract_strided_slice %186 {offsets = [7, 64], sizes = [1, 64], strides = [1, 1]} : vector<8x128xf32> to vector<1x64xf32>
    %c7_203 = arith.constant 7 : index
    %c0_204 = arith.constant 0 : index
    %c0_205 = arith.constant 0 : index
    %267 = vector.load %arg7[%c7_203, %c0_204, %c0_205] : memref<8x64x64xf32, #tpu.memory_space<vmem>>, vector<1x64x64xf32>
    %268 = vector.shape_cast %267 : vector<1x64x64xf32> to vector<64x64xf32>
    %cst_206 = arith.constant dense<0.000000e+00> : vector<1x64xf32>
    %269 = tpu.matmul %266, %268, %cst_206 {dimension_numbers = #tpu.dot_dimension_numbers<[1], [0], [0], [1], [0, 0, 1, 1], [], []>} : vector<1x64xf32>, vector<64x64xf32>, vector<1x64xf32> -> vector<1x64xf32>
    %270 = arith.addf %265, %269 : vector<1x64xf32>
    %cst_207 = arith.constant 0.000000e+00 : f32
    %271 = vector.broadcast %cst_207 : f32 to vector<1x64xf32>
    %272 = arith.maximumf %270, %271 : vector<1x64xf32>
    %273 = tpu.concatenate %229, %272 in 0 : vector<1x64xf32>, vector<1x64xf32> -> vector<2x64xf32>
    %c0_208 = arith.constant 0 : index
    %c0_209 = arith.constant 0 : index
    %274 = vector.load %arg9[%c0_208, %c0_209] : memref<64x128xf32, #tpu.memory_space<vmem>>, vector<64x128xf32>
    %cst_210 = arith.constant dense<0.000000e+00> : vector<2x128xf32>
    %275 = tpu.matmul %273, %274, %cst_210 {dimension_numbers = #tpu.dot_dimension_numbers<[1], [0], [0], [1], [0, 0, 1, 1], [], []>} : vector<2x64xf32>, vector<64x128xf32>, vector<2x128xf32> -> vector<2x128xf32>
    %c0_211 = arith.constant 0 : index
    %c0_212 = arith.constant 0 : index
    %276 = vector.load %arg10[%c0_211, %c0_212] : memref<2x128xf32, #tpu.memory_space<vmem>>, vector<2x128xf32>
    %277 = arith.addf %275, %276 : vector<2x128xf32>
    %c0_213 = arith.constant 0 : index
    %c0_214 = arith.constant 0 : index
    %278 = vector.load %arg11[%c0_213, %c0_214] : memref<2x128xf32, #tpu.memory_space<vmem>>, vector<2x128xf32>
    tpu.vector_store %arg11[%c0_213, %c0_214], %277 {strides = array<i32>} : memref<2x128xf32, #tpu.memory_space<vmem>>, vector<2x128xf32>,
    return
  }
  func.func @transform_0(%arg0: i32) -> (i32, i32) {
    %c0_i32 = arith.constant 0 : i32
    %c0_i32_0 = arith.constant 0 : i32
    %c0_i32_1 = arith.constant 0 : i32
    return %c0_i32, %c0_i32_0 : i32, i32
  }
  func.func @transform_1(%arg0: i32) -> (i32, i32) {
    %c0_i32 = arith.constant 0 : i32
    %c0_i32_0 = arith.constant 0 : i32
    %c0_i32_1 = arith.constant 0 : i32
    return %c0_i32, %c0_i32_0 : i32, i32
  }
  func.func @transform_2(%arg0: i32) -> (i32, i32) {
    %c0_i32 = arith.constant 0 : i32
    %c0_i32_0 = arith.constant 0 : i32
    %c0_i32_1 = arith.constant 0 : i32
    return %c0_i32, %c0_i32_0 : i32, i32
  }
  func.func @transform_3(%arg0: i32) -> (i32, i32) {
    %c0_i32 = arith.constant 0 : i32
    %c0_i32_0 = arith.constant 0 : i32
    %c0_i32_1 = arith.constant 0 : i32
    return %c0_i32, %c0_i32_0 : i32, i32
  }
  func.func @transform_4(%arg0: i32) -> (i32, i32, i32) {
    %c0_i32 = arith.constant 0 : i32
    %c0_i32_0 = arith.constant 0 : i32
    %c0_i32_1 = arith.constant 0 : i32
    %c0_i32_2 = arith.constant 0 : i32
    return %c0_i32, %c0_i32_0, %c0_i32_1 : i32, i32, i32
  }
  func.func @transform_5(%arg0: i32) -> (i32, i32) {
    %c0_i32 = arith.constant 0 : i32
    %c0_i32_0 = arith.constant 0 : i32
    %c0_i32_1 = arith.constant 0 : i32
    return %c0_i32, %c0_i32_0 : i32, i32
  }
  func.func @transform_6(%arg0: i32) -> (i32, i32, i32) {
    %c0_i32 = arith.constant 0 : i32
    %c0_i32_0 = arith.constant 0 : i32
    %c0_i32_1 = arith.constant 0 : i32
    %c0_i32_2 = arith.constant 0 : i32
    return %c0_i32, %c0_i32_0, %c0_i32_1 : i32, i32, i32
  }
  func.func @transform_7(%arg0: i32) -> (i32, i32) {
    %c0_i32 = arith.constant 0 : i32
    %c0_i32_0 = arith.constant 0 : i32
    %c0_i32_1 = arith.constant 0 : i32
    return %c0_i32, %c0_i32_0 : i32, i32
  }
  func.func @transform_8(%arg0: i32) -> (i32, i32) {
    %c0_i32 = arith.constant 0 : i32
    %c0_i32_0 = arith.constant 0 : i32
    %c0_i32_1 = arith.constant 0 : i32
    return %c0_i32, %c0_i32_0 : i32, i32
  }
  func.func @transform_9(%arg0: i32) -> (i32, i32) {
    %c0_i32 = arith.constant 0 : i32
    %c0_i32_0 = arith.constant 0 : i32
    %c0_i32_1 = arith.constant 0 : i32
    return %c0_i32, %c0_i32_0 : i32, i32
  }
  func.func @transform_10(%arg0: i32) -> (i32, i32) {
    %c0_i32 = arith.constant 0 : i32
    %c0_i32_0 = arith.constant 0 : i32
    %c0_i32_1 = arith.constant 0 : i32
    return %c0_i32, %c0_i32_0 : i32, i32
  }
}

</mosaic_0001>

<llo_original>
// kernel: forward.1
$region0: #{forward.1}
  #allocation0 [shape = 'u32[]', space=smem, size = 0x4, offset = 0x4, fixed_abs, tag = 'smem constant byte address 0x4 - core index']
  #allocation1 [shape = 'u32[144,128]{1,0:T(1,128)}', space=vmem, size = 0x12000, scoped, tag = 'internal scratch']
  %s0 = inlined_call_operand.vmem [shape: f32[16,512], index: 0, kind: input, shape index: {}]
  %s1 = inlined_call_operand.vmem [shape: f32[8,16], index: 1, kind: input, shape index: {}]
  %s2 = inlined_call_operand.vmem [shape: f32[8,512], index: 2, kind: input, shape index: {}]
  %s3 = inlined_call_operand.vmem [shape: s32[16,128], index: 3, kind: input, shape index: {}]
  %s4 = inlined_call_operand.vmem [shape: f32[16,8,8], index: 4, kind: input, shape index: {}]
  %s5 = inlined_call_operand.vmem [shape: f32[8,128], index: 5, kind: input, shape index: {}]
  %s6 = inlined_call_operand.vmem [shape: f32[8,64,64], index: 6, kind: input, shape index: {}]
  %s7 = inlined_call_operand.vmem [shape: f32[1,64], index: 7, kind: input, shape index: {}]
  %s8 = inlined_call_operand.vmem [shape: f32[64,128], index: 8, kind: input, shape index: {}]
  %s9 = inlined_call_operand.vmem [shape: f32[2,128], index: 9, kind: input, shape index: {}]
  %s10 = inlined_call_operand.hbm [shape: f32[2,128], index: 10, kind: output, shape index: {}]
  %s11 = sld [smem:[#allocation0]]
  $region50: #{forward.1} parent=0
    _
  %s13 = ssub.s32 1, %s11
  %s14 = scalar_select 0, %s13, %s11
  $region1: #{forward.1} parent=0
    #allocation2 [shape = 'u8[1024]{0}', space=vmem, size = 0x400, scoped, tag = 'output window, operand 0, single buffered']
    #allocation3 [shape = 's32[1]{0}', space=sflag, size = 0x4, scoped, tag = 'scoped memory for forward.1']
    %15 = vsyncpa [#allocation3], 0
    // Predicated region
    $region2: #{forward.1} parent=1 // pred_check
      _
    $region3: #{forward.1} parent=1 // pred_check_branch
      %17 = sbr.rel (0) target = $region5
    $region4: #{forward.1} parent=1 // pred_region
      _
    $region5: #{forward.1} parent=1 // pred_fallthru
      _
    // Predicated region
    $region6: #{forward.1} parent=1 // pred_check
      _
    $region7: #{forward.1} parent=1 // pred_check_branch
      %19 = sbr.rel (0) target = $region9
    $region8: #{forward.1} parent=1 // pred_region
      _
    $region9: #{forward.1} parent=1 // pred_fallthru
      _
    // Predicated region
    $region10: #{forward.1} parent=1 // pred_check
      _
    $region11: #{forward.1} parent=1 // pred_check_branch
      %21 = sbr.rel (0) target = $region13
    $region12: #{forward.1} parent=1 // pred_region
      _
    $region13: #{forward.1} parent=1 // pred_fallthru
      _
    // Predicated region
    $region14: #{forward.1} parent=1 // pred_check
      _
    $region15: #{forward.1} parent=1 // pred_check_branch
      %23 = sbr.rel (0) target = $region17
    $region16: #{forward.1} parent=1 // pred_region
      _
    $region17: #{forward.1} parent=1 // pred_fallthru
      _
    // Predicated region
    $region18: #{forward.1} parent=1 // pred_check
      _
    $region19: #{forward.1} parent=1 // pred_check_branch
      %25 = sbr.rel (0) target = $region21
    $region20: #{forward.1} parent=1 // pred_region
      _
    $region21: #{forward.1} parent=1 // pred_fallthru
      _
    // Predicated region
    $region22: #{forward.1} parent=1 // pred_check
      _
    $region23: #{forward.1} parent=1 // pred_check_branch
      %27 = sbr.rel (0) target = $region25
    $region24: #{forward.1} parent=1 // pred_region
      _
    $region25: #{forward.1} parent=1 // pred_fallthru
      _
    // Predicated region
    $region26: #{forward.1} parent=1 // pred_check
      _
    $region27: #{forward.1} parent=1 // pred_check_branch
      %29 = sbr.rel (0) target = $region29
    $region28: #{forward.1} parent=1 // pred_region
      _
    $region29: #{forward.1} parent=1 // pred_fallthru
      _
    // Predicated region
    $region30: #{forward.1} parent=1 // pred_check
      _
    $region31: #{forward.1} parent=1 // pred_check_branch
      %31 = sbr.rel (0) target = $region33
    $region32: #{forward.1} parent=1 // pred_region
      _
    $region33: #{forward.1} parent=1 // pred_fallthru
      _
    // Predicated region
    $region34: #{forward.1} parent=1 // pred_check
      _
    $region35: #{forward.1} parent=1 // pred_check_branch
      %33 = sbr.rel (0) target = $region37
    $region36: #{forward.1} parent=1 // pred_region
      _
    $region37: #{forward.1} parent=1 // pred_fallthru
      _
    // Predicated region
    $region38: #{forward.1} parent=1 // pred_check
      _
    $region39: #{forward.1} parent=1 // pred_check_branch
      %35 = sbr.rel (0) target = $region41
    $region40: #{forward.1} parent=1 // pred_region
      _
    $region41: #{forward.1} parent=1 // pred_fallthru
      _
    %v36 = vld [vmem:[%s1] sm:$0xff]
    %v37 = vld [vmem:[%s0] sm:$0xff]
    %v38 = vld [vmem:[%s0 + $0x8] sm:$0xff]
    %v39 = vld [vmem:[%s0 + $0x10] sm:$0xff]
    %v40 = vld [vmem:[%s0 + $0x18] sm:$0xff]
    %v41 = vld [vmem:[%s0 + $0x20] sm:$0xff]
    %v42 = vld [vmem:[%s0 + $0x28] sm:$0xff]
    %v43 = vld [vmem:[%s0 + $0x30] sm:$0xff]
    %v44 = vld [vmem:[%s0 + $0x38] sm:$0xff]
    %v45 = vld [vmem:[%s2] sm:$0xff]
    %v46 = vld [vmem:[%s2 + $0x8] sm:$0xff]
    %v47 = vld [vmem:[%s2 + $0x10] sm:$0xff]
    %v48 = vld [vmem:[%s2 + $0x18] sm:$0xff]
    %vm49 = vcmask 130048
    %v51 = vsel %vm49, %v36, 0
    %53 = vmatprep.subr.mxu0 0.0
    %54 = vmatpush1.msra.mxu0 0.0
    %55 = vmatprep.subr.mxu0 0.0
    %56 = vmatpush1.msra.mxu0 0.0
    %57 = vmatprep.subr.mxu0 0.0
    %58 = vmatpush1.msra.mxu0 0.0
    %59 = vmatprep.subr.mxu0 0.0
    %60 = vmatpush1.msra.mxu0 0.0
    %61 = vmatprep.subr.mxu0 0.0
    %62 = vmatpush1.msra.mxu0 0.0
    %63 = vmatprep.subr.mxu0 0.0
    %64 = vmatpush1.msra.mxu0 0.0
    %65 = vmatprep.subr.mxu0 0.0
    %66 = vmatpush1.msra.mxu0 0.0
    %67 = vmatprep.subr.mxu0 0.0
    %68 = vmatpush1.msra.mxu0 0.0
    %69 = vmatprep.subr.mxu0 0.0
    %70 = vmatpush1.msra.mxu0 0.0
    %71 = vmatprep.subr.mxu0 0.0
    %72 = vmatpush1.msra.mxu0 0.0
    %73 = vmatprep.subr.mxu0 0.0
    %74 = vmatpush1.msra.mxu0 0.0
    %75 = vmatprep.subr.mxu0 0.0
    %76 = vmatpush1.msra.mxu0 0.0
    %77 = vmatprep.subr.mxu0 0.0
    %78 = vmatpush1.msra.mxu0 0.0
    %79 = vmatprep.subr.mxu0 0.0
    %80 = vmatpush1.msra.mxu0 0.0
    %81 = vmatprep.subr.mxu0 %v42
    %82 = vmatpush1.msra.mxu0 %v41
    %83 = vmatprep.subr.mxu0 %v38
    %84 = vmatpush1.msra.mxu0 %v37
    %85 = vmatprep.subr.mxu0 0.0
    %86 = vmatpush2.msra.mxu0 0.0
    %87 = vmatprep.subr.mxu0 0.0
    %88 = vmatpush2.msra.mxu0 0.0
    %89 = vmatprep.subr.mxu0 0.0
    %90 = vmatpush2.msra.mxu0 0.0
    %91 = vmatprep.subr.mxu0 0.0
    %92 = vmatpush2.msra.mxu0 0.0
    %93 = vmatprep.subr.mxu0 0.0
    %94 = vmatpush2.msra.mxu0 0.0
    %95 = vmatprep.subr.mxu0 0.0
    %96 = vmatpush2.msra.mxu0 0.0
    %97 = vmatprep.subr.mxu0 0.0
    %98 = vmatpush2.msra.mxu0 0.0
    %99 = vmatprep.subr.mxu0 0.0
    %100 = vmatpush2.msra.mxu0 0.0
    %101 = vmatprep.subr.mxu0 0.0
    %102 = vmatpush2.msra.mxu0 0.0
    %103 = vmatprep.subr.mxu0 0.0
    %104 = vmatpush2.msra.mxu0 0.0
    %105 = vmatprep.subr.mxu0 0.0
    %106 = vmatpush2.msra.mxu0 0.0
    %107 = vmatprep.subr.mxu0 0.0
    %108 = vmatpush2.msra.mxu0 0.0
    %109 = vmatprep.subr.mxu0 0.0
    %110 = vmatpush2.msra.mxu0 0.0
    %111 = vmatprep.subr.mxu0 0.0
    %112 = vmatpush2.msra.mxu0 0.0
    %113 = vmatprep.subr.mxu0 0.0
    %114 = vmatpush2.msra.mxu0 0.0
    %115 = vmatprep.subr.mxu0 0.0
    %116 = vmatpush2.msra.mxu0 0.0
    %117 = vmatprep.mubr.f32.mxu0 0.0
    %118 = vmatmul.mubr.f32.gmra.mxu0 %v51
    %v119 = vpop.f32.mrf.mxu0
    %v120 = vadd.f32 %v45, %v119
    %v121 = vpop.f32.mrf.mxu0
    %v122 = vadd.f32 %v46, %v121
    %123 = vdwg.mxu0
    %124 = vmatprep.subr.mxu0 0.0
    %125 = vmatpush1.msra.mxu0 0.0
    %126 = vmatprep.subr.mxu0 0.0
    %127 = vmatpush1.msra.mxu0 0.0
    %128 = vmatprep.subr.mxu0 0.0
    %129 = vmatpush1.msra.mxu0 0.0
    %130 = vmatprep.subr.mxu0 0.0
    %131 = vmatpush1.msra.mxu0 0.0
    %132 = vmatprep.subr.mxu0 0.0
    %133 = vmatpush1.msra.mxu0 0.0
    %134 = vmatprep.subr.mxu0 0.0
    %135 = vmatpush1.msra.mxu0 0.0
    %136 = vmatprep.subr.mxu0 0.0
    %137 = vmatpush1.msra.mxu0 0.0
    %138 = vmatprep.subr.mxu0 0.0
    %139 = vmatpush1.msra.mxu0 0.0
    %140 = vmatprep.subr.mxu0 0.0
    %141 = vmatpush1.msra.mxu0 0.0
    %142 = vmatprep.subr.mxu0 0.0
    %143 = vmatpush1.msra.mxu0 0.0
    %144 = vmatprep.subr.mxu0 0.0
    %145 = vmatpush1.msra.mxu0 0.0
    %146 = vmatprep.subr.mxu0 0.0
    %147 = vmatpush1.msra.mxu0 0.0
    %148 = vmatprep.subr.mxu0 0.0
    %149 = vmatpush1.msra.mxu0 0.0
    %150 = vmatprep.subr.mxu0 0.0
    %151 = vmatpush1.msra.mxu0 0.0
    %152 = vmatprep.subr.mxu0 %v44
    %153 = vmatpush1.msra.mxu0 %v43
    %154 = vmatprep.subr.mxu0 %v40
    %155 = vmatpush1.msra.mxu0 %v39
    %156 = vmatprep.subr.mxu0 0.0
    %157 = vmatpush2.msra.mxu0 0.0
    %158 = vmatprep.subr.mxu0 0.0
    %159 = vmatpush2.msra.mxu0 0.0
    %160 = vmatprep.subr.mxu0 0.0
    %161 = vmatpush2.msra.mxu0 0.0
    %162 = vmatprep.subr.mxu0 0.0
    %163 = vmatpush2.msra.mxu0 0.0
    %164 = vmatprep.subr.mxu0 0.0
    %165 = vmatpush2.msra.mxu0 0.0
    %166 = vmatprep.subr.mxu0 0.0
    %167 = vmatpush2.msra.mxu0 0.0
    %168 = vmatprep.subr.mxu0 0.0
    %169 = vmatpush2.msra.mxu0 0.0
    %170 = vmatprep.subr.mxu0 0.0
    %171 = vmatpush2.msra.mxu0 0.0
    %172 = vmatprep.subr.mxu0 0.0
    %173 = vmatpush2.msra.mxu0 0.0
    %174 = vmatprep.subr.mxu0 0.0
    %175 = vmatpush2.msra.mxu0 0.0
    %176 = vmatprep.subr.mxu0 0.0
    %177 = vmatpush2.msra.mxu0 0.0
    %178 = vmatprep.subr.mxu0 0.0
    %179 = vmatpush2.msra.mxu0 0.0
    %180 = vmatprep.subr.mxu0 0.0
    %181 = vmatpush2.msra.mxu0 0.0
    %182 = vmatprep.subr.mxu0 0.0
    %183 = vmatpush2.msra.mxu0 0.0
    %184 = vmatprep.subr.mxu0 0.0
    %185 = vmatpush2.msra.mxu0 0.0
    %186 = vmatprep.subr.mxu0 0.0
    %187 = vmatpush2.msra.mxu0 0.0
    %188 = vmatprep.mubr.f32.mxu0 0.0
    %189 = vmatmul.mubr.f32.gmra.mxu0 %v51
    %v190 = vpop.f32.mrf.mxu0
    %v191 = vadd.f32 %v47, %v190
    %v192 = vpop.f32.mrf.mxu0
    %v193 = vadd.f32 %v48, %v192
    %194 = vdwg.mxu0
    %v195 = vmax.f32 %v120, 0.0
    %v196 = vmax.f32 %v122, 0.0
    %v197 = vmax.f32 %v191, 0.0
    %v198 = vmax.f32 %v193, 0.0
    %v199 = vlaneseq
    %v200 = vshrl.u32 %v199, 7
    %v201 = vadd.s32 %v200, 8
    %v202 = vadd.s32 %v200, 16
    %v203 = vadd.s32 %v200, 24
    %v204 = vadd.s32 %v200, 32
    %v205 = vadd.s32 %v200, 40
    %v206 = vadd.s32 %v200, 48
    %v207 = vadd.s32 %v200, 56
    %v208 = vadd.s32 %v200, 64
    %v209 = vadd.s32 %v200, 72
    %v210 = vadd.s32 %v200, 80
    %v211 = vadd.s32 %v200, 88
    %v212 = vadd.s32 %v200, 96
    %v213 = vadd.s32 %v200, 104
    %v214 = vadd.s32 %v200, 112
    %v215 = vadd.s32 %v200, 120
    %v216 = vadd.s32 %v200, 128
    %v217 = vadd.s32 %v200, 136
    %v218 = vadd.s32 %v200, 144
    %v219 = vadd.s32 %v200, 152
    %v220 = vadd.s32 %v200, 160
    %v221 = vadd.s32 %v200, 168
    %v222 = vadd.s32 %v200, 176
    %v223 = vadd.s32 %v200, 184
    %v224 = vadd.s32 %v200, 192
    %v225 = vadd.s32 %v200, 200
    %v226 = vadd.s32 %v200, 208
    %v227 = vadd.s32 %v200, 216
    %v228 = vadd.s32 %v200, 224
    %v229 = vadd.s32 %v200, 232
    %v230 = vadd.s32 %v200, 240
    %v231 = vadd.s32 %v200, 248
    %v232 = vadd.s32 %v200, 256
    %v233 = vadd.s32 %v200, 264
    %v234 = vadd.s32 %v200, 272
    %v235 = vadd.s32 %v200, 280
    %v236 = vadd.s32 %v200, 288
    %v237 = vadd.s32 %v200, 296
    %v238 = vadd.s32 %v200, 304
    %v239 = vadd.s32 %v200, 312
    %v240 = vadd.s32 %v200, 320
    %v241 = vadd.s32 %v200, 328
    %v242 = vadd.s32 %v200, 336
    %v243 = vadd.s32 %v200, 344
    %v244 = vadd.s32 %v200, 352
    %v245 = vadd.s32 %v200, 360
    %v246 = vadd.s32 %v200, 368
    %v247 = vadd.s32 %v200, 376
    %v248 = vadd.s32 %v200, 384
    %v249 = vadd.s32 %v200, 392
    %v250 = vadd.s32 %v200, 400
    %v251 = vadd.s32 %v200, 408
    %v252 = vadd.s32 %v200, 416
    %v253 = vadd.s32 %v200, 424
    %v254 = vadd.s32 %v200, 432
    %v255 = vadd.s32 %v200, 440
    %v256 = vadd.s32 %v200, 448
    %v257 = vadd.s32 %v200, 456
    %v258 = vadd.s32 %v200, 464
    %v259 = vadd.s32 %v200, 472
    %v260 = vadd.s32 %v200, 480
    %v261 = vadd.s32 %v200, 488
    %v262 = vadd.s32 %v200, 496
    %v263 = vadd.s32 %v200, 504
    %v264 = vld [vmem:[%s5] sm:$0xff]
    %v265 = vld [vmem:[%s3] sm:$0x1]
    %v266 = vlaneseq
    %v267 = vshrl.u32 %v266, 7
    %v268 = vsub.s32 0, %v267
    %v269 = vrot.slane %v265, %v268
    %vm270 = vcmp.eq.s32.totalorder %v200, %v269
    %vm271 = vcmp.eq.s32.totalorder %v201, %v269
    %vm272 = vcmp.eq.s32.totalorder %v202, %v269
    %vm273 = vcmp.eq.s32.totalorder %v203, %v269
    %vm274 = vcmp.eq.s32.totalorder %v204, %v269
    %vm275 = vcmp.eq.s32.totalorder %v205, %v269
    %vm276 = vcmp.eq.s32.totalorder %v206, %v269
    %vm277 = vcmp.eq.s32.totalorder %v207, %v269
    %vm278 = vcmp.eq.s32.totalorder %v208, %v269
    %vm279 = vcmp.eq.s32.totalorder %v209, %v269
    %vm280 = vcmp.eq.s32.totalorder %v210, %v269
    %vm281 = vcmp.eq.s32.totalorder %v211, %v269
    %vm282 = vcmp.eq.s32.totalorder %v212, %v269
    %vm283 = vcmp.eq.s32.totalorder %v213, %v269
    %vm284 = vcmp.eq.s32.totalorder %v214, %v269
    %vm285 = vcmp.eq.s32.totalorder %v215, %v269
    %vm286 = vcmp.eq.s32.totalorder %v216, %v269
    %vm287 = vcmp.eq.s32.totalorder %v217, %v269
    %vm288 = vcmp.eq.s32.totalorder %v218, %v269
    %vm289 = vcmp.eq.s32.totalorder %v219, %v269
    %vm290 = vcmp.eq.s32.totalorder %v220, %v269
    %vm291 = vcmp.eq.s32.totalorder %v221, %v269
    %vm292 = vcmp.eq.s32.totalorder %v222, %v269
    %vm293 = vcmp.eq.s32.totalorder %v223, %v269
    %vm294 = vcmp.eq.s32.totalorder %v224, %v269
    %vm295 = vcmp.eq.s32.totalorder %v225, %v269
    %vm296 = vcmp.eq.s32.totalorder %v226, %v269
    %vm297 = vcmp.eq.s32.totalorder %v227, %v269
    %vm298 = vcmp.eq.s32.totalorder %v228, %v269
    %vm299 = vcmp.eq.s32.totalorder %v229, %v269
    %vm300 = vcmp.eq.s32.totalorder %v230, %v269
    %vm301 = vcmp.eq.s32.totalorder %v231, %v269
    %vm302 = vcmp.eq.s32.totalorder %v232, %v269
    %vm303 = vcmp.eq.s32.totalorder %v233, %v269
    %vm304 = vcmp.eq.s32.totalorder %v234, %v269
    %vm305 = vcmp.eq.s32.totalorder %v235, %v269
    %vm306 = vcmp.eq.s32.totalorder %v236, %v269
    %vm307 = vcmp.eq.s32.totalorder %v237, %v269
    %vm308 = vcmp.eq.s32.totalorder %v238, %v269
    %vm309 = vcmp.eq.s32.totalorder %v239, %v269
    %vm310 = vcmp.eq.s32.totalorder %v240, %v269
    %vm311 = vcmp.eq.s32.totalorder %v241, %v269
    %vm312 = vcmp.eq.s32.totalorder %v242, %v269
    %vm313 = vcmp.eq.s32.totalorder %v243, %v269
    %vm314 = vcmp.eq.s32.totalorder %v244, %v269
    %vm315 = vcmp.eq.s32.totalorder %v245, %v269
    %vm316 = vcmp.eq.s32.totalorder %v246, %v269
    %vm317 = vcmp.eq.s32.totalorder %v247, %v269
    %vm318 = vcmp.eq.s32.totalorder %v248, %v269
    %vm319 = vcmp.eq.s32.totalorder %v249, %v269
    %vm320 = vcmp.eq.s32.totalorder %v250, %v269
    %vm321 = vcmp.eq.s32.totalorder %v251, %v269
    %vm322 = vcmp.eq.s32.totalorder %v252, %v269
    %vm323 = vcmp.eq.s32.totalorder %v253, %v269
    %vm324 = vcmp.eq.s32.totalorder %v254, %v269
    %vm325 = vcmp.eq.s32.totalorder %v255, %v269
    %vm326 = vcmp.eq.s32.totalorder %v256, %v269
    %vm327 = vcmp.eq.s32.totalorder %v257, %v269
    %vm328 = vcmp.eq.s32.totalorder %v258, %v269
    %vm329 = vcmp.eq.s32.totalorder %v259, %v269
    %vm330 = vcmp.eq.s32.totalorder %v260, %v269
    %vm331 = vcmp.eq.s32.totalorder %v261, %v269
    %vm332 = vcmp.eq.s32.totalorder %v262, %v269
    %vm333 = vcmp.eq.s32.totalorder %v263, %v269
    %v334 = vsel %vm270, 1.0, 0.0
    %v335 = vsel %vm271, 1.0, 0.0
    %v336 = vsel %vm272, 1.0, 0.0
    %v337 = vsel %vm273, 1.0, 0.0
    %v338 = vsel %vm274, 1.0, 0.0
    %v339 = vsel %vm275, 1.0, 0.0
    %v340 = vsel %vm276, 1.0, 0.0
    %v341 = vsel %vm277, 1.0, 0.0
    %v342 = vsel %vm278, 1.0, 0.0
    %v343 = vsel %vm279, 1.0, 0.0
    %v344 = vsel %vm280, 1.0, 0.0
    %v345 = vsel %vm281, 1.0, 0.0
    %v346 = vsel %vm282, 1.0, 0.0
    %v347 = vsel %vm283, 1.0, 0.0
    %v348 = vsel %vm284, 1.0, 0.0
    %v349 = vsel %vm285, 1.0, 0.0
    %v350 = vsel %vm286, 1.0, 0.0
    %v351 = vsel %vm287, 1.0, 0.0
    %v352 = vsel %vm288, 1.0, 0.0
    %v353 = vsel %vm289, 1.0, 0.0
    %v354 = vsel %vm290, 1.0, 0.0
    %v355 = vsel %vm291, 1.0, 0.0
    %v356 = vsel %vm292, 1.0, 0.0
    %v357 = vsel %vm293, 1.0, 0.0
    %v358 = vsel %vm294, 1.0, 0.0
    %v359 = vsel %vm295, 1.0, 0.0
    %v360 = vsel %vm296, 1.0, 0.0
    %v361 = vsel %vm297, 1.0, 0.0
    %v362 = vsel %vm298, 1.0, 0.0
    %v363 = vsel %vm299, 1.0, 0.0
    %v364 = vsel %vm300, 1.0, 0.0
    %v365 = vsel %vm301, 1.0, 0.0
    %v366 = vsel %vm302, 1.0, 0.0
    %v367 = vsel %vm303, 1.0, 0.0
    %v368 = vsel %vm304, 1.0, 0.0
    %v369 = vsel %vm305, 1.0, 0.0
    %v370 = vsel %vm306, 1.0, 0.0
    %v371 = vsel %vm307, 1.0, 0.0
    %v372 = vsel %vm308, 1.0, 0.0
    %v373 = vsel %vm309, 1.0, 0.0
    %v374 = vsel %vm310, 1.0, 0.0
    %v375 = vsel %vm311, 1.0, 0.0
    %v376 = vsel %vm312, 1.0, 0.0
    %v377 = vsel %vm313, 1.0, 0.0
    %v378 = vsel %vm314, 1.0, 0.0
    %v379 = vsel %vm315, 1.0, 0.0
    %v380 = vsel %vm316, 1.0, 0.0
    %v381 = vsel %vm317, 1.0, 0.0
    %v382 = vsel %vm318, 1.0, 0.0
    %v383 = vsel %vm319, 1.0, 0.0
    %v384 = vsel %vm320, 1.0, 0.0
    %v385 = vsel %vm321, 1.0, 0.0
    %v386 = vsel %vm322, 1.0, 0.0
    %v387 = vsel %vm323, 1.0, 0.0
    %v388 = vsel %vm324, 1.0, 0.0
    %v389 = vsel %vm325, 1.0, 0.0
    %v390 = vsel %vm326, 1.0, 0.0
    %v391 = vsel %vm327, 1.0, 0.0
    %v392 = vsel %vm328, 1.0, 0.0
    %v393 = vsel %vm329, 1.0, 0.0
    %v394 = vsel %vm330, 1.0, 0.0
    %v395 = vsel %vm331, 1.0, 0.0
    %v396 = vsel %vm332, 1.0, 0.0
    %v397 = vsel %vm333, 1.0, 0.0
    %398 = vmatprep.subr.mxu0 0.0
    %399 = vmatpush1.msra.mxu0 %v349
    %400 = vmatprep.subr.mxu0 0.0
    %401 = vmatpush1.msra.mxu0 %v348
    %402 = vmatprep.subr.mxu0 0.0
    %403 = vmatpush1.msra.mxu0 %v347
    %404 = vmatprep.subr.mxu0 0.0
    %405 = vmatpush1.msra.mxu0 %v346
    %406 = vmatprep.subr.mxu0 0.0
    %407 = vmatpush1.msra.mxu0 %v345
    %408 = vmatprep.subr.mxu0 0.0
    %409 = vmatpush1.msra.mxu0 %v344
    %410 = vmatprep.subr.mxu0 0.0
    %411 = vmatpush1.msra.mxu0 %v343
    %412 = vmatprep.subr.mxu0 0.0
    %413 = vmatpush1.msra.mxu0 %v342
    %414 = vmatprep.subr.mxu0 0.0
    %415 = vmatpush1.msra.mxu0 %v341
    %416 = vmatprep.subr.mxu0 0.0
    %417 = vmatpush1.msra.mxu0 %v340
    %418 = vmatprep.subr.mxu0 0.0
    %419 = vmatpush1.msra.mxu0 %v339
    %420 = vmatprep.subr.mxu0 0.0
    %421 = vmatpush1.msra.mxu0 %v338
    %422 = vmatprep.subr.mxu0 0.0
    %423 = vmatpush1.msra.mxu0 %v337
    %424 = vmatprep.subr.mxu0 0.0
    %425 = vmatpush1.msra.mxu0 %v336
    %426 = vmatprep.subr.mxu0 0.0
    %427 = vmatpush1.msra.mxu0 %v335
    %428 = vmatprep.subr.mxu0 0.0
    %429 = vmatpush1.msra.mxu0 %v334
    %430 = vmatprep.subr.mxu0 0.0
    %431 = vmatpush2.msra.mxu0 %v365
    %432 = vmatprep.subr.mxu0 0.0
    %433 = vmatpush2.msra.mxu0 %v364
    %434 = vmatprep.subr.mxu0 0.0
    %435 = vmatpush2.msra.mxu0 %v363
    %436 = vmatprep.subr.mxu0 0.0
    %437 = vmatpush2.msra.mxu0 %v362
    %438 = vmatprep.subr.mxu0 0.0
    %439 = vmatpush2.msra.mxu0 %v361
    %440 = vmatprep.subr.mxu0 0.0
    %441 = vmatpush2.msra.mxu0 %v360
    %442 = vmatprep.subr.mxu0 0.0
    %443 = vmatpush2.msra.mxu0 %v359
    %444 = vmatprep.subr.mxu0 0.0
    %445 = vmatpush2.msra.mxu0 %v358
    %446 = vmatprep.subr.mxu0 0.0
    %447 = vmatpush2.msra.mxu0 %v357
    %448 = vmatprep.subr.mxu0 0.0
    %449 = vmatpush2.msra.mxu0 %v356
    %450 = vmatprep.subr.mxu0 0.0
    %451 = vmatpush2.msra.mxu0 %v355
    %452 = vmatprep.subr.mxu0 0.0
    %453 = vmatpush2.msra.mxu0 %v354
    %454 = vmatprep.subr.mxu0 0.0
    %455 = vmatpush2.msra.mxu0 %v353
    %456 = vmatprep.subr.mxu0 0.0
    %457 = vmatpush2.msra.mxu0 %v352
    %458 = vmatprep.subr.mxu0 0.0
    %459 = vmatpush2.msra.mxu0 %v351
    %460 = vmatprep.subr.mxu0 0.0
    %461 = vmatpush2.msra.mxu0 %v350
    %462 = vmatprep.mubr.f32.mxu0 %v196
    %463 = vmatmul.mubr.f32.gmra.mxu0 %v195
    %v464 = vpop.f32.mrf.mxu0
    %v465 = vadd.f32 0.0, %v464
    %v466 = vpop.f32.mrf.mxu0
    %467 = vdwg.mxu0
    %468 = vmatprep.subr.mxu0 0.0
    %469 = vmatpush1.msra.mxu0 %v381
    %470 = vmatprep.subr.mxu0 0.0
    %471 = vmatpush1.msra.mxu0 %v380
    %472 = vmatprep.subr.mxu0 0.0
    %473 = vmatpush1.msra.mxu0 %v379
    %474 = vmatprep.subr.mxu0 0.0
    %475 = vmatpush1.msra.mxu0 %v378
    %476 = vmatprep.subr.mxu0 0.0
    %477 = vmatpush1.msra.mxu0 %v377
    %478 = vmatprep.subr.mxu0 0.0
    %479 = vmatpush1.msra.mxu0 %v376
    %480 = vmatprep.subr.mxu0 0.0
    %481 = vmatpush1.msra.mxu0 %v375
    %482 = vmatprep.subr.mxu0 0.0
    %483 = vmatpush1.msra.mxu0 %v374
    %484 = vmatprep.subr.mxu0 0.0
    %485 = vmatpush1.msra.mxu0 %v373
    %486 = vmatprep.subr.mxu0 0.0
    %487 = vmatpush1.msra.mxu0 %v372
    %488 = vmatprep.subr.mxu0 0.0
    %489 = vmatpush1.msra.mxu0 %v371
    %490 = vmatprep.subr.mxu0 0.0
    %491 = vmatpush1.msra.mxu0 %v370
    %492 = vmatprep.subr.mxu0 0.0
    %493 = vmatpush1.msra.mxu0 %v369
    %494 = vmatprep.subr.mxu0 0.0
    %495 = vmatpush1.msra.mxu0 %v368
    %496 = vmatprep.subr.mxu0 0.0
    %497 = vmatpush1.msra.mxu0 %v367
    %498 = vmatprep.subr.mxu0 0.0
    %499 = vmatpush1.msra.mxu0 %v366
    %500 = vmatprep.subr.mxu0 0.0
    %501 = vmatpush2.msra.mxu0 %v397
    %502 = vmatprep.subr.mxu0 0.0
    %503 = vmatpush2.msra.mxu0 %v396
    %504 = vmatprep.subr.mxu0 0.0
    %505 = vmatpush2.msra.mxu0 %v395
    %506 = vmatprep.subr.mxu0 0.0
    %507 = vmatpush2.msra.mxu0 %v394
    %508 = vmatprep.subr.mxu0 0.0
    %509 = vmatpush2.msra.mxu0 %v393
    %510 = vmatprep.subr.mxu0 0.0
    %511 = vmatpush2.msra.mxu0 %v392
    %512 = vmatprep.subr.mxu0 0.0
    %513 = vmatpush2.msra.mxu0 %v391
    %514 = vmatprep.subr.mxu0 0.0
    %515 = vmatpush2.msra.mxu0 %v390
    %516 = vmatprep.subr.mxu0 0.0
    %517 = vmatpush2.msra.mxu0 %v389
    %518 = vmatprep.subr.mxu0 0.0
    %519 = vmatpush2.msra.mxu0 %v388
    %520 = vmatprep.subr.mxu0 0.0
    %521 = vmatpush2.msra.mxu0 %v387
    %522 = vmatprep.subr.mxu0 0.0
    %523 = vmatpush2.msra.mxu0 %v386
    %524 = vmatprep.subr.mxu0 0.0
    %525 = vmatpush2.msra.mxu0 %v385
    %526 = vmatprep.subr.mxu0 0.0
    %527 = vmatpush2.msra.mxu0 %v384
    %528 = vmatprep.subr.mxu0 0.0
    %529 = vmatpush2.msra.mxu0 %v383
    %530 = vmatprep.subr.mxu0 0.0
    %531 = vmatpush2.msra.mxu0 %v382
    %532 = vmatprep.mubr.f32.mxu0 %v198
    %533 = vmatmul.mubr.f32.gmra.mxu0 %v197
    %v534 = vpop.f32.mrf.mxu0
    %v535 = vadd.f32 %v465, %v534
    %v536 = vpop.f32.mrf.mxu0
    %537 = vdwg.mxu0
    %v538 = vld [vmem:[%s4] sm:$0xff]
    %vm539 = vcmask 64512
    %v541 = vsel %vm539, %v538, 0
    %543 = vmatprep.subr.mxu0 0.0
    %544 = vmatpush1.msra.mxu0 0.0
    %545 = vmatprep.subr.mxu0 0.0
    %546 = vmatpush1.msra.mxu0 0.0
    %547 = vmatprep.subr.mxu0 0.0
    %548 = vmatpush1.msra.mxu0 0.0
    %549 = vmatprep.subr.mxu0 0.0
    %550 = vmatpush1.msra.mxu0 0.0
    %551 = vmatprep.subr.mxu0 0.0
    %552 = vmatpush1.msra.mxu0 0.0
    %553 = vmatprep.subr.mxu0 0.0
    %554 = vmatpush1.msra.mxu0 0.0
    %555 = vmatprep.subr.mxu0 0.0
    %556 = vmatpush1.msra.mxu0 0.0
    %557 = vmatprep.subr.mxu0 0.0
    %558 = vmatpush1.msra.mxu0 0.0
    %559 = vmatprep.subr.mxu0 0.0
    %560 = vmatpush1.msra.mxu0 0.0
    %561 = vmatprep.subr.mxu0 0.0
    %562 = vmatpush1.msra.mxu0 0.0
    %563 = vmatprep.subr.mxu0 0.0
    %564 = vmatpush1.msra.mxu0 0.0
    %565 = vmatprep.subr.mxu0 0.0
    %566 = vmatpush1.msra.mxu0 0.0
    %567 = vmatprep.subr.mxu0 0.0
    %568 = vmatpush1.msra.mxu0 0.0
    %569 = vmatprep.subr.mxu0 0.0
    %570 = vmatpush1.msra.mxu0 0.0
    %571 = vmatprep.subr.mxu0 0.0
    %572 = vmatpush1.msra.mxu0 0.0
    %573 = vmatprep.subr.mxu0 0.0
    %574 = vmatpush1.msra.mxu0 %v535
    %575 = vmatprep.subr.mxu0 0.0
    %576 = vmatpush2.msra.mxu0 0.0
    %577 = vmatprep.subr.mxu0 0.0
    %578 = vmatpush2.msra.mxu0 0.0
    %579 = vmatprep.subr.mxu0 0.0
    %580 = vmatpush2.msra.mxu0 0.0
    %581 = vmatprep.subr.mxu0 0.0
    %582 = vmatpush2.msra.mxu0 0.0
    %583 = vmatprep.subr.mxu0 0.0
    %584 = vmatpush2.msra.mxu0 0.0
    %585 = vmatprep.subr.mxu0 0.0
    %586 = vmatpush2.msra.mxu0 0.0
    %587 = vmatprep.subr.mxu0 0.0
    %588 = vmatpush2.msra.mxu0 0.0
    %589 = vmatprep.subr.mxu0 0.0
    %590 = vmatpush2.msra.mxu0 0.0
    %591 = vmatprep.subr.mxu0 0.0
    %592 = vmatpush2.msra.mxu0 0.0
    %593 = vmatprep.subr.mxu0 0.0
    %594 = vmatpush2.msra.mxu0 0.0
    %595 = vmatprep.subr.mxu0 0.0
    %596 = vmatpush2.msra.mxu0 0.0
    %597 = vmatprep.subr.mxu0 0.0
    %598 = vmatpush2.msra.mxu0 0.0
    %599 = vmatprep.subr.mxu0 0.0
    %600 = vmatpush2.msra.mxu0 0.0
    %601 = vmatprep.subr.mxu0 0.0
    %602 = vmatpush2.msra.mxu0 0.0
    %603 = vmatprep.subr.mxu0 0.0
    %604 = vmatpush2.msra.mxu0 0.0
    %605 = vmatprep.subr.mxu0 0.0
    %606 = vmatpush2.msra.mxu0 0.0
    %607 = vmatprep.mubr.f32.mxu0 0.0
    %608 = vmatmul.mubr.f32.gmra.mxu0 %v541
    %v609 = vpop.f32.mrf.mxu0
    %v610 = vadd.f32 0.0, %v609
    %v611 = vpop.f32.mrf.mxu0
    %612 = vdwg.mxu0
    %v613 = vadd.f32 %v264, %v610
    %v614 = vld [vmem:[%s3 + $0x1] sm:$0x1]
    %v615 = vlaneseq
    %v616 = vshrl.u32 %v615, 7
    %v617 = vsub.s32 0, %v616
    %v618 = vrot.slane %v614, %v617
    %vm619 = vcmp.eq.s32.totalorder %v200, %v618
    %vm620 = vcmp.eq.s32.totalorder %v201, %v618
    %vm621 = vcmp.eq.s32.totalorder %v202, %v618
    %vm622 = vcmp.eq.s32.totalorder %v203, %v618
    %vm623 = vcmp.eq.s32.totalorder %v204, %v618
    %vm624 = vcmp.eq.s32.totalorder %v205, %v618
    %vm625 = vcmp.eq.s32.totalorder %v206, %v618
    %vm626 = vcmp.eq.s32.totalorder %v207, %v618
    %vm627 = vcmp.eq.s32.totalorder %v208, %v618
    %vm628 = vcmp.eq.s32.totalorder %v209, %v618
    %vm629 = vcmp.eq.s32.totalorder %v210, %v618
    %vm630 = vcmp.eq.s32.totalorder %v211, %v618
    %vm631 = vcmp.eq.s32.totalorder %v212, %v618
    %vm632 = vcmp.eq.s32.totalorder %v213, %v618
    %vm633 = vcmp.eq.s32.totalorder %v214, %v618
    %vm634 = vcmp.eq.s32.totalorder %v215, %v618
    %vm635 = vcmp.eq.s32.totalorder %v216, %v618
    %vm636 = vcmp.eq.s32.totalorder %v217, %v618
    %vm637 = vcmp.eq.s32.totalorder %v218, %v618
    %vm638 = vcmp.eq.s32.totalorder %v219, %v618
    %vm639 = vcmp.eq.s32.totalorder %v220, %v618
    %vm640 = vcmp.eq.s32.totalorder %v221, %v618
    %vm641 = vcmp.eq.s32.totalorder %v222, %v618
    %vm642 = vcmp.eq.s32.totalorder %v223, %v618
    %vm643 = vcmp.eq.s32.totalorder %v224, %v618
    %vm644 = vcmp.eq.s32.totalorder %v225, %v618
    %vm645 = vcmp.eq.s32.totalorder %v226, %v618
    %vm646 = vcmp.eq.s32.totalorder %v227, %v618
    %vm647 = vcmp.eq.s32.totalorder %v228, %v618
    %vm648 = vcmp.eq.s32.totalorder %v229, %v618
    %vm649 = vcmp.eq.s32.totalorder %v230, %v618
    %vm650 = vcmp.eq.s32.totalorder %v231, %v618
    %vm651 = vcmp.eq.s32.totalorder %v232, %v618
    %vm652 = vcmp.eq.s32.totalorder %v233, %v618
    %vm653 = vcmp.eq.s32.totalorder %v234, %v618
    %vm654 = vcmp.eq.s32.totalorder %v235, %v618
    %vm655 = vcmp.eq.s32.totalorder %v236, %v618
    %vm656 = vcmp.eq.s32.totalorder %v237, %v618
    %vm657 = vcmp.eq.s32.totalorder %v238, %v618
    %vm658 = vcmp.eq.s32.totalorder %v239, %v618
    %vm659 = vcmp.eq.s32.totalorder %v240, %v618
    %vm660 = vcmp.eq.s32.totalorder %v241, %v618
    %vm661 = vcmp.eq.s32.totalorder %v242, %v618
    %vm662 = vcmp.eq.s32.totalorder %v243, %v618
    %vm663 = vcmp.eq.s32.totalorder %v244, %v618
    %vm664 = vcmp.eq.s32.totalorder %v245, %v618
    %vm665 = vcmp.eq.s32.totalorder %v246, %v618
    %vm666 = vcmp.eq.s32.totalorder %v247, %v618
    %vm667 = vcmp.eq.s32.totalorder %v248, %v618
    %vm668 = vcmp.eq.s32.totalorder %v249, %v618
    %vm669 = vcmp.eq.s32.totalorder %v250, %v618
    %vm670 = vcmp.eq.s32.totalorder %v251, %v618
    %vm671 = vcmp.eq.s32.totalorder %v252, %v618
    %vm672 = vcmp.eq.s32.totalorder %v253, %v618
    %vm673 = vcmp.eq.s32.totalorder %v254, %v618
    %vm674 = vcmp.eq.s32.totalorder %v255, %v618
    %vm675 = vcmp.eq.s32.totalorder %v256, %v618
    %vm676 = vcmp.eq.s32.totalorder %v257, %v618
    %vm677 = vcmp.eq.s32.totalorder %v258, %v618
    %vm678 = vcmp.eq.s32.totalorder %v259, %v618
    %vm679 = vcmp.eq.s32.totalorder %v260, %v618
    %vm680 = vcmp.eq.s32.totalorder %v261, %v618
    %vm681 = vcmp.eq.s32.totalorder %v262, %v618
    %vm682 = vcmp.eq.s32.totalorder %v263, %v618
    %v683 = vsel %vm619, 1.0, 0.0
    %v684 = vsel %vm620, 1.0, 0.0
    %v685 = vsel %vm621, 1.0, 0.0
    %v686 = vsel %vm622, 1.0, 0.0
    %v687 = vsel %vm623, 1.0, 0.0
    %v688 = vsel %vm624, 1.0, 0.0
    %v689 = vsel %vm625, 1.0, 0.0
    %v690 = vsel %vm626, 1.0, 0.0
    %v691 = vsel %vm627, 1.0, 0.0
    %v692 = vsel %vm628, 1.0, 0.0
    %v693 = vsel %vm629, 1.0, 0.0
    %v694 = vsel %vm630, 1.0, 0.0
    %v695 = vsel %vm631, 1.0, 0.0
    %v696 = vsel %vm632, 1.0, 0.0
    %v697 = vsel %vm633, 1.0, 0.0
    %v698 = vsel %vm634, 1.0, 0.0
    %v699 = vsel %vm635, 1.0, 0.0
    %v700 = vsel %vm636, 1.0, 0.0
    %v701 = vsel %vm637, 1.0, 0.0
    %v702 = vsel %vm638, 1.0, 0.0
    %v703 = vsel %vm639, 1.0, 0.0
    %v704 = vsel %vm640, 1.0, 0.0
    %v705 = vsel %vm641, 1.0, 0.0
    %v706 = vsel %vm642, 1.0, 0.0
    %v707 = vsel %vm643, 1.0, 0.0
    %v708 = vsel %vm644, 1.0, 0.0
    %v709 = vsel %vm645, 1.0, 0.0
    %v710 = vsel %vm646, 1.0, 0.0
    %v711 = vsel %vm647, 1.0, 0.0
    %v712 = vsel %vm648, 1.0, 0.0
    %v713 = vsel %vm649, 1.0, 0.0
    %v714 = vsel %vm650, 1.0, 0.0
    %v715 = vsel %vm651, 1.0, 0.0
    %v716 = vsel %vm652, 1.0, 0.0
    %v717 = vsel %vm653, 1.0, 0.0
    %v718 = vsel %vm654, 1.0, 0.0
    %v719 = vsel %vm655, 1.0, 0.0
    %v720 = vsel %vm656, 1.0, 0.0
    %v721 = vsel %vm657, 1.0, 0.0
    %v722 = vsel %vm658, 1.0, 0.0
    %v723 = vsel %vm659, 1.0, 0.0
    %v724 = vsel %vm660, 1.0, 0.0
    %v725 = vsel %vm661, 1.0, 0.0
    %v726 = vsel %vm662, 1.0, 0.0
    %v727 = vsel %vm663, 1.0, 0.0
    %v728 = vsel %vm664, 1.0, 0.0
    %v729 = vsel %vm665, 1.0, 0.0
    %v730 = vsel %vm666, 1.0, 0.0
    %v731 = vsel %vm667, 1.0, 0.0
    %v732 = vsel %vm668, 1.0, 0.0
    %v733 = vsel %vm669, 1.0, 0.0
    %v734 = vsel %vm670, 1.0, 0.0
    %v735 = vsel %vm671, 1.0, 0.0
    %v736 = vsel %vm672, 1.0, 0.0
    %v737 = vsel %vm673, 1.0, 0.0
    %v738 = vsel %vm674, 1.0, 0.0
    %v739 = vsel %vm675, 1.0, 0.0
    %v740 = vsel %vm676, 1.0, 0.0
    %v741 = vsel %vm677, 1.0, 0.0
    %v742 = vsel %vm678, 1.0, 0.0
    %v743 = vsel %vm679, 1.0, 0.0
    %v744 = vsel %vm680, 1.0, 0.0
    %v745 = vsel %vm681, 1.0, 0.0
    %v746 = vsel %vm682, 1.0, 0.0
    %747 = vmatprep.subr.mxu0 0.0
    %748 = vmatpush1.msra.mxu0 %v698
    %749 = vmatprep.subr.mxu0 0.0
    %750 = vmatpush1.msra.mxu0 %v697
    %751 = vmatprep.subr.mxu0 0.0
    %752 = vmatpush1.msra.mxu0 %v696
    %753 = vmatprep.subr.mxu0 0.0
    %754 = vmatpush1.msra.mxu0 %v695
    %755 = vmatprep.subr.mxu0 0.0
    %756 = vmatpush1.msra.mxu0 %v694
    %757 = vmatprep.subr.mxu0 0.0
    %758 = vmatpush1.msra.mxu0 %v693
    %759 = vmatprep.subr.mxu0 0.0
    %760 = vmatpush1.msra.mxu0 %v692
    %761 = vmatprep.subr.mxu0 0.0
    %762 = vmatpush1.msra.mxu0 %v691
    %763 = vmatprep.subr.mxu0 0.0
    %764 = vmatpush1.msra.mxu0 %v690
    %765 = vmatprep.subr.mxu0 0.0
    %766 = vmatpush1.msra.mxu0 %v689
    %767 = vmatprep.subr.mxu0 0.0
    %768 = vmatpush1.msra.mxu0 %v688
    %769 = vmatprep.subr.mxu0 0.0
    %770 = vmatpush1.msra.mxu0 %v687
    %771 = vmatprep.subr.mxu0 0.0
    %772 = vmatpush1.msra.mxu0 %v686
    %773 = vmatprep.subr.mxu0 0.0
    %774 = vmatpush1.msra.mxu0 %v685
    %775 = vmatprep.subr.mxu0 0.0
    %776 = vmatpush1.msra.mxu0 %v684
    %777 = vmatprep.subr.mxu0 0.0
    %778 = vmatpush1.msra.mxu0 %v683
    %779 = vmatprep.subr.mxu0 0.0
    %780 = vmatpush2.msra.mxu0 %v714
    %781 = vmatprep.subr.mxu0 0.0
    %782 = vmatpush2.msra.mxu0 %v713
    %783 = vmatprep.subr.mxu0 0.0
    %784 = vmatpush2.msra.mxu0 %v712
    %785 = vmatprep.subr.mxu0 0.0
    %786 = vmatpush2.msra.mxu0 %v711
    %787 = vmatprep.subr.mxu0 0.0
    %788 = vmatpush2.msra.mxu0 %v710
    %789 = vmatprep.subr.mxu0 0.0
    %790 = vmatpush2.msra.mxu0 %v709
    %791 = vmatprep.subr.mxu0 0.0
    %792 = vmatpush2.msra.mxu0 %v708
    %793 = vmatprep.subr.mxu0 0.0
    %794 = vmatpush2.msra.mxu0 %v707
    %795 = vmatprep.subr.mxu0 0.0
    %796 = vmatpush2.msra.mxu0 %v706
    %797 = vmatprep.subr.mxu0 0.0
    %798 = vmatpush2.msra.mxu0 %v705
    %799 = vmatprep.subr.mxu0 0.0
    %800 = vmatpush2.msra.mxu0 %v704
    %801 = vmatprep.subr.mxu0 0.0
    %802 = vmatpush2.msra.mxu0 %v703
    %803 = vmatprep.subr.mxu0 0.0
    %804 = vmatpush2.msra.mxu0 %v702
    %805 = vmatprep.subr.mxu0 0.0
    %806 = vmatpush2.msra.mxu0 %v701
    %807 = vmatprep.subr.mxu0 0.0
    %808 = vmatpush2.msra.mxu0 %v700
    %809 = vmatprep.subr.mxu0 0.0
    %810 = vmatpush2.msra.mxu0 %v699
    %811 = vmatprep.mubr.f32.mxu0 %v196
    %812 = vmatmul.mubr.f32.gmra.mxu0 %v195
    %v813 = vpop.f32.mrf.mxu0
    %v814 = vadd.f32 0.0, %v813
    %v815 = vpop.f32.mrf.mxu0
    %816 = vdwg.mxu0
    %817 = vmatprep.subr.mxu0 0.0
    %818 = vmatpush1.msra.mxu0 %v730
    %819 = vmatprep.subr.mxu0 0.0
    %820 = vmatpush1.msra.mxu0 %v729
    %821 = vmatprep.subr.mxu0 0.0
    %822 = vmatpush1.msra.mxu0 %v728
    %823 = vmatprep.subr.mxu0 0.0
    %824 = vmatpush1.msra.mxu0 %v727
    %825 = vmatprep.subr.mxu0 0.0
    %826 = vmatpush1.msra.mxu0 %v726
    %827 = vmatprep.subr.mxu0 0.0
    %828 = vmatpush1.msra.mxu0 %v725
    %829 = vmatprep.subr.mxu0 0.0
    %830 = vmatpush1.msra.mxu0 %v724
    %831 = vmatprep.subr.mxu0 0.0
    %832 = vmatpush1.msra.mxu0 %v723
    %833 = vmatprep.subr.mxu0 0.0
    %834 = vmatpush1.msra.mxu0 %v722
    %835 = vmatprep.subr.mxu0 0.0
    %836 = vmatpush1.msra.mxu0 %v721
    %837 = vmatprep.subr.mxu0 0.0
    %838 = vmatpush1.msra.mxu0 %v720
    %839 = vmatprep.subr.mxu0 0.0
    %840 = vmatpush1.msra.mxu0 %v719
    %841 = vmatprep.subr.mxu0 0.0
    %842 = vmatpush1.msra.mxu0 %v718
    %843 = vmatprep.subr.mxu0 0.0
    %844 = vmatpush1.msra.mxu0 %v717
    %845 = vmatprep.subr.mxu0 0.0
    %846 = vmatpush1.msra.mxu0 %v716
    %847 = vmatprep.subr.mxu0 0.0
    %848 = vmatpush1.msra.mxu0 %v715
    %849 = vmatprep.subr.mxu0 0.0
    %850 = vmatpush2.msra.mxu0 %v746
    %851 = vmatprep.subr.mxu0 0.0
    %852 = vmatpush2.msra.mxu0 %v745
    %853 = vmatprep.subr.mxu0 0.0
    %854 = vmatpush2.msra.mxu0 %v744
    %855 = vmatprep.subr.mxu0 0.0
    %856 = vmatpush2.msra.mxu0 %v743
    %857 = vmatprep.subr.mxu0 0.0
    %858 = vmatpush2.msra.mxu0 %v742
    %859 = vmatprep.subr.mxu0 0.0
    %860 = vmatpush2.msra.mxu0 %v741
    %861 = vmatprep.subr.mxu0 0.0
    %862 = vmatpush2.msra.mxu0 %v740
    %863 = vmatprep.subr.mxu0 0.0
    %864 = vmatpush2.msra.mxu0 %v739
    %865 = vmatprep.subr.mxu0 0.0
    %866 = vmatpush2.msra.mxu0 %v738
    %867 = vmatprep.subr.mxu0 0.0
    %868 = vmatpush2.msra.mxu0 %v737
    %869 = vmatprep.subr.mxu0 0.0
    %870 = vmatpush2.msra.mxu0 %v736
    %871 = vmatprep.subr.mxu0 0.0
    %872 = vmatpush2.msra.mxu0 %v735
    %873 = vmatprep.subr.mxu0 0.0
    %874 = vmatpush2.msra.mxu0 %v734
    %875 = vmatprep.subr.mxu0 0.0
    %876 = vmatpush2.msra.mxu0 %v733
    %877 = vmatprep.subr.mxu0 0.0
    %878 = vmatpush2.msra.mxu0 %v732
    %879 = vmatprep.subr.mxu0 0.0
    %880 = vmatpush2.msra.mxu0 %v731
    %881 = vmatprep.mubr.f32.mxu0 %v198
    %882 = vmatmul.mubr.f32.gmra.mxu0 %v197
    %v883 = vpop.f32.mrf.mxu0
    %v884 = vadd.f32 %v814, %v883
    %v885 = vpop.f32.mrf.mxu0
    %886 = vdwg.mxu0
    %s887 = scalar_lea.vmem %s4, 8
    %v888 = vld [vmem:[%s887] sm:$0xff]
    %v890 = vsel %vm539, %v888, 0
    %892 = vmatprep.subr.mxu0 0.0
    %893 = vmatpush1.msra.mxu0 0.0
    %894 = vmatprep.subr.mxu0 0.0
    %895 = vmatpush1.msra.mxu0 0.0
    %896 = vmatprep.subr.mxu0 0.0
    %897 = vmatpush1.msra.mxu0 0.0
    %898 = vmatprep.subr.mxu0 0.0
    %899 = vmatpush1.msra.mxu0 0.0
    %900 = vmatprep.subr.mxu0 0.0
    %901 = vmatpush1.msra.mxu0 0.0
    %902 = vmatprep.subr.mxu0 0.0
    %903 = vmatpush1.msra.mxu0 0.0
    %904 = vmatprep.subr.mxu0 0.0
    %905 = vmatpush1.msra.mxu0 0.0
    %906 = vmatprep.subr.mxu0 0.0
    %907 = vmatpush1.msra.mxu0 0.0
    %908 = vmatprep.subr.mxu0 0.0
    %909 = vmatpush1.msra.mxu0 0.0
    %910 = vmatprep.subr.mxu0 0.0
    %911 = vmatpush1.msra.mxu0 0.0
    %912 = vmatprep.subr.mxu0 0.0
    %913 = vmatpush1.msra.mxu0 0.0
    %914 = vmatprep.subr.mxu0 0.0
    %915 = vmatpush1.msra.mxu0 0.0
    %916 = vmatprep.subr.mxu0 0.0
    %917 = vmatpush1.msra.mxu0 0.0
    %918 = vmatprep.subr.mxu0 0.0
    %919 = vmatpush1.msra.mxu0 0.0
    %920 = vmatprep.subr.mxu0 0.0
    %921 = vmatpush1.msra.mxu0 0.0
    %922 = vmatprep.subr.mxu0 0.0
    %923 = vmatpush1.msra.mxu0 %v884
    %924 = vmatprep.subr.mxu0 0.0
    %925 = vmatpush2.msra.mxu0 0.0
    %926 = vmatprep.subr.mxu0 0.0
    %927 = vmatpush2.msra.mxu0 0.0
    %928 = vmatprep.subr.mxu0 0.0
    %929 = vmatpush2.msra.mxu0 0.0
    %930 = vmatprep.subr.mxu0 0.0
    %931 = vmatpush2.msra.mxu0 0.0
    %932 = vmatprep.subr.mxu0 0.0
    %933 = vmatpush2.msra.mxu0 0.0
    %934 = vmatprep.subr.mxu0 0.0
    %935 = vmatpush2.msra.mxu0 0.0
    %936 = vmatprep.subr.mxu0 0.0
    %937 = vmatpush2.msra.mxu0 0.0
    %938 = vmatprep.subr.mxu0 0.0
    %939 = vmatpush2.msra.mxu0 0.0
    %940 = vmatprep.subr.mxu0 0.0
    %941 = vmatpush2.msra.mxu0 0.0
    %942 = vmatprep.subr.mxu0 0.0
    %943 = vmatpush2.msra.mxu0 0.0
    %944 = vmatprep.subr.mxu0 0.0
    %945 = vmatpush2.msra.mxu0 0.0
    %946 = vmatprep.subr.mxu0 0.0
    %947 = vmatpush2.msra.mxu0 0.0
    %948 = vmatprep.subr.mxu0 0.0
    %949 = vmatpush2.msra.mxu0 0.0
    %950 = vmatprep.subr.mxu0 0.0
    %951 = vmatpush2.msra.mxu0 0.0
    %952 = vmatprep.subr.mxu0 0.0
    %953 = vmatpush2.msra.mxu0 0.0
    %954 = vmatprep.subr.mxu0 0.0
    %955 = vmatpush2.msra.mxu0 0.0
    %956 = vmatprep.mubr.f32.mxu0 0.0
    %957 = vmatmul.mubr.f32.gmra.mxu0 %v890
    %v958 = vpop.f32.mrf.mxu0
    %v959 = vadd.f32 0.0, %v958
    %v960 = vpop.f32.mrf.mxu0
    %961 = vdwg.mxu0
    %v962 = vadd.f32 %v613, %v959
    %v963 = vld [vmem:[%s3 + $0x2] sm:$0x1]
    %v964 = vlaneseq
    %v965 = vshrl.u32 %v964, 7
    %v966 = vsub.s32 0, %v965
    %v967 = vrot.slane %v963, %v966
    %vm968 = vcmp.eq.s32.totalorder %v200, %v967
    %vm969 = vcmp.eq.s32.totalorder %v201, %v967
    %vm970 = vcmp.eq.s32.totalorder %v202, %v967
    %vm971 = vcmp.eq.s32.totalorder %v203, %v967
    %vm972 = vcmp.eq.s32.totalorder %v204, %v967
    %vm973 = vcmp.eq.s32.totalorder %v205, %v967
    %vm974 = vcmp.eq.s32.totalorder %v206, %v967
    %vm975 = vcmp.eq.s32.totalorder %v207, %v967
    %vm976 = vcmp.eq.s32.totalorder %v208, %v967
    %vm977 = vcmp.eq.s32.totalorder %v209, %v967
    %vm978 = vcmp.eq.s32.totalorder %v210, %v967
    %vm979 = vcmp.eq.s32.totalorder %v211, %v967
    %vm980 = vcmp.eq.s32.totalorder %v212, %v967
    %vm981 = vcmp.eq.s32.totalorder %v213, %v967
    %vm982 = vcmp.eq.s32.totalorder %v214, %v967
    %vm983 = vcmp.eq.s32.totalorder %v215, %v967
    %vm984 = vcmp.eq.s32.totalorder %v216, %v967
    %vm985 = vcmp.eq.s32.totalorder %v217, %v967
    %vm986 = vcmp.eq.s32.totalorder %v218, %v967
    %vm987 = vcmp.eq.s32.totalorder %v219, %v967
    %vm988 = vcmp.eq.s32.totalorder %v220, %v967
    %vm989 = vcmp.eq.s32.totalorder %v221, %v967
    %vm990 = vcmp.eq.s32.totalorder %v222, %v967
    %vm991 = vcmp.eq.s32.totalorder %v223, %v967
    %vm992 = vcmp.eq.s32.totalorder %v224, %v967
    %vm993 = vcmp.eq.s32.totalorder %v225, %v967
    %vm994 = vcmp.eq.s32.totalorder %v226, %v967
    %vm995 = vcmp.eq.s32.totalorder %v227, %v967
    %vm996 = vcmp.eq.s32.totalorder %v228, %v967
    %vm997 = vcmp.eq.s32.totalorder %v229, %v967
    %vm998 = vcmp.eq.s32.totalorder %v230, %v967
    %vm999 = vcmp.eq.s32.totalorder %v231, %v967
    %vm1000 = vcmp.eq.s32.totalorder %v232, %v967
    %vm1001 = vcmp.eq.s32.totalorder %v233, %v967
    %vm1002 = vcmp.eq.s32.totalorder %v234, %v967
    %vm1003 = vcmp.eq.s32.totalorder %v235, %v967
    %vm1004 = vcmp.eq.s32.totalorder %v236, %v967
    %vm1005 = vcmp.eq.s32.totalorder %v237, %v967
    %vm1006 = vcmp.eq.s32.totalorder %v238, %v967
    %vm1007 = vcmp.eq.s32.totalorder %v239, %v967
    %vm1008 = vcmp.eq.s32.totalorder %v240, %v967
    %vm1009 = vcmp.eq.s32.totalorder %v241, %v967
    %vm1010 = vcmp.eq.s32.totalorder %v242, %v967
    %vm1011 = vcmp.eq.s32.totalorder %v243, %v967
    %vm1012 = vcmp.eq.s32.totalorder %v244, %v967
    %vm1013 = vcmp.eq.s32.totalorder %v245, %v967
    %vm1014 = vcmp.eq.s32.totalorder %v246, %v967
    %vm1015 = vcmp.eq.s32.totalorder %v247, %v967
    %vm1016 = vcmp.eq.s32.totalorder %v248, %v967
    %vm1017 = vcmp.eq.s32.totalorder %v249, %v967
    %vm1018 = vcmp.eq.s32.totalorder %v250, %v967
    %vm1019 = vcmp.eq.s32.totalorder %v251, %v967
    %vm1020 = vcmp.eq.s32.totalorder %v252, %v967
    %vm1021 = vcmp.eq.s32.totalorder %v253, %v967
    %vm1022 = vcmp.eq.s32.totalorder %v254, %v967
    %vm1023 = vcmp.eq.s32.totalorder %v255, %v967
    %vm1024 = vcmp.eq.s32.totalorder %v256, %v967
    %vm1025 = vcmp.eq.s32.totalorder %v257, %v967
    %vm1026 = vcmp.eq.s32.totalorder %v258, %v967
    %vm1027 = vcmp.eq.s32.totalorder %v259, %v967
    %vm1028 = vcmp.eq.s32.totalorder %v260, %v967
    %vm1029 = vcmp.eq.s32.totalorder %v261, %v967
    %vm1030 = vcmp.eq.s32.totalorder %v262, %v967
    %vm1031 = vcmp.eq.s32.totalorder %v263, %v967
    %v1032 = vsel %vm968, 1.0, 0.0
    %v1033 = vsel %vm969, 1.0, 0.0
    %v1034 = vsel %vm970, 1.0, 0.0
    %v1035 = vsel %vm971, 1.0, 0.0
    %v1036 = vsel %vm972, 1.0, 0.0
    %v1037 = vsel %vm973, 1.0, 0.0
    %v1038 = vsel %vm974, 1.0, 0.0
    %v1039 = vsel %vm975, 1.0, 0.0
    %v1040 = vsel %vm976, 1.0, 0.0
    %v1041 = vsel %vm977, 1.0, 0.0
    %v1042 = vsel %vm978, 1.0, 0.0
    %v1043 = vsel %vm979, 1.0, 0.0
    %v1044 = vsel %vm980, 1.0, 0.0
    %v1045 = vsel %vm981, 1.0, 0.0
    %v1046 = vsel %vm982, 1.0, 0.0
    %v1047 = vsel %vm983, 1.0, 0.0
    %v1048 = vsel %vm984, 1.0, 0.0
    %v1049 = vsel %vm985, 1.0, 0.0
    %v1050 = vsel %vm986, 1.0, 0.0
    %v1051 = vsel %vm987, 1.0, 0.0
    %v1052 = vsel %vm988, 1.0, 0.0
    %v1053 = vsel %vm989, 1.0, 0.0
    %v1054 = vsel %vm990, 1.0, 0.0
    %v1055 = vsel %vm991, 1.0, 0.0
    %v1056 = vsel %vm992, 1.0, 0.0
    %v1057 = vsel %vm993, 1.0, 0.0
    %v1058 = vsel %vm994, 1.0, 0.0
    %v1059 = vsel %vm995, 1.0, 0.0
    %v1060 = vsel %vm996, 1.0, 0.0
    %v1061 = vsel %vm997, 1.0, 0.0
    %v1062 = vsel %vm998, 1.0, 0.0
    %v1063 = vsel %vm999, 1.0, 0.0
    %v1064 = vsel %vm1000, 1.0, 0.0
    %v1065 = vsel %vm1001, 1.0, 0.0
    %v1066 = vsel %vm1002, 1.0, 0.0
    %v1067 = vsel %vm1003, 1.0, 0.0
    %v1068 = vsel %vm1004, 1.0, 0.0
    %v1069 = vsel %vm1005, 1.0, 0.0
    %v1070 = vsel %vm1006, 1.0, 0.0
    %v1071 = vsel %vm1007, 1.0, 0.0
    %v1072 = vsel %vm1008, 1.0, 0.0
    %v1073 = vsel %vm1009, 1.0, 0.0
    %v1074 = vsel %vm1010, 1.0, 0.0
    %v1075 = vsel %vm1011, 1.0, 0.0
    %v1076 = vsel %vm1012, 1.0, 0.0
    %v1077 = vsel %vm1013, 1.0, 0.0
    %v1078 = vsel %vm1014, 1.0, 0.0
    %v1079 = vsel %vm1015, 1.0, 0.0
    %v1080 = vsel %vm1016, 1.0, 0.0
    %v1081 = vsel %vm1017, 1.0, 0.0
    %v1082 = vsel %vm1018, 1.0, 0.0
    %v1083 = vsel %vm1019, 1.0, 0.0
    %v1084 = vsel %vm1020, 1.0, 0.0
    %v1085 = vsel %vm1021, 1.0, 0.0
    %v1086 = vsel %vm1022, 1.0, 0.0
    %v1087 = vsel %vm1023, 1.0, 0.0
    %v1088 = vsel %vm1024, 1.0, 0.0
    %v1089 = vsel %vm1025, 1.0, 0.0
    %v1090 = vsel %vm1026, 1.0, 0.0
    %v1091 = vsel %vm1027, 1.0, 0.0
    %v1092 = vsel %vm1028, 1.0, 0.0
    %v1093 = vsel %vm1029, 1.0, 0.0
    %v1094 = vsel %vm1030, 1.0, 0.0
    %v1095 = vsel %vm1031, 1.0, 0.0
    %1096 = vmatprep.subr.mxu0 0.0
    %1097 = vmatpush1.msra.mxu0 %v1047
    %1098 = vmatprep.subr.mxu0 0.0
    %1099 = vmatpush1.msra.mxu0 %v1046
    %1100 = vmatprep.subr.mxu0 0.0
    %1101 = vmatpush1.msra.mxu0 %v1045
    %1102 = vmatprep.subr.mxu0 0.0
    %1103 = vmatpush1.msra.mxu0 %v1044
    %1104 = vmatprep.subr.mxu0 0.0
    %1105 = vmatpush1.msra.mxu0 %v1043
    %1106 = vmatprep.subr.mxu0 0.0
    %1107 = vmatpush1.msra.mxu0 %v1042
    %1108 = vmatprep.subr.mxu0 0.0
    %1109 = vmatpush1.msra.mxu0 %v1041
    %1110 = vmatprep.subr.mxu0 0.0
    %1111 = vmatpush1.msra.mxu0 %v1040
    %1112 = vmatprep.subr.mxu0 0.0
    %1113 = vmatpush1.msra.mxu0 %v1039
    %1114 = vmatprep.subr.mxu0 0.0
    %1115 = vmatpush1.msra.mxu0 %v1038
    %1116 = vmatprep.subr.mxu0 0.0
    %1117 = vmatpush1.msra.mxu0 %v1037
    %1118 = vmatprep.subr.mxu0 0.0
    %1119 = vmatpush1.msra.mxu0 %v1036
    %1120 = vmatprep.subr.mxu0 0.0
    %1121 = vmatpush1.msra.mxu0 %v1035
    %1122 = vmatprep.subr.mxu0 0.0
    %1123 = vmatpush1.msra.mxu0 %v1034
    %1124 = vmatprep.subr.mxu0 0.0
    %1125 = vmatpush1.msra.mxu0 %v1033
    %1126 = vmatprep.subr.mxu0 0.0
    %1127 = vmatpush1.msra.mxu0 %v1032
    %1128 = vmatprep.subr.mxu0 0.0
    %1129 = vmatpush2.msra.mxu0 %v1063
    %1130 = vmatprep.subr.mxu0 0.0
    %1131 = vmatpush2.msra.mxu0 %v1062
    %1132 = vmatprep.subr.mxu0 0.0
    %1133 = vmatpush2.msra.mxu0 %v1061
    %1134 = vmatprep.subr.mxu0 0.0
    %1135 = vmatpush2.msra.mxu0 %v1060
    %1136 = vmatprep.subr.mxu0 0.0
    %1137 = vmatpush2.msra.mxu0 %v1059
    %1138 = vmatprep.subr.mxu0 0.0
    %1139 = vmatpush2.msra.mxu0 %v1058
    %1140 = vmatprep.subr.mxu0 0.0
    %1141 = vmatpush2.msra.mxu0 %v1057
    %1142 = vmatprep.subr.mxu0 0.0
    %1143 = vmatpush2.msra.mxu0 %v1056
    %1144 = vmatprep.subr.mxu0 0.0
    %1145 = vmatpush2.msra.mxu0 %v1055
    %1146 = vmatprep.subr.mxu0 0.0
    %1147 = vmatpush2.msra.mxu0 %v1054
    %1148 = vmatprep.subr.mxu0 0.0
    %1149 = vmatpush2.msra.mxu0 %v1053
    %1150 = vmatprep.subr.mxu0 0.0
    %1151 = vmatpush2.msra.mxu0 %v1052
    %1152 = vmatprep.subr.mxu0 0.0
    %1153 = vmatpush2.msra.mxu0 %v1051
    %1154 = vmatprep.subr.mxu0 0.0
    %1155 = vmatpush2.msra.mxu0 %v1050
    %1156 = vmatprep.subr.mxu0 0.0
    %1157 = vmatpush2.msra.mxu0 %v1049
    %1158 = vmatprep.subr.mxu0 0.0
    %1159 = vmatpush2.msra.mxu0 %v1048
    %1160 = vmatprep.mubr.f32.mxu0 %v196
    %1161 = vmatmul.mubr.f32.gmra.mxu0 %v195
    %v1162 = vpop.f32.mrf.mxu0
    %v1163 = vadd.f32 0.0, %v1162
    %v1164 = vpop.f32.mrf.mxu0
    %1165 = vdwg.mxu0
    %1166 = vmatprep.subr.mxu0 0.0
    %1167 = vmatpush1.msra.mxu0 %v1079
    %1168 = vmatprep.subr.mxu0 0.0
    %1169 = vmatpush1.msra.mxu0 %v1078
    %1170 = vmatprep.subr.mxu0 0.0
    %1171 = vmatpush1.msra.mxu0 %v1077
    %1172 = vmatprep.subr.mxu0 0.0
    %1173 = vmatpush1.msra.mxu0 %v1076
    %1174 = vmatprep.subr.mxu0 0.0
    %1175 = vmatpush1.msra.mxu0 %v1075
    %1176 = vmatprep.subr.mxu0 0.0
    %1177 = vmatpush1.msra.mxu0 %v1074
    %1178 = vmatprep.subr.mxu0 0.0
    %1179 = vmatpush1.msra.mxu0 %v1073
    %1180 = vmatprep.subr.mxu0 0.0
    %1181 = vmatpush1.msra.mxu0 %v1072
    %1182 = vmatprep.subr.mxu0 0.0
    %1183 = vmatpush1.msra.mxu0 %v1071
    %1184 = vmatprep.subr.mxu0 0.0
    %1185 = vmatpush1.msra.mxu0 %v1070
    %1186 = vmatprep.subr.mxu0 0.0
    %1187 = vmatpush1.msra.mxu0 %v1069
    %1188 = vmatprep.subr.mxu0 0.0
    %1189 = vmatpush1.msra.mxu0 %v1068
    %1190 = vmatprep.subr.mxu0 0.0
    %1191 = vmatpush1.msra.mxu0 %v1067
    %1192 = vmatprep.subr.mxu0 0.0
    %1193 = vmatpush1.msra.mxu0 %v1066
    %1194 = vmatprep.subr.mxu0 0.0
    %1195 = vmatpush1.msra.mxu0 %v1065
    %1196 = vmatprep.subr.mxu0 0.0
    %1197 = vmatpush1.msra.mxu0 %v1064
    %1198 = vmatprep.subr.mxu0 0.0
    %1199 = vmatpush2.msra.mxu0 %v1095
    %1200 = vmatprep.subr.mxu0 0.0
    %1201 = vmatpush2.msra.mxu0 %v1094
    %1202 = vmatprep.subr.mxu0 0.0
    %1203 = vmatpush2.msra.mxu0 %v1093
    %1204 = vmatprep.subr.mxu0 0.0
    %1205 = vmatpush2.msra.mxu0 %v1092
    %1206 = vmatprep.subr.mxu0 0.0
    %1207 = vmatpush2.msra.mxu0 %v1091
    %1208 = vmatprep.subr.mxu0 0.0
    %1209 = vmatpush2.msra.mxu0 %v1090
    %1210 = vmatprep.subr.mxu0 0.0
    %1211 = vmatpush2.msra.mxu0 %v1089
    %1212 = vmatprep.subr.mxu0 0.0
    %1213 = vmatpush2.msra.mxu0 %v1088
    %1214 = vmatprep.subr.mxu0 0.0
    %1215 = vmatpush2.msra.mxu0 %v1087
    %1216 = vmatprep.subr.mxu0 0.0
    %1217 = vmatpush2.msra.mxu0 %v1086
    %1218 = vmatprep.subr.mxu0 0.0
    %1219 = vmatpush2.msra.mxu0 %v1085
    %1220 = vmatprep.subr.mxu0 0.0
    %1221 = vmatpush2.msra.mxu0 %v1084
    %1222 = vmatprep.subr.mxu0 0.0
    %1223 = vmatpush2.msra.mxu0 %v1083
    %1224 = vmatprep.subr.mxu0 0.0
    %1225 = vmatpush2.msra.mxu0 %v1082
    %1226 = vmatprep.subr.mxu0 0.0
    %1227 = vmatpush2.msra.mxu0 %v1081
    %1228 = vmatprep.subr.mxu0 0.0
    %1229 = vmatpush2.msra.mxu0 %v1080
    %1230 = vmatprep.mubr.f32.mxu0 %v198
    %1231 = vmatmul.mubr.f32.gmra.mxu0 %v197
    %v1232 = vpop.f32.mrf.mxu0
    %v1233 = vadd.f32 %v1163, %v1232
    %v1234 = vpop.f32.mrf.mxu0
    %1235 = vdwg.mxu0
    %s1236 = scalar_lea.vmem %s4, 16
    %v1237 = vld [vmem:[%s1236] sm:$0xff]
    %v1239 = vsel %vm539, %v1237, 0
    %1241 = vmatprep.subr.mxu0 0.0
    %1242 = vmatpush1.msra.mxu0 0.0
    %1243 = vmatprep.subr.mxu0 0.0
    %1244 = vmatpush1.msra.mxu0 0.0
    %1245 = vmatprep.subr.mxu0 0.0
    %1246 = vmatpush1.msra.mxu0 0.0
    %1247 = vmatprep.subr.mxu0 0.0
    %1248 = vmatpush1.msra.mxu0 0.0
    %1249 = vmatprep.subr.mxu0 0.0
    %1250 = vmatpush1.msra.mxu0 0.0
    %1251 = vmatprep.subr.mxu0 0.0
    %1252 = vmatpush1.msra.mxu0 0.0
    %1253 = vmatprep.subr.mxu0 0.0
    %1254 = vmatpush1.msra.mxu0 0.0
    %1255 = vmatprep.subr.mxu0 0.0
    %1256 = vmatpush1.msra.mxu0 0.0
    %1257 = vmatprep.subr.mxu0 0.0
    %1258 = vmatpush1.msra.mxu0 0.0
    %1259 = vmatprep.subr.mxu0 0.0
    %1260 = vmatpush1.msra.mxu0 0.0
    %1261 = vmatprep.subr.mxu0 0.0
    %1262 = vmatpush1.msra.mxu0 0.0
    %1263 = vmatprep.subr.mxu0 0.0
    %1264 = vmatpush1.msra.mxu0 0.0
    %1265 = vmatprep.subr.mxu0 0.0
    %1266 = vmatpush1.msra.mxu0 0.0
    %1267 = vmatprep.subr.mxu0 0.0
    %1268 = vmatpush1.msra.mxu0 0.0
    %1269 = vmatprep.subr.mxu0 0.0
    %1270 = vmatpush1.msra.mxu0 0.0
    %1271 = vmatprep.subr.mxu0 0.0
    %1272 = vmatpush1.msra.mxu0 %v1233
    %1273 = vmatprep.subr.mxu0 0.0
    %1274 = vmatpush2.msra.mxu0 0.0
    %1275 = vmatprep.subr.mxu0 0.0
    %1276 = vmatpush2.msra.mxu0 0.0
    %1277 = vmatprep.subr.mxu0 0.0
    %1278 = vmatpush2.msra.mxu0 0.0
    %1279 = vmatprep.subr.mxu0 0.0
    %1280 = vmatpush2.msra.mxu0 0.0
    %1281 = vmatprep.subr.mxu0 0.0
    %1282 = vmatpush2.msra.mxu0 0.0
    %1283 = vmatprep.subr.mxu0 0.0
    %1284 = vmatpush2.msra.mxu0 0.0
    %1285 = vmatprep.subr.mxu0 0.0
    %1286 = vmatpush2.msra.mxu0 0.0
    %1287 = vmatprep.subr.mxu0 0.0
    %1288 = vmatpush2.msra.mxu0 0.0
    %1289 = vmatprep.subr.mxu0 0.0
    %1290 = vmatpush2.msra.mxu0 0.0
    %1291 = vmatprep.subr.mxu0 0.0
    %1292 = vmatpush2.msra.mxu0 0.0
    %1293 = vmatprep.subr.mxu0 0.0
    %1294 = vmatpush2.msra.mxu0 0.0
    %1295 = vmatprep.subr.mxu0 0.0
    %1296 = vmatpush2.msra.mxu0 0.0
    %1297 = vmatprep.subr.mxu0 0.0
    %1298 = vmatpush2.msra.mxu0 0.0
    %1299 = vmatprep.subr.mxu0 0.0
    %1300 = vmatpush2.msra.mxu0 0.0
    %1301 = vmatprep.subr.mxu0 0.0
    %1302 = vmatpush2.msra.mxu0 0.0
    %1303 = vmatprep.subr.mxu0 0.0
    %1304 = vmatpush2.msra.mxu0 0.0
    %1305 = vmatprep.mubr.f32.mxu0 0.0
    %1306 = vmatmul.mubr.f32.gmra.mxu0 %v1239
    %v1307 = vpop.f32.mrf.mxu0
    %v1308 = vadd.f32 0.0, %v1307
    %v1309 = vpop.f32.mrf.mxu0
    %1310 = vdwg.mxu0
    %v1311 = vadd.f32 %v962, %v1308
    %v1312 = vld [vmem:[%s3 + $0x3] sm:$0x1]
    %v1313 = vlaneseq
    %v1314 = vshrl.u32 %v1313, 7
    %v1315 = vsub.s32 0, %v1314
    %v1316 = vrot.slane %v1312, %v1315
    %vm1317 = vcmp.eq.s32.totalorder %v200, %v1316
    %vm1318 = vcmp.eq.s32.totalorder %v201, %v1316
    %vm1319 = vcmp.eq.s32.totalorder %v202, %v1316
    %vm1320 = vcmp.eq.s32.totalorder %v203, %v1316
    %vm1321 = vcmp.eq.s32.totalorder %v204, %v1316
    %vm1322 = vcmp.eq.s32.totalorder %v205, %v1316
    %vm1323 = vcmp.eq.s32.totalorder %v206, %v1316
    %vm1324 = vcmp.eq.s32.totalorder %v207, %v1316
    %vm1325 = vcmp.eq.s32.totalorder %v208, %v1316
    %vm1326 = vcmp.eq.s32.totalorder %v209, %v1316
    %vm1327 = vcmp.eq.s32.totalorder %v210, %v1316
    %vm1328 = vcmp.eq.s32.totalorder %v211, %v1316
    %vm1329 = vcmp.eq.s32.totalorder %v212, %v1316
    %vm1330 = vcmp.eq.s32.totalorder %v213, %v1316
    %vm1331 = vcmp.eq.s32.totalorder %v214, %v1316
    %vm1332 = vcmp.eq.s32.totalorder %v215, %v1316
    %vm1333 = vcmp.eq.s32.totalorder %v216, %v1316
    %vm1334 = vcmp.eq.s32.totalorder %v217, %v1316
    %vm1335 = vcmp.eq.s32.totalorder %v218, %v1316
    %vm1336 = vcmp.eq.s32.totalorder %v219, %v1316
    %vm1337 = vcmp.eq.s32.totalorder %v220, %v1316
    %vm1338 = vcmp.eq.s32.totalorder %v221, %v1316
    %vm1339 = vcmp.eq.s32.totalorder %v222, %v1316
    %vm1340 = vcmp.eq.s32.totalorder %v223, %v1316
    %vm1341 = vcmp.eq.s32.totalorder %v224, %v1316
    %vm1342 = vcmp.eq.s32.totalorder %v225, %v1316
    %vm1343 = vcmp.eq.s32.totalorder %v226, %v1316
    %vm1344 = vcmp.eq.s32.totalorder %v227, %v1316
    %vm1345 = vcmp.eq.s32.totalorder %v228, %v1316
    %vm1346 = vcmp.eq.s32.totalorder %v229, %v1316
    %vm1347 = vcmp.eq.s32.totalorder %v230, %v1316
    %vm1348 = vcmp.eq.s32.totalorder %v231, %v1316
    %vm1349 = vcmp.eq.s32.totalorder %v232, %v1316
    %vm1350 = vcmp.eq.s32.totalorder %v233, %v1316
    %vm1351 = vcmp.eq.s32.totalorder %v234, %v1316
    %vm1352 = vcmp.eq.s32.totalorder %v235, %v1316
    %vm1353 = vcmp.eq.s32.totalorder %v236, %v1316
    %vm1354 = vcmp.eq.s32.totalorder %v237, %v1316
    %vm1355 = vcmp.eq.s32.totalorder %v238, %v1316
    %vm1356 = vcmp.eq.s32.totalorder %v239, %v1316
    %vm1357 = vcmp.eq.s32.totalorder %v240, %v1316
    %vm1358 = vcmp.eq.s32.totalorder %v241, %v1316
    %vm1359 = vcmp.eq.s32.totalorder %v242, %v1316
    %vm1360 = vcmp.eq.s32.totalorder %v243, %v1316
    %vm1361 = vcmp.eq.s32.totalorder %v244, %v1316
    %vm1362 = vcmp.eq.s32.totalorder %v245, %v1316
    %vm1363 = vcmp.eq.s32.totalorder %v246, %v1316
    %vm1364 = vcmp.eq.s32.totalorder %v247, %v1316
    %vm1365 = vcmp.eq.s32.totalorder %v248, %v1316
    %vm1366 = vcmp.eq.s32.totalorder %v249, %v1316
    %vm1367 = vcmp.eq.s32.totalorder %v250, %v1316
    %vm1368 = vcmp.eq.s32.totalorder %v251, %v1316
    %vm1369 = vcmp.eq.s32.totalorder %v252, %v1316
    %vm1370 = vcmp.eq.s32.totalorder %v253, %v1316
    %vm1371 = vcmp.eq.s32.totalorder %v254, %v1316
    %vm1372 = vcmp.eq.s32.totalorder %v255, %v1316
    %vm1373 = vcmp.eq.s32.totalorder %v256, %v1316
    %vm1374 = vcmp.eq.s32.totalorder %v257, %v1316
    %vm1375 = vcmp.eq.s32.totalorder %v258, %v1316
    %vm1376 = vcmp.eq.s32.totalorder %v259, %v1316
    %vm1377 = vcmp.eq.s32.totalorder %v260, %v1316
    %vm1378 = vcmp.eq.s32.totalorder %v261, %v1316
    %vm1379 = vcmp.eq.s32.totalorder %v262, %v1316
    %vm1380 = vcmp.eq.s32.totalorder %v263, %v1316
    %v1381 = vsel %vm1317, 1.0, 0.0
    %v1382 = vsel %vm1318, 1.0, 0.0
    %v1383 = vsel %vm1319, 1.0, 0.0
    %v1384 = vsel %vm1320, 1.0, 0.0
    %v1385 = vsel %vm1321, 1.0, 0.0
    %v1386 = vsel %vm1322, 1.0, 0.0
    %v1387 = vsel %vm1323, 1.0, 0.0
    %v1388 = vsel %vm1324, 1.0, 0.0
    %v1389 = vsel %vm1325, 1.0, 0.0
    %v1390 = vsel %vm1326, 1.0, 0.0
    %v1391 = vsel %vm1327, 1.0, 0.0
    %v1392 = vsel %vm1328, 1.0, 0.0
    %v1393 = vsel %vm1329, 1.0, 0.0
    %v1394 = vsel %vm1330, 1.0, 0.0
    %v1395 = vsel %vm1331, 1.0, 0.0
    %v1396 = vsel %vm1332, 1.0, 0.0
    %v1397 = vsel %vm1333, 1.0, 0.0
    %v1398 = vsel %vm1334, 1.0, 0.0
    %v1399 = vsel %vm1335, 1.0, 0.0
    %v1400 = vsel %vm1336, 1.0, 0.0
    %v1401 = vsel %vm1337, 1.0, 0.0
    %v1402 = vsel %vm1338, 1.0, 0.0
    %v1403 = vsel %vm1339, 1.0, 0.0
    %v1404 = vsel %vm1340, 1.0, 0.0
    %v1405 = vsel %vm1341, 1.0, 0.0
    %v1406 = vsel %vm1342, 1.0, 0.0
    %v1407 = vsel %vm1343, 1.0, 0.0
    %v1408 = vsel %vm1344, 1.0, 0.0
    %v1409 = vsel %vm1345, 1.0, 0.0
    %v1410 = vsel %vm1346, 1.0, 0.0
    %v1411 = vsel %vm1347, 1.0, 0.0
    %v1412 = vsel %vm1348, 1.0, 0.0
    %v1413 = vsel %vm1349, 1.0, 0.0
    %v1414 = vsel %vm1350, 1.0, 0.0
    %v1415 = vsel %vm1351, 1.0, 0.0
    %v1416 = vsel %vm1352, 1.0, 0.0
    %v1417 = vsel %vm1353, 1.0, 0.0
    %v1418 = vsel %vm1354, 1.0, 0.0
    %v1419 = vsel %vm1355, 1.0, 0.0
    %v1420 = vsel %vm1356, 1.0, 0.0
    %v1421 = vsel %vm1357, 1.0, 0.0
    %v1422 = vsel %vm1358, 1.0, 0.0
    %v1423 = vsel %vm1359, 1.0, 0.0
    %v1424 = vsel %vm1360, 1.0, 0.0
    %v1425 = vsel %vm1361, 1.0, 0.0
    %v1426 = vsel %vm1362, 1.0, 0.0
    %v1427 = vsel %vm1363, 1.0, 0.0
    %v1428 = vsel %vm1364, 1.0, 0.0
    %v1429 = vsel %vm1365, 1.0, 0.0
    %v1430 = vsel %vm1366, 1.0, 0.0
    %v1431 = vsel %vm1367, 1.0, 0.0
    %v1432 = vsel %vm1368, 1.0, 0.0
    %v1433 = vsel %vm1369, 1.0, 0.0
    %v1434 = vsel %vm1370, 1.0, 0.0
    %v1435 = vsel %vm1371, 1.0, 0.0
    %v1436 = vsel %vm1372, 1.0, 0.0
    %v1437 = vsel %vm1373, 1.0, 0.0
    %v1438 = vsel %vm1374, 1.0, 0.0
    %v1439 = vsel %vm1375, 1.0, 0.0
    %v1440 = vsel %vm1376, 1.0, 0.0
    %v1441 = vsel %vm1377, 1.0, 0.0
    %v1442 = vsel %vm1378, 1.0, 0.0
    %v1443 = vsel %vm1379, 1.0, 0.0
    %v1444 = vsel %vm1380, 1.0, 0.0
    %1445 = vmatprep.subr.mxu0 0.0
    %1446 = vmatpush1.msra.mxu0 %v1396
    %1447 = vmatprep.subr.mxu0 0.0
    %1448 = vmatpush1.msra.mxu0 %v1395
    %1449 = vmatprep.subr.mxu0 0.0
    %1450 = vmatpush1.msra.mxu0 %v1394
    %1451 = vmatprep.subr.mxu0 0.0
    %1452 = vmatpush1.msra.mxu0 %v1393
    %1453 = vmatprep.subr.mxu0 0.0
    %1454 = vmatpush1.msra.mxu0 %v1392
    %1455 = vmatprep.subr.mxu0 0.0
    %1456 = vmatpush1.msra.mxu0 %v1391
    %1457 = vmatprep.subr.mxu0 0.0
    %1458 = vmatpush1.msra.mxu0 %v1390
    %1459 = vmatprep.subr.mxu0 0.0
    %1460 = vmatpush1.msra.mxu0 %v1389
    %1461 = vmatprep.subr.mxu0 0.0
    %1462 = vmatpush1.msra.mxu0 %v1388
    %1463 = vmatprep.subr.mxu0 0.0
    %1464 = vmatpush1.msra.mxu0 %v1387
    %1465 = vmatprep.subr.mxu0 0.0
    %1466 = vmatpush1.msra.mxu0 %v1386
    %1467 = vmatprep.subr.mxu0 0.0
    %1468 = vmatpush1.msra.mxu0 %v1385
    %1469 = vmatprep.subr.mxu0 0.0
    %1470 = vmatpush1.msra.mxu0 %v1384
    %1471 = vmatprep.subr.mxu0 0.0
    %1472 = vmatpush1.msra.mxu0 %v1383
    %1473 = vmatprep.subr.mxu0 0.0
    %1474 = vmatpush1.msra.mxu0 %v1382
    %1475 = vmatprep.subr.mxu0 0.0
    %1476 = vmatpush1.msra.mxu0 %v1381
    %1477 = vmatprep.subr.mxu0 0.0
    %1478 = vmatpush2.msra.mxu0 %v1412
    %1479 = vmatprep.subr.mxu0 0.0
    %1480 = vmatpush2.msra.mxu0 %v1411
    %1481 = vmatprep.subr.mxu0 0.0
    %1482 = vmatpush2.msra.mxu0 %v1410
    %1483 = vmatprep.subr.mxu0 0.0
    %1484 = vmatpush2.msra.mxu0 %v1409
    %1485 = vmatprep.subr.mxu0 0.0
    %1486 = vmatpush2.msra.mxu0 %v1408
    %1487 = vmatprep.subr.mxu0 0.0
    %1488 = vmatpush2.msra.mxu0 %v1407
    %1489 = vmatprep.subr.mxu0 0.0
    %1490 = vmatpush2.msra.mxu0 %v1406
    %1491 = vmatprep.subr.mxu0 0.0
    %1492 = vmatpush2.msra.mxu0 %v1405
    %1493 = vmatprep.subr.mxu0 0.0
    %1494 = vmatpush2.msra.mxu0 %v1404
    %1495 = vmatprep.subr.mxu0 0.0
    %1496 = vmatpush2.msra.mxu0 %v1403
    %1497 = vmatprep.subr.mxu0 0.0
    %1498 = vmatpush2.msra.mxu0 %v1402
    %1499 = vmatprep.subr.mxu0 0.0
    %1500 = vmatpush2.msra.mxu0 %v1401
    %1501 = vmatprep.subr.mxu0 0.0
    %1502 = vmatpush2.msra.mxu0 %v1400
    %1503 = vmatprep.subr.mxu0 0.0
    %1504 = vmatpush2.msra.mxu0 %v1399
    %1505 = vmatprep.subr.mxu0 0.0
    %1506 = vmatpush2.msra.mxu0 %v1398
    %1507 = vmatprep.subr.mxu0 0.0
    %1508 = vmatpush2.msra.mxu0 %v1397
    %1509 = vmatprep.mubr.f32.mxu0 %v196
    %1510 = vmatmul.mubr.f32.gmra.mxu0 %v195
    %v1511 = vpop.f32.mrf.mxu0
    %v1512 = vadd.f32 0.0, %v1511
    %v1513 = vpop.f32.mrf.mxu0
    %1514 = vdwg.mxu0
    %1515 = vmatprep.subr.mxu0 0.0
    %1516 = vmatpush1.msra.mxu0 %v1428
    %1517 = vmatprep.subr.mxu0 0.0
    %1518 = vmatpush1.msra.mxu0 %v1427
    %1519 = vmatprep.subr.mxu0 0.0
    %1520 = vmatpush1.msra.mxu0 %v1426
    %1521 = vmatprep.subr.mxu0 0.0
    %1522 = vmatpush1.msra.mxu0 %v1425
    %1523 = vmatprep.subr.mxu0 0.0
    %1524 = vmatpush1.msra.mxu0 %v1424
    %1525 = vmatprep.subr.mxu0 0.0
    %1526 = vmatpush1.msra.mxu0 %v1423
    %1527 = vmatprep.subr.mxu0 0.0
    %1528 = vmatpush1.msra.mxu0 %v1422
    %1529 = vmatprep.subr.mxu0 0.0
    %1530 = vmatpush1.msra.mxu0 %v1421
    %1531 = vmatprep.subr.mxu0 0.0
    %1532 = vmatpush1.msra.mxu0 %v1420
    %1533 = vmatprep.subr.mxu0 0.0
    %1534 = vmatpush1.msra.mxu0 %v1419
    %1535 = vmatprep.subr.mxu0 0.0
    %1536 = vmatpush1.msra.mxu0 %v1418
    %1537 = vmatprep.subr.mxu0 0.0
    %1538 = vmatpush1.msra.mxu0 %v1417
    %1539 = vmatprep.subr.mxu0 0.0
    %1540 = vmatpush1.msra.mxu0 %v1416
    %1541 = vmatprep.subr.mxu0 0.0
    %1542 = vmatpush1.msra.mxu0 %v1415
    %1543 = vmatprep.subr.mxu0 0.0
    %1544 = vmatpush1.msra.mxu0 %v1414
    %1545 = vmatprep.subr.mxu0 0.0
    %1546 = vmatpush1.msra.mxu0 %v1413
    %1547 = vmatprep.subr.mxu0 0.0
    %1548 = vmatpush2.msra.mxu0 %v1444
    %1549 = vmatprep.subr.mxu0 0.0
    %1550 = vmatpush2.msra.mxu0 %v1443
    %1551 = vmatprep.subr.mxu0 0.0
    %1552 = vmatpush2.msra.mxu0 %v1442
    %1553 = vmatprep.subr.mxu0 0.0
    %1554 = vmatpush2.msra.mxu0 %v1441
    %1555 = vmatprep.subr.mxu0 0.0
    %1556 = vmatpush2.msra.mxu0 %v1440
    %1557 = vmatprep.subr.mxu0 0.0
    %1558 = vmatpush2.msra.mxu0 %v1439
    %1559 = vmatprep.subr.mxu0 0.0
    %1560 = vmatpush2.msra.mxu0 %v1438
    %1561 = vmatprep.subr.mxu0 0.0
    %1562 = vmatpush2.msra.mxu0 %v1437
    %1563 = vmatprep.subr.mxu0 0.0
    %1564 = vmatpush2.msra.mxu0 %v1436
    %1565 = vmatprep.subr.mxu0 0.0
    %1566 = vmatpush2.msra.mxu0 %v1435
    %1567 = vmatprep.subr.mxu0 0.0
    %1568 = vmatpush2.msra.mxu0 %v1434
    %1569 = vmatprep.subr.mxu0 0.0
    %1570 = vmatpush2.msra.mxu0 %v1433
    %1571 = vmatprep.subr.mxu0 0.0
    %1572 = vmatpush2.msra.mxu0 %v1432
    %1573 = vmatprep.subr.mxu0 0.0
    %1574 = vmatpush2.msra.mxu0 %v1431
    %1575 = vmatprep.subr.mxu0 0.0
    %1576 = vmatpush2.msra.mxu0 %v1430
    %1577 = vmatprep.subr.mxu0 0.0
    %1578 = vmatpush2.msra.mxu0 %v1429
    %1579 = vmatprep.mubr.f32.mxu0 %v198
    %1580 = vmatmul.mubr.f32.gmra.mxu0 %v197
    %v1581 = vpop.f32.mrf.mxu0
    %v1582 = vadd.f32 %v1512, %v1581
    %v1583 = vpop.f32.mrf.mxu0
    %1584 = vdwg.mxu0
    %s1585 = scalar_lea.vmem %s4, 24
    %v1586 = vld [vmem:[%s1585] sm:$0xff]
    %v1588 = vsel %vm539, %v1586, 0
    %1590 = vmatprep.subr.mxu0 0.0
    %1591 = vmatpush1.msra.mxu0 0.0
    %1592 = vmatprep.subr.mxu0 0.0
    %1593 = vmatpush1.msra.mxu0 0.0
    %1594 = vmatprep.subr.mxu0 0.0
    %1595 = vmatpush1.msra.mxu0 0.0
    %1596 = vmatprep.subr.mxu0 0.0
    %1597 = vmatpush1.msra.mxu0 0.0
    %1598 = vmatprep.subr.mxu0 0.0
    %1599 = vmatpush1.msra.mxu0 0.0
    %1600 = vmatprep.subr.mxu0 0.0
    %1601 = vmatpush1.msra.mxu0 0.0
    %1602 = vmatprep.subr.mxu0 0.0
    %1603 = vmatpush1.msra.mxu0 0.0
    %1604 = vmatprep.subr.mxu0 0.0
    %1605 = vmatpush1.msra.mxu0 0.0
    %1606 = vmatprep.subr.mxu0 0.0
    %1607 = vmatpush1.msra.mxu0 0.0
    %1608 = vmatprep.subr.mxu0 0.0
    %1609 = vmatpush1.msra.mxu0 0.0
    %1610 = vmatprep.subr.mxu0 0.0
    %1611 = vmatpush1.msra.mxu0 0.0
    %1612 = vmatprep.subr.mxu0 0.0
    %1613 = vmatpush1.msra.mxu0 0.0
    %1614 = vmatprep.subr.mxu0 0.0
    %1615 = vmatpush1.msra.mxu0 0.0
    %1616 = vmatprep.subr.mxu0 0.0
    %1617 = vmatpush1.msra.mxu0 0.0
    %1618 = vmatprep.subr.mxu0 0.0
    %1619 = vmatpush1.msra.mxu0 0.0
    %1620 = vmatprep.subr.mxu0 0.0
    %1621 = vmatpush1.msra.mxu0 %v1582
    %1622 = vmatprep.subr.mxu0 0.0
    %1623 = vmatpush2.msra.mxu0 0.0
    %1624 = vmatprep.subr.mxu0 0.0
    %1625 = vmatpush2.msra.mxu0 0.0
    %1626 = vmatprep.subr.mxu0 0.0
    %1627 = vmatpush2.msra.mxu0 0.0
    %1628 = vmatprep.subr.mxu0 0.0
    %1629 = vmatpush2.msra.mxu0 0.0
    %1630 = vmatprep.subr.mxu0 0.0
    %1631 = vmatpush2.msra.mxu0 0.0
    %1632 = vmatprep.subr.mxu0 0.0
    %1633 = vmatpush2.msra.mxu0 0.0
    %1634 = vmatprep.subr.mxu0 0.0
    %1635 = vmatpush2.msra.mxu0 0.0
    %1636 = vmatprep.subr.mxu0 0.0
    %1637 = vmatpush2.msra.mxu0 0.0
    %1638 = vmatprep.subr.mxu0 0.0
    %1639 = vmatpush2.msra.mxu0 0.0
    %1640 = vmatprep.subr.mxu0 0.0
    %1641 = vmatpush2.msra.mxu0 0.0
    %1642 = vmatprep.subr.mxu0 0.0
    %1643 = vmatpush2.msra.mxu0 0.0
    %1644 = vmatprep.subr.mxu0 0.0
    %1645 = vmatpush2.msra.mxu0 0.0
    %1646 = vmatprep.subr.mxu0 0.0
    %1647 = vmatpush2.msra.mxu0 0.0
    %1648 = vmatprep.subr.mxu0 0.0
    %1649 = vmatpush2.msra.mxu0 0.0
    %1650 = vmatprep.subr.mxu0 0.0
    %1651 = vmatpush2.msra.mxu0 0.0
    %1652 = vmatprep.subr.mxu0 0.0
    %1653 = vmatpush2.msra.mxu0 0.0
    %1654 = vmatprep.mubr.f32.mxu0 0.0
    %1655 = vmatmul.mubr.f32.gmra.mxu0 %v1588
    %v1656 = vpop.f32.mrf.mxu0
    %v1657 = vadd.f32 0.0, %v1656
    %v1658 = vpop.f32.mrf.mxu0
    %1659 = vdwg.mxu0
    %v1660 = vadd.f32 %v1311, %v1657
    %v1661 = vld [vmem:[%s3 + $0x4] sm:$0x1]
    %v1662 = vlaneseq
    %v1663 = vshrl.u32 %v1662, 7
    %v1664 = vsub.s32 0, %v1663
    %v1665 = vrot.slane %v1661, %v1664
    %vm1666 = vcmp.eq.s32.totalorder %v200, %v1665
    %vm1667 = vcmp.eq.s32.totalorder %v201, %v1665
    %vm1668 = vcmp.eq.s32.totalorder %v202, %v1665
    %vm1669 = vcmp.eq.s32.totalorder %v203, %v1665
    %vm1670 = vcmp.eq.s32.totalorder %v204, %v1665
    %vm1671 = vcmp.eq.s32.totalorder %v205, %v1665
    %vm1672 = vcmp.eq.s32.totalorder %v206, %v1665
    %vm1673 = vcmp.eq.s32.totalorder %v207, %v1665
    %vm1674 = vcmp.eq.s32.totalorder %v208, %v1665
    %vm1675 = vcmp.eq.s32.totalorder %v209, %v1665
    %vm1676 = vcmp.eq.s32.totalorder %v210, %v1665
    %vm1677 = vcmp.eq.s32.totalorder %v211, %v1665
    %vm1678 = vcmp.eq.s32.totalorder %v212, %v1665
    %vm1679 = vcmp.eq.s32.totalorder %v213, %v1665
    %vm1680 = vcmp.eq.s32.totalorder %v214, %v1665
    %vm1681 = vcmp.eq.s32.totalorder %v215, %v1665
    %vm1682 = vcmp.eq.s32.totalorder %v216, %v1665
    %vm1683 = vcmp.eq.s32.totalorder %v217, %v1665
    %vm1684 = vcmp.eq.s32.totalorder %v218, %v1665
    %vm1685 = vcmp.eq.s32.totalorder %v219, %v1665
    %vm1686 = vcmp.eq.s32.totalorder %v220, %v1665
    %vm1687 = vcmp.eq.s32.totalorder %v221, %v1665
    %vm1688 = vcmp.eq.s32.totalorder %v222, %v1665
    %vm1689 = vcmp.eq.s32.totalorder %v223, %v1665
    %vm1690 = vcmp.eq.s32.totalorder %v224, %v1665
    %vm1691 = vcmp.eq.s32.totalorder %v225, %v1665
    %vm1692 = vcmp.eq.s32.totalorder %v226, %v1665
    %vm1693 = vcmp.eq.s32.totalorder %v227, %v1665
    %vm1694 = vcmp.eq.s32.totalorder %v228, %v1665
    %vm1695 = vcmp.eq.s32.totalorder %v229, %v1665
    %vm1696 = vcmp.eq.s32.totalorder %v230, %v1665
    %vm1697 = vcmp.eq.s32.totalorder %v231, %v1665
    %vm1698 = vcmp.eq.s32.totalorder %v232, %v1665
    %vm1699 = vcmp.eq.s32.totalorder %v233, %v1665
    %vm1700 = vcmp.eq.s32.totalorder %v234, %v1665
    %vm1701 = vcmp.eq.s32.totalorder %v235, %v1665
    %vm1702 = vcmp.eq.s32.totalorder %v236, %v1665
    %vm1703 = vcmp.eq.s32.totalorder %v237, %v1665
    %vm1704 = vcmp.eq.s32.totalorder %v238, %v1665
    %vm1705 = vcmp.eq.s32.totalorder %v239, %v1665
    %vm1706 = vcmp.eq.s32.totalorder %v240, %v1665
    %vm1707 = vcmp.eq.s32.totalorder %v241, %v1665
    %vm1708 = vcmp.eq.s32.totalorder %v242, %v1665
    %vm1709 = vcmp.eq.s32.totalorder %v243, %v1665
    %vm1710 = vcmp.eq.s32.totalorder %v244, %v1665
    %vm1711 = vcmp.eq.s32.totalorder %v245, %v1665
    %vm1712 = vcmp.eq.s32.totalorder %v246, %v1665
    %vm1713 = vcmp.eq.s32.totalorder %v247, %v1665
    %vm1714 = vcmp.eq.s32.totalorder %v248, %v1665
    %vm1715 = vcmp.eq.s32.totalorder %v249, %v1665
    %vm1716 = vcmp.eq.s32.totalorder %v250, %v1665
    %vm1717 = vcmp.eq.s32.totalorder %v251, %v1665
    %vm1718 = vcmp.eq.s32.totalorder %v252, %v1665
    %vm1719 = vcmp.eq.s32.totalorder %v253, %v1665
    %vm1720 = vcmp.eq.s32.totalorder %v254, %v1665
    %vm1721 = vcmp.eq.s32.totalorder %v255, %v1665
    %vm1722 = vcmp.eq.s32.totalorder %v256, %v1665
    %vm1723 = vcmp.eq.s32.totalorder %v257, %v1665
    %vm1724 = vcmp.eq.s32.totalorder %v258, %v1665
    %vm1725 = vcmp.eq.s32.totalorder %v259, %v1665
    %vm1726 = vcmp.eq.s32.totalorder %v260, %v1665
    %vm1727 = vcmp.eq.s32.totalorder %v261, %v1665
    %vm1728 = vcmp.eq.s32.totalorder %v262, %v1665
    %vm1729 = vcmp.eq.s32.totalorder %v263, %v1665
    %v1730 = vsel %vm1666, 1.0, 0.0
    %v1731 = vsel %vm1667, 1.0, 0.0
    %v1732 = vsel %vm1668, 1.0, 0.0
    %v1733 = vsel %vm1669, 1.0, 0.0
    %v1734 = vsel %vm1670, 1.0, 0.0
    %v1735 = vsel %vm1671, 1.0, 0.0
    %v1736 = vsel %vm1672, 1.0, 0.0
    %v1737 = vsel %vm1673, 1.0, 0.0
    %v1738 = vsel %vm1674, 1.0, 0.0
    %v1739 = vsel %vm1675, 1.0, 0.0
    %v1740 = vsel %vm1676, 1.0, 0.0
    %v1741 = vsel %vm1677, 1.0, 0.0
    %v1742 = vsel %vm1678, 1.0, 0.0
    %v1743 = vsel %vm1679, 1.0, 0.0
    %v1744 = vsel %vm1680, 1.0, 0.0
    %v1745 = vsel %vm1681, 1.0, 0.0
    %v1746 = vsel %vm1682, 1.0, 0.0
    %v1747 = vsel %vm1683, 1.0, 0.0
    %v1748 = vsel %vm1684, 1.0, 0.0
    %v1749 = vsel %vm1685, 1.0, 0.0
    %v1750 = vsel %vm1686, 1.0, 0.0
    %v1751 = vsel %vm1687, 1.0, 0.0
    %v1752 = vsel %vm1688, 1.0, 0.0
    %v1753 = vsel %vm1689, 1.0, 0.0
    %v1754 = vsel %vm1690, 1.0, 0.0
    %v1755 = vsel %vm1691, 1.0, 0.0
    %v1756 = vsel %vm1692, 1.0, 0.0
    %v1757 = vsel %vm1693, 1.0, 0.0
    %v1758 = vsel %vm1694, 1.0, 0.0
    %v1759 = vsel %vm1695, 1.0, 0.0
    %v1760 = vsel %vm1696, 1.0, 0.0
    %v1761 = vsel %vm1697, 1.0, 0.0
    %v1762 = vsel %vm1698, 1.0, 0.0
    %v1763 = vsel %vm1699, 1.0, 0.0
    %v1764 = vsel %vm1700, 1.0, 0.0
    %v1765 = vsel %vm1701, 1.0, 0.0
    %v1766 = vsel %vm1702, 1.0, 0.0
    %v1767 = vsel %vm1703, 1.0, 0.0
    %v1768 = vsel %vm1704, 1.0, 0.0
    %v1769 = vsel %vm1705, 1.0, 0.0
    %v1770 = vsel %vm1706, 1.0, 0.0
    %v1771 = vsel %vm1707, 1.0, 0.0
    %v1772 = vsel %vm1708, 1.0, 0.0
    %v1773 = vsel %vm1709, 1.0, 0.0
    %v1774 = vsel %vm1710, 1.0, 0.0
    %v1775 = vsel %vm1711, 1.0, 0.0
    %v1776 = vsel %vm1712, 1.0, 0.0
    %v1777 = vsel %vm1713, 1.0, 0.0
    %v1778 = vsel %vm1714, 1.0, 0.0
    %v1779 = vsel %vm1715, 1.0, 0.0
    %v1780 = vsel %vm1716, 1.0, 0.0
    %v1781 = vsel %vm1717, 1.0, 0.0
    %v1782 = vsel %vm1718, 1.0, 0.0
    %v1783 = vsel %vm1719, 1.0, 0.0
    %v1784 = vsel %vm1720, 1.0, 0.0
    %v1785 = vsel %vm1721, 1.0, 0.0
    %v1786 = vsel %vm1722, 1.0, 0.0
    %v1787 = vsel %vm1723, 1.0, 0.0
    %v1788 = vsel %vm1724, 1.0, 0.0
    %v1789 = vsel %vm1725, 1.0, 0.0
    %v1790 = vsel %vm1726, 1.0, 0.0
    %v1791 = vsel %vm1727, 1.0, 0.0
    %v1792 = vsel %vm1728, 1.0, 0.0
    %v1793 = vsel %vm1729, 1.0, 0.0
    %1794 = vmatprep.subr.mxu0 0.0
    %1795 = vmatpush1.msra.mxu0 %v1745
    %1796 = vmatprep.subr.mxu0 0.0
    %1797 = vmatpush1.msra.mxu0 %v1744
    %1798 = vmatprep.subr.mxu0 0.0
    %1799 = vmatpush1.msra.mxu0 %v1743
    %1800 = vmatprep.subr.mxu0 0.0
    %1801 = vmatpush1.msra.mxu0 %v1742
    %1802 = vmatprep.subr.mxu0 0.0
    %1803 = vmatpush1.msra.mxu0 %v1741
    %1804 = vmatprep.subr.mxu0 0.0
    %1805 = vmatpush1.msra.mxu0 %v1740
    %1806 = vmatprep.subr.mxu0 0.0
    %1807 = vmatpush1.msra.mxu0 %v1739
    %1808 = vmatprep.subr.mxu0 0.0
    %1809 = vmatpush1.msra.mxu0 %v1738
    %1810 = vmatprep.subr.mxu0 0.0
    %1811 = vmatpush1.msra.mxu0 %v1737
    %1812 = vmatprep.subr.mxu0 0.0
    %1813 = vmatpush1.msra.mxu0 %v1736
    %1814 = vmatprep.subr.mxu0 0.0
    %1815 = vmatpush1.msra.mxu0 %v1735
    %1816 = vmatprep.subr.mxu0 0.0
    %1817 = vmatpush1.msra.mxu0 %v1734
    %1818 = vmatprep.subr.mxu0 0.0
    %1819 = vmatpush1.msra.mxu0 %v1733
    %1820 = vmatprep.subr.mxu0 0.0
    %1821 = vmatpush1.msra.mxu0 %v1732
    %1822 = vmatprep.subr.mxu0 0.0
    %1823 = vmatpush1.msra.mxu0 %v1731
    %1824 = vmatprep.subr.mxu0 0.0
    %1825 = vmatpush1.msra.mxu0 %v1730
    %1826 = vmatprep.subr.mxu0 0.0
    %1827 = vmatpush2.msra.mxu0 %v1761
    %1828 = vmatprep.subr.mxu0 0.0
    %1829 = vmatpush2.msra.mxu0 %v1760
    %1830 = vmatprep.subr.mxu0 0.0
    %1831 = vmatpush2.msra.mxu0 %v1759
    %1832 = vmatprep.subr.mxu0 0.0
    %1833 = vmatpush2.msra.mxu0 %v1758
    %1834 = vmatprep.subr.mxu0 0.0
    %1835 = vmatpush2.msra.mxu0 %v1757
    %1836 = vmatprep.subr.mxu0 0.0
    %1837 = vmatpush2.msra.mxu0 %v1756
    %1838 = vmatprep.subr.mxu0 0.0
    %1839 = vmatpush2.msra.mxu0 %v1755
    %1840 = vmatprep.subr.mxu0 0.0
    %1841 = vmatpush2.msra.mxu0 %v1754
    %1842 = vmatprep.subr.mxu0 0.0
    %1843 = vmatpush2.msra.mxu0 %v1753
    %1844 = vmatprep.subr.mxu0 0.0
    %1845 = vmatpush2.msra.mxu0 %v1752
    %1846 = vmatprep.subr.mxu0 0.0
    %1847 = vmatpush2.msra.mxu0 %v1751
    %1848 = vmatprep.subr.mxu0 0.0
    %1849 = vmatpush2.msra.mxu0 %v1750
    %1850 = vmatprep.subr.mxu0 0.0
    %1851 = vmatpush2.msra.mxu0 %v1749
    %1852 = vmatprep.subr.mxu0 0.0
    %1853 = vmatpush2.msra.mxu0 %v1748
    %1854 = vmatprep.subr.mxu0 0.0
    %1855 = vmatpush2.msra.mxu0 %v1747
    %1856 = vmatprep.subr.mxu0 0.0
    %1857 = vmatpush2.msra.mxu0 %v1746
    %1858 = vmatprep.mubr.f32.mxu0 %v196
    %1859 = vmatmul.mubr.f32.gmra.mxu0 %v195
    %v1860 = vpop.f32.mrf.mxu0
    %v1861 = vadd.f32 0.0, %v1860
    %v1862 = vpop.f32.mrf.mxu0
    %1863 = vdwg.mxu0
    %1864 = vmatprep.subr.mxu0 0.0
    %1865 = vmatpush1.msra.mxu0 %v1777
    %1866 = vmatprep.subr.mxu0 0.0
    %1867 = vmatpush1.msra.mxu0 %v1776
    %1868 = vmatprep.subr.mxu0 0.0
    %1869 = vmatpush1.msra.mxu0 %v1775
    %1870 = vmatprep.subr.mxu0 0.0
    %1871 = vmatpush1.msra.mxu0 %v1774
    %1872 = vmatprep.subr.mxu0 0.0
    %1873 = vmatpush1.msra.mxu0 %v1773
    %1874 = vmatprep.subr.mxu0 0.0
    %1875 = vmatpush1.msra.mxu0 %v1772
    %1876 = vmatprep.subr.mxu0 0.0
    %1877 = vmatpush1.msra.mxu0 %v1771
    %1878 = vmatprep.subr.mxu0 0.0
    %1879 = vmatpush1.msra.mxu0 %v1770
    %1880 = vmatprep.subr.mxu0 0.0
    %1881 = vmatpush1.msra.mxu0 %v1769
    %1882 = vmatprep.subr.mxu0 0.0
    %1883 = vmatpush1.msra.mxu0 %v1768
    %1884 = vmatprep.subr.mxu0 0.0
    %1885 = vmatpush1.msra.mxu0 %v1767
    %1886 = vmatprep.subr.mxu0 0.0
    %1887 = vmatpush1.msra.mxu0 %v1766
    %1888 = vmatprep.subr.mxu0 0.0
    %1889 = vmatpush1.msra.mxu0 %v1765
    %1890 = vmatprep.subr.mxu0 0.0
    %1891 = vmatpush1.msra.mxu0 %v1764
    %1892 = vmatprep.subr.mxu0 0.0
    %1893 = vmatpush1.msra.mxu0 %v1763
    %1894 = vmatprep.subr.mxu0 0.0
    %1895 = vmatpush1.msra.mxu0 %v1762
    %1896 = vmatprep.subr.mxu0 0.0
    %1897 = vmatpush2.msra.mxu0 %v1793
    %1898 = vmatprep.subr.mxu0 0.0
    %1899 = vmatpush2.msra.mxu0 %v1792
    %1900 = vmatprep.subr.mxu0 0.0
    %1901 = vmatpush2.msra.mxu0 %v1791
    %1902 = vmatprep.subr.mxu0 0.0
    %1903 = vmatpush2.msra.mxu0 %v1790
    %1904 = vmatprep.subr.mxu0 0.0
    %1905 = vmatpush2.msra.mxu0 %v1789
    %1906 = vmatprep.subr.mxu0 0.0
    %1907 = vmatpush2.msra.mxu0 %v1788
    %1908 = vmatprep.subr.mxu0 0.0
    %1909 = vmatpush2.msra.mxu0 %v1787
    %1910 = vmatprep.subr.mxu0 0.0
    %1911 = vmatpush2.msra.mxu0 %v1786
    %1912 = vmatprep.subr.mxu0 0.0
    %1913 = vmatpush2.msra.mxu0 %v1785
    %1914 = vmatprep.subr.mxu0 0.0
    %1915 = vmatpush2.msra.mxu0 %v1784
    %1916 = vmatprep.subr.mxu0 0.0
    %1917 = vmatpush2.msra.mxu0 %v1783
    %1918 = vmatprep.subr.mxu0 0.0
    %1919 = vmatpush2.msra.mxu0 %v1782
    %1920 = vmatprep.subr.mxu0 0.0
    %1921 = vmatpush2.msra.mxu0 %v1781
    %1922 = vmatprep.subr.mxu0 0.0
    %1923 = vmatpush2.msra.mxu0 %v1780
    %1924 = vmatprep.subr.mxu0 0.0
    %1925 = vmatpush2.msra.mxu0 %v1779
    %1926 = vmatprep.subr.mxu0 0.0
    %1927 = vmatpush2.msra.mxu0 %v1778
    %1928 = vmatprep.mubr.f32.mxu0 %v198
    %1929 = vmatmul.mubr.f32.gmra.mxu0 %v197
    %v1930 = vpop.f32.mrf.mxu0
    %v1931 = vadd.f32 %v1861, %v1930
    %v1932 = vpop.f32.mrf.mxu0
    %1933 = vdwg.mxu0
    %s1934 = scalar_lea.vmem %s4, 32
    %v1935 = vld [vmem:[%s1934] sm:$0xff]
    %v1937 = vsel %vm539, %v1935, 0
    %1939 = vmatprep.subr.mxu0 0.0
    %1940 = vmatpush1.msra.mxu0 0.0
    %1941 = vmatprep.subr.mxu0 0.0
    %1942 = vmatpush1.msra.mxu0 0.0
    %1943 = vmatprep.subr.mxu0 0.0
    %1944 = vmatpush1.msra.mxu0 0.0
    %1945 = vmatprep.subr.mxu0 0.0
    %1946 = vmatpush1.msra.mxu0 0.0
    %1947 = vmatprep.subr.mxu0 0.0
    %1948 = vmatpush1.msra.mxu0 0.0
    %1949 = vmatprep.subr.mxu0 0.0
    %1950 = vmatpush1.msra.mxu0 0.0
    %1951 = vmatprep.subr.mxu0 0.0
    %1952 = vmatpush1.msra.mxu0 0.0
    %1953 = vmatprep.subr.mxu0 0.0
    %1954 = vmatpush1.msra.mxu0 0.0
    %1955 = vmatprep.subr.mxu0 0.0
    %1956 = vmatpush1.msra.mxu0 0.0
    %1957 = vmatprep.subr.mxu0 0.0
    %1958 = vmatpush1.msra.mxu0 0.0
    %1959 = vmatprep.subr.mxu0 0.0
    %1960 = vmatpush1.msra.mxu0 0.0
    %1961 = vmatprep.subr.mxu0 0.0
    %1962 = vmatpush1.msra.mxu0 0.0
    %1963 = vmatprep.subr.mxu0 0.0
    %1964 = vmatpush1.msra.mxu0 0.0
    %1965 = vmatprep.subr.mxu0 0.0
    %1966 = vmatpush1.msra.mxu0 0.0
    %1967 = vmatprep.subr.mxu0 0.0
    %1968 = vmatpush1.msra.mxu0 0.0
    %1969 = vmatprep.subr.mxu0 0.0
    %1970 = vmatpush1.msra.mxu0 %v1931
    %1971 = vmatprep.subr.mxu0 0.0
    %1972 = vmatpush2.msra.mxu0 0.0
    %1973 = vmatprep.subr.mxu0 0.0
    %1974 = vmatpush2.msra.mxu0 0.0
    %1975 = vmatprep.subr.mxu0 0.0
    %1976 = vmatpush2.msra.mxu0 0.0
    %1977 = vmatprep.subr.mxu0 0.0
    %1978 = vmatpush2.msra.mxu0 0.0
    %1979 = vmatprep.subr.mxu0 0.0
    %1980 = vmatpush2.msra.mxu0 0.0
    %1981 = vmatprep.subr.mxu0 0.0
    %1982 = vmatpush2.msra.mxu0 0.0
    %1983 = vmatprep.subr.mxu0 0.0
    %1984 = vmatpush2.msra.mxu0 0.0
    %1985 = vmatprep.subr.mxu0 0.0
    %1986 = vmatpush2.msra.mxu0 0.0
    %1987 = vmatprep.subr.mxu0 0.0
    %1988 = vmatpush2.msra.mxu0 0.0
    %1989 = vmatprep.subr.mxu0 0.0
    %1990 = vmatpush2.msra.mxu0 0.0
    %1991 = vmatprep.subr.mxu0 0.0
    %1992 = vmatpush2.msra.mxu0 0.0
    %1993 = vmatprep.subr.mxu0 0.0
    %1994 = vmatpush2.msra.mxu0 0.0
    %1995 = vmatprep.subr.mxu0 0.0
    %1996 = vmatpush2.msra.mxu0 0.0
    %1997 = vmatprep.subr.mxu0 0.0
    %1998 = vmatpush2.msra.mxu0 0.0
    %1999 = vmatprep.subr.mxu0 0.0
    %2000 = vmatpush2.msra.mxu0 0.0
    %2001 = vmatprep.subr.mxu0 0.0
    %2002 = vmatpush2.msra.mxu0 0.0
    %2003 = vmatprep.mubr.f32.mxu0 0.0
    %2004 = vmatmul.mubr.f32.gmra.mxu0 %v1937
    %v2005 = vpop.f32.mrf.mxu0
    %v2006 = vadd.f32 0.0, %v2005
    %v2007 = vpop.f32.mrf.mxu0
    %2008 = vdwg.mxu0
    %v2009 = vadd.f32 %v1660, %v2006
    %v2010 = vld [vmem:[%s3 + $0x5] sm:$0x1]
    %v2011 = vlaneseq
    %v2012 = vshrl.u32 %v2011, 7
    %v2013 = vsub.s32 0, %v2012
    %v2014 = vrot.slane %v2010, %v2013
    %vm2015 = vcmp.eq.s32.totalorder %v200, %v2014
    %vm2016 = vcmp.eq.s32.totalorder %v201, %v2014
    %vm2017 = vcmp.eq.s32.totalorder %v202, %v2014
    %vm2018 = vcmp.eq.s32.totalorder %v203, %v2014
    %vm2019 = vcmp.eq.s32.totalorder %v204, %v2014
    %vm2020 = vcmp.eq.s32.totalorder %v205, %v2014
    %vm2021 = vcmp.eq.s32.totalorder %v206, %v2014
    %vm2022 = vcmp.eq.s32.totalorder %v207, %v2014
    %vm2023 = vcmp.eq.s32.totalorder %v208, %v2014
    %vm2024 = vcmp.eq.s32.totalorder %v209, %v2014
    %vm2025 = vcmp.eq.s32.totalorder %v210, %v2014
    %vm2026 = vcmp.eq.s32.totalorder %v211, %v2014
    %vm2027 = vcmp.eq.s32.totalorder %v212, %v2014
    %vm2028 = vcmp.eq.s32.totalorder %v213, %v2014
    %vm2029 = vcmp.eq.s32.totalorder %v214, %v2014
    %vm2030 = vcmp.eq.s32.totalorder %v215, %v2014
    %vm2031 = vcmp.eq.s32.totalorder %v216, %v2014
    %vm2032 = vcmp.eq.s32.totalorder %v217, %v2014
    %vm2033 = vcmp.eq.s32.totalorder %v218, %v2014
    %vm2034 = vcmp.eq.s32.totalorder %v219, %v2014
    %vm2035 = vcmp.eq.s32.totalorder %v220, %v2014
    %vm2036 = vcmp.eq.s32.totalorder %v221, %v2014
    %vm2037 = vcmp.eq.s32.totalorder %v222, %v2014
    %vm2038 = vcmp.eq.s32.totalorder %v223, %v2014
    %vm2039 = vcmp.eq.s32.totalorder %v224, %v2014
    %vm2040 = vcmp.eq.s32.totalorder %v225, %v2014
    %vm2041 = vcmp.eq.s32.totalorder %v226, %v2014
    %vm2042 = vcmp.eq.s32.totalorder %v227, %v2014
    %vm2043 = vcmp.eq.s32.totalorder %v228, %v2014
    %vm2044 = vcmp.eq.s32.totalorder %v229, %v2014
    %vm2045 = vcmp.eq.s32.totalorder %v230, %v2014
    %vm2046 = vcmp.eq.s32.totalorder %v231, %v2014
    %vm2047 = vcmp.eq.s32.totalorder %v232, %v2014
    %vm2048 = vcmp.eq.s32.totalorder %v233, %v2014
    %vm2049 = vcmp.eq.s32.totalorder %v234, %v2014
    %vm2050 = vcmp.eq.s32.totalorder %v235, %v2014
    %vm2051 = vcmp.eq.s32.totalorder %v236, %v2014
    %vm2052 = vcmp.eq.s32.totalorder %v237, %v2014
    %vm2053 = vcmp.eq.s32.totalorder %v238, %v2014
    %vm2054 = vcmp.eq.s32.totalorder %v239, %v2014
    %vm2055 = vcmp.eq.s32.totalorder %v240, %v2014
    %vm2056 = vcmp.eq.s32.totalorder %v241, %v2014
    %vm2057 = vcmp.eq.s32.totalorder %v242, %v2014
    %vm2058 = vcmp.eq.s32.totalorder %v243, %v2014
    %vm2059 = vcmp.eq.s32.totalorder %v244, %v2014
    %vm2060 = vcmp.eq.s32.totalorder %v245, %v2014
    %vm2061 = vcmp.eq.s32.totalorder %v246, %v2014
    %vm2062 = vcmp.eq.s32.totalorder %v247, %v2014
    %vm2063 = vcmp.eq.s32.totalorder %v248, %v2014
    %vm2064 = vcmp.eq.s32.totalorder %v249, %v2014
    %vm2065 = vcmp.eq.s32.totalorder %v250, %v2014
    %vm2066 = vcmp.eq.s32.totalorder %v251, %v2014
    %vm2067 = vcmp.eq.s32.totalorder %v252, %v2014
    %vm2068 = vcmp.eq.s32.totalorder %v253, %v2014
    %vm2069 = vcmp.eq.s32.totalorder %v254, %v2014
    %vm2070 = vcmp.eq.s32.totalorder %v255, %v2014
    %vm2071 = vcmp.eq.s32.totalorder %v256, %v2014
    %vm2072 = vcmp.eq.s32.totalorder %v257, %v2014
    %vm2073 = vcmp.eq.s32.totalorder %v258, %v2014
    %vm2074 = vcmp.eq.s32.totalorder %v259, %v2014
    %vm2075 = vcmp.eq.s32.totalorder %v260, %v2014
    %vm2076 = vcmp.eq.s32.totalorder %v261, %v2014
    %vm2077 = vcmp.eq.s32.totalorder %v262, %v2014
    %vm2078 = vcmp.eq.s32.totalorder %v263, %v2014
    %v2079 = vsel %vm2015, 1.0, 0.0
    %v2080 = vsel %vm2016, 1.0, 0.0
    %v2081 = vsel %vm2017, 1.0, 0.0
    %v2082 = vsel %vm2018, 1.0, 0.0
    %v2083 = vsel %vm2019, 1.0, 0.0
    %v2084 = vsel %vm2020, 1.0, 0.0
    %v2085 = vsel %vm2021, 1.0, 0.0
    %v2086 = vsel %vm2022, 1.0, 0.0
    %v2087 = vsel %vm2023, 1.0, 0.0
    %v2088 = vsel %vm2024, 1.0, 0.0
    %v2089 = vsel %vm2025, 1.0, 0.0
    %v2090 = vsel %vm2026, 1.0, 0.0
    %v2091 = vsel %vm2027, 1.0, 0.0
    %v2092 = vsel %vm2028, 1.0, 0.0
    %v2093 = vsel %vm2029, 1.0, 0.0
    %v2094 = vsel %vm2030, 1.0, 0.0
    %v2095 = vsel %vm2031, 1.0, 0.0
    %v2096 = vsel %vm2032, 1.0, 0.0
    %v2097 = vsel %vm2033, 1.0, 0.0
    %v2098 = vsel %vm2034, 1.0, 0.0
    %v2099 = vsel %vm2035, 1.0, 0.0
    %v2100 = vsel %vm2036, 1.0, 0.0
    %v2101 = vsel %vm2037, 1.0, 0.0
    %v2102 = vsel %vm2038, 1.0, 0.0
    %v2103 = vsel %vm2039, 1.0, 0.0
    %v2104 = vsel %vm2040, 1.0, 0.0
    %v2105 = vsel %vm2041, 1.0, 0.0
    %v2106 = vsel %vm2042, 1.0, 0.0
    %v2107 = vsel %vm2043, 1.0, 0.0
    %v2108 = vsel %vm2044, 1.0, 0.0
    %v2109 = vsel %vm2045, 1.0, 0.0
    %v2110 = vsel %vm2046, 1.0, 0.0
    %v2111 = vsel %vm2047, 1.0, 0.0
    %v2112 = vsel %vm2048, 1.0, 0.0
    %v2113 = vsel %vm2049, 1.0, 0.0
    %v2114 = vsel %vm2050, 1.0, 0.0
    %v2115 = vsel %vm2051, 1.0, 0.0
    %v2116 = vsel %vm2052, 1.0, 0.0
    %v2117 = vsel %vm2053, 1.0, 0.0
    %v2118 = vsel %vm2054, 1.0, 0.0
    %v2119 = vsel %vm2055, 1.0, 0.0
    %v2120 = vsel %vm2056, 1.0, 0.0
    %v2121 = vsel %vm2057, 1.0, 0.0
    %v2122 = vsel %vm2058, 1.0, 0.0
    %v2123 = vsel %vm2059, 1.0, 0.0
    %v2124 = vsel %vm2060, 1.0, 0.0
    %v2125 = vsel %vm2061, 1.0, 0.0
    %v2126 = vsel %vm2062, 1.0, 0.0
    %v2127 = vsel %vm2063, 1.0, 0.0
    %v2128 = vsel %vm2064, 1.0, 0.0
    %v2129 = vsel %vm2065, 1.0, 0.0
    %v2130 = vsel %vm2066, 1.0, 0.0
    %v2131 = vsel %vm2067, 1.0, 0.0
    %v2132 = vsel %vm2068, 1.0, 0.0
    %v2133 = vsel %vm2069, 1.0, 0.0
    %v2134 = vsel %vm2070, 1.0, 0.0
    %v2135 = vsel %vm2071, 1.0, 0.0
    %v2136 = vsel %vm2072, 1.0, 0.0
    %v2137 = vsel %vm2073, 1.0, 0.0
    %v2138 = vsel %vm2074, 1.0, 0.0
    %v2139 = vsel %vm2075, 1.0, 0.0
    %v2140 = vsel %vm2076, 1.0, 0.0
    %v2141 = vsel %vm2077, 1.0, 0.0
    %v2142 = vsel %vm2078, 1.0, 0.0
    %2143 = vmatprep.subr.mxu0 0.0
    %2144 = vmatpush1.msra.mxu0 %v2094
    %2145 = vmatprep.subr.mxu0 0.0
    %2146 = vmatpush1.msra.mxu0 %v2093
    %2147 = vmatprep.subr.mxu0 0.0
    %2148 = vmatpush1.msra.mxu0 %v2092
    %2149 = vmatprep.subr.mxu0 0.0
    %2150 = vmatpush1.msra.mxu0 %v2091
    %2151 = vmatprep.subr.mxu0 0.0
    %2152 = vmatpush1.msra.mxu0 %v2090
    %2153 = vmatprep.subr.mxu0 0.0
    %2154 = vmatpush1.msra.mxu0 %v2089
    %2155 = vmatprep.subr.mxu0 0.0
    %2156 = vmatpush1.msra.mxu0 %v2088
    %2157 = vmatprep.subr.mxu0 0.0
    %2158 = vmatpush1.msra.mxu0 %v2087
    %2159 = vmatprep.subr.mxu0 0.0
    %2160 = vmatpush1.msra.mxu0 %v2086
    %2161 = vmatprep.subr.mxu0 0.0
    %2162 = vmatpush1.msra.mxu0 %v2085
    %2163 = vmatprep.subr.mxu0 0.0
    %2164 = vmatpush1.msra.mxu0 %v2084
    %2165 = vmatprep.subr.mxu0 0.0
    %2166 = vmatpush1.msra.mxu0 %v2083
    %2167 = vmatprep.subr.mxu0 0.0
    %2168 = vmatpush1.msra.mxu0 %v2082
    %2169 = vmatprep.subr.mxu0 0.0
    %2170 = vmatpush1.msra.mxu0 %v2081
    %2171 = vmatprep.subr.mxu0 0.0
    %2172 = vmatpush1.msra.mxu0 %v2080
    %2173 = vmatprep.subr.mxu0 0.0
    %2174 = vmatpush1.msra.mxu0 %v2079
    %2175 = vmatprep.subr.mxu0 0.0
    %2176 = vmatpush2.msra.mxu0 %v2110
    %2177 = vmatprep.subr.mxu0 0.0
    %2178 = vmatpush2.msra.mxu0 %v2109
    %2179 = vmatprep.subr.mxu0 0.0
    %2180 = vmatpush2.msra.mxu0 %v2108
    %2181 = vmatprep.subr.mxu0 0.0
    %2182 = vmatpush2.msra.mxu0 %v2107
    %2183 = vmatprep.subr.mxu0 0.0
    %2184 = vmatpush2.msra.mxu0 %v2106
    %2185 = vmatprep.subr.mxu0 0.0
    %2186 = vmatpush2.msra.mxu0 %v2105
    %2187 = vmatprep.subr.mxu0 0.0
    %2188 = vmatpush2.msra.mxu0 %v2104
    %2189 = vmatprep.subr.mxu0 0.0
    %2190 = vmatpush2.msra.mxu0 %v2103
    %2191 = vmatprep.subr.mxu0 0.0
    %2192 = vmatpush2.msra.mxu0 %v2102
    %2193 = vmatprep.subr.mxu0 0.0
    %2194 = vmatpush2.msra.mxu0 %v2101
    %2195 = vmatprep.subr.mxu0 0.0
    %2196 = vmatpush2.msra.mxu0 %v2100
    %2197 = vmatprep.subr.mxu0 0.0
    %2198 = vmatpush2.msra.mxu0 %v2099
    %2199 = vmatprep.subr.mxu0 0.0
    %2200 = vmatpush2.msra.mxu0 %v2098
    %2201 = vmatprep.subr.mxu0 0.0
    %2202 = vmatpush2.msra.mxu0 %v2097
    %2203 = vmatprep.subr.mxu0 0.0
    %2204 = vmatpush2.msra.mxu0 %v2096
    %2205 = vmatprep.subr.mxu0 0.0
    %2206 = vmatpush2.msra.mxu0 %v2095
    %2207 = vmatprep.mubr.f32.mxu0 %v196
    %2208 = vmatmul.mubr.f32.gmra.mxu0 %v195
    %v2209 = vpop.f32.mrf.mxu0
    %v2210 = vadd.f32 0.0, %v2209
    %v2211 = vpop.f32.mrf.mxu0
    %2212 = vdwg.mxu0
    %2213 = vmatprep.subr.mxu0 0.0
    %2214 = vmatpush1.msra.mxu0 %v2126
    %2215 = vmatprep.subr.mxu0 0.0
    %2216 = vmatpush1.msra.mxu0 %v2125
    %2217 = vmatprep.subr.mxu0 0.0
    %2218 = vmatpush1.msra.mxu0 %v2124
    %2219 = vmatprep.subr.mxu0 0.0
    %2220 = vmatpush1.msra.mxu0 %v2123
    %2221 = vmatprep.subr.mxu0 0.0
    %2222 = vmatpush1.msra.mxu0 %v2122
    %2223 = vmatprep.subr.mxu0 0.0
    %2224 = vmatpush1.msra.mxu0 %v2121
    %2225 = vmatprep.subr.mxu0 0.0
    %2226 = vmatpush1.msra.mxu0 %v2120
    %2227 = vmatprep.subr.mxu0 0.0
    %2228 = vmatpush1.msra.mxu0 %v2119
    %2229 = vmatprep.subr.mxu0 0.0
    %2230 = vmatpush1.msra.mxu0 %v2118
    %2231 = vmatprep.subr.mxu0 0.0
    %2232 = vmatpush1.msra.mxu0 %v2117
    %2233 = vmatprep.subr.mxu0 0.0
    %2234 = vmatpush1.msra.mxu0 %v2116
    %2235 = vmatprep.subr.mxu0 0.0
    %2236 = vmatpush1.msra.mxu0 %v2115
    %2237 = vmatprep.subr.mxu0 0.0
    %2238 = vmatpush1.msra.mxu0 %v2114
    %2239 = vmatprep.subr.mxu0 0.0
    %2240 = vmatpush1.msra.mxu0 %v2113
    %2241 = vmatprep.subr.mxu0 0.0
    %2242 = vmatpush1.msra.mxu0 %v2112
    %2243 = vmatprep.subr.mxu0 0.0
    %2244 = vmatpush1.msra.mxu0 %v2111
    %2245 = vmatprep.subr.mxu0 0.0
    %2246 = vmatpush2.msra.mxu0 %v2142
    %2247 = vmatprep.subr.mxu0 0.0
    %2248 = vmatpush2.msra.mxu0 %v2141
    %2249 = vmatprep.subr.mxu0 0.0
    %2250 = vmatpush2.msra.mxu0 %v2140
    %2251 = vmatprep.subr.mxu0 0.0
    %2252 = vmatpush2.msra.mxu0 %v2139
    %2253 = vmatprep.subr.mxu0 0.0
    %2254 = vmatpush2.msra.mxu0 %v2138
    %2255 = vmatprep.subr.mxu0 0.0
    %2256 = vmatpush2.msra.mxu0 %v2137
    %2257 = vmatprep.subr.mxu0 0.0
    %2258 = vmatpush2.msra.mxu0 %v2136
    %2259 = vmatprep.subr.mxu0 0.0
    %2260 = vmatpush2.msra.mxu0 %v2135
    %2261 = vmatprep.subr.mxu0 0.0
    %2262 = vmatpush2.msra.mxu0 %v2134
    %2263 = vmatprep.subr.mxu0 0.0
    %2264 = vmatpush2.msra.mxu0 %v2133
    %2265 = vmatprep.subr.mxu0 0.0
    %2266 = vmatpush2.msra.mxu0 %v2132
    %2267 = vmatprep.subr.mxu0 0.0
    %2268 = vmatpush2.msra.mxu0 %v2131
    %2269 = vmatprep.subr.mxu0 0.0
    %2270 = vmatpush2.msra.mxu0 %v2130
    %2271 = vmatprep.subr.mxu0 0.0
    %2272 = vmatpush2.msra.mxu0 %v2129
    %2273 = vmatprep.subr.mxu0 0.0
    %2274 = vmatpush2.msra.mxu0 %v2128
    %2275 = vmatprep.subr.mxu0 0.0
    %2276 = vmatpush2.msra.mxu0 %v2127
    %2277 = vmatprep.mubr.f32.mxu0 %v198
    %2278 = vmatmul.mubr.f32.gmra.mxu0 %v197
    %v2279 = vpop.f32.mrf.mxu0
    %v2280 = vadd.f32 %v2210, %v2279
    %v2281 = vpop.f32.mrf.mxu0
    %2282 = vdwg.mxu0
    %s2283 = scalar_lea.vmem %s4, 40
    %v2284 = vld [vmem:[%s2283] sm:$0xff]
    %v2286 = vsel %vm539, %v2284, 0
    %2288 = vmatprep.subr.mxu0 0.0
    %2289 = vmatpush1.msra.mxu0 0.0
    %2290 = vmatprep.subr.mxu0 0.0
    %2291 = vmatpush1.msra.mxu0 0.0
    %2292 = vmatprep.subr.mxu0 0.0
    %2293 = vmatpush1.msra.mxu0 0.0
    %2294 = vmatprep.subr.mxu0 0.0
    %2295 = vmatpush1.msra.mxu0 0.0
    %2296 = vmatprep.subr.mxu0 0.0
    %2297 = vmatpush1.msra.mxu0 0.0
    %2298 = vmatprep.subr.mxu0 0.0
    %2299 = vmatpush1.msra.mxu0 0.0
    %2300 = vmatprep.subr.mxu0 0.0
    %2301 = vmatpush1.msra.mxu0 0.0
    %2302 = vmatprep.subr.mxu0 0.0
    %2303 = vmatpush1.msra.mxu0 0.0
    %2304 = vmatprep.subr.mxu0 0.0
    %2305 = vmatpush1.msra.mxu0 0.0
    %2306 = vmatprep.subr.mxu0 0.0
    %2307 = vmatpush1.msra.mxu0 0.0
    %2308 = vmatprep.subr.mxu0 0.0
    %2309 = vmatpush1.msra.mxu0 0.0
    %2310 = vmatprep.subr.mxu0 0.0
    %2311 = vmatpush1.msra.mxu0 0.0
    %2312 = vmatprep.subr.mxu0 0.0
    %2313 = vmatpush1.msra.mxu0 0.0
    %2314 = vmatprep.subr.mxu0 0.0
    %2315 = vmatpush1.msra.mxu0 0.0
    %2316 = vmatprep.subr.mxu0 0.0
    %2317 = vmatpush1.msra.mxu0 0.0
    %2318 = vmatprep.subr.mxu0 0.0
    %2319 = vmatpush1.msra.mxu0 %v2280
    %2320 = vmatprep.subr.mxu0 0.0
    %2321 = vmatpush2.msra.mxu0 0.0
    %2322 = vmatprep.subr.mxu0 0.0
    %2323 = vmatpush2.msra.mxu0 0.0
    %2324 = vmatprep.subr.mxu0 0.0
    %2325 = vmatpush2.msra.mxu0 0.0
    %2326 = vmatprep.subr.mxu0 0.0
    %2327 = vmatpush2.msra.mxu0 0.0
    %2328 = vmatprep.subr.mxu0 0.0
    %2329 = vmatpush2.msra.mxu0 0.0
    %2330 = vmatprep.subr.mxu0 0.0
    %2331 = vmatpush2.msra.mxu0 0.0
    %2332 = vmatprep.subr.mxu0 0.0
    %2333 = vmatpush2.msra.mxu0 0.0
    %2334 = vmatprep.subr.mxu0 0.0
    %2335 = vmatpush2.msra.mxu0 0.0
    %2336 = vmatprep.subr.mxu0 0.0
    %2337 = vmatpush2.msra.mxu0 0.0
    %2338 = vmatprep.subr.mxu0 0.0
    %2339 = vmatpush2.msra.mxu0 0.0
    %2340 = vmatprep.subr.mxu0 0.0
    %2341 = vmatpush2.msra.mxu0 0.0
    %2342 = vmatprep.subr.mxu0 0.0
    %2343 = vmatpush2.msra.mxu0 0.0
    %2344 = vmatprep.subr.mxu0 0.0
    %2345 = vmatpush2.msra.mxu0 0.0
    %2346 = vmatprep.subr.mxu0 0.0
    %2347 = vmatpush2.msra.mxu0 0.0
    %2348 = vmatprep.subr.mxu0 0.0
    %2349 = vmatpush2.msra.mxu0 0.0
    %2350 = vmatprep.subr.mxu0 0.0
    %2351 = vmatpush2.msra.mxu0 0.0
    %2352 = vmatprep.mubr.f32.mxu0 0.0
    %2353 = vmatmul.mubr.f32.gmra.mxu0 %v2286
    %v2354 = vpop.f32.mrf.mxu0
    %v2355 = vadd.f32 0.0, %v2354
    %v2356 = vpop.f32.mrf.mxu0
    %2357 = vdwg.mxu0
    %v2358 = vadd.f32 %v2009, %v2355
    %v2359 = vld [vmem:[%s3 + $0x6] sm:$0x1]
    %v2360 = vlaneseq
    %v2361 = vshrl.u32 %v2360, 7
    %v2362 = vsub.s32 0, %v2361
    %v2363 = vrot.slane %v2359, %v2362
    %vm2364 = vcmp.eq.s32.totalorder %v200, %v2363
    %vm2365 = vcmp.eq.s32.totalorder %v201, %v2363
    %vm2366 = vcmp.eq.s32.totalorder %v202, %v2363
    %vm2367 = vcmp.eq.s32.totalorder %v203, %v2363
    %vm2368 = vcmp.eq.s32.totalorder %v204, %v2363
    %vm2369 = vcmp.eq.s32.totalorder %v205, %v2363
    %vm2370 = vcmp.eq.s32.totalorder %v206, %v2363
    %vm2371 = vcmp.eq.s32.totalorder %v207, %v2363
    %vm2372 = vcmp.eq.s32.totalorder %v208, %v2363
    %vm2373 = vcmp.eq.s32.totalorder %v209, %v2363
    %vm2374 = vcmp.eq.s32.totalorder %v210, %v2363
    %vm2375 = vcmp.eq.s32.totalorder %v211, %v2363
    %vm2376 = vcmp.eq.s32.totalorder %v212, %v2363
    %vm2377 = vcmp.eq.s32.totalorder %v213, %v2363
    %vm2378 = vcmp.eq.s32.totalorder %v214, %v2363
    %vm2379 = vcmp.eq.s32.totalorder %v215, %v2363
    %vm2380 = vcmp.eq.s32.totalorder %v216, %v2363
    %vm2381 = vcmp.eq.s32.totalorder %v217, %v2363
    %vm2382 = vcmp.eq.s32.totalorder %v218, %v2363
    %vm2383 = vcmp.eq.s32.totalorder %v219, %v2363
    %vm2384 = vcmp.eq.s32.totalorder %v220, %v2363
    %vm2385 = vcmp.eq.s32.totalorder %v221, %v2363
    %vm2386 = vcmp.eq.s32.totalorder %v222, %v2363
    %vm2387 = vcmp.eq.s32.totalorder %v223, %v2363
    %vm2388 = vcmp.eq.s32.totalorder %v224, %v2363
    %vm2389 = vcmp.eq.s32.totalorder %v225, %v2363
    %vm2390 = vcmp.eq.s32.totalorder %v226, %v2363
    %vm2391 = vcmp.eq.s32.totalorder %v227, %v2363
    %vm2392 = vcmp.eq.s32.totalorder %v228, %v2363
    %vm2393 = vcmp.eq.s32.totalorder %v229, %v2363
    %vm2394 = vcmp.eq.s32.totalorder %v230, %v2363
    %vm2395 = vcmp.eq.s32.totalorder %v231, %v2363
    %vm2396 = vcmp.eq.s32.totalorder %v232, %v2363
    %vm2397 = vcmp.eq.s32.totalorder %v233, %v2363
    %vm2398 = vcmp.eq.s32.totalorder %v234, %v2363
    %vm2399 = vcmp.eq.s32.totalorder %v235, %v2363
    %vm2400 = vcmp.eq.s32.totalorder %v236, %v2363
    %vm2401 = vcmp.eq.s32.totalorder %v237, %v2363
    %vm2402 = vcmp.eq.s32.totalorder %v238, %v2363
    %vm2403 = vcmp.eq.s32.totalorder %v239, %v2363
    %vm2404 = vcmp.eq.s32.totalorder %v240, %v2363
    %vm2405 = vcmp.eq.s32.totalorder %v241, %v2363
    %vm2406 = vcmp.eq.s32.totalorder %v242, %v2363
    %vm2407 = vcmp.eq.s32.totalorder %v243, %v2363
    %vm2408 = vcmp.eq.s32.totalorder %v244, %v2363
    %vm2409 = vcmp.eq.s32.totalorder %v245, %v2363
    %vm2410 = vcmp.eq.s32.totalorder %v246, %v2363
    %vm2411 = vcmp.eq.s32.totalorder %v247, %v2363
    %vm2412 = vcmp.eq.s32.totalorder %v248, %v2363
    %vm2413 = vcmp.eq.s32.totalorder %v249, %v2363
    %vm2414 = vcmp.eq.s32.totalorder %v250, %v2363
    %vm2415 = vcmp.eq.s32.totalorder %v251, %v2363
    %vm2416 = vcmp.eq.s32.totalorder %v252, %v2363
    %vm2417 = vcmp.eq.s32.totalorder %v253, %v2363
    %vm2418 = vcmp.eq.s32.totalorder %v254, %v2363
    %vm2419 = vcmp.eq.s32.totalorder %v255, %v2363
    %vm2420 = vcmp.eq.s32.totalorder %v256, %v2363
    %vm2421 = vcmp.eq.s32.totalorder %v257, %v2363
    %vm2422 = vcmp.eq.s32.totalorder %v258, %v2363
    %vm2423 = vcmp.eq.s32.totalorder %v259, %v2363
    %vm2424 = vcmp.eq.s32.totalorder %v260, %v2363
    %vm2425 = vcmp.eq.s32.totalorder %v261, %v2363
    %vm2426 = vcmp.eq.s32.totalorder %v262, %v2363
    %vm2427 = vcmp.eq.s32.totalorder %v263, %v2363
    %v2428 = vsel %vm2364, 1.0, 0.0
    %v2429 = vsel %vm2365, 1.0, 0.0
    %v2430 = vsel %vm2366, 1.0, 0.0
    %v2431 = vsel %vm2367, 1.0, 0.0
    %v2432 = vsel %vm2368, 1.0, 0.0
    %v2433 = vsel %vm2369, 1.0, 0.0
    %v2434 = vsel %vm2370, 1.0, 0.0
    %v2435 = vsel %vm2371, 1.0, 0.0
    %v2436 = vsel %vm2372, 1.0, 0.0
    %v2437 = vsel %vm2373, 1.0, 0.0
    %v2438 = vsel %vm2374, 1.0, 0.0
    %v2439 = vsel %vm2375, 1.0, 0.0
    %v2440 = vsel %vm2376, 1.0, 0.0
    %v2441 = vsel %vm2377, 1.0, 0.0
    %v2442 = vsel %vm2378, 1.0, 0.0
    %v2443 = vsel %vm2379, 1.0, 0.0
    %v2444 = vsel %vm2380, 1.0, 0.0
    %v2445 = vsel %vm2381, 1.0, 0.0
    %v2446 = vsel %vm2382, 1.0, 0.0
    %v2447 = vsel %vm2383, 1.0, 0.0
    %v2448 = vsel %vm2384, 1.0, 0.0
    %v2449 = vsel %vm2385, 1.0, 0.0
    %v2450 = vsel %vm2386, 1.0, 0.0
    %v2451 = vsel %vm2387, 1.0, 0.0
    %v2452 = vsel %vm2388, 1.0, 0.0
    %v2453 = vsel %vm2389, 1.0, 0.0
    %v2454 = vsel %vm2390, 1.0, 0.0
    %v2455 = vsel %vm2391, 1.0, 0.0
    %v2456 = vsel %vm2392, 1.0, 0.0
    %v2457 = vsel %vm2393, 1.0, 0.0
    %v2458 = vsel %vm2394, 1.0, 0.0
    %v2459 = vsel %vm2395, 1.0, 0.0
    %v2460 = vsel %vm2396, 1.0, 0.0
    %v2461 = vsel %vm2397, 1.0, 0.0
    %v2462 = vsel %vm2398, 1.0, 0.0
    %v2463 = vsel %vm2399, 1.0, 0.0
    %v2464 = vsel %vm2400, 1.0, 0.0
    %v2465 = vsel %vm2401, 1.0, 0.0
    %v2466 = vsel %vm2402, 1.0, 0.0
    %v2467 = vsel %vm2403, 1.0, 0.0
    %v2468 = vsel %vm2404, 1.0, 0.0
    %v2469 = vsel %vm2405, 1.0, 0.0
    %v2470 = vsel %vm2406, 1.0, 0.0
    %v2471 = vsel %vm2407, 1.0, 0.0
    %v2472 = vsel %vm2408, 1.0, 0.0
    %v2473 = vsel %vm2409, 1.0, 0.0
    %v2474 = vsel %vm2410, 1.0, 0.0
    %v2475 = vsel %vm2411, 1.0, 0.0
    %v2476 = vsel %vm2412, 1.0, 0.0
    %v2477 = vsel %vm2413, 1.0, 0.0
    %v2478 = vsel %vm2414, 1.0, 0.0
    %v2479 = vsel %vm2415, 1.0, 0.0
    %v2480 = vsel %vm2416, 1.0, 0.0
    %v2481 = vsel %vm2417, 1.0, 0.0
    %v2482 = vsel %vm2418, 1.0, 0.0
    %v2483 = vsel %vm2419, 1.0, 0.0
    %v2484 = vsel %vm2420, 1.0, 0.0
    %v2485 = vsel %vm2421, 1.0, 0.0
    %v2486 = vsel %vm2422, 1.0, 0.0
    %v2487 = vsel %vm2423, 1.0, 0.0
    %v2488 = vsel %vm2424, 1.0, 0.0
    %v2489 = vsel %vm2425, 1.0, 0.0
    %v2490 = vsel %vm2426, 1.0, 0.0
    %v2491 = vsel %vm2427, 1.0, 0.0
    %2492 = vmatprep.subr.mxu0 0.0
    %2493 = vmatpush1.msra.mxu0 %v2443
    %2494 = vmatprep.subr.mxu0 0.0
    %2495 = vmatpush1.msra.mxu0 %v2442
    %2496 = vmatprep.subr.mxu0 0.0
    %2497 = vmatpush1.msra.mxu0 %v2441
    %2498 = vmatprep.subr.mxu0 0.0
    %2499 = vmatpush1.msra.mxu0 %v2440
    %2500 = vmatprep.subr.mxu0 0.0
    %2501 = vmatpush1.msra.mxu0 %v2439
    %2502 = vmatprep.subr.mxu0 0.0
    %2503 = vmatpush1.msra.mxu0 %v2438
    %2504 = vmatprep.subr.mxu0 0.0
    %2505 = vmatpush1.msra.mxu0 %v2437
    %2506 = vmatprep.subr.mxu0 0.0
    %2507 = vmatpush1.msra.mxu0 %v2436
    %2508 = vmatprep.subr.mxu0 0.0
    %2509 = vmatpush1.msra.mxu0 %v2435
    %2510 = vmatprep.subr.mxu0 0.0
    %2511 = vmatpush1.msra.mxu0 %v2434
    %2512 = vmatprep.subr.mxu0 0.0
    %2513 = vmatpush1.msra.mxu0 %v2433
    %2514 = vmatprep.subr.mxu0 0.0
    %2515 = vmatpush1.msra.mxu0 %v2432
    %2516 = vmatprep.subr.mxu0 0.0
    %2517 = vmatpush1.msra.mxu0 %v2431
    %2518 = vmatprep.subr.mxu0 0.0
    %2519 = vmatpush1.msra.mxu0 %v2430
    %2520 = vmatprep.subr.mxu0 0.0
    %2521 = vmatpush1.msra.mxu0 %v2429
    %2522 = vmatprep.subr.mxu0 0.0
    %2523 = vmatpush1.msra.mxu0 %v2428
    %2524 = vmatprep.subr.mxu0 0.0
    %2525 = vmatpush2.msra.mxu0 %v2459
    %2526 = vmatprep.subr.mxu0 0.0
    %2527 = vmatpush2.msra.mxu0 %v2458
    %2528 = vmatprep.subr.mxu0 0.0
    %2529 = vmatpush2.msra.mxu0 %v2457
    %2530 = vmatprep.subr.mxu0 0.0
    %2531 = vmatpush2.msra.mxu0 %v2456
    %2532 = vmatprep.subr.mxu0 0.0
    %2533 = vmatpush2.msra.mxu0 %v2455
    %2534 = vmatprep.subr.mxu0 0.0
    %2535 = vmatpush2.msra.mxu0 %v2454
    %2536 = vmatprep.subr.mxu0 0.0
    %2537 = vmatpush2.msra.mxu0 %v2453
    %2538 = vmatprep.subr.mxu0 0.0
    %2539 = vmatpush2.msra.mxu0 %v2452
    %2540 = vmatprep.subr.mxu0 0.0
    %2541 = vmatpush2.msra.mxu0 %v2451
    %2542 = vmatprep.subr.mxu0 0.0
    %2543 = vmatpush2.msra.mxu0 %v2450
    %2544 = vmatprep.subr.mxu0 0.0
    %2545 = vmatpush2.msra.mxu0 %v2449
    %2546 = vmatprep.subr.mxu0 0.0
    %2547 = vmatpush2.msra.mxu0 %v2448
    %2548 = vmatprep.subr.mxu0 0.0
    %2549 = vmatpush2.msra.mxu0 %v2447
    %2550 = vmatprep.subr.mxu0 0.0
    %2551 = vmatpush2.msra.mxu0 %v2446
    %2552 = vmatprep.subr.mxu0 0.0
    %2553 = vmatpush2.msra.mxu0 %v2445
    %2554 = vmatprep.subr.mxu0 0.0
    %2555 = vmatpush2.msra.mxu0 %v2444
    %2556 = vmatprep.mubr.f32.mxu0 %v196
    %2557 = vmatmul.mubr.f32.gmra.mxu0 %v195
    %v2558 = vpop.f32.mrf.mxu0
    %v2559 = vadd.f32 0.0, %v2558
    %v2560 = vpop.f32.mrf.mxu0
    %2561 = vdwg.mxu0
    %2562 = vmatprep.subr.mxu0 0.0
    %2563 = vmatpush1.msra.mxu0 %v2475
    %2564 = vmatprep.subr.mxu0 0.0
    %2565 = vmatpush1.msra.mxu0 %v2474
    %2566 = vmatprep.subr.mxu0 0.0
    %2567 = vmatpush1.msra.mxu0 %v2473
    %2568 = vmatprep.subr.mxu0 0.0
    %2569 = vmatpush1.msra.mxu0 %v2472
    %2570 = vmatprep.subr.mxu0 0.0
    %2571 = vmatpush1.msra.mxu0 %v2471
    %2572 = vmatprep.subr.mxu0 0.0
    %2573 = vmatpush1.msra.mxu0 %v2470
    %2574 = vmatprep.subr.mxu0 0.0
    %2575 = vmatpush1.msra.mxu0 %v2469
    %2576 = vmatprep.subr.mxu0 0.0
    %2577 = vmatpush1.msra.mxu0 %v2468
    %2578 = vmatprep.subr.mxu0 0.0
    %2579 = vmatpush1.msra.mxu0 %v2467
    %2580 = vmatprep.subr.mxu0 0.0
    %2581 = vmatpush1.msra.mxu0 %v2466
    %2582 = vmatprep.subr.mxu0 0.0
    %2583 = vmatpush1.msra.mxu0 %v2465
    %2584 = vmatprep.subr.mxu0 0.0
    %2585 = vmatpush1.msra.mxu0 %v2464
    %2586 = vmatprep.subr.mxu0 0.0
    %2587 = vmatpush1.msra.mxu0 %v2463
    %2588 = vmatprep.subr.mxu0 0.0
    %2589 = vmatpush1.msra.mxu0 %v2462
    %2590 = vmatprep.subr.mxu0 0.0
    %2591 = vmatpush1.msra.mxu0 %v2461
    %2592 = vmatprep.subr.mxu0 0.0
    %2593 = vmatpush1.msra.mxu0 %v2460
    %2594 = vmatprep.subr.mxu0 0.0
    %2595 = vmatpush2.msra.mxu0 %v2491
    %2596 = vmatprep.subr.mxu0 0.0
    %2597 = vmatpush2.msra.mxu0 %v2490
    %2598 = vmatprep.subr.mxu0 0.0
    %2599 = vmatpush2.msra.mxu0 %v2489
    %2600 = vmatprep.subr.mxu0 0.0
    %2601 = vmatpush2.msra.mxu0 %v2488
    %2602 = vmatprep.subr.mxu0 0.0
    %2603 = vmatpush2.msra.mxu0 %v2487
    %2604 = vmatprep.subr.mxu0 0.0
    %2605 = vmatpush2.msra.mxu0 %v2486
    %2606 = vmatprep.subr.mxu0 0.0
    %2607 = vmatpush2.msra.mxu0 %v2485
    %2608 = vmatprep.subr.mxu0 0.0
    %2609 = vmatpush2.msra.mxu0 %v2484
    %2610 = vmatprep.subr.mxu0 0.0
    %2611 = vmatpush2.msra.mxu0 %v2483
    %2612 = vmatprep.subr.mxu0 0.0
    %2613 = vmatpush2.msra.mxu0 %v2482
    %2614 = vmatprep.subr.mxu0 0.0
    %2615 = vmatpush2.msra.mxu0 %v2481
    %2616 = vmatprep.subr.mxu0 0.0
    %2617 = vmatpush2.msra.mxu0 %v2480
    %2618 = vmatprep.subr.mxu0 0.0
    %2619 = vmatpush2.msra.mxu0 %v2479
    %2620 = vmatprep.subr.mxu0 0.0
    %2621 = vmatpush2.msra.mxu0 %v2478
    %2622 = vmatprep.subr.mxu0 0.0
    %2623 = vmatpush2.msra.mxu0 %v2477
    %2624 = vmatprep.subr.mxu0 0.0
    %2625 = vmatpush2.msra.mxu0 %v2476
    %2626 = vmatprep.mubr.f32.mxu0 %v198
    %2627 = vmatmul.mubr.f32.gmra.mxu0 %v197
    %v2628 = vpop.f32.mrf.mxu0
    %v2629 = vadd.f32 %v2559, %v2628
    %v2630 = vpop.f32.mrf.mxu0
    %2631 = vdwg.mxu0
    %s2632 = scalar_lea.vmem %s4, 48
    %v2633 = vld [vmem:[%s2632] sm:$0xff]
    %v2635 = vsel %vm539, %v2633, 0
    %2637 = vmatprep.subr.mxu0 0.0
    %2638 = vmatpush1.msra.mxu0 0.0
    %2639 = vmatprep.subr.mxu0 0.0
    %2640 = vmatpush1.msra.mxu0 0.0
    %2641 = vmatprep.subr.mxu0 0.0
    %2642 = vmatpush1.msra.mxu0 0.0
    %2643 = vmatprep.subr.mxu0 0.0
    %2644 = vmatpush1.msra.mxu0 0.0
    %2645 = vmatprep.subr.mxu0 0.0
    %2646 = vmatpush1.msra.mxu0 0.0
    %2647 = vmatprep.subr.mxu0 0.0
    %2648 = vmatpush1.msra.mxu0 0.0
    %2649 = vmatprep.subr.mxu0 0.0
    %2650 = vmatpush1.msra.mxu0 0.0
    %2651 = vmatprep.subr.mxu0 0.0
    %2652 = vmatpush1.msra.mxu0 0.0
    %2653 = vmatprep.subr.mxu0 0.0
    %2654 = vmatpush1.msra.mxu0 0.0
    %2655 = vmatprep.subr.mxu0 0.0
    %2656 = vmatpush1.msra.mxu0 0.0
    %2657 = vmatprep.subr.mxu0 0.0
    %2658 = vmatpush1.msra.mxu0 0.0
    %2659 = vmatprep.subr.mxu0 0.0
    %2660 = vmatpush1.msra.mxu0 0.0
    %2661 = vmatprep.subr.mxu0 0.0
    %2662 = vmatpush1.msra.mxu0 0.0
    %2663 = vmatprep.subr.mxu0 0.0
    %2664 = vmatpush1.msra.mxu0 0.0
    %2665 = vmatprep.subr.mxu0 0.0
    %2666 = vmatpush1.msra.mxu0 0.0
    %2667 = vmatprep.subr.mxu0 0.0
    %2668 = vmatpush1.msra.mxu0 %v2629
    %2669 = vmatprep.subr.mxu0 0.0
    %2670 = vmatpush2.msra.mxu0 0.0
    %2671 = vmatprep.subr.mxu0 0.0
    %2672 = vmatpush2.msra.mxu0 0.0
    %2673 = vmatprep.subr.mxu0 0.0
    %2674 = vmatpush2.msra.mxu0 0.0
    %2675 = vmatprep.subr.mxu0 0.0
    %2676 = vmatpush2.msra.mxu0 0.0
    %2677 = vmatprep.subr.mxu0 0.0
    %2678 = vmatpush2.msra.mxu0 0.0
    %2679 = vmatprep.subr.mxu0 0.0
    %2680 = vmatpush2.msra.mxu0 0.0
    %2681 = vmatprep.subr.mxu0 0.0
    %2682 = vmatpush2.msra.mxu0 0.0
    %2683 = vmatprep.subr.mxu0 0.0
    %2684 = vmatpush2.msra.mxu0 0.0
    %2685 = vmatprep.subr.mxu0 0.0
    %2686 = vmatpush2.msra.mxu0 0.0
    %2687 = vmatprep.subr.mxu0 0.0
    %2688 = vmatpush2.msra.mxu0 0.0
    %2689 = vmatprep.subr.mxu0 0.0
    %2690 = vmatpush2.msra.mxu0 0.0
    %2691 = vmatprep.subr.mxu0 0.0
    %2692 = vmatpush2.msra.mxu0 0.0
    %2693 = vmatprep.subr.mxu0 0.0
    %2694 = vmatpush2.msra.mxu0 0.0
    %2695 = vmatprep.subr.mxu0 0.0
    %2696 = vmatpush2.msra.mxu0 0.0
    %2697 = vmatprep.subr.mxu0 0.0
    %2698 = vmatpush2.msra.mxu0 0.0
    %2699 = vmatprep.subr.mxu0 0.0
    %2700 = vmatpush2.msra.mxu0 0.0
    %2701 = vmatprep.mubr.f32.mxu0 0.0
    %2702 = vmatmul.mubr.f32.gmra.mxu0 %v2635
    %v2703 = vpop.f32.mrf.mxu0
    %v2704 = vadd.f32 0.0, %v2703
    %v2705 = vpop.f32.mrf.mxu0
    %2706 = vdwg.mxu0
    %v2707 = vadd.f32 %v2358, %v2704
    %v2708 = vld [vmem:[%s3 + $0x7] sm:$0x1]
    %v2709 = vlaneseq
    %v2710 = vshrl.u32 %v2709, 7
    %v2711 = vsub.s32 0, %v2710
    %v2712 = vrot.slane %v2708, %v2711
    %vm2713 = vcmp.eq.s32.totalorder %v200, %v2712
    %vm2714 = vcmp.eq.s32.totalorder %v201, %v2712
    %vm2715 = vcmp.eq.s32.totalorder %v202, %v2712
    %vm2716 = vcmp.eq.s32.totalorder %v203, %v2712
    %vm2717 = vcmp.eq.s32.totalorder %v204, %v2712
    %vm2718 = vcmp.eq.s32.totalorder %v205, %v2712
    %vm2719 = vcmp.eq.s32.totalorder %v206, %v2712
    %vm2720 = vcmp.eq.s32.totalorder %v207, %v2712
    %vm2721 = vcmp.eq.s32.totalorder %v208, %v2712
    %vm2722 = vcmp.eq.s32.totalorder %v209, %v2712
    %vm2723 = vcmp.eq.s32.totalorder %v210, %v2712
    %vm2724 = vcmp.eq.s32.totalorder %v211, %v2712
    %vm2725 = vcmp.eq.s32.totalorder %v212, %v2712
    %vm2726 = vcmp.eq.s32.totalorder %v213, %v2712
    %vm2727 = vcmp.eq.s32.totalorder %v214, %v2712
    %vm2728 = vcmp.eq.s32.totalorder %v215, %v2712
    %vm2729 = vcmp.eq.s32.totalorder %v216, %v2712
    %vm2730 = vcmp.eq.s32.totalorder %v217, %v2712
    %vm2731 = vcmp.eq.s32.totalorder %v218, %v2712
    %vm2732 = vcmp.eq.s32.totalorder %v219, %v2712
    %vm2733 = vcmp.eq.s32.totalorder %v220, %v2712
    %vm2734 = vcmp.eq.s32.totalorder %v221, %v2712
    %vm2735 = vcmp.eq.s32.totalorder %v222, %v2712
    %vm2736 = vcmp.eq.s32.totalorder %v223, %v2712
    %vm2737 = vcmp.eq.s32.totalorder %v224, %v2712
    %vm2738 = vcmp.eq.s32.totalorder %v225, %v2712
    %vm2739 = vcmp.eq.s32.totalorder %v226, %v2712
    %vm2740 = vcmp.eq.s32.totalorder %v227, %v2712
    %vm2741 = vcmp.eq.s32.totalorder %v228, %v2712
    %vm2742 = vcmp.eq.s32.totalorder %v229, %v2712
    %vm2743 = vcmp.eq.s32.totalorder %v230, %v2712
    %vm2744 = vcmp.eq.s32.totalorder %v231, %v2712
    %vm2745 = vcmp.eq.s32.totalorder %v232, %v2712
    %vm2746 = vcmp.eq.s32.totalorder %v233, %v2712
    %vm2747 = vcmp.eq.s32.totalorder %v234, %v2712
    %vm2748 = vcmp.eq.s32.totalorder %v235, %v2712
    %vm2749 = vcmp.eq.s32.totalorder %v236, %v2712
    %vm2750 = vcmp.eq.s32.totalorder %v237, %v2712
    %vm2751 = vcmp.eq.s32.totalorder %v238, %v2712
    %vm2752 = vcmp.eq.s32.totalorder %v239, %v2712
    %vm2753 = vcmp.eq.s32.totalorder %v240, %v2712
    %vm2754 = vcmp.eq.s32.totalorder %v241, %v2712
    %vm2755 = vcmp.eq.s32.totalorder %v242, %v2712
    %vm2756 = vcmp.eq.s32.totalorder %v243, %v2712
    %vm2757 = vcmp.eq.s32.totalorder %v244, %v2712
    %vm2758 = vcmp.eq.s32.totalorder %v245, %v2712
    %vm2759 = vcmp.eq.s32.totalorder %v246, %v2712
    %vm2760 = vcmp.eq.s32.totalorder %v247, %v2712
    %vm2761 = vcmp.eq.s32.totalorder %v248, %v2712
    %vm2762 = vcmp.eq.s32.totalorder %v249, %v2712
    %vm2763 = vcmp.eq.s32.totalorder %v250, %v2712
    %vm2764 = vcmp.eq.s32.totalorder %v251, %v2712
    %vm2765 = vcmp.eq.s32.totalorder %v252, %v2712
    %vm2766 = vcmp.eq.s32.totalorder %v253, %v2712
    %vm2767 = vcmp.eq.s32.totalorder %v254, %v2712
    %vm2768 = vcmp.eq.s32.totalorder %v255, %v2712
    %vm2769 = vcmp.eq.s32.totalorder %v256, %v2712
    %vm2770 = vcmp.eq.s32.totalorder %v257, %v2712
    %vm2771 = vcmp.eq.s32.totalorder %v258, %v2712
    %vm2772 = vcmp.eq.s32.totalorder %v259, %v2712
    %vm2773 = vcmp.eq.s32.totalorder %v260, %v2712
    %vm2774 = vcmp.eq.s32.totalorder %v261, %v2712
    %vm2775 = vcmp.eq.s32.totalorder %v262, %v2712
    %vm2776 = vcmp.eq.s32.totalorder %v263, %v2712
    %v2777 = vsel %vm2713, 1.0, 0.0
    %v2778 = vsel %vm2714, 1.0, 0.0
    %v2779 = vsel %vm2715, 1.0, 0.0
    %v2780 = vsel %vm2716, 1.0, 0.0
    %v2781 = vsel %vm2717, 1.0, 0.0
    %v2782 = vsel %vm2718, 1.0, 0.0
    %v2783 = vsel %vm2719, 1.0, 0.0
    %v2784 = vsel %vm2720, 1.0, 0.0
    %v2785 = vsel %vm2721, 1.0, 0.0
    %v2786 = vsel %vm2722, 1.0, 0.0
    %v2787 = vsel %vm2723, 1.0, 0.0
    %v2788 = vsel %vm2724, 1.0, 0.0
    %v2789 = vsel %vm2725, 1.0, 0.0
    %v2790 = vsel %vm2726, 1.0, 0.0
    %v2791 = vsel %vm2727, 1.0, 0.0
    %v2792 = vsel %vm2728, 1.0, 0.0
    %v2793 = vsel %vm2729, 1.0, 0.0
    %v2794 = vsel %vm2730, 1.0, 0.0
    %v2795 = vsel %vm2731, 1.0, 0.0
    %v2796 = vsel %vm2732, 1.0, 0.0
    %v2797 = vsel %vm2733, 1.0, 0.0
    %v2798 = vsel %vm2734, 1.0, 0.0
    %v2799 = vsel %vm2735, 1.0, 0.0
    %v2800 = vsel %vm2736, 1.0, 0.0
    %v2801 = vsel %vm2737, 1.0, 0.0
    %v2802 = vsel %vm2738, 1.0, 0.0
    %v2803 = vsel %vm2739, 1.0, 0.0
    %v2804 = vsel %vm2740, 1.0, 0.0
    %v2805 = vsel %vm2741, 1.0, 0.0
    %v2806 = vsel %vm2742, 1.0, 0.0
    %v2807 = vsel %vm2743, 1.0, 0.0
    %v2808 = vsel %vm2744, 1.0, 0.0
    %v2809 = vsel %vm2745, 1.0, 0.0
    %v2810 = vsel %vm2746, 1.0, 0.0
    %v2811 = vsel %vm2747, 1.0, 0.0
    %v2812 = vsel %vm2748, 1.0, 0.0
    %v2813 = vsel %vm2749, 1.0, 0.0
    %v2814 = vsel %vm2750, 1.0, 0.0
    %v2815 = vsel %vm2751, 1.0, 0.0
    %v2816 = vsel %vm2752, 1.0, 0.0
    %v2817 = vsel %vm2753, 1.0, 0.0
    %v2818 = vsel %vm2754, 1.0, 0.0
    %v2819 = vsel %vm2755, 1.0, 0.0
    %v2820 = vsel %vm2756, 1.0, 0.0
    %v2821 = vsel %vm2757, 1.0, 0.0
    %v2822 = vsel %vm2758, 1.0, 0.0
    %v2823 = vsel %vm2759, 1.0, 0.0
    %v2824 = vsel %vm2760, 1.0, 0.0
    %v2825 = vsel %vm2761, 1.0, 0.0
    %v2826 = vsel %vm2762, 1.0, 0.0
    %v2827 = vsel %vm2763, 1.0, 0.0
    %v2828 = vsel %vm2764, 1.0, 0.0
    %v2829 = vsel %vm2765, 1.0, 0.0
    %v2830 = vsel %vm2766, 1.0, 0.0
    %v2831 = vsel %vm2767, 1.0, 0.0
    %v2832 = vsel %vm2768, 1.0, 0.0
    %v2833 = vsel %vm2769, 1.0, 0.0
    %v2834 = vsel %vm2770, 1.0, 0.0
    %v2835 = vsel %vm2771, 1.0, 0.0
    %v2836 = vsel %vm2772, 1.0, 0.0
    %v2837 = vsel %vm2773, 1.0, 0.0
    %v2838 = vsel %vm2774, 1.0, 0.0
    %v2839 = vsel %vm2775, 1.0, 0.0
    %v2840 = vsel %vm2776, 1.0, 0.0
    %2841 = vmatprep.subr.mxu0 0.0
    %2842 = vmatpush1.msra.mxu0 %v2792
    %2843 = vmatprep.subr.mxu0 0.0
    %2844 = vmatpush1.msra.mxu0 %v2791
    %2845 = vmatprep.subr.mxu0 0.0
    %2846 = vmatpush1.msra.mxu0 %v2790
    %2847 = vmatprep.subr.mxu0 0.0
    %2848 = vmatpush1.msra.mxu0 %v2789
    %2849 = vmatprep.subr.mxu0 0.0
    %2850 = vmatpush1.msra.mxu0 %v2788
    %2851 = vmatprep.subr.mxu0 0.0
    %2852 = vmatpush1.msra.mxu0 %v2787
    %2853 = vmatprep.subr.mxu0 0.0
    %2854 = vmatpush1.msra.mxu0 %v2786
    %2855 = vmatprep.subr.mxu0 0.0
    %2856 = vmatpush1.msra.mxu0 %v2785
    %2857 = vmatprep.subr.mxu0 0.0
    %2858 = vmatpush1.msra.mxu0 %v2784
    %2859 = vmatprep.subr.mxu0 0.0
    %2860 = vmatpush1.msra.mxu0 %v2783
    %2861 = vmatprep.subr.mxu0 0.0
    %2862 = vmatpush1.msra.mxu0 %v2782
    %2863 = vmatprep.subr.mxu0 0.0
    %2864 = vmatpush1.msra.mxu0 %v2781
    %2865 = vmatprep.subr.mxu0 0.0
    %2866 = vmatpush1.msra.mxu0 %v2780
    %2867 = vmatprep.subr.mxu0 0.0
    %2868 = vmatpush1.msra.mxu0 %v2779
    %2869 = vmatprep.subr.mxu0 0.0
    %2870 = vmatpush1.msra.mxu0 %v2778
    %2871 = vmatprep.subr.mxu0 0.0
    %2872 = vmatpush1.msra.mxu0 %v2777
    %2873 = vmatprep.subr.mxu0 0.0
    %2874 = vmatpush2.msra.mxu0 %v2808
    %2875 = vmatprep.subr.mxu0 0.0
    %2876 = vmatpush2.msra.mxu0 %v2807
    %2877 = vmatprep.subr.mxu0 0.0
    %2878 = vmatpush2.msra.mxu0 %v2806
    %2879 = vmatprep.subr.mxu0 0.0
    %2880 = vmatpush2.msra.mxu0 %v2805
    %2881 = vmatprep.subr.mxu0 0.0
    %2882 = vmatpush2.msra.mxu0 %v2804
    %2883 = vmatprep.subr.mxu0 0.0
    %2884 = vmatpush2.msra.mxu0 %v2803
    %2885 = vmatprep.subr.mxu0 0.0
    %2886 = vmatpush2.msra.mxu0 %v2802
    %2887 = vmatprep.subr.mxu0 0.0
    %2888 = vmatpush2.msra.mxu0 %v2801
    %2889 = vmatprep.subr.mxu0 0.0
    %2890 = vmatpush2.msra.mxu0 %v2800
    %2891 = vmatprep.subr.mxu0 0.0
    %2892 = vmatpush2.msra.mxu0 %v2799
    %2893 = vmatprep.subr.mxu0 0.0
    %2894 = vmatpush2.msra.mxu0 %v2798
    %2895 = vmatprep.subr.mxu0 0.0
    %2896 = vmatpush2.msra.mxu0 %v2797
    %2897 = vmatprep.subr.mxu0 0.0
    %2898 = vmatpush2.msra.mxu0 %v2796
    %2899 = vmatprep.subr.mxu0 0.0
    %2900 = vmatpush2.msra.mxu0 %v2795
    %2901 = vmatprep.subr.mxu0 0.0
    %2902 = vmatpush2.msra.mxu0 %v2794
    %2903 = vmatprep.subr.mxu0 0.0
    %2904 = vmatpush2.msra.mxu0 %v2793
    %2905 = vmatprep.mubr.f32.mxu0 %v196
    %2906 = vmatmul.mubr.f32.gmra.mxu0 %v195
    %v2907 = vpop.f32.mrf.mxu0
    %v2908 = vadd.f32 0.0, %v2907
    %v2909 = vpop.f32.mrf.mxu0
    %2910 = vdwg.mxu0
    %2911 = vmatprep.subr.mxu0 0.0
    %2912 = vmatpush1.msra.mxu0 %v2824
    %2913 = vmatprep.subr.mxu0 0.0
    %2914 = vmatpush1.msra.mxu0 %v2823
    %2915 = vmatprep.subr.mxu0 0.0
    %2916 = vmatpush1.msra.mxu0 %v2822
    %2917 = vmatprep.subr.mxu0 0.0
    %2918 = vmatpush1.msra.mxu0 %v2821
    %2919 = vmatprep.subr.mxu0 0.0
    %2920 = vmatpush1.msra.mxu0 %v2820
    %2921 = vmatprep.subr.mxu0 0.0
    %2922 = vmatpush1.msra.mxu0 %v2819
    %2923 = vmatprep.subr.mxu0 0.0
    %2924 = vmatpush1.msra.mxu0 %v2818
    %2925 = vmatprep.subr.mxu0 0.0
    %2926 = vmatpush1.msra.mxu0 %v2817
    %2927 = vmatprep.subr.mxu0 0.0
    %2928 = vmatpush1.msra.mxu0 %v2816
    %2929 = vmatprep.subr.mxu0 0.0
    %2930 = vmatpush1.msra.mxu0 %v2815
    %2931 = vmatprep.subr.mxu0 0.0
    %2932 = vmatpush1.msra.mxu0 %v2814
    %2933 = vmatprep.subr.mxu0 0.0
    %2934 = vmatpush1.msra.mxu0 %v2813
    %2935 = vmatprep.subr.mxu0 0.0
    %2936 = vmatpush1.msra.mxu0 %v2812
    %2937 = vmatprep.subr.mxu0 0.0
    %2938 = vmatpush1.msra.mxu0 %v2811
    %2939 = vmatprep.subr.mxu0 0.0
    %2940 = vmatpush1.msra.mxu0 %v2810
    %2941 = vmatprep.subr.mxu0 0.0
    %2942 = vmatpush1.msra.mxu0 %v2809
    %2943 = vmatprep.subr.mxu0 0.0
    %2944 = vmatpush2.msra.mxu0 %v2840
    %2945 = vmatprep.subr.mxu0 0.0
    %2946 = vmatpush2.msra.mxu0 %v2839
    %2947 = vmatprep.subr.mxu0 0.0
    %2948 = vmatpush2.msra.mxu0 %v2838
    %2949 = vmatprep.subr.mxu0 0.0
    %2950 = vmatpush2.msra.mxu0 %v2837
    %2951 = vmatprep.subr.mxu0 0.0
    %2952 = vmatpush2.msra.mxu0 %v2836
    %2953 = vmatprep.subr.mxu0 0.0
    %2954 = vmatpush2.msra.mxu0 %v2835
    %2955 = vmatprep.subr.mxu0 0.0
    %2956 = vmatpush2.msra.mxu0 %v2834
    %2957 = vmatprep.subr.mxu0 0.0
    %2958 = vmatpush2.msra.mxu0 %v2833
    %2959 = vmatprep.subr.mxu0 0.0
    %2960 = vmatpush2.msra.mxu0 %v2832
    %2961 = vmatprep.subr.mxu0 0.0
    %2962 = vmatpush2.msra.mxu0 %v2831
    %2963 = vmatprep.subr.mxu0 0.0
    %2964 = vmatpush2.msra.mxu0 %v2830
    %2965 = vmatprep.subr.mxu0 0.0
    %2966 = vmatpush2.msra.mxu0 %v2829
    %2967 = vmatprep.subr.mxu0 0.0
    %2968 = vmatpush2.msra.mxu0 %v2828
    %2969 = vmatprep.subr.mxu0 0.0
    %2970 = vmatpush2.msra.mxu0 %v2827
    %2971 = vmatprep.subr.mxu0 0.0
    %2972 = vmatpush2.msra.mxu0 %v2826
    %2973 = vmatprep.subr.mxu0 0.0
    %2974 = vmatpush2.msra.mxu0 %v2825
    %2975 = vmatprep.mubr.f32.mxu0 %v198
    %2976 = vmatmul.mubr.f32.gmra.mxu0 %v197
    %v2977 = vpop.f32.mrf.mxu0
    %v2978 = vadd.f32 %v2908, %v2977
    %v2979 = vpop.f32.mrf.mxu0
    %2980 = vdwg.mxu0
    %s2981 = scalar_lea.vmem %s4, 56
    %v2982 = vld [vmem:[%s2981] sm:$0xff]
    %v2984 = vsel %vm539, %v2982, 0
    %2986 = vmatprep.subr.mxu0 0.0
    %2987 = vmatpush1.msra.mxu0 0.0
    %2988 = vmatprep.subr.mxu0 0.0
    %2989 = vmatpush1.msra.mxu0 0.0
    %2990 = vmatprep.subr.mxu0 0.0
    %2991 = vmatpush1.msra.mxu0 0.0
    %2992 = vmatprep.subr.mxu0 0.0
    %2993 = vmatpush1.msra.mxu0 0.0
    %2994 = vmatprep.subr.mxu0 0.0
    %2995 = vmatpush1.msra.mxu0 0.0
    %2996 = vmatprep.subr.mxu0 0.0
    %2997 = vmatpush1.msra.mxu0 0.0
    %2998 = vmatprep.subr.mxu0 0.0
    %2999 = vmatpush1.msra.mxu0 0.0
    %3000 = vmatprep.subr.mxu0 0.0
    %3001 = vmatpush1.msra.mxu0 0.0
    %3002 = vmatprep.subr.mxu0 0.0
    %3003 = vmatpush1.msra.mxu0 0.0
    %3004 = vmatprep.subr.mxu0 0.0
    %3005 = vmatpush1.msra.mxu0 0.0
    %3006 = vmatprep.subr.mxu0 0.0
    %3007 = vmatpush1.msra.mxu0 0.0
    %3008 = vmatprep.subr.mxu0 0.0
    %3009 = vmatpush1.msra.mxu0 0.0
    %3010 = vmatprep.subr.mxu0 0.0
    %3011 = vmatpush1.msra.mxu0 0.0
    %3012 = vmatprep.subr.mxu0 0.0
    %3013 = vmatpush1.msra.mxu0 0.0
    %3014 = vmatprep.subr.mxu0 0.0
    %3015 = vmatpush1.msra.mxu0 0.0
    %3016 = vmatprep.subr.mxu0 0.0
    %3017 = vmatpush1.msra.mxu0 %v2978
    %3018 = vmatprep.subr.mxu0 0.0
    %3019 = vmatpush2.msra.mxu0 0.0
    %3020 = vmatprep.subr.mxu0 0.0
    %3021 = vmatpush2.msra.mxu0 0.0
    %3022 = vmatprep.subr.mxu0 0.0
    %3023 = vmatpush2.msra.mxu0 0.0
    %3024 = vmatprep.subr.mxu0 0.0
    %3025 = vmatpush2.msra.mxu0 0.0
    %3026 = vmatprep.subr.mxu0 0.0
    %3027 = vmatpush2.msra.mxu0 0.0
    %3028 = vmatprep.subr.mxu0 0.0
    %3029 = vmatpush2.msra.mxu0 0.0
    %3030 = vmatprep.subr.mxu0 0.0
    %3031 = vmatpush2.msra.mxu0 0.0
    %3032 = vmatprep.subr.mxu0 0.0
    %3033 = vmatpush2.msra.mxu0 0.0
    %3034 = vmatprep.subr.mxu0 0.0
    %3035 = vmatpush2.msra.mxu0 0.0
    %3036 = vmatprep.subr.mxu0 0.0
    %3037 = vmatpush2.msra.mxu0 0.0
    %3038 = vmatprep.subr.mxu0 0.0
    %3039 = vmatpush2.msra.mxu0 0.0
    %3040 = vmatprep.subr.mxu0 0.0
    %3041 = vmatpush2.msra.mxu0 0.0
    %3042 = vmatprep.subr.mxu0 0.0
    %3043 = vmatpush2.msra.mxu0 0.0
    %3044 = vmatprep.subr.mxu0 0.0
    %3045 = vmatpush2.msra.mxu0 0.0
    %3046 = vmatprep.subr.mxu0 0.0
    %3047 = vmatpush2.msra.mxu0 0.0
    %3048 = vmatprep.subr.mxu0 0.0
    %3049 = vmatpush2.msra.mxu0 0.0
    %3050 = vmatprep.mubr.f32.mxu0 0.0
    %3051 = vmatmul.mubr.f32.gmra.mxu0 %v2984
    %v3052 = vpop.f32.mrf.mxu0
    %v3053 = vadd.f32 0.0, %v3052
    %v3054 = vpop.f32.mrf.mxu0
    %3055 = vdwg.mxu0
    %v3056 = vadd.f32 %v2707, %v3053
    %v3057 = vld [vmem:[%s3 + $0x8] sm:$0x1]
    %v3058 = vlaneseq
    %v3059 = vshrl.u32 %v3058, 7
    %v3060 = vsub.s32 0, %v3059
    %v3061 = vrot.slane %v3057, %v3060
    %vm3062 = vcmp.eq.s32.totalorder %v200, %v3061
    %vm3063 = vcmp.eq.s32.totalorder %v201, %v3061
    %vm3064 = vcmp.eq.s32.totalorder %v202, %v3061
    %vm3065 = vcmp.eq.s32.totalorder %v203, %v3061
    %vm3066 = vcmp.eq.s32.totalorder %v204, %v3061
    %vm3067 = vcmp.eq.s32.totalorder %v205, %v3061
    %vm3068 = vcmp.eq.s32.totalorder %v206, %v3061
    %vm3069 = vcmp.eq.s32.totalorder %v207, %v3061
    %vm3070 = vcmp.eq.s32.totalorder %v208, %v3061
    %vm3071 = vcmp.eq.s32.totalorder %v209, %v3061
    %vm3072 = vcmp.eq.s32.totalorder %v210, %v3061
    %vm3073 = vcmp.eq.s32.totalorder %v211, %v3061
    %vm3074 = vcmp.eq.s32.totalorder %v212, %v3061
    %vm3075 = vcmp.eq.s32.totalorder %v213, %v3061
    %vm3076 = vcmp.eq.s32.totalorder %v214, %v3061
    %vm3077 = vcmp.eq.s32.totalorder %v215, %v3061
    %vm3078 = vcmp.eq.s32.totalorder %v216, %v3061
    %vm3079 = vcmp.eq.s32.totalorder %v217, %v3061
    %vm3080 = vcmp.eq.s32.totalorder %v218, %v3061
    %vm3081 = vcmp.eq.s32.totalorder %v219, %v3061
    %vm3082 = vcmp.eq.s32.totalorder %v220, %v3061
    %vm3083 = vcmp.eq.s32.totalorder %v221, %v3061
    %vm3084 = vcmp.eq.s32.totalorder %v222, %v3061
    %vm3085 = vcmp.eq.s32.totalorder %v223, %v3061
    %vm3086 = vcmp.eq.s32.totalorder %v224, %v3061
    %vm3087 = vcmp.eq.s32.totalorder %v225, %v3061
    %vm3088 = vcmp.eq.s32.totalorder %v226, %v3061
    %vm3089 = vcmp.eq.s32.totalorder %v227, %v3061
    %vm3090 = vcmp.eq.s32.totalorder %v228, %v3061
    %vm3091 = vcmp.eq.s32.totalorder %v229, %v3061
    %vm3092 = vcmp.eq.s32.totalorder %v230, %v3061
    %vm3093 = vcmp.eq.s32.totalorder %v231, %v3061
    %vm3094 = vcmp.eq.s32.totalorder %v232, %v3061
    %vm3095 = vcmp.eq.s32.totalorder %v233, %v3061
    %vm3096 = vcmp.eq.s32.totalorder %v234, %v3061
    %vm3097 = vcmp.eq.s32.totalorder %v235, %v3061
    %vm3098 = vcmp.eq.s32.totalorder %v236, %v3061
    %vm3099 = vcmp.eq.s32.totalorder %v237, %v3061
    %vm3100 = vcmp.eq.s32.totalorder %v238, %v3061
    %vm3101 = vcmp.eq.s32.totalorder %v239, %v3061
    %vm3102 = vcmp.eq.s32.totalorder %v240, %v3061
    %vm3103 = vcmp.eq.s32.totalorder %v241, %v3061
    %vm3104 = vcmp.eq.s32.totalorder %v242, %v3061
    %vm3105 = vcmp.eq.s32.totalorder %v243, %v3061
    %vm3106 = vcmp.eq.s32.totalorder %v244, %v3061
    %vm3107 = vcmp.eq.s32.totalorder %v245, %v3061
    %vm3108 = vcmp.eq.s32.totalorder %v246, %v3061
    %vm3109 = vcmp.eq.s32.totalorder %v247, %v3061
    %vm3110 = vcmp.eq.s32.totalorder %v248, %v3061
    %vm3111 = vcmp.eq.s32.totalorder %v249, %v3061
    %vm3112 = vcmp.eq.s32.totalorder %v250, %v3061
    %vm3113 = vcmp.eq.s32.totalorder %v251, %v3061
    %vm3114 = vcmp.eq.s32.totalorder %v252, %v3061
    %vm3115 = vcmp.eq.s32.totalorder %v253, %v3061
    %vm3116 = vcmp.eq.s32.totalorder %v254, %v3061
    %vm3117 = vcmp.eq.s32.totalorder %v255, %v3061
    %vm3118 = vcmp.eq.s32.totalorder %v256, %v3061
    %vm3119 = vcmp.eq.s32.totalorder %v257, %v3061
    %vm3120 = vcmp.eq.s32.totalorder %v258, %v3061
    %vm3121 = vcmp.eq.s32.totalorder %v259, %v3061
    %vm3122 = vcmp.eq.s32.totalorder %v260, %v3061
    %vm3123 = vcmp.eq.s32.totalorder %v261, %v3061
    %vm3124 = vcmp.eq.s32.totalorder %v262, %v3061
    %vm3125 = vcmp.eq.s32.totalorder %v263, %v3061
    %v3126 = vsel %vm3062, 1.0, 0.0
    %v3127 = vsel %vm3063, 1.0, 0.0
    %v3128 = vsel %vm3064, 1.0, 0.0
    %v3129 = vsel %vm3065, 1.0, 0.0
    %v3130 = vsel %vm3066, 1.0, 0.0
    %v3131 = vsel %vm3067, 1.0, 0.0
    %v3132 = vsel %vm3068, 1.0, 0.0
    %v3133 = vsel %vm3069, 1.0, 0.0
    %v3134 = vsel %vm3070, 1.0, 0.0
    %v3135 = vsel %vm3071, 1.0, 0.0
    %v3136 = vsel %vm3072, 1.0, 0.0
    %v3137 = vsel %vm3073, 1.0, 0.0
    %v3138 = vsel %vm3074, 1.0, 0.0
    %v3139 = vsel %vm3075, 1.0, 0.0
    %v3140 = vsel %vm3076, 1.0, 0.0
    %v3141 = vsel %vm3077, 1.0, 0.0
    %v3142 = vsel %vm3078, 1.0, 0.0
    %v3143 = vsel %vm3079, 1.0, 0.0
    %v3144 = vsel %vm3080, 1.0, 0.0
    %v3145 = vsel %vm3081, 1.0, 0.0
    %v3146 = vsel %vm3082, 1.0, 0.0
    %v3147 = vsel %vm3083, 1.0, 0.0
    %v3148 = vsel %vm3084, 1.0, 0.0
    %v3149 = vsel %vm3085, 1.0, 0.0
    %v3150 = vsel %vm3086, 1.0, 0.0
    %v3151 = vsel %vm3087, 1.0, 0.0
    %v3152 = vsel %vm3088, 1.0, 0.0
    %v3153 = vsel %vm3089, 1.0, 0.0
    %v3154 = vsel %vm3090, 1.0, 0.0
    %v3155 = vsel %vm3091, 1.0, 0.0
    %v3156 = vsel %vm3092, 1.0, 0.0
    %v3157 = vsel %vm3093, 1.0, 0.0
    %v3158 = vsel %vm3094, 1.0, 0.0
    %v3159 = vsel %vm3095, 1.0, 0.0
    %v3160 = vsel %vm3096, 1.0, 0.0
    %v3161 = vsel %vm3097, 1.0, 0.0
    %v3162 = vsel %vm3098, 1.0, 0.0
    %v3163 = vsel %vm3099, 1.0, 0.0
    %v3164 = vsel %vm3100, 1.0, 0.0
    %v3165 = vsel %vm3101, 1.0, 0.0
    %v3166 = vsel %vm3102, 1.0, 0.0
    %v3167 = vsel %vm3103, 1.0, 0.0
    %v3168 = vsel %vm3104, 1.0, 0.0
    %v3169 = vsel %vm3105, 1.0, 0.0
    %v3170 = vsel %vm3106, 1.0, 0.0
    %v3171 = vsel %vm3107, 1.0, 0.0
    %v3172 = vsel %vm3108, 1.0, 0.0
    %v3173 = vsel %vm3109, 1.0, 0.0
    %v3174 = vsel %vm3110, 1.0, 0.0
    %v3175 = vsel %vm3111, 1.0, 0.0
    %v3176 = vsel %vm3112, 1.0, 0.0
    %v3177 = vsel %vm3113, 1.0, 0.0
    %v3178 = vsel %vm3114, 1.0, 0.0
    %v3179 = vsel %vm3115, 1.0, 0.0
    %v3180 = vsel %vm3116, 1.0, 0.0
    %v3181 = vsel %vm3117, 1.0, 0.0
    %v3182 = vsel %vm3118, 1.0, 0.0
    %v3183 = vsel %vm3119, 1.0, 0.0
    %v3184 = vsel %vm3120, 1.0, 0.0
    %v3185 = vsel %vm3121, 1.0, 0.0
    %v3186 = vsel %vm3122, 1.0, 0.0
    %v3187 = vsel %vm3123, 1.0, 0.0
    %v3188 = vsel %vm3124, 1.0, 0.0
    %v3189 = vsel %vm3125, 1.0, 0.0
    %3190 = vmatprep.subr.mxu0 0.0
    %3191 = vmatpush1.msra.mxu0 %v3141
    %3192 = vmatprep.subr.mxu0 0.0
    %3193 = vmatpush1.msra.mxu0 %v3140
    %3194 = vmatprep.subr.mxu0 0.0
    %3195 = vmatpush1.msra.mxu0 %v3139
    %3196 = vmatprep.subr.mxu0 0.0
    %3197 = vmatpush1.msra.mxu0 %v3138
    %3198 = vmatprep.subr.mxu0 0.0
    %3199 = vmatpush1.msra.mxu0 %v3137
    %3200 = vmatprep.subr.mxu0 0.0
    %3201 = vmatpush1.msra.mxu0 %v3136
    %3202 = vmatprep.subr.mxu0 0.0
    %3203 = vmatpush1.msra.mxu0 %v3135
    %3204 = vmatprep.subr.mxu0 0.0
    %3205 = vmatpush1.msra.mxu0 %v3134
    %3206 = vmatprep.subr.mxu0 0.0
    %3207 = vmatpush1.msra.mxu0 %v3133
    %3208 = vmatprep.subr.mxu0 0.0
    %3209 = vmatpush1.msra.mxu0 %v3132
    %3210 = vmatprep.subr.mxu0 0.0
    %3211 = vmatpush1.msra.mxu0 %v3131
    %3212 = vmatprep.subr.mxu0 0.0
    %3213 = vmatpush1.msra.mxu0 %v3130
    %3214 = vmatprep.subr.mxu0 0.0
    %3215 = vmatpush1.msra.mxu0 %v3129
    %3216 = vmatprep.subr.mxu0 0.0
    %3217 = vmatpush1.msra.mxu0 %v3128
    %3218 = vmatprep.subr.mxu0 0.0
    %3219 = vmatpush1.msra.mxu0 %v3127
    %3220 = vmatprep.subr.mxu0 0.0
    %3221 = vmatpush1.msra.mxu0 %v3126
    %3222 = vmatprep.subr.mxu0 0.0
    %3223 = vmatpush2.msra.mxu0 %v3157
    %3224 = vmatprep.subr.mxu0 0.0
    %3225 = vmatpush2.msra.mxu0 %v3156
    %3226 = vmatprep.subr.mxu0 0.0
    %3227 = vmatpush2.msra.mxu0 %v3155
    %3228 = vmatprep.subr.mxu0 0.0
    %3229 = vmatpush2.msra.mxu0 %v3154
    %3230 = vmatprep.subr.mxu0 0.0
    %3231 = vmatpush2.msra.mxu0 %v3153
    %3232 = vmatprep.subr.mxu0 0.0
    %3233 = vmatpush2.msra.mxu0 %v3152
    %3234 = vmatprep.subr.mxu0 0.0
    %3235 = vmatpush2.msra.mxu0 %v3151
    %3236 = vmatprep.subr.mxu0 0.0
    %3237 = vmatpush2.msra.mxu0 %v3150
    %3238 = vmatprep.subr.mxu0 0.0
    %3239 = vmatpush2.msra.mxu0 %v3149
    %3240 = vmatprep.subr.mxu0 0.0
    %3241 = vmatpush2.msra.mxu0 %v3148
    %3242 = vmatprep.subr.mxu0 0.0
    %3243 = vmatpush2.msra.mxu0 %v3147
    %3244 = vmatprep.subr.mxu0 0.0
    %3245 = vmatpush2.msra.mxu0 %v3146
    %3246 = vmatprep.subr.mxu0 0.0
    %3247 = vmatpush2.msra.mxu0 %v3145
    %3248 = vmatprep.subr.mxu0 0.0
    %3249 = vmatpush2.msra.mxu0 %v3144
    %3250 = vmatprep.subr.mxu0 0.0
    %3251 = vmatpush2.msra.mxu0 %v3143
    %3252 = vmatprep.subr.mxu0 0.0
    %3253 = vmatpush2.msra.mxu0 %v3142
    %3254 = vmatprep.mubr.f32.mxu0 %v196
    %3255 = vmatmul.mubr.f32.gmra.mxu0 %v195
    %v3256 = vpop.f32.mrf.mxu0
    %v3257 = vadd.f32 0.0, %v3256
    %v3258 = vpop.f32.mrf.mxu0
    %3259 = vdwg.mxu0
    %3260 = vmatprep.subr.mxu0 0.0
    %3261 = vmatpush1.msra.mxu0 %v3173
    %3262 = vmatprep.subr.mxu0 0.0
    %3263 = vmatpush1.msra.mxu0 %v3172
    %3264 = vmatprep.subr.mxu0 0.0
    %3265 = vmatpush1.msra.mxu0 %v3171
    %3266 = vmatprep.subr.mxu0 0.0
    %3267 = vmatpush1.msra.mxu0 %v3170
    %3268 = vmatprep.subr.mxu0 0.0
    %3269 = vmatpush1.msra.mxu0 %v3169
    %3270 = vmatprep.subr.mxu0 0.0
    %3271 = vmatpush1.msra.mxu0 %v3168
    %3272 = vmatprep.subr.mxu0 0.0
    %3273 = vmatpush1.msra.mxu0 %v3167
    %3274 = vmatprep.subr.mxu0 0.0
    %3275 = vmatpush1.msra.mxu0 %v3166
    %3276 = vmatprep.subr.mxu0 0.0
    %3277 = vmatpush1.msra.mxu0 %v3165
    %3278 = vmatprep.subr.mxu0 0.0
    %3279 = vmatpush1.msra.mxu0 %v3164
    %3280 = vmatprep.subr.mxu0 0.0
    %3281 = vmatpush1.msra.mxu0 %v3163
    %3282 = vmatprep.subr.mxu0 0.0
    %3283 = vmatpush1.msra.mxu0 %v3162
    %3284 = vmatprep.subr.mxu0 0.0
    %3285 = vmatpush1.msra.mxu0 %v3161
    %3286 = vmatprep.subr.mxu0 0.0
    %3287 = vmatpush1.msra.mxu0 %v3160
    %3288 = vmatprep.subr.mxu0 0.0
    %3289 = vmatpush1.msra.mxu0 %v3159
    %3290 = vmatprep.subr.mxu0 0.0
    %3291 = vmatpush1.msra.mxu0 %v3158
    %3292 = vmatprep.subr.mxu0 0.0
    %3293 = vmatpush2.msra.mxu0 %v3189
    %3294 = vmatprep.subr.mxu0 0.0
    %3295 = vmatpush2.msra.mxu0 %v3188
    %3296 = vmatprep.subr.mxu0 0.0
    %3297 = vmatpush2.msra.mxu0 %v3187
    %3298 = vmatprep.subr.mxu0 0.0
    %3299 = vmatpush2.msra.mxu0 %v3186
    %3300 = vmatprep.subr.mxu0 0.0
    %3301 = vmatpush2.msra.mxu0 %v3185
    %3302 = vmatprep.subr.mxu0 0.0
    %3303 = vmatpush2.msra.mxu0 %v3184
    %3304 = vmatprep.subr.mxu0 0.0
    %3305 = vmatpush2.msra.mxu0 %v3183
    %3306 = vmatprep.subr.mxu0 0.0
    %3307 = vmatpush2.msra.mxu0 %v3182
    %3308 = vmatprep.subr.mxu0 0.0
    %3309 = vmatpush2.msra.mxu0 %v3181
    %3310 = vmatprep.subr.mxu0 0.0
    %3311 = vmatpush2.msra.mxu0 %v3180
    %3312 = vmatprep.subr.mxu0 0.0
    %3313 = vmatpush2.msra.mxu0 %v3179
    %3314 = vmatprep.subr.mxu0 0.0
    %3315 = vmatpush2.msra.mxu0 %v3178
    %3316 = vmatprep.subr.mxu0 0.0
    %3317 = vmatpush2.msra.mxu0 %v3177
    %3318 = vmatprep.subr.mxu0 0.0
    %3319 = vmatpush2.msra.mxu0 %v3176
    %3320 = vmatprep.subr.mxu0 0.0
    %3321 = vmatpush2.msra.mxu0 %v3175
    %3322 = vmatprep.subr.mxu0 0.0
    %3323 = vmatpush2.msra.mxu0 %v3174
    %3324 = vmatprep.mubr.f32.mxu0 %v198
    %3325 = vmatmul.mubr.f32.gmra.mxu0 %v197
    %v3326 = vpop.f32.mrf.mxu0
    %v3327 = vadd.f32 %v3257, %v3326
    %v3328 = vpop.f32.mrf.mxu0
    %3329 = vdwg.mxu0
    %s3330 = scalar_lea.vmem %s4, 64
    %v3331 = vld [vmem:[%s3330] sm:$0xff]
    %v3333 = vsel %vm539, %v3331, 0
    %3335 = vmatprep.subr.mxu0 0.0
    %3336 = vmatpush1.msra.mxu0 0.0
    %3337 = vmatprep.subr.mxu0 0.0
    %3338 = vmatpush1.msra.mxu0 0.0
    %3339 = vmatprep.subr.mxu0 0.0
    %3340 = vmatpush1.msra.mxu0 0.0
    %3341 = vmatprep.subr.mxu0 0.0
    %3342 = vmatpush1.msra.mxu0 0.0
    %3343 = vmatprep.subr.mxu0 0.0
    %3344 = vmatpush1.msra.mxu0 0.0
    %3345 = vmatprep.subr.mxu0 0.0
    %3346 = vmatpush1.msra.mxu0 0.0
    %3347 = vmatprep.subr.mxu0 0.0
    %3348 = vmatpush1.msra.mxu0 0.0
    %3349 = vmatprep.subr.mxu0 0.0
    %3350 = vmatpush1.msra.mxu0 0.0
    %3351 = vmatprep.subr.mxu0 0.0
    %3352 = vmatpush1.msra.mxu0 0.0
    %3353 = vmatprep.subr.mxu0 0.0
    %3354 = vmatpush1.msra.mxu0 0.0
    %3355 = vmatprep.subr.mxu0 0.0
    %3356 = vmatpush1.msra.mxu0 0.0
    %3357 = vmatprep.subr.mxu0 0.0
    %3358 = vmatpush1.msra.mxu0 0.0
    %3359 = vmatprep.subr.mxu0 0.0
    %3360 = vmatpush1.msra.mxu0 0.0
    %3361 = vmatprep.subr.mxu0 0.0
    %3362 = vmatpush1.msra.mxu0 0.0
    %3363 = vmatprep.subr.mxu0 0.0
    %3364 = vmatpush1.msra.mxu0 0.0
    %3365 = vmatprep.subr.mxu0 0.0
    %3366 = vmatpush1.msra.mxu0 %v3327
    %3367 = vmatprep.subr.mxu0 0.0
    %3368 = vmatpush2.msra.mxu0 0.0
    %3369 = vmatprep.subr.mxu0 0.0
    %3370 = vmatpush2.msra.mxu0 0.0
    %3371 = vmatprep.subr.mxu0 0.0
    %3372 = vmatpush2.msra.mxu0 0.0
    %3373 = vmatprep.subr.mxu0 0.0
    %3374 = vmatpush2.msra.mxu0 0.0
    %3375 = vmatprep.subr.mxu0 0.0
    %3376 = vmatpush2.msra.mxu0 0.0
    %3377 = vmatprep.subr.mxu0 0.0
    %3378 = vmatpush2.msra.mxu0 0.0
    %3379 = vmatprep.subr.mxu0 0.0
    %3380 = vmatpush2.msra.mxu0 0.0
    %3381 = vmatprep.subr.mxu0 0.0
    %3382 = vmatpush2.msra.mxu0 0.0
    %3383 = vmatprep.subr.mxu0 0.0
    %3384 = vmatpush2.msra.mxu0 0.0
    %3385 = vmatprep.subr.mxu0 0.0
    %3386 = vmatpush2.msra.mxu0 0.0
    %3387 = vmatprep.subr.mxu0 0.0
    %3388 = vmatpush2.msra.mxu0 0.0
    %3389 = vmatprep.subr.mxu0 0.0
    %3390 = vmatpush2.msra.mxu0 0.0
    %3391 = vmatprep.subr.mxu0 0.0
    %3392 = vmatpush2.msra.mxu0 0.0
    %3393 = vmatprep.subr.mxu0 0.0
    %3394 = vmatpush2.msra.mxu0 0.0
    %3395 = vmatprep.subr.mxu0 0.0
    %3396 = vmatpush2.msra.mxu0 0.0
    %3397 = vmatprep.subr.mxu0 0.0
    %3398 = vmatpush2.msra.mxu0 0.0
    %3399 = vmatprep.mubr.f32.mxu0 0.0
    %3400 = vmatmul.mubr.f32.gmra.mxu0 %v3333
    %v3401 = vpop.f32.mrf.mxu0
    %v3402 = vadd.f32 0.0, %v3401
    %v3403 = vpop.f32.mrf.mxu0
    %3404 = vdwg.mxu0
    %v3405 = vadd.f32 %v3056, %v3402
    %v3406 = vld [vmem:[%s3 + $0x9] sm:$0x1]
    %v3407 = vlaneseq
    %v3408 = vshrl.u32 %v3407, 7
    %v3409 = vsub.s32 0, %v3408
    %v3410 = vrot.slane %v3406, %v3409
    %vm3411 = vcmp.eq.s32.totalorder %v200, %v3410
    %vm3412 = vcmp.eq.s32.totalorder %v201, %v3410
    %vm3413 = vcmp.eq.s32.totalorder %v202, %v3410
    %vm3414 = vcmp.eq.s32.totalorder %v203, %v3410
    %vm3415 = vcmp.eq.s32.totalorder %v204, %v3410
    %vm3416 = vcmp.eq.s32.totalorder %v205, %v3410
    %vm3417 = vcmp.eq.s32.totalorder %v206, %v3410
    %vm3418 = vcmp.eq.s32.totalorder %v207, %v3410
    %vm3419 = vcmp.eq.s32.totalorder %v208, %v3410
    %vm3420 = vcmp.eq.s32.totalorder %v209, %v3410
    %vm3421 = vcmp.eq.s32.totalorder %v210, %v3410
    %vm3422 = vcmp.eq.s32.totalorder %v211, %v3410
    %vm3423 = vcmp.eq.s32.totalorder %v212, %v3410
    %vm3424 = vcmp.eq.s32.totalorder %v213, %v3410
    %vm3425 = vcmp.eq.s32.totalorder %v214, %v3410
    %vm3426 = vcmp.eq.s32.totalorder %v215, %v3410
    %vm3427 = vcmp.eq.s32.totalorder %v216, %v3410
    %vm3428 = vcmp.eq.s32.totalorder %v217, %v3410
    %vm3429 = vcmp.eq.s32.totalorder %v218, %v3410
    %vm3430 = vcmp.eq.s32.totalorder %v219, %v3410
    %vm3431 = vcmp.eq.s32.totalorder %v220, %v3410
    %vm3432 = vcmp.eq.s32.totalorder %v221, %v3410
    %vm3433 = vcmp.eq.s32.totalorder %v222, %v3410
    %vm3434 = vcmp.eq.s32.totalorder %v223, %v3410
    %vm3435 = vcmp.eq.s32.totalorder %v224, %v3410
    %vm3436 = vcmp.eq.s32.totalorder %v225, %v3410
    %vm3437 = vcmp.eq.s32.totalorder %v226, %v3410
    %vm3438 = vcmp.eq.s32.totalorder %v227, %v3410
    %vm3439 = vcmp.eq.s32.totalorder %v228, %v3410
    %vm3440 = vcmp.eq.s32.totalorder %v229, %v3410
    %vm3441 = vcmp.eq.s32.totalorder %v230, %v3410
    %vm3442 = vcmp.eq.s32.totalorder %v231, %v3410
    %vm3443 = vcmp.eq.s32.totalorder %v232, %v3410
    %vm3444 = vcmp.eq.s32.totalorder %v233, %v3410
    %vm3445 = vcmp.eq.s32.totalorder %v234, %v3410
    %vm3446 = vcmp.eq.s32.totalorder %v235, %v3410
    %vm3447 = vcmp.eq.s32.totalorder %v236, %v3410
    %vm3448 = vcmp.eq.s32.totalorder %v237, %v3410
    %vm3449 = vcmp.eq.s32.totalorder %v238, %v3410
    %vm3450 = vcmp.eq.s32.totalorder %v239, %v3410
    %vm3451 = vcmp.eq.s32.totalorder %v240, %v3410
    %vm3452 = vcmp.eq.s32.totalorder %v241, %v3410
    %vm3453 = vcmp.eq.s32.totalorder %v242, %v3410
    %vm3454 = vcmp.eq.s32.totalorder %v243, %v3410
    %vm3455 = vcmp.eq.s32.totalorder %v244, %v3410
    %vm3456 = vcmp.eq.s32.totalorder %v245, %v3410
    %vm3457 = vcmp.eq.s32.totalorder %v246, %v3410
    %vm3458 = vcmp.eq.s32.totalorder %v247, %v3410
    %vm3459 = vcmp.eq.s32.totalorder %v248, %v3410
    %vm3460 = vcmp.eq.s32.totalorder %v249, %v3410
    %vm3461 = vcmp.eq.s32.totalorder %v250, %v3410
    %vm3462 = vcmp.eq.s32.totalorder %v251, %v3410
    %vm3463 = vcmp.eq.s32.totalorder %v252, %v3410
    %vm3464 = vcmp.eq.s32.totalorder %v253, %v3410
    %vm3465 = vcmp.eq.s32.totalorder %v254, %v3410
    %vm3466 = vcmp.eq.s32.totalorder %v255, %v3410
    %vm3467 = vcmp.eq.s32.totalorder %v256, %v3410
    %vm3468 = vcmp.eq.s32.totalorder %v257, %v3410
    %vm3469 = vcmp.eq.s32.totalorder %v258, %v3410
    %vm3470 = vcmp.eq.s32.totalorder %v259, %v3410
    %vm3471 = vcmp.eq.s32.totalorder %v260, %v3410
    %vm3472 = vcmp.eq.s32.totalorder %v261, %v3410
    %vm3473 = vcmp.eq.s32.totalorder %v262, %v3410
    %vm3474 = vcmp.eq.s32.totalorder %v263, %v3410
    %v3475 = vsel %vm3411, 1.0, 0.0
    %v3476 = vsel %vm3412, 1.0, 0.0
    %v3477 = vsel %vm3413, 1.0, 0.0
    %v3478 = vsel %vm3414, 1.0, 0.0
    %v3479 = vsel %vm3415, 1.0, 0.0
    %v3480 = vsel %vm3416, 1.0, 0.0
    %v3481 = vsel %vm3417, 1.0, 0.0
    %v3482 = vsel %vm3418, 1.0, 0.0
    %v3483 = vsel %vm3419, 1.0, 0.0
    %v3484 = vsel %vm3420, 1.0, 0.0
    %v3485 = vsel %vm3421, 1.0, 0.0
    %v3486 = vsel %vm3422, 1.0, 0.0
    %v3487 = vsel %vm3423, 1.0, 0.0
    %v3488 = vsel %vm3424, 1.0, 0.0
    %v3489 = vsel %vm3425, 1.0, 0.0
    %v3490 = vsel %vm3426, 1.0, 0.0
    %v3491 = vsel %vm3427, 1.0, 0.0
    %v3492 = vsel %vm3428, 1.0, 0.0
    %v3493 = vsel %vm3429, 1.0, 0.0
    %v3494 = vsel %vm3430, 1.0, 0.0
    %v3495 = vsel %vm3431, 1.0, 0.0
    %v3496 = vsel %vm3432, 1.0, 0.0
    %v3497 = vsel %vm3433, 1.0, 0.0
    %v3498 = vsel %vm3434, 1.0, 0.0
    %v3499 = vsel %vm3435, 1.0, 0.0
    %v3500 = vsel %vm3436, 1.0, 0.0
    %v3501 = vsel %vm3437, 1.0, 0.0
    %v3502 = vsel %vm3438, 1.0, 0.0
    %v3503 = vsel %vm3439, 1.0, 0.0
    %v3504 = vsel %vm3440, 1.0, 0.0
    %v3505 = vsel %vm3441, 1.0, 0.0
    %v3506 = vsel %vm3442, 1.0, 0.0
    %v3507 = vsel %vm3443, 1.0, 0.0
    %v3508 = vsel %vm3444, 1.0, 0.0
    %v3509 = vsel %vm3445, 1.0, 0.0
    %v3510 = vsel %vm3446, 1.0, 0.0
    %v3511 = vsel %vm3447, 1.0, 0.0
    %v3512 = vsel %vm3448, 1.0, 0.0
    %v3513 = vsel %vm3449, 1.0, 0.0
    %v3514 = vsel %vm3450, 1.0, 0.0
    %v3515 = vsel %vm3451, 1.0, 0.0
    %v3516 = vsel %vm3452, 1.0, 0.0
    %v3517 = vsel %vm3453, 1.0, 0.0
    %v3518 = vsel %vm3454, 1.0, 0.0
    %v3519 = vsel %vm3455, 1.0, 0.0
    %v3520 = vsel %vm3456, 1.0, 0.0
    %v3521 = vsel %vm3457, 1.0, 0.0
    %v3522 = vsel %vm3458, 1.0, 0.0
    %v3523 = vsel %vm3459, 1.0, 0.0
    %v3524 = vsel %vm3460, 1.0, 0.0
    %v3525 = vsel %vm3461, 1.0, 0.0
    %v3526 = vsel %vm3462, 1.0, 0.0
    %v3527 = vsel %vm3463, 1.0, 0.0
    %v3528 = vsel %vm3464, 1.0, 0.0
    %v3529 = vsel %vm3465, 1.0, 0.0
    %v3530 = vsel %vm3466, 1.0, 0.0
    %v3531 = vsel %vm3467, 1.0, 0.0
    %v3532 = vsel %vm3468, 1.0, 0.0
    %v3533 = vsel %vm3469, 1.0, 0.0
    %v3534 = vsel %vm3470, 1.0, 0.0
    %v3535 = vsel %vm3471, 1.0, 0.0
    %v3536 = vsel %vm3472, 1.0, 0.0
    %v3537 = vsel %vm3473, 1.0, 0.0
    %v3538 = vsel %vm3474, 1.0, 0.0
    %3539 = vmatprep.subr.mxu0 0.0
    %3540 = vmatpush1.msra.mxu0 %v3490
    %3541 = vmatprep.subr.mxu0 0.0
    %3542 = vmatpush1.msra.mxu0 %v3489
    %3543 = vmatprep.subr.mxu0 0.0
    %3544 = vmatpush1.msra.mxu0 %v3488
    %3545 = vmatprep.subr.mxu0 0.0
    %3546 = vmatpush1.msra.mxu0 %v3487
    %3547 = vmatprep.subr.mxu0 0.0
    %3548 = vmatpush1.msra.mxu0 %v3486
    %3549 = vmatprep.subr.mxu0 0.0
    %3550 = vmatpush1.msra.mxu0 %v3485
    %3551 = vmatprep.subr.mxu0 0.0
    %3552 = vmatpush1.msra.mxu0 %v3484
    %3553 = vmatprep.subr.mxu0 0.0
    %3554 = vmatpush1.msra.mxu0 %v3483
    %3555 = vmatprep.subr.mxu0 0.0
    %3556 = vmatpush1.msra.mxu0 %v3482
    %3557 = vmatprep.subr.mxu0 0.0
    %3558 = vmatpush1.msra.mxu0 %v3481
    %3559 = vmatprep.subr.mxu0 0.0
    %3560 = vmatpush1.msra.mxu0 %v3480
    %3561 = vmatprep.subr.mxu0 0.0
    %3562 = vmatpush1.msra.mxu0 %v3479
    %3563 = vmatprep.subr.mxu0 0.0
    %3564 = vmatpush1.msra.mxu0 %v3478
    %3565 = vmatprep.subr.mxu0 0.0
    %3566 = vmatpush1.msra.mxu0 %v3477
    %3567 = vmatprep.subr.mxu0 0.0
    %3568 = vmatpush1.msra.mxu0 %v3476
    %3569 = vmatprep.subr.mxu0 0.0
    %3570 = vmatpush1.msra.mxu0 %v3475
    %3571 = vmatprep.subr.mxu0 0.0
    %3572 = vmatpush2.msra.mxu0 %v3506
    %3573 = vmatprep.subr.mxu0 0.0
    %3574 = vmatpush2.msra.mxu0 %v3505
    %3575 = vmatprep.subr.mxu0 0.0
    %3576 = vmatpush2.msra.mxu0 %v3504
    %3577 = vmatprep.subr.mxu0 0.0
    %3578 = vmatpush2.msra.mxu0 %v3503
    %3579 = vmatprep.subr.mxu0 0.0
    %3580 = vmatpush2.msra.mxu0 %v3502
    %3581 = vmatprep.subr.mxu0 0.0
    %3582 = vmatpush2.msra.mxu0 %v3501
    %3583 = vmatprep.subr.mxu0 0.0
    %3584 = vmatpush2.msra.mxu0 %v3500
    %3585 = vmatprep.subr.mxu0 0.0
    %3586 = vmatpush2.msra.mxu0 %v3499
    %3587 = vmatprep.subr.mxu0 0.0
    %3588 = vmatpush2.msra.mxu0 %v3498
    %3589 = vmatprep.subr.mxu0 0.0
    %3590 = vmatpush2.msra.mxu0 %v3497
    %3591 = vmatprep.subr.mxu0 0.0
    %3592 = vmatpush2.msra.mxu0 %v3496
    %3593 = vmatprep.subr.mxu0 0.0
    %3594 = vmatpush2.msra.mxu0 %v3495
    %3595 = vmatprep.subr.mxu0 0.0
    %3596 = vmatpush2.msra.mxu0 %v3494
    %3597 = vmatprep.subr.mxu0 0.0
    %3598 = vmatpush2.msra.mxu0 %v3493
    %3599 = vmatprep.subr.mxu0 0.0
    %3600 = vmatpush2.msra.mxu0 %v3492
    %3601 = vmatprep.subr.mxu0 0.0
    %3602 = vmatpush2.msra.mxu0 %v3491
    %3603 = vmatprep.mubr.f32.mxu0 %v196
    %3604 = vmatmul.mubr.f32.gmra.mxu0 %v195
    %v3605 = vpop.f32.mrf.mxu0
    %v3606 = vadd.f32 0.0, %v3605
    %v3607 = vpop.f32.mrf.mxu0
    %3608 = vdwg.mxu0
    %3609 = vmatprep.subr.mxu0 0.0
    %3610 = vmatpush1.msra.mxu0 %v3522
    %3611 = vmatprep.subr.mxu0 0.0
    %3612 = vmatpush1.msra.mxu0 %v3521
    %3613 = vmatprep.subr.mxu0 0.0
    %3614 = vmatpush1.msra.mxu0 %v3520
    %3615 = vmatprep.subr.mxu0 0.0
    %3616 = vmatpush1.msra.mxu0 %v3519
    %3617 = vmatprep.subr.mxu0 0.0
    %3618 = vmatpush1.msra.mxu0 %v3518
    %3619 = vmatprep.subr.mxu0 0.0
    %3620 = vmatpush1.msra.mxu0 %v3517
    %3621 = vmatprep.subr.mxu0 0.0
    %3622 = vmatpush1.msra.mxu0 %v3516
    %3623 = vmatprep.subr.mxu0 0.0
    %3624 = vmatpush1.msra.mxu0 %v3515
    %3625 = vmatprep.subr.mxu0 0.0
    %3626 = vmatpush1.msra.mxu0 %v3514
    %3627 = vmatprep.subr.mxu0 0.0
    %3628 = vmatpush1.msra.mxu0 %v3513
    %3629 = vmatprep.subr.mxu0 0.0
    %3630 = vmatpush1.msra.mxu0 %v3512
    %3631 = vmatprep.subr.mxu0 0.0
    %3632 = vmatpush1.msra.mxu0 %v3511
    %3633 = vmatprep.subr.mxu0 0.0
    %3634 = vmatpush1.msra.mxu0 %v3510
    %3635 = vmatprep.subr.mxu0 0.0
    %3636 = vmatpush1.msra.mxu0 %v3509
    %3637 = vmatprep.subr.mxu0 0.0
    %3638 = vmatpush1.msra.mxu0 %v3508
    %3639 = vmatprep.subr.mxu0 0.0
    %3640 = vmatpush1.msra.mxu0 %v3507
    %3641 = vmatprep.subr.mxu0 0.0
    %3642 = vmatpush2.msra.mxu0 %v3538
    %3643 = vmatprep.subr.mxu0 0.0
    %3644 = vmatpush2.msra.mxu0 %v3537
    %3645 = vmatprep.subr.mxu0 0.0
    %3646 = vmatpush2.msra.mxu0 %v3536
    %3647 = vmatprep.subr.mxu0 0.0
    %3648 = vmatpush2.msra.mxu0 %v3535
    %3649 = vmatprep.subr.mxu0 0.0
    %3650 = vmatpush2.msra.mxu0 %v3534
    %3651 = vmatprep.subr.mxu0 0.0
    %3652 = vmatpush2.msra.mxu0 %v3533
    %3653 = vmatprep.subr.mxu0 0.0
    %3654 = vmatpush2.msra.mxu0 %v3532
    %3655 = vmatprep.subr.mxu0 0.0
    %3656 = vmatpush2.msra.mxu0 %v3531
    %3657 = vmatprep.subr.mxu0 0.0
    %3658 = vmatpush2.msra.mxu0 %v3530
    %3659 = vmatprep.subr.mxu0 0.0
    %3660 = vmatpush2.msra.mxu0 %v3529
    %3661 = vmatprep.subr.mxu0 0.0
    %3662 = vmatpush2.msra.mxu0 %v3528
    %3663 = vmatprep.subr.mxu0 0.0
    %3664 = vmatpush2.msra.mxu0 %v3527
    %3665 = vmatprep.subr.mxu0 0.0
    %3666 = vmatpush2.msra.mxu0 %v3526
    %3667 = vmatprep.subr.mxu0 0.0
    %3668 = vmatpush2.msra.mxu0 %v3525
    %3669 = vmatprep.subr.mxu0 0.0
    %3670 = vmatpush2.msra.mxu0 %v3524
    %3671 = vmatprep.subr.mxu0 0.0
    %3672 = vmatpush2.msra.mxu0 %v3523
    %3673 = vmatprep.mubr.f32.mxu0 %v198
    %3674 = vmatmul.mubr.f32.gmra.mxu0 %v197
    %v3675 = vpop.f32.mrf.mxu0
    %v3676 = vadd.f32 %v3606, %v3675
    %v3677 = vpop.f32.mrf.mxu0
    %3678 = vdwg.mxu0
    %s3679 = scalar_lea.vmem %s4, 72
    %v3680 = vld [vmem:[%s3679] sm:$0xff]
    %v3682 = vsel %vm539, %v3680, 0
    %3684 = vmatprep.subr.mxu0 0.0
    %3685 = vmatpush1.msra.mxu0 0.0
    %3686 = vmatprep.subr.mxu0 0.0
    %3687 = vmatpush1.msra.mxu0 0.0
    %3688 = vmatprep.subr.mxu0 0.0
    %3689 = vmatpush1.msra.mxu0 0.0
    %3690 = vmatprep.subr.mxu0 0.0
    %3691 = vmatpush1.msra.mxu0 0.0
    %3692 = vmatprep.subr.mxu0 0.0
    %3693 = vmatpush1.msra.mxu0 0.0
    %3694 = vmatprep.subr.mxu0 0.0
    %3695 = vmatpush1.msra.mxu0 0.0
    %3696 = vmatprep.subr.mxu0 0.0
    %3697 = vmatpush1.msra.mxu0 0.0
    %3698 = vmatprep.subr.mxu0 0.0
    %3699 = vmatpush1.msra.mxu0 0.0
    %3700 = vmatprep.subr.mxu0 0.0
    %3701 = vmatpush1.msra.mxu0 0.0
    %3702 = vmatprep.subr.mxu0 0.0
    %3703 = vmatpush1.msra.mxu0 0.0
    %3704 = vmatprep.subr.mxu0 0.0
    %3705 = vmatpush1.msra.mxu0 0.0
    %3706 = vmatprep.subr.mxu0 0.0
    %3707 = vmatpush1.msra.mxu0 0.0
    %3708 = vmatprep.subr.mxu0 0.0
    %3709 = vmatpush1.msra.mxu0 0.0
    %3710 = vmatprep.subr.mxu0 0.0
    %3711 = vmatpush1.msra.mxu0 0.0
    %3712 = vmatprep.subr.mxu0 0.0
    %3713 = vmatpush1.msra.mxu0 0.0
    %3714 = vmatprep.subr.mxu0 0.0
    %3715 = vmatpush1.msra.mxu0 %v3676
    %3716 = vmatprep.subr.mxu0 0.0
    %3717 = vmatpush2.msra.mxu0 0.0
    %3718 = vmatprep.subr.mxu0 0.0
    %3719 = vmatpush2.msra.mxu0 0.0
    %3720 = vmatprep.subr.mxu0 0.0
    %3721 = vmatpush2.msra.mxu0 0.0
    %3722 = vmatprep.subr.mxu0 0.0
    %3723 = vmatpush2.msra.mxu0 0.0
    %3724 = vmatprep.subr.mxu0 0.0
    %3725 = vmatpush2.msra.mxu0 0.0
    %3726 = vmatprep.subr.mxu0 0.0
    %3727 = vmatpush2.msra.mxu0 0.0
    %3728 = vmatprep.subr.mxu0 0.0
    %3729 = vmatpush2.msra.mxu0 0.0
    %3730 = vmatprep.subr.mxu0 0.0
    %3731 = vmatpush2.msra.mxu0 0.0
    %3732 = vmatprep.subr.mxu0 0.0
    %3733 = vmatpush2.msra.mxu0 0.0
    %3734 = vmatprep.subr.mxu0 0.0
    %3735 = vmatpush2.msra.mxu0 0.0
    %3736 = vmatprep.subr.mxu0 0.0
    %3737 = vmatpush2.msra.mxu0 0.0
    %3738 = vmatprep.subr.mxu0 0.0
    %3739 = vmatpush2.msra.mxu0 0.0
    %3740 = vmatprep.subr.mxu0 0.0
    %3741 = vmatpush2.msra.mxu0 0.0
    %3742 = vmatprep.subr.mxu0 0.0
    %3743 = vmatpush2.msra.mxu0 0.0
    %3744 = vmatprep.subr.mxu0 0.0
    %3745 = vmatpush2.msra.mxu0 0.0
    %3746 = vmatprep.subr.mxu0 0.0
    %3747 = vmatpush2.msra.mxu0 0.0
    %3748 = vmatprep.mubr.f32.mxu0 0.0
    %3749 = vmatmul.mubr.f32.gmra.mxu0 %v3682
    %v3750 = vpop.f32.mrf.mxu0
    %v3751 = vadd.f32 0.0, %v3750
    %v3752 = vpop.f32.mrf.mxu0
    %3753 = vdwg.mxu0
    %v3754 = vadd.f32 %v3405, %v3751
    %v3755 = vld [vmem:[%s3 + $0xa] sm:$0x1]
    %v3756 = vlaneseq
    %v3757 = vshrl.u32 %v3756, 7
    %v3758 = vsub.s32 0, %v3757
    %v3759 = vrot.slane %v3755, %v3758
    %vm3760 = vcmp.eq.s32.totalorder %v200, %v3759
    %vm3761 = vcmp.eq.s32.totalorder %v201, %v3759
    %vm3762 = vcmp.eq.s32.totalorder %v202, %v3759
    %vm3763 = vcmp.eq.s32.totalorder %v203, %v3759
    %vm3764 = vcmp.eq.s32.totalorder %v204, %v3759
    %vm3765 = vcmp.eq.s32.totalorder %v205, %v3759
    %vm3766 = vcmp.eq.s32.totalorder %v206, %v3759
    %vm3767 = vcmp.eq.s32.totalorder %v207, %v3759
    %vm3768 = vcmp.eq.s32.totalorder %v208, %v3759
    %vm3769 = vcmp.eq.s32.totalorder %v209, %v3759
    %vm3770 = vcmp.eq.s32.totalorder %v210, %v3759
    %vm3771 = vcmp.eq.s32.totalorder %v211, %v3759
    %vm3772 = vcmp.eq.s32.totalorder %v212, %v3759
    %vm3773 = vcmp.eq.s32.totalorder %v213, %v3759
    %vm3774 = vcmp.eq.s32.totalorder %v214, %v3759
    %vm3775 = vcmp.eq.s32.totalorder %v215, %v3759
    %vm3776 = vcmp.eq.s32.totalorder %v216, %v3759
    %vm3777 = vcmp.eq.s32.totalorder %v217, %v3759
    %vm3778 = vcmp.eq.s32.totalorder %v218, %v3759
    %vm3779 = vcmp.eq.s32.totalorder %v219, %v3759
    %vm3780 = vcmp.eq.s32.totalorder %v220, %v3759
    %vm3781 = vcmp.eq.s32.totalorder %v221, %v3759
    %vm3782 = vcmp.eq.s32.totalorder %v222, %v3759
    %vm3783 = vcmp.eq.s32.totalorder %v223, %v3759
    %vm3784 = vcmp.eq.s32.totalorder %v224, %v3759
    %vm3785 = vcmp.eq.s32.totalorder %v225, %v3759
    %vm3786 = vcmp.eq.s32.totalorder %v226, %v3759
    %vm3787 = vcmp.eq.s32.totalorder %v227, %v3759
    %vm3788 = vcmp.eq.s32.totalorder %v228, %v3759
    %vm3789 = vcmp.eq.s32.totalorder %v229, %v3759
    %vm3790 = vcmp.eq.s32.totalorder %v230, %v3759
    %vm3791 = vcmp.eq.s32.totalorder %v231, %v3759
    %vm3792 = vcmp.eq.s32.totalorder %v232, %v3759
    %vm3793 = vcmp.eq.s32.totalorder %v233, %v3759
    %vm3794 = vcmp.eq.s32.totalorder %v234, %v3759
    %vm3795 = vcmp.eq.s32.totalorder %v235, %v3759
    %vm3796 = vcmp.eq.s32.totalorder %v236, %v3759
    %vm3797 = vcmp.eq.s32.totalorder %v237, %v3759
    %vm3798 = vcmp.eq.s32.totalorder %v238, %v3759
    %vm3799 = vcmp.eq.s32.totalorder %v239, %v3759
    %vm3800 = vcmp.eq.s32.totalorder %v240, %v3759
    %vm3801 = vcmp.eq.s32.totalorder %v241, %v3759
    %vm3802 = vcmp.eq.s32.totalorder %v242, %v3759
    %vm3803 = vcmp.eq.s32.totalorder %v243, %v3759
    %vm3804 = vcmp.eq.s32.totalorder %v244, %v3759
    %vm3805 = vcmp.eq.s32.totalorder %v245, %v3759
    %vm3806 = vcmp.eq.s32.totalorder %v246, %v3759
    %vm3807 = vcmp.eq.s32.totalorder %v247, %v3759
    %vm3808 = vcmp.eq.s32.totalorder %v248, %v3759
    %vm3809 = vcmp.eq.s32.totalorder %v249, %v3759
    %vm3810 = vcmp.eq.s32.totalorder %v250, %v3759
    %vm3811 = vcmp.eq.s32.totalorder %v251, %v3759
    %vm3812 = vcmp.eq.s32.totalorder %v252, %v3759
    %vm3813 = vcmp.eq.s32.totalorder %v253, %v3759
    %vm3814 = vcmp.eq.s32.totalorder %v254, %v3759
    %vm3815 = vcmp.eq.s32.totalorder %v255, %v3759
    %vm3816 = vcmp.eq.s32.totalorder %v256, %v3759
    %vm3817 = vcmp.eq.s32.totalorder %v257, %v3759
    %vm3818 = vcmp.eq.s32.totalorder %v258, %v3759
    %vm3819 = vcmp.eq.s32.totalorder %v259, %v3759
    %vm3820 = vcmp.eq.s32.totalorder %v260, %v3759
    %vm3821 = vcmp.eq.s32.totalorder %v261, %v3759
    %vm3822 = vcmp.eq.s32.totalorder %v262, %v3759
    %vm3823 = vcmp.eq.s32.totalorder %v263, %v3759
    %v3824 = vsel %vm3760, 1.0, 0.0
    %v3825 = vsel %vm3761, 1.0, 0.0
    %v3826 = vsel %vm3762, 1.0, 0.0
    %v3827 = vsel %vm3763, 1.0, 0.0
    %v3828 = vsel %vm3764, 1.0, 0.0
    %v3829 = vsel %vm3765, 1.0, 0.0
    %v3830 = vsel %vm3766, 1.0, 0.0
    %v3831 = vsel %vm3767, 1.0, 0.0
    %v3832 = vsel %vm3768, 1.0, 0.0
    %v3833 = vsel %vm3769, 1.0, 0.0
    %v3834 = vsel %vm3770, 1.0, 0.0
    %v3835 = vsel %vm3771, 1.0, 0.0
    %v3836 = vsel %vm3772, 1.0, 0.0
    %v3837 = vsel %vm3773, 1.0, 0.0
    %v3838 = vsel %vm3774, 1.0, 0.0
    %v3839 = vsel %vm3775, 1.0, 0.0
    %v3840 = vsel %vm3776, 1.0, 0.0
    %v3841 = vsel %vm3777, 1.0, 0.0
    %v3842 = vsel %vm3778, 1.0, 0.0
    %v3843 = vsel %vm3779, 1.0, 0.0
    %v3844 = vsel %vm3780, 1.0, 0.0
    %v3845 = vsel %vm3781, 1.0, 0.0
    %v3846 = vsel %vm3782, 1.0, 0.0
    %v3847 = vsel %vm3783, 1.0, 0.0
    %v3848 = vsel %vm3784, 1.0, 0.0
    %v3849 = vsel %vm3785, 1.0, 0.0
    %v3850 = vsel %vm3786, 1.0, 0.0
    %v3851 = vsel %vm3787, 1.0, 0.0
    %v3852 = vsel %vm3788, 1.0, 0.0
    %v3853 = vsel %vm3789, 1.0, 0.0
    %v3854 = vsel %vm3790, 1.0, 0.0
    %v3855 = vsel %vm3791, 1.0, 0.0
    %v3856 = vsel %vm3792, 1.0, 0.0
    %v3857 = vsel %vm3793, 1.0, 0.0
    %v3858 = vsel %vm3794, 1.0, 0.0
    %v3859 = vsel %vm3795, 1.0, 0.0
    %v3860 = vsel %vm3796, 1.0, 0.0
    %v3861 = vsel %vm3797, 1.0, 0.0
    %v3862 = vsel %vm3798, 1.0, 0.0
    %v3863 = vsel %vm3799, 1.0, 0.0
    %v3864 = vsel %vm3800, 1.0, 0.0
    %v3865 = vsel %vm3801, 1.0, 0.0
    %v3866 = vsel %vm3802, 1.0, 0.0
    %v3867 = vsel %vm3803, 1.0, 0.0
    %v3868 = vsel %vm3804, 1.0, 0.0
    %v3869 = vsel %vm3805, 1.0, 0.0
    %v3870 = vsel %vm3806, 1.0, 0.0
    %v3871 = vsel %vm3807, 1.0, 0.0
    %v3872 = vsel %vm3808, 1.0, 0.0
    %v3873 = vsel %vm3809, 1.0, 0.0
    %v3874 = vsel %vm3810, 1.0, 0.0
    %v3875 = vsel %vm3811, 1.0, 0.0
    %v3876 = vsel %vm3812, 1.0, 0.0
    %v3877 = vsel %vm3813, 1.0, 0.0
    %v3878 = vsel %vm3814, 1.0, 0.0
    %v3879 = vsel %vm3815, 1.0, 0.0
    %v3880 = vsel %vm3816, 1.0, 0.0
    %v3881 = vsel %vm3817, 1.0, 0.0
    %v3882 = vsel %vm3818, 1.0, 0.0
    %v3883 = vsel %vm3819, 1.0, 0.0
    %v3884 = vsel %vm3820, 1.0, 0.0
    %v3885 = vsel %vm3821, 1.0, 0.0
    %v3886 = vsel %vm3822, 1.0, 0.0
    %v3887 = vsel %vm3823, 1.0, 0.0
    %3888 = vmatprep.subr.mxu0 0.0
    %3889 = vmatpush1.msra.mxu0 %v3839
    %3890 = vmatprep.subr.mxu0 0.0
    %3891 = vmatpush1.msra.mxu0 %v3838
    %3892 = vmatprep.subr.mxu0 0.0
    %3893 = vmatpush1.msra.mxu0 %v3837
    %3894 = vmatprep.subr.mxu0 0.0
    %3895 = vmatpush1.msra.mxu0 %v3836
    %3896 = vmatprep.subr.mxu0 0.0
    %3897 = vmatpush1.msra.mxu0 %v3835
    %3898 = vmatprep.subr.mxu0 0.0
    %3899 = vmatpush1.msra.mxu0 %v3834
    %3900 = vmatprep.subr.mxu0 0.0
    %3901 = vmatpush1.msra.mxu0 %v3833
    %3902 = vmatprep.subr.mxu0 0.0
    %3903 = vmatpush1.msra.mxu0 %v3832
    %3904 = vmatprep.subr.mxu0 0.0
    %3905 = vmatpush1.msra.mxu0 %v3831
    %3906 = vmatprep.subr.mxu0 0.0
    %3907 = vmatpush1.msra.mxu0 %v3830
    %3908 = vmatprep.subr.mxu0 0.0
    %3909 = vmatpush1.msra.mxu0 %v3829
    %3910 = vmatprep.subr.mxu0 0.0
    %3911 = vmatpush1.msra.mxu0 %v3828
    %3912 = vmatprep.subr.mxu0 0.0
    %3913 = vmatpush1.msra.mxu0 %v3827
    %3914 = vmatprep.subr.mxu0 0.0
    %3915 = vmatpush1.msra.mxu0 %v3826
    %3916 = vmatprep.subr.mxu0 0.0
    %3917 = vmatpush1.msra.mxu0 %v3825
    %3918 = vmatprep.subr.mxu0 0.0
    %3919 = vmatpush1.msra.mxu0 %v3824
    %3920 = vmatprep.subr.mxu0 0.0
    %3921 = vmatpush2.msra.mxu0 %v3855
    %3922 = vmatprep.subr.mxu0 0.0
    %3923 = vmatpush2.msra.mxu0 %v3854
    %3924 = vmatprep.subr.mxu0 0.0
    %3925 = vmatpush2.msra.mxu0 %v3853
    %3926 = vmatprep.subr.mxu0 0.0
    %3927 = vmatpush2.msra.mxu0 %v3852
    %3928 = vmatprep.subr.mxu0 0.0
    %3929 = vmatpush2.msra.mxu0 %v3851
    %3930 = vmatprep.subr.mxu0 0.0
    %3931 = vmatpush2.msra.mxu0 %v3850
    %3932 = vmatprep.subr.mxu0 0.0
    %3933 = vmatpush2.msra.mxu0 %v3849
    %3934 = vmatprep.subr.mxu0 0.0
    %3935 = vmatpush2.msra.mxu0 %v3848
    %3936 = vmatprep.subr.mxu0 0.0
    %3937 = vmatpush2.msra.mxu0 %v3847
    %3938 = vmatprep.subr.mxu0 0.0
    %3939 = vmatpush2.msra.mxu0 %v3846
    %3940 = vmatprep.subr.mxu0 0.0
    %3941 = vmatpush2.msra.mxu0 %v3845
    %3942 = vmatprep.subr.mxu0 0.0
    %3943 = vmatpush2.msra.mxu0 %v3844
    %3944 = vmatprep.subr.mxu0 0.0
    %3945 = vmatpush2.msra.mxu0 %v3843
    %3946 = vmatprep.subr.mxu0 0.0
    %3947 = vmatpush2.msra.mxu0 %v3842
    %3948 = vmatprep.subr.mxu0 0.0
    %3949 = vmatpush2.msra.mxu0 %v3841
    %3950 = vmatprep.subr.mxu0 0.0
    %3951 = vmatpush2.msra.mxu0 %v3840
    %3952 = vmatprep.mubr.f32.mxu0 %v196
    %3953 = vmatmul.mubr.f32.gmra.mxu0 %v195
    %v3954 = vpop.f32.mrf.mxu0
    %v3955 = vadd.f32 0.0, %v3954
    %v3956 = vpop.f32.mrf.mxu0
    %3957 = vdwg.mxu0
    %3958 = vmatprep.subr.mxu0 0.0
    %3959 = vmatpush1.msra.mxu0 %v3871
    %3960 = vmatprep.subr.mxu0 0.0
    %3961 = vmatpush1.msra.mxu0 %v3870
    %3962 = vmatprep.subr.mxu0 0.0
    %3963 = vmatpush1.msra.mxu0 %v3869
    %3964 = vmatprep.subr.mxu0 0.0
    %3965 = vmatpush1.msra.mxu0 %v3868
    %3966 = vmatprep.subr.mxu0 0.0
    %3967 = vmatpush1.msra.mxu0 %v3867
    %3968 = vmatprep.subr.mxu0 0.0
    %3969 = vmatpush1.msra.mxu0 %v3866
    %3970 = vmatprep.subr.mxu0 0.0
    %3971 = vmatpush1.msra.mxu0 %v3865
    %3972 = vmatprep.subr.mxu0 0.0
    %3973 = vmatpush1.msra.mxu0 %v3864
    %3974 = vmatprep.subr.mxu0 0.0
    %3975 = vmatpush1.msra.mxu0 %v3863
    %3976 = vmatprep.subr.mxu0 0.0
    %3977 = vmatpush1.msra.mxu0 %v3862
    %3978 = vmatprep.subr.mxu0 0.0
    %3979 = vmatpush1.msra.mxu0 %v3861
    %3980 = vmatprep.subr.mxu0 0.0
    %3981 = vmatpush1.msra.mxu0 %v3860
    %3982 = vmatprep.subr.mxu0 0.0
    %3983 = vmatpush1.msra.mxu0 %v3859
    %3984 = vmatprep.subr.mxu0 0.0
    %3985 = vmatpush1.msra.mxu0 %v3858
    %3986 = vmatprep.subr.mxu0 0.0
    %3987 = vmatpush1.msra.mxu0 %v3857
    %3988 = vmatprep.subr.mxu0 0.0
    %3989 = vmatpush1.msra.mxu0 %v3856
    %3990 = vmatprep.subr.mxu0 0.0
    %3991 = vmatpush2.msra.mxu0 %v3887
    %3992 = vmatprep.subr.mxu0 0.0
    %3993 = vmatpush2.msra.mxu0 %v3886
    %3994 = vmatprep.subr.mxu0 0.0
    %3995 = vmatpush2.msra.mxu0 %v3885
    %3996 = vmatprep.subr.mxu0 0.0
    %3997 = vmatpush2.msra.mxu0 %v3884
    %3998 = vmatprep.subr.mxu0 0.0
    %3999 = vmatpush2.msra.mxu0 %v3883
    %4000 = vmatprep.subr.mxu0 0.0
    %4001 = vmatpush2.msra.mxu0 %v3882
    %4002 = vmatprep.subr.mxu0 0.0
    %4003 = vmatpush2.msra.mxu0 %v3881
    %4004 = vmatprep.subr.mxu0 0.0
    %4005 = vmatpush2.msra.mxu0 %v3880
    %4006 = vmatprep.subr.mxu0 0.0
    %4007 = vmatpush2.msra.mxu0 %v3879
    %4008 = vmatprep.subr.mxu0 0.0
    %4009 = vmatpush2.msra.mxu0 %v3878
    %4010 = vmatprep.subr.mxu0 0.0
    %4011 = vmatpush2.msra.mxu0 %v3877
    %4012 = vmatprep.subr.mxu0 0.0
    %4013 = vmatpush2.msra.mxu0 %v3876
    %4014 = vmatprep.subr.mxu0 0.0
    %4015 = vmatpush2.msra.mxu0 %v3875
    %4016 = vmatprep.subr.mxu0 0.0
    %4017 = vmatpush2.msra.mxu0 %v3874
    %4018 = vmatprep.subr.mxu0 0.0
    %4019 = vmatpush2.msra.mxu0 %v3873
    %4020 = vmatprep.subr.mxu0 0.0
    %4021 = vmatpush2.msra.mxu0 %v3872
    %4022 = vmatprep.mubr.f32.mxu0 %v198
    %4023 = vmatmul.mubr.f32.gmra.mxu0 %v197
    %v4024 = vpop.f32.mrf.mxu0
    %v4025 = vadd.f32 %v3955, %v4024
    %v4026 = vpop.f32.mrf.mxu0
    %4027 = vdwg.mxu0
    %s4028 = scalar_lea.vmem %s4, 80
    %v4029 = vld [vmem:[%s4028] sm:$0xff]
    %v4031 = vsel %vm539, %v4029, 0
    %4033 = vmatprep.subr.mxu0 0.0
    %4034 = vmatpush1.msra.mxu0 0.0
    %4035 = vmatprep.subr.mxu0 0.0
    %4036 = vmatpush1.msra.mxu0 0.0
    %4037 = vmatprep.subr.mxu0 0.0
    %4038 = vmatpush1.msra.mxu0 0.0
    %4039 = vmatprep.subr.mxu0 0.0
    %4040 = vmatpush1.msra.mxu0 0.0
    %4041 = vmatprep.subr.mxu0 0.0
    %4042 = vmatpush1.msra.mxu0 0.0
    %4043 = vmatprep.subr.mxu0 0.0
    %4044 = vmatpush1.msra.mxu0 0.0
    %4045 = vmatprep.subr.mxu0 0.0
    %4046 = vmatpush1.msra.mxu0 0.0
    %4047 = vmatprep.subr.mxu0 0.0
    %4048 = vmatpush1.msra.mxu0 0.0
    %4049 = vmatprep.subr.mxu0 0.0
    %4050 = vmatpush1.msra.mxu0 0.0
    %4051 = vmatprep.subr.mxu0 0.0
    %4052 = vmatpush1.msra.mxu0 0.0
    %4053 = vmatprep.subr.mxu0 0.0
    %4054 = vmatpush1.msra.mxu0 0.0
    %4055 = vmatprep.subr.mxu0 0.0
    %4056 = vmatpush1.msra.mxu0 0.0
    %4057 = vmatprep.subr.mxu0 0.0
    %4058 = vmatpush1.msra.mxu0 0.0
    %4059 = vmatprep.subr.mxu0 0.0
    %4060 = vmatpush1.msra.mxu0 0.0
    %4061 = vmatprep.subr.mxu0 0.0
    %4062 = vmatpush1.msra.mxu0 0.0
    %4063 = vmatprep.subr.mxu0 0.0
    %4064 = vmatpush1.msra.mxu0 %v4025
    %4065 = vmatprep.subr.mxu0 0.0
    %4066 = vmatpush2.msra.mxu0 0.0
    %4067 = vmatprep.subr.mxu0 0.0
    %4068 = vmatpush2.msra.mxu0 0.0
    %4069 = vmatprep.subr.mxu0 0.0
    %4070 = vmatpush2.msra.mxu0 0.0
    %4071 = vmatprep.subr.mxu0 0.0
    %4072 = vmatpush2.msra.mxu0 0.0
    %4073 = vmatprep.subr.mxu0 0.0
    %4074 = vmatpush2.msra.mxu0 0.0
    %4075 = vmatprep.subr.mxu0 0.0
    %4076 = vmatpush2.msra.mxu0 0.0
    %4077 = vmatprep.subr.mxu0 0.0
    %4078 = vmatpush2.msra.mxu0 0.0
    %4079 = vmatprep.subr.mxu0 0.0
    %4080 = vmatpush2.msra.mxu0 0.0
    %4081 = vmatprep.subr.mxu0 0.0
    %4082 = vmatpush2.msra.mxu0 0.0
    %4083 = vmatprep.subr.mxu0 0.0
    %4084 = vmatpush2.msra.mxu0 0.0
    %4085 = vmatprep.subr.mxu0 0.0
    %4086 = vmatpush2.msra.mxu0 0.0
    %4087 = vmatprep.subr.mxu0 0.0
    %4088 = vmatpush2.msra.mxu0 0.0
    %4089 = vmatprep.subr.mxu0 0.0
    %4090 = vmatpush2.msra.mxu0 0.0
    %4091 = vmatprep.subr.mxu0 0.0
    %4092 = vmatpush2.msra.mxu0 0.0
    %4093 = vmatprep.subr.mxu0 0.0
    %4094 = vmatpush2.msra.mxu0 0.0
    %4095 = vmatprep.subr.mxu0 0.0
    %4096 = vmatpush2.msra.mxu0 0.0
    %4097 = vmatprep.mubr.f32.mxu0 0.0
    %4098 = vmatmul.mubr.f32.gmra.mxu0 %v4031
    %v4099 = vpop.f32.mrf.mxu0
    %v4100 = vadd.f32 0.0, %v4099
    %v4101 = vpop.f32.mrf.mxu0
    %4102 = vdwg.mxu0
    %v4103 = vadd.f32 %v3754, %v4100
    %v4104 = vld [vmem:[%s3 + $0xb] sm:$0x1]
    %v4105 = vlaneseq
    %v4106 = vshrl.u32 %v4105, 7
    %v4107 = vsub.s32 0, %v4106
    %v4108 = vrot.slane %v4104, %v4107
    %vm4109 = vcmp.eq.s32.totalorder %v200, %v4108
    %vm4110 = vcmp.eq.s32.totalorder %v201, %v4108
    %vm4111 = vcmp.eq.s32.totalorder %v202, %v4108
    %vm4112 = vcmp.eq.s32.totalorder %v203, %v4108
    %vm4113 = vcmp.eq.s32.totalorder %v204, %v4108
    %vm4114 = vcmp.eq.s32.totalorder %v205, %v4108
    %vm4115 = vcmp.eq.s32.totalorder %v206, %v4108
    %vm4116 = vcmp.eq.s32.totalorder %v207, %v4108
    %vm4117 = vcmp.eq.s32.totalorder %v208, %v4108
    %vm4118 = vcmp.eq.s32.totalorder %v209, %v4108
    %vm4119 = vcmp.eq.s32.totalorder %v210, %v4108
    %vm4120 = vcmp.eq.s32.totalorder %v211, %v4108
    %vm4121 = vcmp.eq.s32.totalorder %v212, %v4108
    %vm4122 = vcmp.eq.s32.totalorder %v213, %v4108
    %vm4123 = vcmp.eq.s32.totalorder %v214, %v4108
    %vm4124 = vcmp.eq.s32.totalorder %v215, %v4108
    %vm4125 = vcmp.eq.s32.totalorder %v216, %v4108
    %vm4126 = vcmp.eq.s32.totalorder %v217, %v4108
    %vm4127 = vcmp.eq.s32.totalorder %v218, %v4108
    %vm4128 = vcmp.eq.s32.totalorder %v219, %v4108
    %vm4129 = vcmp.eq.s32.totalorder %v220, %v4108
    %vm4130 = vcmp.eq.s32.totalorder %v221, %v4108
    %vm4131 = vcmp.eq.s32.totalorder %v222, %v4108
    %vm4132 = vcmp.eq.s32.totalorder %v223, %v4108
    %vm4133 = vcmp.eq.s32.totalorder %v224, %v4108
    %vm4134 = vcmp.eq.s32.totalorder %v225, %v4108
    %vm4135 = vcmp.eq.s32.totalorder %v226, %v4108
    %vm4136 = vcmp.eq.s32.totalorder %v227, %v4108
    %vm4137 = vcmp.eq.s32.totalorder %v228, %v4108
    %vm4138 = vcmp.eq.s32.totalorder %v229, %v4108
    %vm4139 = vcmp.eq.s32.totalorder %v230, %v4108
    %vm4140 = vcmp.eq.s32.totalorder %v231, %v4108
    %vm4141 = vcmp.eq.s32.totalorder %v232, %v4108
    %vm4142 = vcmp.eq.s32.totalorder %v233, %v4108
    %vm4143 = vcmp.eq.s32.totalorder %v234, %v4108
    %vm4144 = vcmp.eq.s32.totalorder %v235, %v4108
    %vm4145 = vcmp.eq.s32.totalorder %v236, %v4108
    %vm4146 = vcmp.eq.s32.totalorder %v237, %v4108
    %vm4147 = vcmp.eq.s32.totalorder %v238, %v4108
    %vm4148 = vcmp.eq.s32.totalorder %v239, %v4108
    %vm4149 = vcmp.eq.s32.totalorder %v240, %v4108
    %vm4150 = vcmp.eq.s32.totalorder %v241, %v4108
    %vm4151 = vcmp.eq.s32.totalorder %v242, %v4108
    %vm4152 = vcmp.eq.s32.totalorder %v243, %v4108
    %vm4153 = vcmp.eq.s32.totalorder %v244, %v4108
    %vm4154 = vcmp.eq.s32.totalorder %v245, %v4108
    %vm4155 = vcmp.eq.s32.totalorder %v246, %v4108
    %vm4156 = vcmp.eq.s32.totalorder %v247, %v4108
    %vm4157 = vcmp.eq.s32.totalorder %v248, %v4108
    %vm4158 = vcmp.eq.s32.totalorder %v249, %v4108
    %vm4159 = vcmp.eq.s32.totalorder %v250, %v4108
    %vm4160 = vcmp.eq.s32.totalorder %v251, %v4108
    %vm4161 = vcmp.eq.s32.totalorder %v252, %v4108
    %vm4162 = vcmp.eq.s32.totalorder %v253, %v4108
    %vm4163 = vcmp.eq.s32.totalorder %v254, %v4108
    %vm4164 = vcmp.eq.s32.totalorder %v255, %v4108
    %vm4165 = vcmp.eq.s32.totalorder %v256, %v4108
    %vm4166 = vcmp.eq.s32.totalorder %v257, %v4108
    %vm4167 = vcmp.eq.s32.totalorder %v258, %v4108
    %vm4168 = vcmp.eq.s32.totalorder %v259, %v4108
    %vm4169 = vcmp.eq.s32.totalorder %v260, %v4108
    %vm4170 = vcmp.eq.s32.totalorder %v261, %v4108
    %vm4171 = vcmp.eq.s32.totalorder %v262, %v4108
    %vm4172 = vcmp.eq.s32.totalorder %v263, %v4108
    %v4173 = vsel %vm4109, 1.0, 0.0
    %v4174 = vsel %vm4110, 1.0, 0.0
    %v4175 = vsel %vm4111, 1.0, 0.0
    %v4176 = vsel %vm4112, 1.0, 0.0
    %v4177 = vsel %vm4113, 1.0, 0.0
    %v4178 = vsel %vm4114, 1.0, 0.0
    %v4179 = vsel %vm4115, 1.0, 0.0
    %v4180 = vsel %vm4116, 1.0, 0.0
    %v4181 = vsel %vm4117, 1.0, 0.0
    %v4182 = vsel %vm4118, 1.0, 0.0
    %v4183 = vsel %vm4119, 1.0, 0.0
    %v4184 = vsel %vm4120, 1.0, 0.0
    %v4185 = vsel %vm4121, 1.0, 0.0
    %v4186 = vsel %vm4122, 1.0, 0.0
    %v4187 = vsel %vm4123, 1.0, 0.0
    %v4188 = vsel %vm4124, 1.0, 0.0
    %v4189 = vsel %vm4125, 1.0, 0.0
    %v4190 = vsel %vm4126, 1.0, 0.0
    %v4191 = vsel %vm4127, 1.0, 0.0
    %v4192 = vsel %vm4128, 1.0, 0.0
    %v4193 = vsel %vm4129, 1.0, 0.0
    %v4194 = vsel %vm4130, 1.0, 0.0
    %v4195 = vsel %vm4131, 1.0, 0.0
    %v4196 = vsel %vm4132, 1.0, 0.0
    %v4197 = vsel %vm4133, 1.0, 0.0
    %v4198 = vsel %vm4134, 1.0, 0.0
    %v4199 = vsel %vm4135, 1.0, 0.0
    %v4200 = vsel %vm4136, 1.0, 0.0
    %v4201 = vsel %vm4137, 1.0, 0.0
    %v4202 = vsel %vm4138, 1.0, 0.0
    %v4203 = vsel %vm4139, 1.0, 0.0
    %v4204 = vsel %vm4140, 1.0, 0.0
    %v4205 = vsel %vm4141, 1.0, 0.0
    %v4206 = vsel %vm4142, 1.0, 0.0
    %v4207 = vsel %vm4143, 1.0, 0.0
    %v4208 = vsel %vm4144, 1.0, 0.0
    %v4209 = vsel %vm4145, 1.0, 0.0
    %v4210 = vsel %vm4146, 1.0, 0.0
    %v4211 = vsel %vm4147, 1.0, 0.0
    %v4212 = vsel %vm4148, 1.0, 0.0
    %v4213 = vsel %vm4149, 1.0, 0.0
    %v4214 = vsel %vm4150, 1.0, 0.0
    %v4215 = vsel %vm4151, 1.0, 0.0
    %v4216 = vsel %vm4152, 1.0, 0.0
    %v4217 = vsel %vm4153, 1.0, 0.0
    %v4218 = vsel %vm4154, 1.0, 0.0
    %v4219 = vsel %vm4155, 1.0, 0.0
    %v4220 = vsel %vm4156, 1.0, 0.0
    %v4221 = vsel %vm4157, 1.0, 0.0
    %v4222 = vsel %vm4158, 1.0, 0.0
    %v4223 = vsel %vm4159, 1.0, 0.0
    %v4224 = vsel %vm4160, 1.0, 0.0
    %v4225 = vsel %vm4161, 1.0, 0.0
    %v4226 = vsel %vm4162, 1.0, 0.0
    %v4227 = vsel %vm4163, 1.0, 0.0
    %v4228 = vsel %vm4164, 1.0, 0.0
    %v4229 = vsel %vm4165, 1.0, 0.0
    %v4230 = vsel %vm4166, 1.0, 0.0
    %v4231 = vsel %vm4167, 1.0, 0.0
    %v4232 = vsel %vm4168, 1.0, 0.0
    %v4233 = vsel %vm4169, 1.0, 0.0
    %v4234 = vsel %vm4170, 1.0, 0.0
    %v4235 = vsel %vm4171, 1.0, 0.0
    %v4236 = vsel %vm4172, 1.0, 0.0
    %4237 = vmatprep.subr.mxu0 0.0
    %4238 = vmatpush1.msra.mxu0 %v4188
    %4239 = vmatprep.subr.mxu0 0.0
    %4240 = vmatpush1.msra.mxu0 %v4187
    %4241 = vmatprep.subr.mxu0 0.0
    %4242 = vmatpush1.msra.mxu0 %v4186
    %4243 = vmatprep.subr.mxu0 0.0
    %4244 = vmatpush1.msra.mxu0 %v4185
    %4245 = vmatprep.subr.mxu0 0.0
    %4246 = vmatpush1.msra.mxu0 %v4184
    %4247 = vmatprep.subr.mxu0 0.0
    %4248 = vmatpush1.msra.mxu0 %v4183
    %4249 = vmatprep.subr.mxu0 0.0
    %4250 = vmatpush1.msra.mxu0 %v4182
    %4251 = vmatprep.subr.mxu0 0.0
    %4252 = vmatpush1.msra.mxu0 %v4181
    %4253 = vmatprep.subr.mxu0 0.0
    %4254 = vmatpush1.msra.mxu0 %v4180
    %4255 = vmatprep.subr.mxu0 0.0
    %4256 = vmatpush1.msra.mxu0 %v4179
    %4257 = vmatprep.subr.mxu0 0.0
    %4258 = vmatpush1.msra.mxu0 %v4178
    %4259 = vmatprep.subr.mxu0 0.0
    %4260 = vmatpush1.msra.mxu0 %v4177
    %4261 = vmatprep.subr.mxu0 0.0
    %4262 = vmatpush1.msra.mxu0 %v4176
    %4263 = vmatprep.subr.mxu0 0.0
    %4264 = vmatpush1.msra.mxu0 %v4175
    %4265 = vmatprep.subr.mxu0 0.0
    %4266 = vmatpush1.msra.mxu0 %v4174
    %4267 = vmatprep.subr.mxu0 0.0
    %4268 = vmatpush1.msra.mxu0 %v4173
    %4269 = vmatprep.subr.mxu0 0.0
    %4270 = vmatpush2.msra.mxu0 %v4204
    %4271 = vmatprep.subr.mxu0 0.0
    %4272 = vmatpush2.msra.mxu0 %v4203
    %4273 = vmatprep.subr.mxu0 0.0
    %4274 = vmatpush2.msra.mxu0 %v4202
    %4275 = vmatprep.subr.mxu0 0.0
    %4276 = vmatpush2.msra.mxu0 %v4201
    %4277 = vmatprep.subr.mxu0 0.0
    %4278 = vmatpush2.msra.mxu0 %v4200
    %4279 = vmatprep.subr.mxu0 0.0
    %4280 = vmatpush2.msra.mxu0 %v4199
    %4281 = vmatprep.subr.mxu0 0.0
    %4282 = vmatpush2.msra.mxu0 %v4198
    %4283 = vmatprep.subr.mxu0 0.0
    %4284 = vmatpush2.msra.mxu0 %v4197
    %4285 = vmatprep.subr.mxu0 0.0
    %4286 = vmatpush2.msra.mxu0 %v4196
    %4287 = vmatprep.subr.mxu0 0.0
    %4288 = vmatpush2.msra.mxu0 %v4195
    %4289 = vmatprep.subr.mxu0 0.0
    %4290 = vmatpush2.msra.mxu0 %v4194
    %4291 = vmatprep.subr.mxu0 0.0
    %4292 = vmatpush2.msra.mxu0 %v4193
    %4293 = vmatprep.subr.mxu0 0.0
    %4294 = vmatpush2.msra.mxu0 %v4192
    %4295 = vmatprep.subr.mxu0 0.0
    %4296 = vmatpush2.msra.mxu0 %v4191
    %4297 = vmatprep.subr.mxu0 0.0
    %4298 = vmatpush2.msra.mxu0 %v4190
    %4299 = vmatprep.subr.mxu0 0.0
    %4300 = vmatpush2.msra.mxu0 %v4189
    %4301 = vmatprep.mubr.f32.mxu0 %v196
    %4302 = vmatmul.mubr.f32.gmra.mxu0 %v195
    %v4303 = vpop.f32.mrf.mxu0
    %v4304 = vadd.f32 0.0, %v4303
    %v4305 = vpop.f32.mrf.mxu0
    %4306 = vdwg.mxu0
    %4307 = vmatprep.subr.mxu0 0.0
    %4308 = vmatpush1.msra.mxu0 %v4220
    %4309 = vmatprep.subr.mxu0 0.0
    %4310 = vmatpush1.msra.mxu0 %v4219
    %4311 = vmatprep.subr.mxu0 0.0
    %4312 = vmatpush1.msra.mxu0 %v4218
    %4313 = vmatprep.subr.mxu0 0.0
    %4314 = vmatpush1.msra.mxu0 %v4217
    %4315 = vmatprep.subr.mxu0 0.0
    %4316 = vmatpush1.msra.mxu0 %v4216
    %4317 = vmatprep.subr.mxu0 0.0
    %4318 = vmatpush1.msra.mxu0 %v4215
    %4319 = vmatprep.subr.mxu0 0.0
    %4320 = vmatpush1.msra.mxu0 %v4214
    %4321 = vmatprep.subr.mxu0 0.0
    %4322 = vmatpush1.msra.mxu0 %v4213
    %4323 = vmatprep.subr.mxu0 0.0
    %4324 = vmatpush1.msra.mxu0 %v4212
    %4325 = vmatprep.subr.mxu0 0.0
    %4326 = vmatpush1.msra.mxu0 %v4211
    %4327 = vmatprep.subr.mxu0 0.0
    %4328 = vmatpush1.msra.mxu0 %v4210
    %4329 = vmatprep.subr.mxu0 0.0
    %4330 = vmatpush1.msra.mxu0 %v4209
    %4331 = vmatprep.subr.mxu0 0.0
    %4332 = vmatpush1.msra.mxu0 %v4208
    %4333 = vmatprep.subr.mxu0 0.0
    %4334 = vmatpush1.msra.mxu0 %v4207
    %4335 = vmatprep.subr.mxu0 0.0
    %4336 = vmatpush1.msra.mxu0 %v4206
    %4337 = vmatprep.subr.mxu0 0.0
    %4338 = vmatpush1.msra.mxu0 %v4205
    %4339 = vmatprep.subr.mxu0 0.0
    %4340 = vmatpush2.msra.mxu0 %v4236
    %4341 = vmatprep.subr.mxu0 0.0
    %4342 = vmatpush2.msra.mxu0 %v4235
    %4343 = vmatprep.subr.mxu0 0.0
    %4344 = vmatpush2.msra.mxu0 %v4234
    %4345 = vmatprep.subr.mxu0 0.0
    %4346 = vmatpush2.msra.mxu0 %v4233
    %4347 = vmatprep.subr.mxu0 0.0
    %4348 = vmatpush2.msra.mxu0 %v4232
    %4349 = vmatprep.subr.mxu0 0.0
    %4350 = vmatpush2.msra.mxu0 %v4231
    %4351 = vmatprep.subr.mxu0 0.0
    %4352 = vmatpush2.msra.mxu0 %v4230
    %4353 = vmatprep.subr.mxu0 0.0
    %4354 = vmatpush2.msra.mxu0 %v4229
    %4355 = vmatprep.subr.mxu0 0.0
    %4356 = vmatpush2.msra.mxu0 %v4228
    %4357 = vmatprep.subr.mxu0 0.0
    %4358 = vmatpush2.msra.mxu0 %v4227
    %4359 = vmatprep.subr.mxu0 0.0
    %4360 = vmatpush2.msra.mxu0 %v4226
    %4361 = vmatprep.subr.mxu0 0.0
    %4362 = vmatpush2.msra.mxu0 %v4225
    %4363 = vmatprep.subr.mxu0 0.0
    %4364 = vmatpush2.msra.mxu0 %v4224
    %4365 = vmatprep.subr.mxu0 0.0
    %4366 = vmatpush2.msra.mxu0 %v4223
    %4367 = vmatprep.subr.mxu0 0.0
    %4368 = vmatpush2.msra.mxu0 %v4222
    %4369 = vmatprep.subr.mxu0 0.0
    %4370 = vmatpush2.msra.mxu0 %v4221
    %4371 = vmatprep.mubr.f32.mxu0 %v198
    %4372 = vmatmul.mubr.f32.gmra.mxu0 %v197
    %v4373 = vpop.f32.mrf.mxu0
    %v4374 = vadd.f32 %v4304, %v4373
    %v4375 = vpop.f32.mrf.mxu0
    %4376 = vdwg.mxu0
    %s4377 = scalar_lea.vmem %s4, 88
    %v4378 = vld [vmem:[%s4377] sm:$0xff]
    %v4380 = vsel %vm539, %v4378, 0
    %4382 = vmatprep.subr.mxu0 0.0
    %4383 = vmatpush1.msra.mxu0 0.0
    %4384 = vmatprep.subr.mxu0 0.0
    %4385 = vmatpush1.msra.mxu0 0.0
    %4386 = vmatprep.subr.mxu0 0.0
    %4387 = vmatpush1.msra.mxu0 0.0
    %4388 = vmatprep.subr.mxu0 0.0
    %4389 = vmatpush1.msra.mxu0 0.0
    %4390 = vmatprep.subr.mxu0 0.0
    %4391 = vmatpush1.msra.mxu0 0.0
    %4392 = vmatprep.subr.mxu0 0.0
    %4393 = vmatpush1.msra.mxu0 0.0
    %4394 = vmatprep.subr.mxu0 0.0
    %4395 = vmatpush1.msra.mxu0 0.0
    %4396 = vmatprep.subr.mxu0 0.0
    %4397 = vmatpush1.msra.mxu0 0.0
    %4398 = vmatprep.subr.mxu0 0.0
    %4399 = vmatpush1.msra.mxu0 0.0
    %4400 = vmatprep.subr.mxu0 0.0
    %4401 = vmatpush1.msra.mxu0 0.0
    %4402 = vmatprep.subr.mxu0 0.0
    %4403 = vmatpush1.msra.mxu0 0.0
    %4404 = vmatprep.subr.mxu0 0.0
    %4405 = vmatpush1.msra.mxu0 0.0
    %4406 = vmatprep.subr.mxu0 0.0
    %4407 = vmatpush1.msra.mxu0 0.0
    %4408 = vmatprep.subr.mxu0 0.0
    %4409 = vmatpush1.msra.mxu0 0.0
    %4410 = vmatprep.subr.mxu0 0.0
    %4411 = vmatpush1.msra.mxu0 0.0
    %4412 = vmatprep.subr.mxu0 0.0
    %4413 = vmatpush1.msra.mxu0 %v4374
    %4414 = vmatprep.subr.mxu0 0.0
    %4415 = vmatpush2.msra.mxu0 0.0
    %4416 = vmatprep.subr.mxu0 0.0
    %4417 = vmatpush2.msra.mxu0 0.0
    %4418 = vmatprep.subr.mxu0 0.0
    %4419 = vmatpush2.msra.mxu0 0.0
    %4420 = vmatprep.subr.mxu0 0.0
    %4421 = vmatpush2.msra.mxu0 0.0
    %4422 = vmatprep.subr.mxu0 0.0
    %4423 = vmatpush2.msra.mxu0 0.0
    %4424 = vmatprep.subr.mxu0 0.0
    %4425 = vmatpush2.msra.mxu0 0.0
    %4426 = vmatprep.subr.mxu0 0.0
    %4427 = vmatpush2.msra.mxu0 0.0
    %4428 = vmatprep.subr.mxu0 0.0
    %4429 = vmatpush2.msra.mxu0 0.0
    %4430 = vmatprep.subr.mxu0 0.0
    %4431 = vmatpush2.msra.mxu0 0.0
    %4432 = vmatprep.subr.mxu0 0.0
    %4433 = vmatpush2.msra.mxu0 0.0
    %4434 = vmatprep.subr.mxu0 0.0
    %4435 = vmatpush2.msra.mxu0 0.0
    %4436 = vmatprep.subr.mxu0 0.0
    %4437 = vmatpush2.msra.mxu0 0.0
    %4438 = vmatprep.subr.mxu0 0.0
    %4439 = vmatpush2.msra.mxu0 0.0
    %4440 = vmatprep.subr.mxu0 0.0
    %4441 = vmatpush2.msra.mxu0 0.0
    %4442 = vmatprep.subr.mxu0 0.0
    %4443 = vmatpush2.msra.mxu0 0.0
    %4444 = vmatprep.subr.mxu0 0.0
    %4445 = vmatpush2.msra.mxu0 0.0
    %4446 = vmatprep.mubr.f32.mxu0 0.0
    %4447 = vmatmul.mubr.f32.gmra.mxu0 %v4380
    %v4448 = vpop.f32.mrf.mxu0
    %v4449 = vadd.f32 0.0, %v4448
    %v4450 = vpop.f32.mrf.mxu0
    %4451 = vdwg.mxu0
    %v4452 = vadd.f32 %v4103, %v4449
    %v4453 = vld [vmem:[%s3 + $0xc] sm:$0x1]
    %v4454 = vlaneseq
    %v4455 = vshrl.u32 %v4454, 7
    %v4456 = vsub.s32 0, %v4455
    %v4457 = vrot.slane %v4453, %v4456
    %vm4458 = vcmp.eq.s32.totalorder %v200, %v4457
    %vm4459 = vcmp.eq.s32.totalorder %v201, %v4457
    %vm4460 = vcmp.eq.s32.totalorder %v202, %v4457
    %vm4461 = vcmp.eq.s32.totalorder %v203, %v4457
    %vm4462 = vcmp.eq.s32.totalorder %v204, %v4457
    %vm4463 = vcmp.eq.s32.totalorder %v205, %v4457
    %vm4464 = vcmp.eq.s32.totalorder %v206, %v4457
    %vm4465 = vcmp.eq.s32.totalorder %v207, %v4457
    %vm4466 = vcmp.eq.s32.totalorder %v208, %v4457
    %vm4467 = vcmp.eq.s32.totalorder %v209, %v4457
    %vm4468 = vcmp.eq.s32.totalorder %v210, %v4457
    %vm4469 = vcmp.eq.s32.totalorder %v211, %v4457
    %vm4470 = vcmp.eq.s32.totalorder %v212, %v4457
    %vm4471 = vcmp.eq.s32.totalorder %v213, %v4457
    %vm4472 = vcmp.eq.s32.totalorder %v214, %v4457
    %vm4473 = vcmp.eq.s32.totalorder %v215, %v4457
    %vm4474 = vcmp.eq.s32.totalorder %v216, %v4457
    %vm4475 = vcmp.eq.s32.totalorder %v217, %v4457
    %vm4476 = vcmp.eq.s32.totalorder %v218, %v4457
    %vm4477 = vcmp.eq.s32.totalorder %v219, %v4457
    %vm4478 = vcmp.eq.s32.totalorder %v220, %v4457
    %vm4479 = vcmp.eq.s32.totalorder %v221, %v4457
    %vm4480 = vcmp.eq.s32.totalorder %v222, %v4457
    %vm4481 = vcmp.eq.s32.totalorder %v223, %v4457
    %vm4482 = vcmp.eq.s32.totalorder %v224, %v4457
    %vm4483 = vcmp.eq.s32.totalorder %v225, %v4457
    %vm4484 = vcmp.eq.s32.totalorder %v226, %v4457
    %vm4485 = vcmp.eq.s32.totalorder %v227, %v4457
    %vm4486 = vcmp.eq.s32.totalorder %v228, %v4457
    %vm4487 = vcmp.eq.s32.totalorder %v229, %v4457
    %vm4488 = vcmp.eq.s32.totalorder %v230, %v4457
    %vm4489 = vcmp.eq.s32.totalorder %v231, %v4457
    %vm4490 = vcmp.eq.s32.totalorder %v232, %v4457
    %vm4491 = vcmp.eq.s32.totalorder %v233, %v4457
    %vm4492 = vcmp.eq.s32.totalorder %v234, %v4457
    %vm4493 = vcmp.eq.s32.totalorder %v235, %v4457
    %vm4494 = vcmp.eq.s32.totalorder %v236, %v4457
    %vm4495 = vcmp.eq.s32.totalorder %v237, %v4457
    %vm4496 = vcmp.eq.s32.totalorder %v238, %v4457
    %vm4497 = vcmp.eq.s32.totalorder %v239, %v4457
    %vm4498 = vcmp.eq.s32.totalorder %v240, %v4457
    %vm4499 = vcmp.eq.s32.totalorder %v241, %v4457
    %vm4500 = vcmp.eq.s32.totalorder %v242, %v4457
    %vm4501 = vcmp.eq.s32.totalorder %v243, %v4457
    %vm4502 = vcmp.eq.s32.totalorder %v244, %v4457
    %vm4503 = vcmp.eq.s32.totalorder %v245, %v4457
    %vm4504 = vcmp.eq.s32.totalorder %v246, %v4457
    %vm4505 = vcmp.eq.s32.totalorder %v247, %v4457
    %vm4506 = vcmp.eq.s32.totalorder %v248, %v4457
    %vm4507 = vcmp.eq.s32.totalorder %v249, %v4457
    %vm4508 = vcmp.eq.s32.totalorder %v250, %v4457
    %vm4509 = vcmp.eq.s32.totalorder %v251, %v4457
    %vm4510 = vcmp.eq.s32.totalorder %v252, %v4457
    %vm4511 = vcmp.eq.s32.totalorder %v253, %v4457
    %vm4512 = vcmp.eq.s32.totalorder %v254, %v4457
    %vm4513 = vcmp.eq.s32.totalorder %v255, %v4457
    %vm4514 = vcmp.eq.s32.totalorder %v256, %v4457
    %vm4515 = vcmp.eq.s32.totalorder %v257, %v4457
    %vm4516 = vcmp.eq.s32.totalorder %v258, %v4457
    %vm4517 = vcmp.eq.s32.totalorder %v259, %v4457
    %vm4518 = vcmp.eq.s32.totalorder %v260, %v4457
    %vm4519 = vcmp.eq.s32.totalorder %v261, %v4457
    %vm4520 = vcmp.eq.s32.totalorder %v262, %v4457
    %vm4521 = vcmp.eq.s32.totalorder %v263, %v4457
    %v4522 = vsel %vm4458, 1.0, 0.0
    %v4523 = vsel %vm4459, 1.0, 0.0
    %v4524 = vsel %vm4460, 1.0, 0.0
    %v4525 = vsel %vm4461, 1.0, 0.0
    %v4526 = vsel %vm4462, 1.0, 0.0
    %v4527 = vsel %vm4463, 1.0, 0.0
    %v4528 = vsel %vm4464, 1.0, 0.0
    %v4529 = vsel %vm4465, 1.0, 0.0
    %v4530 = vsel %vm4466, 1.0, 0.0
    %v4531 = vsel %vm4467, 1.0, 0.0
    %v4532 = vsel %vm4468, 1.0, 0.0
    %v4533 = vsel %vm4469, 1.0, 0.0
    %v4534 = vsel %vm4470, 1.0, 0.0
    %v4535 = vsel %vm4471, 1.0, 0.0
    %v4536 = vsel %vm4472, 1.0, 0.0
    %v4537 = vsel %vm4473, 1.0, 0.0
    %v4538 = vsel %vm4474, 1.0, 0.0
    %v4539 = vsel %vm4475, 1.0, 0.0
    %v4540 = vsel %vm4476, 1.0, 0.0
    %v4541 = vsel %vm4477, 1.0, 0.0
    %v4542 = vsel %vm4478, 1.0, 0.0
    %v4543 = vsel %vm4479, 1.0, 0.0
    %v4544 = vsel %vm4480, 1.0, 0.0
    %v4545 = vsel %vm4481, 1.0, 0.0
    %v4546 = vsel %vm4482, 1.0, 0.0
    %v4547 = vsel %vm4483, 1.0, 0.0
    %v4548 = vsel %vm4484, 1.0, 0.0
    %v4549 = vsel %vm4485, 1.0, 0.0
    %v4550 = vsel %vm4486, 1.0, 0.0
    %v4551 = vsel %vm4487, 1.0, 0.0
    %v4552 = vsel %vm4488, 1.0, 0.0
    %v4553 = vsel %vm4489, 1.0, 0.0
    %v4554 = vsel %vm4490, 1.0, 0.0
    %v4555 = vsel %vm4491, 1.0, 0.0
    %v4556 = vsel %vm4492, 1.0, 0.0
    %v4557 = vsel %vm4493, 1.0, 0.0
    %v4558 = vsel %vm4494, 1.0, 0.0
    %v4559 = vsel %vm4495, 1.0, 0.0
    %v4560 = vsel %vm4496, 1.0, 0.0
    %v4561 = vsel %vm4497, 1.0, 0.0
    %v4562 = vsel %vm4498, 1.0, 0.0
    %v4563 = vsel %vm4499, 1.0, 0.0
    %v4564 = vsel %vm4500, 1.0, 0.0
    %v4565 = vsel %vm4501, 1.0, 0.0
    %v4566 = vsel %vm4502, 1.0, 0.0
    %v4567 = vsel %vm4503, 1.0, 0.0
    %v4568 = vsel %vm4504, 1.0, 0.0
    %v4569 = vsel %vm4505, 1.0, 0.0
    %v4570 = vsel %vm4506, 1.0, 0.0
    %v4571 = vsel %vm4507, 1.0, 0.0
    %v4572 = vsel %vm4508, 1.0, 0.0
    %v4573 = vsel %vm4509, 1.0, 0.0
    %v4574 = vsel %vm4510, 1.0, 0.0
    %v4575 = vsel %vm4511, 1.0, 0.0
    %v4576 = vsel %vm4512, 1.0, 0.0
    %v4577 = vsel %vm4513, 1.0, 0.0
    %v4578 = vsel %vm4514, 1.0, 0.0
    %v4579 = vsel %vm4515, 1.0, 0.0
    %v4580 = vsel %vm4516, 1.0, 0.0
    %v4581 = vsel %vm4517, 1.0, 0.0
    %v4582 = vsel %vm4518, 1.0, 0.0
    %v4583 = vsel %vm4519, 1.0, 0.0
    %v4584 = vsel %vm4520, 1.0, 0.0
    %v4585 = vsel %vm4521, 1.0, 0.0
    %4586 = vmatprep.subr.mxu0 0.0
    %4587 = vmatpush1.msra.mxu0 %v4537
    %4588 = vmatprep.subr.mxu0 0.0
    %4589 = vmatpush1.msra.mxu0 %v4536
    %4590 = vmatprep.subr.mxu0 0.0
    %4591 = vmatpush1.msra.mxu0 %v4535
    %4592 = vmatprep.subr.mxu0 0.0
    %4593 = vmatpush1.msra.mxu0 %v4534
    %4594 = vmatprep.subr.mxu0 0.0
    %4595 = vmatpush1.msra.mxu0 %v4533
    %4596 = vmatprep.subr.mxu0 0.0
    %4597 = vmatpush1.msra.mxu0 %v4532
    %4598 = vmatprep.subr.mxu0 0.0
    %4599 = vmatpush1.msra.mxu0 %v4531
    %4600 = vmatprep.subr.mxu0 0.0
    %4601 = vmatpush1.msra.mxu0 %v4530
    %4602 = vmatprep.subr.mxu0 0.0
    %4603 = vmatpush1.msra.mxu0 %v4529
    %4604 = vmatprep.subr.mxu0 0.0
    %4605 = vmatpush1.msra.mxu0 %v4528
    %4606 = vmatprep.subr.mxu0 0.0
    %4607 = vmatpush1.msra.mxu0 %v4527
    %4608 = vmatprep.subr.mxu0 0.0
    %4609 = vmatpush1.msra.mxu0 %v4526
    %4610 = vmatprep.subr.mxu0 0.0
    %4611 = vmatpush1.msra.mxu0 %v4525
    %4612 = vmatprep.subr.mxu0 0.0
    %4613 = vmatpush1.msra.mxu0 %v4524
    %4614 = vmatprep.subr.mxu0 0.0
    %4615 = vmatpush1.msra.mxu0 %v4523
    %4616 = vmatprep.subr.mxu0 0.0
    %4617 = vmatpush1.msra.mxu0 %v4522
    %4618 = vmatprep.subr.mxu0 0.0
    %4619 = vmatpush2.msra.mxu0 %v4553
    %4620 = vmatprep.subr.mxu0 0.0
    %4621 = vmatpush2.msra.mxu0 %v4552
    %4622 = vmatprep.subr.mxu0 0.0
    %4623 = vmatpush2.msra.mxu0 %v4551
    %4624 = vmatprep.subr.mxu0 0.0
    %4625 = vmatpush2.msra.mxu0 %v4550
    %4626 = vmatprep.subr.mxu0 0.0
    %4627 = vmatpush2.msra.mxu0 %v4549
    %4628 = vmatprep.subr.mxu0 0.0
    %4629 = vmatpush2.msra.mxu0 %v4548
    %4630 = vmatprep.subr.mxu0 0.0
    %4631 = vmatpush2.msra.mxu0 %v4547
    %4632 = vmatprep.subr.mxu0 0.0
    %4633 = vmatpush2.msra.mxu0 %v4546
    %4634 = vmatprep.subr.mxu0 0.0
    %4635 = vmatpush2.msra.mxu0 %v4545
    %4636 = vmatprep.subr.mxu0 0.0
    %4637 = vmatpush2.msra.mxu0 %v4544
    %4638 = vmatprep.subr.mxu0 0.0
    %4639 = vmatpush2.msra.mxu0 %v4543
    %4640 = vmatprep.subr.mxu0 0.0
    %4641 = vmatpush2.msra.mxu0 %v4542
    %4642 = vmatprep.subr.mxu0 0.0
    %4643 = vmatpush2.msra.mxu0 %v4541
    %4644 = vmatprep.subr.mxu0 0.0
    %4645 = vmatpush2.msra.mxu0 %v4540
    %4646 = vmatprep.subr.mxu0 0.0
    %4647 = vmatpush2.msra.mxu0 %v4539
    %4648 = vmatprep.subr.mxu0 0.0
    %4649 = vmatpush2.msra.mxu0 %v4538
    %4650 = vmatprep.mubr.f32.mxu0 %v196
    %4651 = vmatmul.mubr.f32.gmra.mxu0 %v195
    %v4652 = vpop.f32.mrf.mxu0
    %v4653 = vadd.f32 0.0, %v4652
    %v4654 = vpop.f32.mrf.mxu0
    %4655 = vdwg.mxu0
    %4656 = vmatprep.subr.mxu0 0.0
    %4657 = vmatpush1.msra.mxu0 %v4569
    %4658 = vmatprep.subr.mxu0 0.0
    %4659 = vmatpush1.msra.mxu0 %v4568
    %4660 = vmatprep.subr.mxu0 0.0
    %4661 = vmatpush1.msra.mxu0 %v4567
    %4662 = vmatprep.subr.mxu0 0.0
    %4663 = vmatpush1.msra.mxu0 %v4566
    %4664 = vmatprep.subr.mxu0 0.0
    %4665 = vmatpush1.msra.mxu0 %v4565
    %4666 = vmatprep.subr.mxu0 0.0
    %4667 = vmatpush1.msra.mxu0 %v4564
    %4668 = vmatprep.subr.mxu0 0.0
    %4669 = vmatpush1.msra.mxu0 %v4563
    %4670 = vmatprep.subr.mxu0 0.0
    %4671 = vmatpush1.msra.mxu0 %v4562
    %4672 = vmatprep.subr.mxu0 0.0
    %4673 = vmatpush1.msra.mxu0 %v4561
    %4674 = vmatprep.subr.mxu0 0.0
    %4675 = vmatpush1.msra.mxu0 %v4560
    %4676 = vmatprep.subr.mxu0 0.0
    %4677 = vmatpush1.msra.mxu0 %v4559
    %4678 = vmatprep.subr.mxu0 0.0
    %4679 = vmatpush1.msra.mxu0 %v4558
    %4680 = vmatprep.subr.mxu0 0.0
    %4681 = vmatpush1.msra.mxu0 %v4557
    %4682 = vmatprep.subr.mxu0 0.0
    %4683 = vmatpush1.msra.mxu0 %v4556
    %4684 = vmatprep.subr.mxu0 0.0
    %4685 = vmatpush1.msra.mxu0 %v4555
    %4686 = vmatprep.subr.mxu0 0.0
    %4687 = vmatpush1.msra.mxu0 %v4554
    %4688 = vmatprep.subr.mxu0 0.0
    %4689 = vmatpush2.msra.mxu0 %v4585
    %4690 = vmatprep.subr.mxu0 0.0
    %4691 = vmatpush2.msra.mxu0 %v4584
    %4692 = vmatprep.subr.mxu0 0.0
    %4693 = vmatpush2.msra.mxu0 %v4583
    %4694 = vmatprep.subr.mxu0 0.0
    %4695 = vmatpush2.msra.mxu0 %v4582
    %4696 = vmatprep.subr.mxu0 0.0
    %4697 = vmatpush2.msra.mxu0 %v4581
    %4698 = vmatprep.subr.mxu0 0.0
    %4699 = vmatpush2.msra.mxu0 %v4580
    %4700 = vmatprep.subr.mxu0 0.0
    %4701 = vmatpush2.msra.mxu0 %v4579
    %4702 = vmatprep.subr.mxu0 0.0
    %4703 = vmatpush2.msra.mxu0 %v4578
    %4704 = vmatprep.subr.mxu0 0.0
    %4705 = vmatpush2.msra.mxu0 %v4577
    %4706 = vmatprep.subr.mxu0 0.0
    %4707 = vmatpush2.msra.mxu0 %v4576
    %4708 = vmatprep.subr.mxu0 0.0
    %4709 = vmatpush2.msra.mxu0 %v4575
    %4710 = vmatprep.subr.mxu0 0.0
    %4711 = vmatpush2.msra.mxu0 %v4574
    %4712 = vmatprep.subr.mxu0 0.0
    %4713 = vmatpush2.msra.mxu0 %v4573
    %4714 = vmatprep.subr.mxu0 0.0
    %4715 = vmatpush2.msra.mxu0 %v4572
    %4716 = vmatprep.subr.mxu0 0.0
    %4717 = vmatpush2.msra.mxu0 %v4571
    %4718 = vmatprep.subr.mxu0 0.0
    %4719 = vmatpush2.msra.mxu0 %v4570
    %4720 = vmatprep.mubr.f32.mxu0 %v198
    %4721 = vmatmul.mubr.f32.gmra.mxu0 %v197
    %v4722 = vpop.f32.mrf.mxu0
    %v4723 = vadd.f32 %v4653, %v4722
    %v4724 = vpop.f32.mrf.mxu0
    %4725 = vdwg.mxu0
    %s4726 = scalar_lea.vmem %s4, 96
    %v4727 = vld [vmem:[%s4726] sm:$0xff]
    %v4729 = vsel %vm539, %v4727, 0
    %4731 = vmatprep.subr.mxu0 0.0
    %4732 = vmatpush1.msra.mxu0 0.0
    %4733 = vmatprep.subr.mxu0 0.0
    %4734 = vmatpush1.msra.mxu0 0.0
    %4735 = vmatprep.subr.mxu0 0.0
    %4736 = vmatpush1.msra.mxu0 0.0
    %4737 = vmatprep.subr.mxu0 0.0
    %4738 = vmatpush1.msra.mxu0 0.0
    %4739 = vmatprep.subr.mxu0 0.0
    %4740 = vmatpush1.msra.mxu0 0.0
    %4741 = vmatprep.subr.mxu0 0.0
    %4742 = vmatpush1.msra.mxu0 0.0
    %4743 = vmatprep.subr.mxu0 0.0
    %4744 = vmatpush1.msra.mxu0 0.0
    %4745 = vmatprep.subr.mxu0 0.0
    %4746 = vmatpush1.msra.mxu0 0.0
    %4747 = vmatprep.subr.mxu0 0.0
    %4748 = vmatpush1.msra.mxu0 0.0
    %4749 = vmatprep.subr.mxu0 0.0
    %4750 = vmatpush1.msra.mxu0 0.0
    %4751 = vmatprep.subr.mxu0 0.0
    %4752 = vmatpush1.msra.mxu0 0.0
    %4753 = vmatprep.subr.mxu0 0.0
    %4754 = vmatpush1.msra.mxu0 0.0
    %4755 = vmatprep.subr.mxu0 0.0
    %4756 = vmatpush1.msra.mxu0 0.0
    %4757 = vmatprep.subr.mxu0 0.0
    %4758 = vmatpush1.msra.mxu0 0.0
    %4759 = vmatprep.subr.mxu0 0.0
    %4760 = vmatpush1.msra.mxu0 0.0
    %4761 = vmatprep.subr.mxu0 0.0
    %4762 = vmatpush1.msra.mxu0 %v4723
    %4763 = vmatprep.subr.mxu0 0.0
    %4764 = vmatpush2.msra.mxu0 0.0
    %4765 = vmatprep.subr.mxu0 0.0
    %4766 = vmatpush2.msra.mxu0 0.0
    %4767 = vmatprep.subr.mxu0 0.0
    %4768 = vmatpush2.msra.mxu0 0.0
    %4769 = vmatprep.subr.mxu0 0.0
    %4770 = vmatpush2.msra.mxu0 0.0
    %4771 = vmatprep.subr.mxu0 0.0
    %4772 = vmatpush2.msra.mxu0 0.0
    %4773 = vmatprep.subr.mxu0 0.0
    %4774 = vmatpush2.msra.mxu0 0.0
    %4775 = vmatprep.subr.mxu0 0.0
    %4776 = vmatpush2.msra.mxu0 0.0
    %4777 = vmatprep.subr.mxu0 0.0
    %4778 = vmatpush2.msra.mxu0 0.0
    %4779 = vmatprep.subr.mxu0 0.0
    %4780 = vmatpush2.msra.mxu0 0.0
    %4781 = vmatprep.subr.mxu0 0.0
    %4782 = vmatpush2.msra.mxu0 0.0
    %4783 = vmatprep.subr.mxu0 0.0
    %4784 = vmatpush2.msra.mxu0 0.0
    %4785 = vmatprep.subr.mxu0 0.0
    %4786 = vmatpush2.msra.mxu0 0.0
    %4787 = vmatprep.subr.mxu0 0.0
    %4788 = vmatpush2.msra.mxu0 0.0
    %4789 = vmatprep.subr.mxu0 0.0
    %4790 = vmatpush2.msra.mxu0 0.0
    %4791 = vmatprep.subr.mxu0 0.0
    %4792 = vmatpush2.msra.mxu0 0.0
    %4793 = vmatprep.subr.mxu0 0.0
    %4794 = vmatpush2.msra.mxu0 0.0
    %4795 = vmatprep.mubr.f32.mxu0 0.0
    %4796 = vmatmul.mubr.f32.gmra.mxu0 %v4729
    %v4797 = vpop.f32.mrf.mxu0
    %v4798 = vadd.f32 0.0, %v4797
    %v4799 = vpop.f32.mrf.mxu0
    %4800 = vdwg.mxu0
    %v4801 = vadd.f32 %v4452, %v4798
    %v4802 = vld [vmem:[%s3 + $0xd] sm:$0x1]
    %v4803 = vlaneseq
    %v4804 = vshrl.u32 %v4803, 7
    %v4805 = vsub.s32 0, %v4804
    %v4806 = vrot.slane %v4802, %v4805
    %vm4807 = vcmp.eq.s32.totalorder %v200, %v4806
    %vm4808 = vcmp.eq.s32.totalorder %v201, %v4806
    %vm4809 = vcmp.eq.s32.totalorder %v202, %v4806
    %vm4810 = vcmp.eq.s32.totalorder %v203, %v4806
    %vm4811 = vcmp.eq.s32.totalorder %v204, %v4806
    %vm4812 = vcmp.eq.s32.totalorder %v205, %v4806
    %vm4813 = vcmp.eq.s32.totalorder %v206, %v4806
    %vm4814 = vcmp.eq.s32.totalorder %v207, %v4806
    %vm4815 = vcmp.eq.s32.totalorder %v208, %v4806
    %vm4816 = vcmp.eq.s32.totalorder %v209, %v4806
    %vm4817 = vcmp.eq.s32.totalorder %v210, %v4806
    %vm4818 = vcmp.eq.s32.totalorder %v211, %v4806
    %vm4819 = vcmp.eq.s32.totalorder %v212, %v4806
    %vm4820 = vcmp.eq.s32.totalorder %v213, %v4806
    %vm4821 = vcmp.eq.s32.totalorder %v214, %v4806
    %vm4822 = vcmp.eq.s32.totalorder %v215, %v4806
    %vm4823 = vcmp.eq.s32.totalorder %v216, %v4806
    %vm4824 = vcmp.eq.s32.totalorder %v217, %v4806
    %vm4825 = vcmp.eq.s32.totalorder %v218, %v4806
    %vm4826 = vcmp.eq.s32.totalorder %v219, %v4806
    %vm4827 = vcmp.eq.s32.totalorder %v220, %v4806
    %vm4828 = vcmp.eq.s32.totalorder %v221, %v4806
    %vm4829 = vcmp.eq.s32.totalorder %v222, %v4806
    %vm4830 = vcmp.eq.s32.totalorder %v223, %v4806
    %vm4831 = vcmp.eq.s32.totalorder %v224, %v4806
    %vm4832 = vcmp.eq.s32.totalorder %v225, %v4806
    %vm4833 = vcmp.eq.s32.totalorder %v226, %v4806
    %vm4834 = vcmp.eq.s32.totalorder %v227, %v4806
    %vm4835 = vcmp.eq.s32.totalorder %v228, %v4806
    %vm4836 = vcmp.eq.s32.totalorder %v229, %v4806
    %vm4837 = vcmp.eq.s32.totalorder %v230, %v4806
    %vm4838 = vcmp.eq.s32.totalorder %v231, %v4806
    %vm4839 = vcmp.eq.s32.totalorder %v232, %v4806
    %vm4840 = vcmp.eq.s32.totalorder %v233, %v4806
    %vm4841 = vcmp.eq.s32.totalorder %v234, %v4806
    %vm4842 = vcmp.eq.s32.totalorder %v235, %v4806
    %vm4843 = vcmp.eq.s32.totalorder %v236, %v4806
    %vm4844 = vcmp.eq.s32.totalorder %v237, %v4806
    %vm4845 = vcmp.eq.s32.totalorder %v238, %v4806
    %vm4846 = vcmp.eq.s32.totalorder %v239, %v4806
    %vm4847 = vcmp.eq.s32.totalorder %v240, %v4806
    %vm4848 = vcmp.eq.s32.totalorder %v241, %v4806
    %vm4849 = vcmp.eq.s32.totalorder %v242, %v4806
    %vm4850 = vcmp.eq.s32.totalorder %v243, %v4806
    %vm4851 = vcmp.eq.s32.totalorder %v244, %v4806
    %vm4852 = vcmp.eq.s32.totalorder %v245, %v4806
    %vm4853 = vcmp.eq.s32.totalorder %v246, %v4806
    %vm4854 = vcmp.eq.s32.totalorder %v247, %v4806
    %vm4855 = vcmp.eq.s32.totalorder %v248, %v4806
    %vm4856 = vcmp.eq.s32.totalorder %v249, %v4806
    %vm4857 = vcmp.eq.s32.totalorder %v250, %v4806
    %vm4858 = vcmp.eq.s32.totalorder %v251, %v4806
    %vm4859 = vcmp.eq.s32.totalorder %v252, %v4806
    %vm4860 = vcmp.eq.s32.totalorder %v253, %v4806
    %vm4861 = vcmp.eq.s32.totalorder %v254, %v4806
    %vm4862 = vcmp.eq.s32.totalorder %v255, %v4806
    %vm4863 = vcmp.eq.s32.totalorder %v256, %v4806
    %vm4864 = vcmp.eq.s32.totalorder %v257, %v4806
    %vm4865 = vcmp.eq.s32.totalorder %v258, %v4806
    %vm4866 = vcmp.eq.s32.totalorder %v259, %v4806
    %vm4867 = vcmp.eq.s32.totalorder %v260, %v4806
    %vm4868 = vcmp.eq.s32.totalorder %v261, %v4806
    %vm4869 = vcmp.eq.s32.totalorder %v262, %v4806
    %vm4870 = vcmp.eq.s32.totalorder %v263, %v4806
    %v4871 = vsel %vm4807, 1.0, 0.0
    %v4872 = vsel %vm4808, 1.0, 0.0
    %v4873 = vsel %vm4809, 1.0, 0.0
    %v4874 = vsel %vm4810, 1.0, 0.0
    %v4875 = vsel %vm4811, 1.0, 0.0
    %v4876 = vsel %vm4812, 1.0, 0.0
    %v4877 = vsel %vm4813, 1.0, 0.0
    %v4878 = vsel %vm4814, 1.0, 0.0
    %v4879 = vsel %vm4815, 1.0, 0.0
    %v4880 = vsel %vm4816, 1.0, 0.0
    %v4881 = vsel %vm4817, 1.0, 0.0
    %v4882 = vsel %vm4818, 1.0, 0.0
    %v4883 = vsel %vm4819, 1.0, 0.0
    %v4884 = vsel %vm4820, 1.0, 0.0
    %v4885 = vsel %vm4821, 1.0, 0.0
    %v4886 = vsel %vm4822, 1.0, 0.0
    %v4887 = vsel %vm4823, 1.0, 0.0
    %v4888 = vsel %vm4824, 1.0, 0.0
    %v4889 = vsel %vm4825, 1.0, 0.0
    %v4890 = vsel %vm4826, 1.0, 0.0
    %v4891 = vsel %vm4827, 1.0, 0.0
    %v4892 = vsel %vm4828, 1.0, 0.0
    %v4893 = vsel %vm4829, 1.0, 0.0
    %v4894 = vsel %vm4830, 1.0, 0.0
    %v4895 = vsel %vm4831, 1.0, 0.0
    %v4896 = vsel %vm4832, 1.0, 0.0
    %v4897 = vsel %vm4833, 1.0, 0.0
    %v4898 = vsel %vm4834, 1.0, 0.0
    %v4899 = vsel %vm4835, 1.0, 0.0
    %v4900 = vsel %vm4836, 1.0, 0.0
    %v4901 = vsel %vm4837, 1.0, 0.0
    %v4902 = vsel %vm4838, 1.0, 0.0
    %v4903 = vsel %vm4839, 1.0, 0.0
    %v4904 = vsel %vm4840, 1.0, 0.0
    %v4905 = vsel %vm4841, 1.0, 0.0
    %v4906 = vsel %vm4842, 1.0, 0.0
    %v4907 = vsel %vm4843, 1.0, 0.0
    %v4908 = vsel %vm4844, 1.0, 0.0
    %v4909 = vsel %vm4845, 1.0, 0.0
    %v4910 = vsel %vm4846, 1.0, 0.0
    %v4911 = vsel %vm4847, 1.0, 0.0
    %v4912 = vsel %vm4848, 1.0, 0.0
    %v4913 = vsel %vm4849, 1.0, 0.0
    %v4914 = vsel %vm4850, 1.0, 0.0
    %v4915 = vsel %vm4851, 1.0, 0.0
    %v4916 = vsel %vm4852, 1.0, 0.0
    %v4917 = vsel %vm4853, 1.0, 0.0
    %v4918 = vsel %vm4854, 1.0, 0.0
    %v4919 = vsel %vm4855, 1.0, 0.0
    %v4920 = vsel %vm4856, 1.0, 0.0
    %v4921 = vsel %vm4857, 1.0, 0.0
    %v4922 = vsel %vm4858, 1.0, 0.0
    %v4923 = vsel %vm4859, 1.0, 0.0
    %v4924 = vsel %vm4860, 1.0, 0.0
    %v4925 = vsel %vm4861, 1.0, 0.0
    %v4926 = vsel %vm4862, 1.0, 0.0
    %v4927 = vsel %vm4863, 1.0, 0.0
    %v4928 = vsel %vm4864, 1.0, 0.0
    %v4929 = vsel %vm4865, 1.0, 0.0
    %v4930 = vsel %vm4866, 1.0, 0.0
    %v4931 = vsel %vm4867, 1.0, 0.0
    %v4932 = vsel %vm4868, 1.0, 0.0
    %v4933 = vsel %vm4869, 1.0, 0.0
    %v4934 = vsel %vm4870, 1.0, 0.0
    %4935 = vmatprep.subr.mxu0 0.0
    %4936 = vmatpush1.msra.mxu0 %v4886
    %4937 = vmatprep.subr.mxu0 0.0
    %4938 = vmatpush1.msra.mxu0 %v4885
    %4939 = vmatprep.subr.mxu0 0.0
    %4940 = vmatpush1.msra.mxu0 %v4884
    %4941 = vmatprep.subr.mxu0 0.0
    %4942 = vmatpush1.msra.mxu0 %v4883
    %4943 = vmatprep.subr.mxu0 0.0
    %4944 = vmatpush1.msra.mxu0 %v4882
    %4945 = vmatprep.subr.mxu0 0.0
    %4946 = vmatpush1.msra.mxu0 %v4881
    %4947 = vmatprep.subr.mxu0 0.0
    %4948 = vmatpush1.msra.mxu0 %v4880
    %4949 = vmatprep.subr.mxu0 0.0
    %4950 = vmatpush1.msra.mxu0 %v4879
    %4951 = vmatprep.subr.mxu0 0.0
    %4952 = vmatpush1.msra.mxu0 %v4878
    %4953 = vmatprep.subr.mxu0 0.0
    %4954 = vmatpush1.msra.mxu0 %v4877
    %4955 = vmatprep.subr.mxu0 0.0
    %4956 = vmatpush1.msra.mxu0 %v4876
    %4957 = vmatprep.subr.mxu0 0.0
    %4958 = vmatpush1.msra.mxu0 %v4875
    %4959 = vmatprep.subr.mxu0 0.0
    %4960 = vmatpush1.msra.mxu0 %v4874
    %4961 = vmatprep.subr.mxu0 0.0
    %4962 = vmatpush1.msra.mxu0 %v4873
    %4963 = vmatprep.subr.mxu0 0.0
    %4964 = vmatpush1.msra.mxu0 %v4872
    %4965 = vmatprep.subr.mxu0 0.0
    %4966 = vmatpush1.msra.mxu0 %v4871
    %4967 = vmatprep.subr.mxu0 0.0
    %4968 = vmatpush2.msra.mxu0 %v4902
    %4969 = vmatprep.subr.mxu0 0.0
    %4970 = vmatpush2.msra.mxu0 %v4901
    %4971 = vmatprep.subr.mxu0 0.0
    %4972 = vmatpush2.msra.mxu0 %v4900
    %4973 = vmatprep.subr.mxu0 0.0
    %4974 = vmatpush2.msra.mxu0 %v4899
    %4975 = vmatprep.subr.mxu0 0.0
    %4976 = vmatpush2.msra.mxu0 %v4898
    %4977 = vmatprep.subr.mxu0 0.0
    %4978 = vmatpush2.msra.mxu0 %v4897
    %4979 = vmatprep.subr.mxu0 0.0
    %4980 = vmatpush2.msra.mxu0 %v4896
    %4981 = vmatprep.subr.mxu0 0.0
    %4982 = vmatpush2.msra.mxu0 %v4895
    %4983 = vmatprep.subr.mxu0 0.0
    %4984 = vmatpush2.msra.mxu0 %v4894
    %4985 = vmatprep.subr.mxu0 0.0
    %4986 = vmatpush2.msra.mxu0 %v4893
    %4987 = vmatprep.subr.mxu0 0.0
    %4988 = vmatpush2.msra.mxu0 %v4892
    %4989 = vmatprep.subr.mxu0 0.0
    %4990 = vmatpush2.msra.mxu0 %v4891
    %4991 = vmatprep.subr.mxu0 0.0
    %4992 = vmatpush2.msra.mxu0 %v4890
    %4993 = vmatprep.subr.mxu0 0.0
    %4994 = vmatpush2.msra.mxu0 %v4889
    %4995 = vmatprep.subr.mxu0 0.0
    %4996 = vmatpush2.msra.mxu0 %v4888
    %4997 = vmatprep.subr.mxu0 0.0
    %4998 = vmatpush2.msra.mxu0 %v4887
    %4999 = vmatprep.mubr.f32.mxu0 %v196
    %5000 = vmatmul.mubr.f32.gmra.mxu0 %v195
    %v5001 = vpop.f32.mrf.mxu0
    %v5002 = vadd.f32 0.0, %v5001
    %v5003 = vpop.f32.mrf.mxu0
    %5004 = vdwg.mxu0
    %5005 = vmatprep.subr.mxu0 0.0
    %5006 = vmatpush1.msra.mxu0 %v4918
    %5007 = vmatprep.subr.mxu0 0.0
    %5008 = vmatpush1.msra.mxu0 %v4917
    %5009 = vmatprep.subr.mxu0 0.0
    %5010 = vmatpush1.msra.mxu0 %v4916
    %5011 = vmatprep.subr.mxu0 0.0
    %5012 = vmatpush1.msra.mxu0 %v4915
    %5013 = vmatprep.subr.mxu0 0.0
    %5014 = vmatpush1.msra.mxu0 %v4914
    %5015 = vmatprep.subr.mxu0 0.0
    %5016 = vmatpush1.msra.mxu0 %v4913
    %5017 = vmatprep.subr.mxu0 0.0
    %5018 = vmatpush1.msra.mxu0 %v4912
    %5019 = vmatprep.subr.mxu0 0.0
    %5020 = vmatpush1.msra.mxu0 %v4911
    %5021 = vmatprep.subr.mxu0 0.0
    %5022 = vmatpush1.msra.mxu0 %v4910
    %5023 = vmatprep.subr.mxu0 0.0
    %5024 = vmatpush1.msra.mxu0 %v4909
    %5025 = vmatprep.subr.mxu0 0.0
    %5026 = vmatpush1.msra.mxu0 %v4908
    %5027 = vmatprep.subr.mxu0 0.0
    %5028 = vmatpush1.msra.mxu0 %v4907
    %5029 = vmatprep.subr.mxu0 0.0
    %5030 = vmatpush1.msra.mxu0 %v4906
    %5031 = vmatprep.subr.mxu0 0.0
    %5032 = vmatpush1.msra.mxu0 %v4905
    %5033 = vmatprep.subr.mxu0 0.0
    %5034 = vmatpush1.msra.mxu0 %v4904
    %5035 = vmatprep.subr.mxu0 0.0
    %5036 = vmatpush1.msra.mxu0 %v4903
    %5037 = vmatprep.subr.mxu0 0.0
    %5038 = vmatpush2.msra.mxu0 %v4934
    %5039 = vmatprep.subr.mxu0 0.0
    %5040 = vmatpush2.msra.mxu0 %v4933
    %5041 = vmatprep.subr.mxu0 0.0
    %5042 = vmatpush2.msra.mxu0 %v4932
    %5043 = vmatprep.subr.mxu0 0.0
    %5044 = vmatpush2.msra.mxu0 %v4931
    %5045 = vmatprep.subr.mxu0 0.0
    %5046 = vmatpush2.msra.mxu0 %v4930
    %5047 = vmatprep.subr.mxu0 0.0
    %5048 = vmatpush2.msra.mxu0 %v4929
    %5049 = vmatprep.subr.mxu0 0.0
    %5050 = vmatpush2.msra.mxu0 %v4928
    %5051 = vmatprep.subr.mxu0 0.0
    %5052 = vmatpush2.msra.mxu0 %v4927
    %5053 = vmatprep.subr.mxu0 0.0
    %5054 = vmatpush2.msra.mxu0 %v4926
    %5055 = vmatprep.subr.mxu0 0.0
    %5056 = vmatpush2.msra.mxu0 %v4925
    %5057 = vmatprep.subr.mxu0 0.0
    %5058 = vmatpush2.msra.mxu0 %v4924
    %5059 = vmatprep.subr.mxu0 0.0
    %5060 = vmatpush2.msra.mxu0 %v4923
    %5061 = vmatprep.subr.mxu0 0.0
    %5062 = vmatpush2.msra.mxu0 %v4922
    %5063 = vmatprep.subr.mxu0 0.0
    %5064 = vmatpush2.msra.mxu0 %v4921
    %5065 = vmatprep.subr.mxu0 0.0
    %5066 = vmatpush2.msra.mxu0 %v4920
    %5067 = vmatprep.subr.mxu0 0.0
    %5068 = vmatpush2.msra.mxu0 %v4919
    %5069 = vmatprep.mubr.f32.mxu0 %v198
    %5070 = vmatmul.mubr.f32.gmra.mxu0 %v197
    %v5071 = vpop.f32.mrf.mxu0
    %v5072 = vadd.f32 %v5002, %v5071
    %v5073 = vpop.f32.mrf.mxu0
    %5074 = vdwg.mxu0
    %s5075 = scalar_lea.vmem %s4, 104
    %v5076 = vld [vmem:[%s5075] sm:$0xff]
    %v5078 = vsel %vm539, %v5076, 0
    %5080 = vmatprep.subr.mxu0 0.0
    %5081 = vmatpush1.msra.mxu0 0.0
    %5082 = vmatprep.subr.mxu0 0.0
    %5083 = vmatpush1.msra.mxu0 0.0
    %5084 = vmatprep.subr.mxu0 0.0
    %5085 = vmatpush1.msra.mxu0 0.0
    %5086 = vmatprep.subr.mxu0 0.0
    %5087 = vmatpush1.msra.mxu0 0.0
    %5088 = vmatprep.subr.mxu0 0.0
    %5089 = vmatpush1.msra.mxu0 0.0
    %5090 = vmatprep.subr.mxu0 0.0
    %5091 = vmatpush1.msra.mxu0 0.0
    %5092 = vmatprep.subr.mxu0 0.0
    %5093 = vmatpush1.msra.mxu0 0.0
    %5094 = vmatprep.subr.mxu0 0.0
    %5095 = vmatpush1.msra.mxu0 0.0
    %5096 = vmatprep.subr.mxu0 0.0
    %5097 = vmatpush1.msra.mxu0 0.0
    %5098 = vmatprep.subr.mxu0 0.0
    %5099 = vmatpush1.msra.mxu0 0.0
    %5100 = vmatprep.subr.mxu0 0.0
    %5101 = vmatpush1.msra.mxu0 0.0
    %5102 = vmatprep.subr.mxu0 0.0
    %5103 = vmatpush1.msra.mxu0 0.0
    %5104 = vmatprep.subr.mxu0 0.0
    %5105 = vmatpush1.msra.mxu0 0.0
    %5106 = vmatprep.subr.mxu0 0.0
    %5107 = vmatpush1.msra.mxu0 0.0
    %5108 = vmatprep.subr.mxu0 0.0
    %5109 = vmatpush1.msra.mxu0 0.0
    %5110 = vmatprep.subr.mxu0 0.0
    %5111 = vmatpush1.msra.mxu0 %v5072
    %5112 = vmatprep.subr.mxu0 0.0
    %5113 = vmatpush2.msra.mxu0 0.0
    %5114 = vmatprep.subr.mxu0 0.0
    %5115 = vmatpush2.msra.mxu0 0.0
    %5116 = vmatprep.subr.mxu0 0.0
    %5117 = vmatpush2.msra.mxu0 0.0
    %5118 = vmatprep.subr.mxu0 0.0
    %5119 = vmatpush2.msra.mxu0 0.0
    %5120 = vmatprep.subr.mxu0 0.0
    %5121 = vmatpush2.msra.mxu0 0.0
    %5122 = vmatprep.subr.mxu0 0.0
    %5123 = vmatpush2.msra.mxu0 0.0
    %5124 = vmatprep.subr.mxu0 0.0
    %5125 = vmatpush2.msra.mxu0 0.0
    %5126 = vmatprep.subr.mxu0 0.0
    %5127 = vmatpush2.msra.mxu0 0.0
    %5128 = vmatprep.subr.mxu0 0.0
    %5129 = vmatpush2.msra.mxu0 0.0
    %5130 = vmatprep.subr.mxu0 0.0
    %5131 = vmatpush2.msra.mxu0 0.0
    %5132 = vmatprep.subr.mxu0 0.0
    %5133 = vmatpush2.msra.mxu0 0.0
    %5134 = vmatprep.subr.mxu0 0.0
    %5135 = vmatpush2.msra.mxu0 0.0
    %5136 = vmatprep.subr.mxu0 0.0
    %5137 = vmatpush2.msra.mxu0 0.0
    %5138 = vmatprep.subr.mxu0 0.0
    %5139 = vmatpush2.msra.mxu0 0.0
    %5140 = vmatprep.subr.mxu0 0.0
    %5141 = vmatpush2.msra.mxu0 0.0
    %5142 = vmatprep.subr.mxu0 0.0
    %5143 = vmatpush2.msra.mxu0 0.0
    %5144 = vmatprep.mubr.f32.mxu0 0.0
    %5145 = vmatmul.mubr.f32.gmra.mxu0 %v5078
    %v5146 = vpop.f32.mrf.mxu0
    %v5147 = vadd.f32 0.0, %v5146
    %v5148 = vpop.f32.mrf.mxu0
    %5149 = vdwg.mxu0
    %v5150 = vadd.f32 %v4801, %v5147
    %v5151 = vld [vmem:[%s3 + $0xe] sm:$0x1]
    %v5152 = vlaneseq
    %v5153 = vshrl.u32 %v5152, 7
    %v5154 = vsub.s32 0, %v5153
    %v5155 = vrot.slane %v5151, %v5154
    %vm5156 = vcmp.eq.s32.totalorder %v200, %v5155
    %vm5157 = vcmp.eq.s32.totalorder %v201, %v5155
    %vm5158 = vcmp.eq.s32.totalorder %v202, %v5155
    %vm5159 = vcmp.eq.s32.totalorder %v203, %v5155
    %vm5160 = vcmp.eq.s32.totalorder %v204, %v5155
    %vm5161 = vcmp.eq.s32.totalorder %v205, %v5155
    %vm5162 = vcmp.eq.s32.totalorder %v206, %v5155
    %vm5163 = vcmp.eq.s32.totalorder %v207, %v5155
    %vm5164 = vcmp.eq.s32.totalorder %v208, %v5155
    %vm5165 = vcmp.eq.s32.totalorder %v209, %v5155
    %vm5166 = vcmp.eq.s32.totalorder %v210, %v5155
    %vm5167 = vcmp.eq.s32.totalorder %v211, %v5155
    %vm5168 = vcmp.eq.s32.totalorder %v212, %v5155
    %vm5169 = vcmp.eq.s32.totalorder %v213, %v5155
    %vm5170 = vcmp.eq.s32.totalorder %v214, %v5155
    %vm5171 = vcmp.eq.s32.totalorder %v215, %v5155
    %vm5172 = vcmp.eq.s32.totalorder %v216, %v5155
    %vm5173 = vcmp.eq.s32.totalorder %v217, %v5155
    %vm5174 = vcmp.eq.s32.totalorder %v218, %v5155
    %vm5175 = vcmp.eq.s32.totalorder %v219, %v5155
    %vm5176 = vcmp.eq.s32.totalorder %v220, %v5155
    %vm5177 = vcmp.eq.s32.totalorder %v221, %v5155
    %vm5178 = vcmp.eq.s32.totalorder %v222, %v5155
    %vm5179 = vcmp.eq.s32.totalorder %v223, %v5155
    %vm5180 = vcmp.eq.s32.totalorder %v224, %v5155
    %vm5181 = vcmp.eq.s32.totalorder %v225, %v5155
    %vm5182 = vcmp.eq.s32.totalorder %v226, %v5155
    %vm5183 = vcmp.eq.s32.totalorder %v227, %v5155
    %vm5184 = vcmp.eq.s32.totalorder %v228, %v5155
    %vm5185 = vcmp.eq.s32.totalorder %v229, %v5155
    %vm5186 = vcmp.eq.s32.totalorder %v230, %v5155
    %vm5187 = vcmp.eq.s32.totalorder %v231, %v5155
    %vm5188 = vcmp.eq.s32.totalorder %v232, %v5155
    %vm5189 = vcmp.eq.s32.totalorder %v233, %v5155
    %vm5190 = vcmp.eq.s32.totalorder %v234, %v5155
    %vm5191 = vcmp.eq.s32.totalorder %v235, %v5155
    %vm5192 = vcmp.eq.s32.totalorder %v236, %v5155
    %vm5193 = vcmp.eq.s32.totalorder %v237, %v5155
    %vm5194 = vcmp.eq.s32.totalorder %v238, %v5155
    %vm5195 = vcmp.eq.s32.totalorder %v239, %v5155
    %vm5196 = vcmp.eq.s32.totalorder %v240, %v5155
    %vm5197 = vcmp.eq.s32.totalorder %v241, %v5155
    %vm5198 = vcmp.eq.s32.totalorder %v242, %v5155
    %vm5199 = vcmp.eq.s32.totalorder %v243, %v5155
    %vm5200 = vcmp.eq.s32.totalorder %v244, %v5155
    %vm5201 = vcmp.eq.s32.totalorder %v245, %v5155
    %vm5202 = vcmp.eq.s32.totalorder %v246, %v5155
    %vm5203 = vcmp.eq.s32.totalorder %v247, %v5155
    %vm5204 = vcmp.eq.s32.totalorder %v248, %v5155
    %vm5205 = vcmp.eq.s32.totalorder %v249, %v5155
    %vm5206 = vcmp.eq.s32.totalorder %v250, %v5155
    %vm5207 = vcmp.eq.s32.totalorder %v251, %v5155
    %vm5208 = vcmp.eq.s32.totalorder %v252, %v5155
    %vm5209 = vcmp.eq.s32.totalorder %v253, %v5155
    %vm5210 = vcmp.eq.s32.totalorder %v254, %v5155
    %vm5211 = vcmp.eq.s32.totalorder %v255, %v5155
    %vm5212 = vcmp.eq.s32.totalorder %v256, %v5155
    %vm5213 = vcmp.eq.s32.totalorder %v257, %v5155
    %vm5214 = vcmp.eq.s32.totalorder %v258, %v5155
    %vm5215 = vcmp.eq.s32.totalorder %v259, %v5155
    %vm5216 = vcmp.eq.s32.totalorder %v260, %v5155
    %vm5217 = vcmp.eq.s32.totalorder %v261, %v5155
    %vm5218 = vcmp.eq.s32.totalorder %v262, %v5155
    %vm5219 = vcmp.eq.s32.totalorder %v263, %v5155
    %v5220 = vsel %vm5156, 1.0, 0.0
    %v5221 = vsel %vm5157, 1.0, 0.0
    %v5222 = vsel %vm5158, 1.0, 0.0
    %v5223 = vsel %vm5159, 1.0, 0.0
    %v5224 = vsel %vm5160, 1.0, 0.0
    %v5225 = vsel %vm5161, 1.0, 0.0
    %v5226 = vsel %vm5162, 1.0, 0.0
    %v5227 = vsel %vm5163, 1.0, 0.0
    %v5228 = vsel %vm5164, 1.0, 0.0
    %v5229 = vsel %vm5165, 1.0, 0.0
    %v5230 = vsel %vm5166, 1.0, 0.0
    %v5231 = vsel %vm5167, 1.0, 0.0
    %v5232 = vsel %vm5168, 1.0, 0.0
    %v5233 = vsel %vm5169, 1.0, 0.0
    %v5234 = vsel %vm5170, 1.0, 0.0
    %v5235 = vsel %vm5171, 1.0, 0.0
    %v5236 = vsel %vm5172, 1.0, 0.0
    %v5237 = vsel %vm5173, 1.0, 0.0
    %v5238 = vsel %vm5174, 1.0, 0.0
    %v5239 = vsel %vm5175, 1.0, 0.0
    %v5240 = vsel %vm5176, 1.0, 0.0
    %v5241 = vsel %vm5177, 1.0, 0.0
    %v5242 = vsel %vm5178, 1.0, 0.0
    %v5243 = vsel %vm5179, 1.0, 0.0
    %v5244 = vsel %vm5180, 1.0, 0.0
    %v5245 = vsel %vm5181, 1.0, 0.0
    %v5246 = vsel %vm5182, 1.0, 0.0
    %v5247 = vsel %vm5183, 1.0, 0.0
    %v5248 = vsel %vm5184, 1.0, 0.0
    %v5249 = vsel %vm5185, 1.0, 0.0
    %v5250 = vsel %vm5186, 1.0, 0.0
    %v5251 = vsel %vm5187, 1.0, 0.0
    %v5252 = vsel %vm5188, 1.0, 0.0
    %v5253 = vsel %vm5189, 1.0, 0.0
    %v5254 = vsel %vm5190, 1.0, 0.0
    %v5255 = vsel %vm5191, 1.0, 0.0
    %v5256 = vsel %vm5192, 1.0, 0.0
    %v5257 = vsel %vm5193, 1.0, 0.0
    %v5258 = vsel %vm5194, 1.0, 0.0
    %v5259 = vsel %vm5195, 1.0, 0.0
    %v5260 = vsel %vm5196, 1.0, 0.0
    %v5261 = vsel %vm5197, 1.0, 0.0
    %v5262 = vsel %vm5198, 1.0, 0.0
    %v5263 = vsel %vm5199, 1.0, 0.0
    %v5264 = vsel %vm5200, 1.0, 0.0
    %v5265 = vsel %vm5201, 1.0, 0.0
    %v5266 = vsel %vm5202, 1.0, 0.0
    %v5267 = vsel %vm5203, 1.0, 0.0
    %v5268 = vsel %vm5204, 1.0, 0.0
    %v5269 = vsel %vm5205, 1.0, 0.0
    %v5270 = vsel %vm5206, 1.0, 0.0
    %v5271 = vsel %vm5207, 1.0, 0.0
    %v5272 = vsel %vm5208, 1.0, 0.0
    %v5273 = vsel %vm5209, 1.0, 0.0
    %v5274 = vsel %vm5210, 1.0, 0.0
    %v5275 = vsel %vm5211, 1.0, 0.0
    %v5276 = vsel %vm5212, 1.0, 0.0
    %v5277 = vsel %vm5213, 1.0, 0.0
    %v5278 = vsel %vm5214, 1.0, 0.0
    %v5279 = vsel %vm5215, 1.0, 0.0
    %v5280 = vsel %vm5216, 1.0, 0.0
    %v5281 = vsel %vm5217, 1.0, 0.0
    %v5282 = vsel %vm5218, 1.0, 0.0
    %v5283 = vsel %vm5219, 1.0, 0.0
    %5284 = vmatprep.subr.mxu0 0.0
    %5285 = vmatpush1.msra.mxu0 %v5235
    %5286 = vmatprep.subr.mxu0 0.0
    %5287 = vmatpush1.msra.mxu0 %v5234
    %5288 = vmatprep.subr.mxu0 0.0
    %5289 = vmatpush1.msra.mxu0 %v5233
    %5290 = vmatprep.subr.mxu0 0.0
    %5291 = vmatpush1.msra.mxu0 %v5232
    %5292 = vmatprep.subr.mxu0 0.0
    %5293 = vmatpush1.msra.mxu0 %v5231
    %5294 = vmatprep.subr.mxu0 0.0
    %5295 = vmatpush1.msra.mxu0 %v5230
    %5296 = vmatprep.subr.mxu0 0.0
    %5297 = vmatpush1.msra.mxu0 %v5229
    %5298 = vmatprep.subr.mxu0 0.0
    %5299 = vmatpush1.msra.mxu0 %v5228
    %5300 = vmatprep.subr.mxu0 0.0
    %5301 = vmatpush1.msra.mxu0 %v5227
    %5302 = vmatprep.subr.mxu0 0.0
    %5303 = vmatpush1.msra.mxu0 %v5226
    %5304 = vmatprep.subr.mxu0 0.0
    %5305 = vmatpush1.msra.mxu0 %v5225
    %5306 = vmatprep.subr.mxu0 0.0
    %5307 = vmatpush1.msra.mxu0 %v5224
    %5308 = vmatprep.subr.mxu0 0.0
    %5309 = vmatpush1.msra.mxu0 %v5223
    %5310 = vmatprep.subr.mxu0 0.0
    %5311 = vmatpush1.msra.mxu0 %v5222
    %5312 = vmatprep.subr.mxu0 0.0
    %5313 = vmatpush1.msra.mxu0 %v5221
    %5314 = vmatprep.subr.mxu0 0.0
    %5315 = vmatpush1.msra.mxu0 %v5220
    %5316 = vmatprep.subr.mxu0 0.0
    %5317 = vmatpush2.msra.mxu0 %v5251
    %5318 = vmatprep.subr.mxu0 0.0
    %5319 = vmatpush2.msra.mxu0 %v5250
    %5320 = vmatprep.subr.mxu0 0.0
    %5321 = vmatpush2.msra.mxu0 %v5249
    %5322 = vmatprep.subr.mxu0 0.0
    %5323 = vmatpush2.msra.mxu0 %v5248
    %5324 = vmatprep.subr.mxu0 0.0
    %5325 = vmatpush2.msra.mxu0 %v5247
    %5326 = vmatprep.subr.mxu0 0.0
    %5327 = vmatpush2.msra.mxu0 %v5246
    %5328 = vmatprep.subr.mxu0 0.0
    %5329 = vmatpush2.msra.mxu0 %v5245
    %5330 = vmatprep.subr.mxu0 0.0
    %5331 = vmatpush2.msra.mxu0 %v5244
    %5332 = vmatprep.subr.mxu0 0.0
    %5333 = vmatpush2.msra.mxu0 %v5243
    %5334 = vmatprep.subr.mxu0 0.0
    %5335 = vmatpush2.msra.mxu0 %v5242
    %5336 = vmatprep.subr.mxu0 0.0
    %5337 = vmatpush2.msra.mxu0 %v5241
    %5338 = vmatprep.subr.mxu0 0.0
    %5339 = vmatpush2.msra.mxu0 %v5240
    %5340 = vmatprep.subr.mxu0 0.0
    %5341 = vmatpush2.msra.mxu0 %v5239
    %5342 = vmatprep.subr.mxu0 0.0
    %5343 = vmatpush2.msra.mxu0 %v5238
    %5344 = vmatprep.subr.mxu0 0.0
    %5345 = vmatpush2.msra.mxu0 %v5237
    %5346 = vmatprep.subr.mxu0 0.0
    %5347 = vmatpush2.msra.mxu0 %v5236
    %5348 = vmatprep.mubr.f32.mxu0 %v196
    %5349 = vmatmul.mubr.f32.gmra.mxu0 %v195
    %v5350 = vpop.f32.mrf.mxu0
    %v5351 = vadd.f32 0.0, %v5350
    %v5352 = vpop.f32.mrf.mxu0
    %5353 = vdwg.mxu0
    %5354 = vmatprep.subr.mxu0 0.0
    %5355 = vmatpush1.msra.mxu0 %v5267
    %5356 = vmatprep.subr.mxu0 0.0
    %5357 = vmatpush1.msra.mxu0 %v5266
    %5358 = vmatprep.subr.mxu0 0.0
    %5359 = vmatpush1.msra.mxu0 %v5265
    %5360 = vmatprep.subr.mxu0 0.0
    %5361 = vmatpush1.msra.mxu0 %v5264
    %5362 = vmatprep.subr.mxu0 0.0
    %5363 = vmatpush1.msra.mxu0 %v5263
    %5364 = vmatprep.subr.mxu0 0.0
    %5365 = vmatpush1.msra.mxu0 %v5262
    %5366 = vmatprep.subr.mxu0 0.0
    %5367 = vmatpush1.msra.mxu0 %v5261
    %5368 = vmatprep.subr.mxu0 0.0
    %5369 = vmatpush1.msra.mxu0 %v5260
    %5370 = vmatprep.subr.mxu0 0.0
    %5371 = vmatpush1.msra.mxu0 %v5259
    %5372 = vmatprep.subr.mxu0 0.0
    %5373 = vmatpush1.msra.mxu0 %v5258
    %5374 = vmatprep.subr.mxu0 0.0
    %5375 = vmatpush1.msra.mxu0 %v5257
    %5376 = vmatprep.subr.mxu0 0.0
    %5377 = vmatpush1.msra.mxu0 %v5256
    %5378 = vmatprep.subr.mxu0 0.0
    %5379 = vmatpush1.msra.mxu0 %v5255
    %5380 = vmatprep.subr.mxu0 0.0
    %5381 = vmatpush1.msra.mxu0 %v5254
    %5382 = vmatprep.subr.mxu0 0.0
    %5383 = vmatpush1.msra.mxu0 %v5253
    %5384 = vmatprep.subr.mxu0 0.0
    %5385 = vmatpush1.msra.mxu0 %v5252
    %5386 = vmatprep.subr.mxu0 0.0
    %5387 = vmatpush2.msra.mxu0 %v5283
    %5388 = vmatprep.subr.mxu0 0.0
    %5389 = vmatpush2.msra.mxu0 %v5282
    %5390 = vmatprep.subr.mxu0 0.0
    %5391 = vmatpush2.msra.mxu0 %v5281
    %5392 = vmatprep.subr.mxu0 0.0
    %5393 = vmatpush2.msra.mxu0 %v5280
    %5394 = vmatprep.subr.mxu0 0.0
    %5395 = vmatpush2.msra.mxu0 %v5279
    %5396 = vmatprep.subr.mxu0 0.0
    %5397 = vmatpush2.msra.mxu0 %v5278
    %5398 = vmatprep.subr.mxu0 0.0
    %5399 = vmatpush2.msra.mxu0 %v5277
    %5400 = vmatprep.subr.mxu0 0.0
    %5401 = vmatpush2.msra.mxu0 %v5276
    %5402 = vmatprep.subr.mxu0 0.0
    %5403 = vmatpush2.msra.mxu0 %v5275
    %5404 = vmatprep.subr.mxu0 0.0
    %5405 = vmatpush2.msra.mxu0 %v5274
    %5406 = vmatprep.subr.mxu0 0.0
    %5407 = vmatpush2.msra.mxu0 %v5273
    %5408 = vmatprep.subr.mxu0 0.0
    %5409 = vmatpush2.msra.mxu0 %v5272
    %5410 = vmatprep.subr.mxu0 0.0
    %5411 = vmatpush2.msra.mxu0 %v5271
    %5412 = vmatprep.subr.mxu0 0.0
    %5413 = vmatpush2.msra.mxu0 %v5270
    %5414 = vmatprep.subr.mxu0 0.0
    %5415 = vmatpush2.msra.mxu0 %v5269
    %5416 = vmatprep.subr.mxu0 0.0
    %5417 = vmatpush2.msra.mxu0 %v5268
    %5418 = vmatprep.mubr.f32.mxu0 %v198
    %5419 = vmatmul.mubr.f32.gmra.mxu0 %v197
    %v5420 = vpop.f32.mrf.mxu0
    %v5421 = vadd.f32 %v5351, %v5420
    %v5422 = vpop.f32.mrf.mxu0
    %5423 = vdwg.mxu0
    %s5424 = scalar_lea.vmem %s4, 112
    %v5425 = vld [vmem:[%s5424] sm:$0xff]
    %v5427 = vsel %vm539, %v5425, 0
    %5429 = vmatprep.subr.mxu0 0.0
    %5430 = vmatpush1.msra.mxu0 0.0
    %5431 = vmatprep.subr.mxu0 0.0
    %5432 = vmatpush1.msra.mxu0 0.0
    %5433 = vmatprep.subr.mxu0 0.0
    %5434 = vmatpush1.msra.mxu0 0.0
    %5435 = vmatprep.subr.mxu0 0.0
    %5436 = vmatpush1.msra.mxu0 0.0
    %5437 = vmatprep.subr.mxu0 0.0
    %5438 = vmatpush1.msra.mxu0 0.0
    %5439 = vmatprep.subr.mxu0 0.0
    %5440 = vmatpush1.msra.mxu0 0.0
    %5441 = vmatprep.subr.mxu0 0.0
    %5442 = vmatpush1.msra.mxu0 0.0
    %5443 = vmatprep.subr.mxu0 0.0
    %5444 = vmatpush1.msra.mxu0 0.0
    %5445 = vmatprep.subr.mxu0 0.0
    %5446 = vmatpush1.msra.mxu0 0.0
    %5447 = vmatprep.subr.mxu0 0.0
    %5448 = vmatpush1.msra.mxu0 0.0
    %5449 = vmatprep.subr.mxu0 0.0
    %5450 = vmatpush1.msra.mxu0 0.0
    %5451 = vmatprep.subr.mxu0 0.0
    %5452 = vmatpush1.msra.mxu0 0.0
    %5453 = vmatprep.subr.mxu0 0.0
    %5454 = vmatpush1.msra.mxu0 0.0
    %5455 = vmatprep.subr.mxu0 0.0
    %5456 = vmatpush1.msra.mxu0 0.0
    %5457 = vmatprep.subr.mxu0 0.0
    %5458 = vmatpush1.msra.mxu0 0.0
    %5459 = vmatprep.subr.mxu0 0.0
    %5460 = vmatpush1.msra.mxu0 %v5421
    %5461 = vmatprep.subr.mxu0 0.0
    %5462 = vmatpush2.msra.mxu0 0.0
    %5463 = vmatprep.subr.mxu0 0.0
    %5464 = vmatpush2.msra.mxu0 0.0
    %5465 = vmatprep.subr.mxu0 0.0
    %5466 = vmatpush2.msra.mxu0 0.0
    %5467 = vmatprep.subr.mxu0 0.0
    %5468 = vmatpush2.msra.mxu0 0.0
    %5469 = vmatprep.subr.mxu0 0.0
    %5470 = vmatpush2.msra.mxu0 0.0
    %5471 = vmatprep.subr.mxu0 0.0
    %5472 = vmatpush2.msra.mxu0 0.0
    %5473 = vmatprep.subr.mxu0 0.0
    %5474 = vmatpush2.msra.mxu0 0.0
    %5475 = vmatprep.subr.mxu0 0.0
    %5476 = vmatpush2.msra.mxu0 0.0
    %5477 = vmatprep.subr.mxu0 0.0
    %5478 = vmatpush2.msra.mxu0 0.0
    %5479 = vmatprep.subr.mxu0 0.0
    %5480 = vmatpush2.msra.mxu0 0.0
    %5481 = vmatprep.subr.mxu0 0.0
    %5482 = vmatpush2.msra.mxu0 0.0
    %5483 = vmatprep.subr.mxu0 0.0
    %5484 = vmatpush2.msra.mxu0 0.0
    %5485 = vmatprep.subr.mxu0 0.0
    %5486 = vmatpush2.msra.mxu0 0.0
    %5487 = vmatprep.subr.mxu0 0.0
    %5488 = vmatpush2.msra.mxu0 0.0
    %5489 = vmatprep.subr.mxu0 0.0
    %5490 = vmatpush2.msra.mxu0 0.0
    %5491 = vmatprep.subr.mxu0 0.0
    %5492 = vmatpush2.msra.mxu0 0.0
    %5493 = vmatprep.mubr.f32.mxu0 0.0
    %5494 = vmatmul.mubr.f32.gmra.mxu0 %v5427
    %v5495 = vpop.f32.mrf.mxu0
    %v5496 = vadd.f32 0.0, %v5495
    %v5497 = vpop.f32.mrf.mxu0
    %5498 = vdwg.mxu0
    %v5499 = vadd.f32 %v5150, %v5496
    %v5500 = vld [vmem:[%s3 + $0xf] sm:$0x1]
    %v5501 = vlaneseq
    %v5502 = vshrl.u32 %v5501, 7
    %v5503 = vsub.s32 0, %v5502
    %v5504 = vrot.slane %v5500, %v5503
    %vm5505 = vcmp.eq.s32.totalorder %v200, %v5504
    %vm5506 = vcmp.eq.s32.totalorder %v201, %v5504
    %vm5507 = vcmp.eq.s32.totalorder %v202, %v5504
    %vm5508 = vcmp.eq.s32.totalorder %v203, %v5504
    %vm5509 = vcmp.eq.s32.totalorder %v204, %v5504
    %vm5510 = vcmp.eq.s32.totalorder %v205, %v5504
    %vm5511 = vcmp.eq.s32.totalorder %v206, %v5504
    %vm5512 = vcmp.eq.s32.totalorder %v207, %v5504
    %vm5513 = vcmp.eq.s32.totalorder %v208, %v5504
    %vm5514 = vcmp.eq.s32.totalorder %v209, %v5504
    %vm5515 = vcmp.eq.s32.totalorder %v210, %v5504
    %vm5516 = vcmp.eq.s32.totalorder %v211, %v5504
    %vm5517 = vcmp.eq.s32.totalorder %v212, %v5504
    %vm5518 = vcmp.eq.s32.totalorder %v213, %v5504
    %vm5519 = vcmp.eq.s32.totalorder %v214, %v5504
    %vm5520 = vcmp.eq.s32.totalorder %v215, %v5504
    %vm5521 = vcmp.eq.s32.totalorder %v216, %v5504
    %vm5522 = vcmp.eq.s32.totalorder %v217, %v5504
    %vm5523 = vcmp.eq.s32.totalorder %v218, %v5504
    %vm5524 = vcmp.eq.s32.totalorder %v219, %v5504
    %vm5525 = vcmp.eq.s32.totalorder %v220, %v5504
    %vm5526 = vcmp.eq.s32.totalorder %v221, %v5504
    %vm5527 = vcmp.eq.s32.totalorder %v222, %v5504
    %vm5528 = vcmp.eq.s32.totalorder %v223, %v5504
    %vm5529 = vcmp.eq.s32.totalorder %v224, %v5504
    %vm5530 = vcmp.eq.s32.totalorder %v225, %v5504
    %vm5531 = vcmp.eq.s32.totalorder %v226, %v5504
    %vm5532 = vcmp.eq.s32.totalorder %v227, %v5504
    %vm5533 = vcmp.eq.s32.totalorder %v228, %v5504
    %vm5534 = vcmp.eq.s32.totalorder %v229, %v5504
    %vm5535 = vcmp.eq.s32.totalorder %v230, %v5504
    %vm5536 = vcmp.eq.s32.totalorder %v231, %v5504
    %vm5537 = vcmp.eq.s32.totalorder %v232, %v5504
    %vm5538 = vcmp.eq.s32.totalorder %v233, %v5504
    %vm5539 = vcmp.eq.s32.totalorder %v234, %v5504
    %vm5540 = vcmp.eq.s32.totalorder %v235, %v5504
    %vm5541 = vcmp.eq.s32.totalorder %v236, %v5504
    %vm5542 = vcmp.eq.s32.totalorder %v237, %v5504
    %vm5543 = vcmp.eq.s32.totalorder %v238, %v5504
    %vm5544 = vcmp.eq.s32.totalorder %v239, %v5504
    %vm5545 = vcmp.eq.s32.totalorder %v240, %v5504
    %vm5546 = vcmp.eq.s32.totalorder %v241, %v5504
    %vm5547 = vcmp.eq.s32.totalorder %v242, %v5504
    %vm5548 = vcmp.eq.s32.totalorder %v243, %v5504
    %vm5549 = vcmp.eq.s32.totalorder %v244, %v5504
    %vm5550 = vcmp.eq.s32.totalorder %v245, %v5504
    %vm5551 = vcmp.eq.s32.totalorder %v246, %v5504
    %vm5552 = vcmp.eq.s32.totalorder %v247, %v5504
    %vm5553 = vcmp.eq.s32.totalorder %v248, %v5504
    %vm5554 = vcmp.eq.s32.totalorder %v249, %v5504
    %vm5555 = vcmp.eq.s32.totalorder %v250, %v5504
    %vm5556 = vcmp.eq.s32.totalorder %v251, %v5504
    %vm5557 = vcmp.eq.s32.totalorder %v252, %v5504
    %vm5558 = vcmp.eq.s32.totalorder %v253, %v5504
    %vm5559 = vcmp.eq.s32.totalorder %v254, %v5504
    %vm5560 = vcmp.eq.s32.totalorder %v255, %v5504
    %vm5561 = vcmp.eq.s32.totalorder %v256, %v5504
    %vm5562 = vcmp.eq.s32.totalorder %v257, %v5504
    %vm5563 = vcmp.eq.s32.totalorder %v258, %v5504
    %vm5564 = vcmp.eq.s32.totalorder %v259, %v5504
    %vm5565 = vcmp.eq.s32.totalorder %v260, %v5504
    %vm5566 = vcmp.eq.s32.totalorder %v261, %v5504
    %vm5567 = vcmp.eq.s32.totalorder %v262, %v5504
    %vm5568 = vcmp.eq.s32.totalorder %v263, %v5504
    %v5569 = vsel %vm5505, 1.0, 0.0
    %v5570 = vsel %vm5506, 1.0, 0.0
    %v5571 = vsel %vm5507, 1.0, 0.0
    %v5572 = vsel %vm5508, 1.0, 0.0
    %v5573 = vsel %vm5509, 1.0, 0.0
    %v5574 = vsel %vm5510, 1.0, 0.0
    %v5575 = vsel %vm5511, 1.0, 0.0
    %v5576 = vsel %vm5512, 1.0, 0.0
    %v5577 = vsel %vm5513, 1.0, 0.0
    %v5578 = vsel %vm5514, 1.0, 0.0
    %v5579 = vsel %vm5515, 1.0, 0.0
    %v5580 = vsel %vm5516, 1.0, 0.0
    %v5581 = vsel %vm5517, 1.0, 0.0
    %v5582 = vsel %vm5518, 1.0, 0.0
    %v5583 = vsel %vm5519, 1.0, 0.0
    %v5584 = vsel %vm5520, 1.0, 0.0
    %v5585 = vsel %vm5521, 1.0, 0.0
    %v5586 = vsel %vm5522, 1.0, 0.0
    %v5587 = vsel %vm5523, 1.0, 0.0
    %v5588 = vsel %vm5524, 1.0, 0.0
    %v5589 = vsel %vm5525, 1.0, 0.0
    %v5590 = vsel %vm5526, 1.0, 0.0
    %v5591 = vsel %vm5527, 1.0, 0.0
    %v5592 = vsel %vm5528, 1.0, 0.0
    %v5593 = vsel %vm5529, 1.0, 0.0
    %v5594 = vsel %vm5530, 1.0, 0.0
    %v5595 = vsel %vm5531, 1.0, 0.0
    %v5596 = vsel %vm5532, 1.0, 0.0
    %v5597 = vsel %vm5533, 1.0, 0.0
    %v5598 = vsel %vm5534, 1.0, 0.0
    %v5599 = vsel %vm5535, 1.0, 0.0
    %v5600 = vsel %vm5536, 1.0, 0.0
    %v5601 = vsel %vm5537, 1.0, 0.0
    %v5602 = vsel %vm5538, 1.0, 0.0
    %v5603 = vsel %vm5539, 1.0, 0.0
    %v5604 = vsel %vm5540, 1.0, 0.0
    %v5605 = vsel %vm5541, 1.0, 0.0
    %v5606 = vsel %vm5542, 1.0, 0.0
    %v5607 = vsel %vm5543, 1.0, 0.0
    %v5608 = vsel %vm5544, 1.0, 0.0
    %v5609 = vsel %vm5545, 1.0, 0.0
    %v5610 = vsel %vm5546, 1.0, 0.0
    %v5611 = vsel %vm5547, 1.0, 0.0
    %v5612 = vsel %vm5548, 1.0, 0.0
    %v5613 = vsel %vm5549, 1.0, 0.0
    %v5614 = vsel %vm5550, 1.0, 0.0
    %v5615 = vsel %vm5551, 1.0, 0.0
    %v5616 = vsel %vm5552, 1.0, 0.0
    %v5617 = vsel %vm5553, 1.0, 0.0
    %v5618 = vsel %vm5554, 1.0, 0.0
    %v5619 = vsel %vm5555, 1.0, 0.0
    %v5620 = vsel %vm5556, 1.0, 0.0
    %v5621 = vsel %vm5557, 1.0, 0.0
    %v5622 = vsel %vm5558, 1.0, 0.0
    %v5623 = vsel %vm5559, 1.0, 0.0
    %v5624 = vsel %vm5560, 1.0, 0.0
    %v5625 = vsel %vm5561, 1.0, 0.0
    %v5626 = vsel %vm5562, 1.0, 0.0
    %v5627 = vsel %vm5563, 1.0, 0.0
    %v5628 = vsel %vm5564, 1.0, 0.0
    %v5629 = vsel %vm5565, 1.0, 0.0
    %v5630 = vsel %vm5566, 1.0, 0.0
    %v5631 = vsel %vm5567, 1.0, 0.0
    %v5632 = vsel %vm5568, 1.0, 0.0
    %5633 = vmatprep.subr.mxu0 0.0
    %5634 = vmatpush1.msra.mxu0 %v5584
    %5635 = vmatprep.subr.mxu0 0.0
    %5636 = vmatpush1.msra.mxu0 %v5583
    %5637 = vmatprep.subr.mxu0 0.0
    %5638 = vmatpush1.msra.mxu0 %v5582
    %5639 = vmatprep.subr.mxu0 0.0
    %5640 = vmatpush1.msra.mxu0 %v5581
    %5641 = vmatprep.subr.mxu0 0.0
    %5642 = vmatpush1.msra.mxu0 %v5580
    %5643 = vmatprep.subr.mxu0 0.0
    %5644 = vmatpush1.msra.mxu0 %v5579
    %5645 = vmatprep.subr.mxu0 0.0
    %5646 = vmatpush1.msra.mxu0 %v5578
    %5647 = vmatprep.subr.mxu0 0.0
    %5648 = vmatpush1.msra.mxu0 %v5577
    %5649 = vmatprep.subr.mxu0 0.0
    %5650 = vmatpush1.msra.mxu0 %v5576
    %5651 = vmatprep.subr.mxu0 0.0
    %5652 = vmatpush1.msra.mxu0 %v5575
    %5653 = vmatprep.subr.mxu0 0.0
    %5654 = vmatpush1.msra.mxu0 %v5574
    %5655 = vmatprep.subr.mxu0 0.0
    %5656 = vmatpush1.msra.mxu0 %v5573
    %5657 = vmatprep.subr.mxu0 0.0
    %5658 = vmatpush1.msra.mxu0 %v5572
    %5659 = vmatprep.subr.mxu0 0.0
    %5660 = vmatpush1.msra.mxu0 %v5571
    %5661 = vmatprep.subr.mxu0 0.0
    %5662 = vmatpush1.msra.mxu0 %v5570
    %5663 = vmatprep.subr.mxu0 0.0
    %5664 = vmatpush1.msra.mxu0 %v5569
    %5665 = vmatprep.subr.mxu0 0.0
    %5666 = vmatpush2.msra.mxu0 %v5600
    %5667 = vmatprep.subr.mxu0 0.0
    %5668 = vmatpush2.msra.mxu0 %v5599
    %5669 = vmatprep.subr.mxu0 0.0
    %5670 = vmatpush2.msra.mxu0 %v5598
    %5671 = vmatprep.subr.mxu0 0.0
    %5672 = vmatpush2.msra.mxu0 %v5597
    %5673 = vmatprep.subr.mxu0 0.0
    %5674 = vmatpush2.msra.mxu0 %v5596
    %5675 = vmatprep.subr.mxu0 0.0
    %5676 = vmatpush2.msra.mxu0 %v5595
    %5677 = vmatprep.subr.mxu0 0.0
    %5678 = vmatpush2.msra.mxu0 %v5594
    %5679 = vmatprep.subr.mxu0 0.0
    %5680 = vmatpush2.msra.mxu0 %v5593
    %5681 = vmatprep.subr.mxu0 0.0
    %5682 = vmatpush2.msra.mxu0 %v5592
    %5683 = vmatprep.subr.mxu0 0.0
    %5684 = vmatpush2.msra.mxu0 %v5591
    %5685 = vmatprep.subr.mxu0 0.0
    %5686 = vmatpush2.msra.mxu0 %v5590
    %5687 = vmatprep.subr.mxu0 0.0
    %5688 = vmatpush2.msra.mxu0 %v5589
    %5689 = vmatprep.subr.mxu0 0.0
    %5690 = vmatpush2.msra.mxu0 %v5588
    %5691 = vmatprep.subr.mxu0 0.0
    %5692 = vmatpush2.msra.mxu0 %v5587
    %5693 = vmatprep.subr.mxu0 0.0
    %5694 = vmatpush2.msra.mxu0 %v5586
    %5695 = vmatprep.subr.mxu0 0.0
    %5696 = vmatpush2.msra.mxu0 %v5585
    %5697 = vmatprep.mubr.f32.mxu0 %v196
    %5698 = vmatmul.mubr.f32.gmra.mxu0 %v195
    %v5699 = vpop.f32.mrf.mxu0
    %v5700 = vadd.f32 0.0, %v5699
    %v5701 = vpop.f32.mrf.mxu0
    %5702 = vdwg.mxu0
    %5703 = vmatprep.subr.mxu0 0.0
    %5704 = vmatpush1.msra.mxu0 %v5616
    %5705 = vmatprep.subr.mxu0 0.0
    %5706 = vmatpush1.msra.mxu0 %v5615
    %5707 = vmatprep.subr.mxu0 0.0
    %5708 = vmatpush1.msra.mxu0 %v5614
    %5709 = vmatprep.subr.mxu0 0.0
    %5710 = vmatpush1.msra.mxu0 %v5613
    %5711 = vmatprep.subr.mxu0 0.0
    %5712 = vmatpush1.msra.mxu0 %v5612
    %5713 = vmatprep.subr.mxu0 0.0
    %5714 = vmatpush1.msra.mxu0 %v5611
    %5715 = vmatprep.subr.mxu0 0.0
    %5716 = vmatpush1.msra.mxu0 %v5610
    %5717 = vmatprep.subr.mxu0 0.0
    %5718 = vmatpush1.msra.mxu0 %v5609
    %5719 = vmatprep.subr.mxu0 0.0
    %5720 = vmatpush1.msra.mxu0 %v5608
    %5721 = vmatprep.subr.mxu0 0.0
    %5722 = vmatpush1.msra.mxu0 %v5607
    %5723 = vmatprep.subr.mxu0 0.0
    %5724 = vmatpush1.msra.mxu0 %v5606
    %5725 = vmatprep.subr.mxu0 0.0
    %5726 = vmatpush1.msra.mxu0 %v5605
    %5727 = vmatprep.subr.mxu0 0.0
    %5728 = vmatpush1.msra.mxu0 %v5604
    %5729 = vmatprep.subr.mxu0 0.0
    %5730 = vmatpush1.msra.mxu0 %v5603
    %5731 = vmatprep.subr.mxu0 0.0
    %5732 = vmatpush1.msra.mxu0 %v5602
    %5733 = vmatprep.subr.mxu0 0.0
    %5734 = vmatpush1.msra.mxu0 %v5601
    %5735 = vmatprep.subr.mxu0 0.0
    %5736 = vmatpush2.msra.mxu0 %v5632
    %5737 = vmatprep.subr.mxu0 0.0
    %5738 = vmatpush2.msra.mxu0 %v5631
    %5739 = vmatprep.subr.mxu0 0.0
    %5740 = vmatpush2.msra.mxu0 %v5630
    %5741 = vmatprep.subr.mxu0 0.0
    %5742 = vmatpush2.msra.mxu0 %v5629
    %5743 = vmatprep.subr.mxu0 0.0
    %5744 = vmatpush2.msra.mxu0 %v5628
    %5745 = vmatprep.subr.mxu0 0.0
    %5746 = vmatpush2.msra.mxu0 %v5627
    %5747 = vmatprep.subr.mxu0 0.0
    %5748 = vmatpush2.msra.mxu0 %v5626
    %5749 = vmatprep.subr.mxu0 0.0
    %5750 = vmatpush2.msra.mxu0 %v5625
    %5751 = vmatprep.subr.mxu0 0.0
    %5752 = vmatpush2.msra.mxu0 %v5624
    %5753 = vmatprep.subr.mxu0 0.0
    %5754 = vmatpush2.msra.mxu0 %v5623
    %5755 = vmatprep.subr.mxu0 0.0
    %5756 = vmatpush2.msra.mxu0 %v5622
    %5757 = vmatprep.subr.mxu0 0.0
    %5758 = vmatpush2.msra.mxu0 %v5621
    %5759 = vmatprep.subr.mxu0 0.0
    %5760 = vmatpush2.msra.mxu0 %v5620
    %5761 = vmatprep.subr.mxu0 0.0
    %5762 = vmatpush2.msra.mxu0 %v5619
    %5763 = vmatprep.subr.mxu0 0.0
    %5764 = vmatpush2.msra.mxu0 %v5618
    %5765 = vmatprep.subr.mxu0 0.0
    %5766 = vmatpush2.msra.mxu0 %v5617
    %5767 = vmatprep.mubr.f32.mxu0 %v198
    %5768 = vmatmul.mubr.f32.gmra.mxu0 %v197
    %v5769 = vpop.f32.mrf.mxu0
    %v5770 = vadd.f32 %v5700, %v5769
    %v5771 = vpop.f32.mrf.mxu0
    %5772 = vdwg.mxu0
    %s5773 = scalar_lea.vmem %s4, 120
    %v5774 = vld [vmem:[%s5773] sm:$0xff]
    %v5776 = vsel %vm539, %v5774, 0
    %5778 = vmatprep.subr.mxu0 0.0
    %5779 = vmatpush1.msra.mxu0 0.0
    %5780 = vmatprep.subr.mxu0 0.0
    %5781 = vmatpush1.msra.mxu0 0.0
    %5782 = vmatprep.subr.mxu0 0.0
    %5783 = vmatpush1.msra.mxu0 0.0
    %5784 = vmatprep.subr.mxu0 0.0
    %5785 = vmatpush1.msra.mxu0 0.0
    %5786 = vmatprep.subr.mxu0 0.0
    %5787 = vmatpush1.msra.mxu0 0.0
    %5788 = vmatprep.subr.mxu0 0.0
    %5789 = vmatpush1.msra.mxu0 0.0
    %5790 = vmatprep.subr.mxu0 0.0
    %5791 = vmatpush1.msra.mxu0 0.0
    %5792 = vmatprep.subr.mxu0 0.0
    %5793 = vmatpush1.msra.mxu0 0.0
    %5794 = vmatprep.subr.mxu0 0.0
    %5795 = vmatpush1.msra.mxu0 0.0
    %5796 = vmatprep.subr.mxu0 0.0
    %5797 = vmatpush1.msra.mxu0 0.0
    %5798 = vmatprep.subr.mxu0 0.0
    %5799 = vmatpush1.msra.mxu0 0.0
    %5800 = vmatprep.subr.mxu0 0.0
    %5801 = vmatpush1.msra.mxu0 0.0
    %5802 = vmatprep.subr.mxu0 0.0
    %5803 = vmatpush1.msra.mxu0 0.0
    %5804 = vmatprep.subr.mxu0 0.0
    %5805 = vmatpush1.msra.mxu0 0.0
    %5806 = vmatprep.subr.mxu0 0.0
    %5807 = vmatpush1.msra.mxu0 0.0
    %5808 = vmatprep.subr.mxu0 0.0
    %5809 = vmatpush1.msra.mxu0 %v5770
    %5810 = vmatprep.subr.mxu0 0.0
    %5811 = vmatpush2.msra.mxu0 0.0
    %5812 = vmatprep.subr.mxu0 0.0
    %5813 = vmatpush2.msra.mxu0 0.0
    %5814 = vmatprep.subr.mxu0 0.0
    %5815 = vmatpush2.msra.mxu0 0.0
    %5816 = vmatprep.subr.mxu0 0.0
    %5817 = vmatpush2.msra.mxu0 0.0
    %5818 = vmatprep.subr.mxu0 0.0
    %5819 = vmatpush2.msra.mxu0 0.0
    %5820 = vmatprep.subr.mxu0 0.0
    %5821 = vmatpush2.msra.mxu0 0.0
    %5822 = vmatprep.subr.mxu0 0.0
    %5823 = vmatpush2.msra.mxu0 0.0
    %5824 = vmatprep.subr.mxu0 0.0
    %5825 = vmatpush2.msra.mxu0 0.0
    %5826 = vmatprep.subr.mxu0 0.0
    %5827 = vmatpush2.msra.mxu0 0.0
    %5828 = vmatprep.subr.mxu0 0.0
    %5829 = vmatpush2.msra.mxu0 0.0
    %5830 = vmatprep.subr.mxu0 0.0
    %5831 = vmatpush2.msra.mxu0 0.0
    %5832 = vmatprep.subr.mxu0 0.0
    %5833 = vmatpush2.msra.mxu0 0.0
    %5834 = vmatprep.subr.mxu0 0.0
    %5835 = vmatpush2.msra.mxu0 0.0
    %5836 = vmatprep.subr.mxu0 0.0
    %5837 = vmatpush2.msra.mxu0 0.0
    %5838 = vmatprep.subr.mxu0 0.0
    %5839 = vmatpush2.msra.mxu0 0.0
    %5840 = vmatprep.subr.mxu0 0.0
    %5841 = vmatpush2.msra.mxu0 0.0
    %5842 = vmatprep.mubr.f32.mxu0 0.0
    %5843 = vmatmul.mubr.f32.gmra.mxu0 %v5776
    %v5844 = vpop.f32.mrf.mxu0
    %v5845 = vadd.f32 0.0, %v5844
    %v5846 = vpop.f32.mrf.mxu0
    %5847 = vdwg.mxu0
    %v5848 = vadd.f32 %v5499, %v5845
    %v5849 = vmax.f32 %v5848, 0.0
    %v5850 = vld [vmem:[%s7] sm:$0x1]
    %v5851 = vld [vmem:[%s6] sm:$0xff]
    %v5852 = vld [vmem:[%s6 + $0x8] sm:$0xff]
    %v5853 = vld [vmem:[%s6 + $0x10] sm:$0xff]
    %v5854 = vld [vmem:[%s6 + $0x18] sm:$0xff]
    %v5855 = vld [vmem:[%s6 + $0x20] sm:$0xff]
    %v5856 = vld [vmem:[%s6 + $0x28] sm:$0xff]
    %v5857 = vld [vmem:[%s6 + $0x30] sm:$0xff]
    %v5858 = vld [vmem:[%s6 + $0x38] sm:$0xff]
    %vm5859 = vcmask 523264
    %v5861 = vsel %vm5859, %v5849, 0
    %5863 = vmatprep.subr.mxu0 0.0
    %5864 = vmatpush1.msra.mxu0 0.0
    %5865 = vmatprep.subr.mxu0 0.0
    %5866 = vmatpush1.msra.mxu0 0.0
    %5867 = vmatprep.subr.mxu0 0.0
    %5868 = vmatpush1.msra.mxu0 0.0
    %5869 = vmatprep.subr.mxu0 0.0
    %5870 = vmatpush1.msra.mxu0 0.0
    %5871 = vmatprep.subr.mxu0 0.0
    %5872 = vmatpush1.msra.mxu0 0.0
    %5873 = vmatprep.subr.mxu0 0.0
    %5874 = vmatpush1.msra.mxu0 0.0
    %5875 = vmatprep.subr.mxu0 0.0
    %5876 = vmatpush1.msra.mxu0 0.0
    %5877 = vmatprep.subr.mxu0 0.0
    %5878 = vmatpush1.msra.mxu0 0.0
    %5879 = vmatprep.subr.mxu0 0.0
    %5880 = vmatpush1.msra.mxu0 %v5858
    %5881 = vmatprep.subr.mxu0 0.0
    %5882 = vmatpush1.msra.mxu0 %v5857
    %5883 = vmatprep.subr.mxu0 0.0
    %5884 = vmatpush1.msra.mxu0 %v5856
    %5885 = vmatprep.subr.mxu0 0.0
    %5886 = vmatpush1.msra.mxu0 %v5855
    %5887 = vmatprep.subr.mxu0 0.0
    %5888 = vmatpush1.msra.mxu0 %v5854
    %5889 = vmatprep.subr.mxu0 0.0
    %5890 = vmatpush1.msra.mxu0 %v5853
    %5891 = vmatprep.subr.mxu0 0.0
    %5892 = vmatpush1.msra.mxu0 %v5852
    %5893 = vmatprep.subr.mxu0 0.0
    %5894 = vmatpush1.msra.mxu0 %v5851
    %5895 = vmatprep.subr.mxu0 0.0
    %5896 = vmatpush2.msra.mxu0 0.0
    %5897 = vmatprep.subr.mxu0 0.0
    %5898 = vmatpush2.msra.mxu0 0.0
    %5899 = vmatprep.subr.mxu0 0.0
    %5900 = vmatpush2.msra.mxu0 0.0
    %5901 = vmatprep.subr.mxu0 0.0
    %5902 = vmatpush2.msra.mxu0 0.0
    %5903 = vmatprep.subr.mxu0 0.0
    %5904 = vmatpush2.msra.mxu0 0.0
    %5905 = vmatprep.subr.mxu0 0.0
    %5906 = vmatpush2.msra.mxu0 0.0
    %5907 = vmatprep.subr.mxu0 0.0
    %5908 = vmatpush2.msra.mxu0 0.0
    %5909 = vmatprep.subr.mxu0 0.0
    %5910 = vmatpush2.msra.mxu0 0.0
    %5911 = vmatprep.subr.mxu0 0.0
    %5912 = vmatpush2.msra.mxu0 0.0
    %5913 = vmatprep.subr.mxu0 0.0
    %5914 = vmatpush2.msra.mxu0 0.0
    %5915 = vmatprep.subr.mxu0 0.0
    %5916 = vmatpush2.msra.mxu0 0.0
    %5917 = vmatprep.subr.mxu0 0.0
    %5918 = vmatpush2.msra.mxu0 0.0
    %5919 = vmatprep.subr.mxu0 0.0
    %5920 = vmatpush2.msra.mxu0 0.0
    %5921 = vmatprep.subr.mxu0 0.0
    %5922 = vmatpush2.msra.mxu0 0.0
    %5923 = vmatprep.subr.mxu0 0.0
    %5924 = vmatpush2.msra.mxu0 0.0
    %5925 = vmatprep.subr.mxu0 0.0
    %5926 = vmatpush2.msra.mxu0 0.0
    %5927 = vmatprep.mubr.f32.mxu0 0.0
    %5928 = vmatmul.mubr.f32.gmra.mxu0 %v5861
    %v5929 = vpop.f32.mrf.mxu0
    %v5930 = vadd.f32 0.0, %v5929
    %v5931 = vpop.f32.mrf.mxu0
    %5932 = vdwg.mxu0
    %v5933 = vadd.f32 %v5850, %v5930
    %s5934 = scalar_lea.vmem %s6, 64
    %v5935 = vld [vmem:[%s5934] sm:$0xff]
    %v5936 = vld [vmem:[%s5934 + $0x8] sm:$0xff]
    %v5937 = vld [vmem:[%s5934 + $0x10] sm:$0xff]
    %v5938 = vld [vmem:[%s5934 + $0x18] sm:$0xff]
    %v5939 = vld [vmem:[%s5934 + $0x20] sm:$0xff]
    %v5940 = vld [vmem:[%s5934 + $0x28] sm:$0xff]
    %v5941 = vld [vmem:[%s5934 + $0x30] sm:$0xff]
    %v5942 = vld [vmem:[%s5934 + $0x38] sm:$0xff]
    %v5943 = vrot.slane %v5849, 1
    %v5944 = vsel %vm5859, %v5943, 0
    %5946 = vmatprep.subr.mxu0 0.0
    %5947 = vmatpush1.msra.mxu0 0.0
    %5948 = vmatprep.subr.mxu0 0.0
    %5949 = vmatpush1.msra.mxu0 0.0
    %5950 = vmatprep.subr.mxu0 0.0
    %5951 = vmatpush1.msra.mxu0 0.0
    %5952 = vmatprep.subr.mxu0 0.0
    %5953 = vmatpush1.msra.mxu0 0.0
    %5954 = vmatprep.subr.mxu0 0.0
    %5955 = vmatpush1.msra.mxu0 0.0
    %5956 = vmatprep.subr.mxu0 0.0
    %5957 = vmatpush1.msra.mxu0 0.0
    %5958 = vmatprep.subr.mxu0 0.0
    %5959 = vmatpush1.msra.mxu0 0.0
    %5960 = vmatprep.subr.mxu0 0.0
    %5961 = vmatpush1.msra.mxu0 0.0
    %5962 = vmatprep.subr.mxu0 0.0
    %5963 = vmatpush1.msra.mxu0 %v5942
    %5964 = vmatprep.subr.mxu0 0.0
    %5965 = vmatpush1.msra.mxu0 %v5941
    %5966 = vmatprep.subr.mxu0 0.0
    %5967 = vmatpush1.msra.mxu0 %v5940
    %5968 = vmatprep.subr.mxu0 0.0
    %5969 = vmatpush1.msra.mxu0 %v5939
    %5970 = vmatprep.subr.mxu0 0.0
    %5971 = vmatpush1.msra.mxu0 %v5938
    %5972 = vmatprep.subr.mxu0 0.0
    %5973 = vmatpush1.msra.mxu0 %v5937
    %5974 = vmatprep.subr.mxu0 0.0
    %5975 = vmatpush1.msra.mxu0 %v5936
    %5976 = vmatprep.subr.mxu0 0.0
    %5977 = vmatpush1.msra.mxu0 %v5935
    %5978 = vmatprep.subr.mxu0 0.0
    %5979 = vmatpush2.msra.mxu0 0.0
    %5980 = vmatprep.subr.mxu0 0.0
    %5981 = vmatpush2.msra.mxu0 0.0
    %5982 = vmatprep.subr.mxu0 0.0
    %5983 = vmatpush2.msra.mxu0 0.0
    %5984 = vmatprep.subr.mxu0 0.0
    %5985 = vmatpush2.msra.mxu0 0.0
    %5986 = vmatprep.subr.mxu0 0.0
    %5987 = vmatpush2.msra.mxu0 0.0
    %5988 = vmatprep.subr.mxu0 0.0
    %5989 = vmatpush2.msra.mxu0 0.0
    %5990 = vmatprep.subr.mxu0 0.0
    %5991 = vmatpush2.msra.mxu0 0.0
    %5992 = vmatprep.subr.mxu0 0.0
    %5993 = vmatpush2.msra.mxu0 0.0
    %5994 = vmatprep.subr.mxu0 0.0
    %5995 = vmatpush2.msra.mxu0 0.0
    %5996 = vmatprep.subr.mxu0 0.0
    %5997 = vmatpush2.msra.mxu0 0.0
    %5998 = vmatprep.subr.mxu0 0.0
    %5999 = vmatpush2.msra.mxu0 0.0
    %6000 = vmatprep.subr.mxu0 0.0
    %6001 = vmatpush2.msra.mxu0 0.0
    %6002 = vmatprep.subr.mxu0 0.0
    %6003 = vmatpush2.msra.mxu0 0.0
    %6004 = vmatprep.subr.mxu0 0.0
    %6005 = vmatpush2.msra.mxu0 0.0
    %6006 = vmatprep.subr.mxu0 0.0
    %6007 = vmatpush2.msra.mxu0 0.0
    %6008 = vmatprep.subr.mxu0 0.0
    %6009 = vmatpush2.msra.mxu0 0.0
    %6010 = vmatprep.mubr.f32.mxu0 0.0
    %6011 = vmatmul.mubr.f32.gmra.mxu0 %v5944
    %v6012 = vpop.f32.mrf.mxu0
    %v6013 = vadd.f32 0.0, %v6012
    %v6014 = vpop.f32.mrf.mxu0
    %6015 = vdwg.mxu0
    %v6016 = vadd.f32 %v5933, %v6013
    %s6017 = scalar_lea.vmem %s6, 128
    %v6018 = vld [vmem:[%s6017] sm:$0xff]
    %v6019 = vld [vmem:[%s6017 + $0x8] sm:$0xff]
    %v6020 = vld [vmem:[%s6017 + $0x10] sm:$0xff]
    %v6021 = vld [vmem:[%s6017 + $0x18] sm:$0xff]
    %v6022 = vld [vmem:[%s6017 + $0x20] sm:$0xff]
    %v6023 = vld [vmem:[%s6017 + $0x28] sm:$0xff]
    %v6024 = vld [vmem:[%s6017 + $0x30] sm:$0xff]
    %v6025 = vld [vmem:[%s6017 + $0x38] sm:$0xff]
    %v6026 = vrot.slane %v5849, 2
    %v6027 = vsel %vm5859, %v6026, 0
    %6029 = vmatprep.subr.mxu0 0.0
    %6030 = vmatpush1.msra.mxu0 0.0
    %6031 = vmatprep.subr.mxu0 0.0
    %6032 = vmatpush1.msra.mxu0 0.0
    %6033 = vmatprep.subr.mxu0 0.0
    %6034 = vmatpush1.msra.mxu0 0.0
    %6035 = vmatprep.subr.mxu0 0.0
    %6036 = vmatpush1.msra.mxu0 0.0
    %6037 = vmatprep.subr.mxu0 0.0
    %6038 = vmatpush1.msra.mxu0 0.0
    %6039 = vmatprep.subr.mxu0 0.0
    %6040 = vmatpush1.msra.mxu0 0.0
    %6041 = vmatprep.subr.mxu0 0.0
    %6042 = vmatpush1.msra.mxu0 0.0
    %6043 = vmatprep.subr.mxu0 0.0
    %6044 = vmatpush1.msra.mxu0 0.0
    %6045 = vmatprep.subr.mxu0 0.0
    %6046 = vmatpush1.msra.mxu0 %v6025
    %6047 = vmatprep.subr.mxu0 0.0
    %6048 = vmatpush1.msra.mxu0 %v6024
    %6049 = vmatprep.subr.mxu0 0.0
    %6050 = vmatpush1.msra.mxu0 %v6023
    %6051 = vmatprep.subr.mxu0 0.0
    %6052 = vmatpush1.msra.mxu0 %v6022
    %6053 = vmatprep.subr.mxu0 0.0
    %6054 = vmatpush1.msra.mxu0 %v6021
    %6055 = vmatprep.subr.mxu0 0.0
    %6056 = vmatpush1.msra.mxu0 %v6020
    %6057 = vmatprep.subr.mxu0 0.0
    %6058 = vmatpush1.msra.mxu0 %v6019
    %6059 = vmatprep.subr.mxu0 0.0
    %6060 = vmatpush1.msra.mxu0 %v6018
    %6061 = vmatprep.subr.mxu0 0.0
    %6062 = vmatpush2.msra.mxu0 0.0
    %6063 = vmatprep.subr.mxu0 0.0
    %6064 = vmatpush2.msra.mxu0 0.0
    %6065 = vmatprep.subr.mxu0 0.0
    %6066 = vmatpush2.msra.mxu0 0.0
    %6067 = vmatprep.subr.mxu0 0.0
    %6068 = vmatpush2.msra.mxu0 0.0
    %6069 = vmatprep.subr.mxu0 0.0
    %6070 = vmatpush2.msra.mxu0 0.0
    %6071 = vmatprep.subr.mxu0 0.0
    %6072 = vmatpush2.msra.mxu0 0.0
    %6073 = vmatprep.subr.mxu0 0.0
    %6074 = vmatpush2.msra.mxu0 0.0
    %6075 = vmatprep.subr.mxu0 0.0
    %6076 = vmatpush2.msra.mxu0 0.0
    %6077 = vmatprep.subr.mxu0 0.0
    %6078 = vmatpush2.msra.mxu0 0.0
    %6079 = vmatprep.subr.mxu0 0.0
    %6080 = vmatpush2.msra.mxu0 0.0
    %6081 = vmatprep.subr.mxu0 0.0
    %6082 = vmatpush2.msra.mxu0 0.0
    %6083 = vmatprep.subr.mxu0 0.0
    %6084 = vmatpush2.msra.mxu0 0.0
    %6085 = vmatprep.subr.mxu0 0.0
    %6086 = vmatpush2.msra.mxu0 0.0
    %6087 = vmatprep.subr.mxu0 0.0
    %6088 = vmatpush2.msra.mxu0 0.0
    %6089 = vmatprep.subr.mxu0 0.0
    %6090 = vmatpush2.msra.mxu0 0.0
    %6091 = vmatprep.subr.mxu0 0.0
    %6092 = vmatpush2.msra.mxu0 0.0
    %6093 = vmatprep.mubr.f32.mxu0 0.0
    %6094 = vmatmul.mubr.f32.gmra.mxu0 %v6027
    %v6095 = vpop.f32.mrf.mxu0
    %v6096 = vadd.f32 0.0, %v6095
    %v6097 = vpop.f32.mrf.mxu0
    %6098 = vdwg.mxu0
    %v6099 = vadd.f32 %v6016, %v6096
    %s6100 = scalar_lea.vmem %s6, 192
    %v6101 = vld [vmem:[%s6100] sm:$0xff]
    %v6102 = vld [vmem:[%s6100 + $0x8] sm:$0xff]
    %v6103 = vld [vmem:[%s6100 + $0x10] sm:$0xff]
    %v6104 = vld [vmem:[%s6100 + $0x18] sm:$0xff]
    %v6105 = vld [vmem:[%s6100 + $0x20] sm:$0xff]
    %v6106 = vld [vmem:[%s6100 + $0x28] sm:$0xff]
    %v6107 = vld [vmem:[%s6100 + $0x30] sm:$0xff]
    %v6108 = vld [vmem:[%s6100 + $0x38] sm:$0xff]
    %v6109 = vrot.slane %v5849, 3
    %v6110 = vsel %vm5859, %v6109, 0
    %6112 = vmatprep.subr.mxu0 0.0
    %6113 = vmatpush1.msra.mxu0 0.0
    %6114 = vmatprep.subr.mxu0 0.0
    %6115 = vmatpush1.msra.mxu0 0.0
    %6116 = vmatprep.subr.mxu0 0.0
    %6117 = vmatpush1.msra.mxu0 0.0
    %6118 = vmatprep.subr.mxu0 0.0
    %6119 = vmatpush1.msra.mxu0 0.0
    %6120 = vmatprep.subr.mxu0 0.0
    %6121 = vmatpush1.msra.mxu0 0.0
    %6122 = vmatprep.subr.mxu0 0.0
    %6123 = vmatpush1.msra.mxu0 0.0
    %6124 = vmatprep.subr.mxu0 0.0
    %6125 = vmatpush1.msra.mxu0 0.0
    %6126 = vmatprep.subr.mxu0 0.0
    %6127 = vmatpush1.msra.mxu0 0.0
    %6128 = vmatprep.subr.mxu0 0.0
    %6129 = vmatpush1.msra.mxu0 %v6108
    %6130 = vmatprep.subr.mxu0 0.0
    %6131 = vmatpush1.msra.mxu0 %v6107
    %6132 = vmatprep.subr.mxu0 0.0
    %6133 = vmatpush1.msra.mxu0 %v6106
    %6134 = vmatprep.subr.mxu0 0.0
    %6135 = vmatpush1.msra.mxu0 %v6105
    %6136 = vmatprep.subr.mxu0 0.0
    %6137 = vmatpush1.msra.mxu0 %v6104
    %6138 = vmatprep.subr.mxu0 0.0
    %6139 = vmatpush1.msra.mxu0 %v6103
    %6140 = vmatprep.subr.mxu0 0.0
    %6141 = vmatpush1.msra.mxu0 %v6102
    %6142 = vmatprep.subr.mxu0 0.0
    %6143 = vmatpush1.msra.mxu0 %v6101
    %6144 = vmatprep.subr.mxu0 0.0
    %6145 = vmatpush2.msra.mxu0 0.0
    %6146 = vmatprep.subr.mxu0 0.0
    %6147 = vmatpush2.msra.mxu0 0.0
    %6148 = vmatprep.subr.mxu0 0.0
    %6149 = vmatpush2.msra.mxu0 0.0
    %6150 = vmatprep.subr.mxu0 0.0
    %6151 = vmatpush2.msra.mxu0 0.0
    %6152 = vmatprep.subr.mxu0 0.0
    %6153 = vmatpush2.msra.mxu0 0.0
    %6154 = vmatprep.subr.mxu0 0.0
    %6155 = vmatpush2.msra.mxu0 0.0
    %6156 = vmatprep.subr.mxu0 0.0
    %6157 = vmatpush2.msra.mxu0 0.0
    %6158 = vmatprep.subr.mxu0 0.0
    %6159 = vmatpush2.msra.mxu0 0.0
    %6160 = vmatprep.subr.mxu0 0.0
    %6161 = vmatpush2.msra.mxu0 0.0
    %6162 = vmatprep.subr.mxu0 0.0
    %6163 = vmatpush2.msra.mxu0 0.0
    %6164 = vmatprep.subr.mxu0 0.0
    %6165 = vmatpush2.msra.mxu0 0.0
    %6166 = vmatprep.subr.mxu0 0.0
    %6167 = vmatpush2.msra.mxu0 0.0
    %6168 = vmatprep.subr.mxu0 0.0
    %6169 = vmatpush2.msra.mxu0 0.0
    %6170 = vmatprep.subr.mxu0 0.0
    %6171 = vmatpush2.msra.mxu0 0.0
    %6172 = vmatprep.subr.mxu0 0.0
    %6173 = vmatpush2.msra.mxu0 0.0
    %6174 = vmatprep.subr.mxu0 0.0
    %6175 = vmatpush2.msra.mxu0 0.0
    %6176 = vmatprep.mubr.f32.mxu0 0.0
    %6177 = vmatmul.mubr.f32.gmra.mxu0 %v6110
    %v6178 = vpop.f32.mrf.mxu0
    %v6179 = vadd.f32 0.0, %v6178
    %v6180 = vpop.f32.mrf.mxu0
    %6181 = vdwg.mxu0
    %v6182 = vadd.f32 %v6099, %v6179
    %s6183 = scalar_lea.vmem %s6, 256
    %v6184 = vld [vmem:[%s6183] sm:$0xff]
    %v6185 = vld [vmem:[%s6183 + $0x8] sm:$0xff]
    %v6186 = vld [vmem:[%s6183 + $0x10] sm:$0xff]
    %v6187 = vld [vmem:[%s6183 + $0x18] sm:$0xff]
    %v6188 = vld [vmem:[%s6183 + $0x20] sm:$0xff]
    %v6189 = vld [vmem:[%s6183 + $0x28] sm:$0xff]
    %v6190 = vld [vmem:[%s6183 + $0x30] sm:$0xff]
    %v6191 = vld [vmem:[%s6183 + $0x38] sm:$0xff]
    %v6192 = vrot.slane %v5849, 4
    %v6193 = vsel %vm5859, %v6192, 0
    %6195 = vmatprep.subr.mxu0 0.0
    %6196 = vmatpush1.msra.mxu0 0.0
    %6197 = vmatprep.subr.mxu0 0.0
    %6198 = vmatpush1.msra.mxu0 0.0
    %6199 = vmatprep.subr.mxu0 0.0
    %6200 = vmatpush1.msra.mxu0 0.0
    %6201 = vmatprep.subr.mxu0 0.0
    %6202 = vmatpush1.msra.mxu0 0.0
    %6203 = vmatprep.subr.mxu0 0.0
    %6204 = vmatpush1.msra.mxu0 0.0
    %6205 = vmatprep.subr.mxu0 0.0
    %6206 = vmatpush1.msra.mxu0 0.0
    %6207 = vmatprep.subr.mxu0 0.0
    %6208 = vmatpush1.msra.mxu0 0.0
    %6209 = vmatprep.subr.mxu0 0.0
    %6210 = vmatpush1.msra.mxu0 0.0
    %6211 = vmatprep.subr.mxu0 0.0
    %6212 = vmatpush1.msra.mxu0 %v6191
    %6213 = vmatprep.subr.mxu0 0.0
    %6214 = vmatpush1.msra.mxu0 %v6190
    %6215 = vmatprep.subr.mxu0 0.0
    %6216 = vmatpush1.msra.mxu0 %v6189
    %6217 = vmatprep.subr.mxu0 0.0
    %6218 = vmatpush1.msra.mxu0 %v6188
    %6219 = vmatprep.subr.mxu0 0.0
    %6220 = vmatpush1.msra.mxu0 %v6187
    %6221 = vmatprep.subr.mxu0 0.0
    %6222 = vmatpush1.msra.mxu0 %v6186
    %6223 = vmatprep.subr.mxu0 0.0
    %6224 = vmatpush1.msra.mxu0 %v6185
    %6225 = vmatprep.subr.mxu0 0.0
    %6226 = vmatpush1.msra.mxu0 %v6184
    %6227 = vmatprep.subr.mxu0 0.0
    %6228 = vmatpush2.msra.mxu0 0.0
    %6229 = vmatprep.subr.mxu0 0.0
    %6230 = vmatpush2.msra.mxu0 0.0
    %6231 = vmatprep.subr.mxu0 0.0
    %6232 = vmatpush2.msra.mxu0 0.0
    %6233 = vmatprep.subr.mxu0 0.0
    %6234 = vmatpush2.msra.mxu0 0.0
    %6235 = vmatprep.subr.mxu0 0.0
    %6236 = vmatpush2.msra.mxu0 0.0
    %6237 = vmatprep.subr.mxu0 0.0
    %6238 = vmatpush2.msra.mxu0 0.0
    %6239 = vmatprep.subr.mxu0 0.0
    %6240 = vmatpush2.msra.mxu0 0.0
    %6241 = vmatprep.subr.mxu0 0.0
    %6242 = vmatpush2.msra.mxu0 0.0
    %6243 = vmatprep.subr.mxu0 0.0
    %6244 = vmatpush2.msra.mxu0 0.0
    %6245 = vmatprep.subr.mxu0 0.0
    %6246 = vmatpush2.msra.mxu0 0.0
    %6247 = vmatprep.subr.mxu0 0.0
    %6248 = vmatpush2.msra.mxu0 0.0
    %6249 = vmatprep.subr.mxu0 0.0
    %6250 = vmatpush2.msra.mxu0 0.0
    %6251 = vmatprep.subr.mxu0 0.0
    %6252 = vmatpush2.msra.mxu0 0.0
    %6253 = vmatprep.subr.mxu0 0.0
    %6254 = vmatpush2.msra.mxu0 0.0
    %6255 = vmatprep.subr.mxu0 0.0
    %6256 = vmatpush2.msra.mxu0 0.0
    %6257 = vmatprep.subr.mxu0 0.0
    %6258 = vmatpush2.msra.mxu0 0.0
    %6259 = vmatprep.mubr.f32.mxu0 0.0
    %6260 = vmatmul.mubr.f32.gmra.mxu0 %v6193
    %v6261 = vpop.f32.mrf.mxu0
    %v6262 = vadd.f32 0.0, %v6261
    %v6263 = vpop.f32.mrf.mxu0
    %6264 = vdwg.mxu0
    %v6265 = vadd.f32 %v6182, %v6262
    %s6266 = scalar_lea.vmem %s6, 320
    %v6267 = vld [vmem:[%s6266] sm:$0xff]
    %v6268 = vld [vmem:[%s6266 + $0x8] sm:$0xff]
    %v6269 = vld [vmem:[%s6266 + $0x10] sm:$0xff]
    %v6270 = vld [vmem:[%s6266 + $0x18] sm:$0xff]
    %v6271 = vld [vmem:[%s6266 + $0x20] sm:$0xff]
    %v6272 = vld [vmem:[%s6266 + $0x28] sm:$0xff]
    %v6273 = vld [vmem:[%s6266 + $0x30] sm:$0xff]
    %v6274 = vld [vmem:[%s6266 + $0x38] sm:$0xff]
    %v6275 = vrot.slane %v5849, 5
    %v6276 = vsel %vm5859, %v6275, 0
    %6278 = vmatprep.subr.mxu0 0.0
    %6279 = vmatpush1.msra.mxu0 0.0
    %6280 = vmatprep.subr.mxu0 0.0
    %6281 = vmatpush1.msra.mxu0 0.0
    %6282 = vmatprep.subr.mxu0 0.0
    %6283 = vmatpush1.msra.mxu0 0.0
    %6284 = vmatprep.subr.mxu0 0.0
    %6285 = vmatpush1.msra.mxu0 0.0
    %6286 = vmatprep.subr.mxu0 0.0
    %6287 = vmatpush1.msra.mxu0 0.0
    %6288 = vmatprep.subr.mxu0 0.0
    %6289 = vmatpush1.msra.mxu0 0.0
    %6290 = vmatprep.subr.mxu0 0.0
    %6291 = vmatpush1.msra.mxu0 0.0
    %6292 = vmatprep.subr.mxu0 0.0
    %6293 = vmatpush1.msra.mxu0 0.0
    %6294 = vmatprep.subr.mxu0 0.0
    %6295 = vmatpush1.msra.mxu0 %v6274
    %6296 = vmatprep.subr.mxu0 0.0
    %6297 = vmatpush1.msra.mxu0 %v6273
    %6298 = vmatprep.subr.mxu0 0.0
    %6299 = vmatpush1.msra.mxu0 %v6272
    %6300 = vmatprep.subr.mxu0 0.0
    %6301 = vmatpush1.msra.mxu0 %v6271
    %6302 = vmatprep.subr.mxu0 0.0
    %6303 = vmatpush1.msra.mxu0 %v6270
    %6304 = vmatprep.subr.mxu0 0.0
    %6305 = vmatpush1.msra.mxu0 %v6269
    %6306 = vmatprep.subr.mxu0 0.0
    %6307 = vmatpush1.msra.mxu0 %v6268
    %6308 = vmatprep.subr.mxu0 0.0
    %6309 = vmatpush1.msra.mxu0 %v6267
    %6310 = vmatprep.subr.mxu0 0.0
    %6311 = vmatpush2.msra.mxu0 0.0
    %6312 = vmatprep.subr.mxu0 0.0
    %6313 = vmatpush2.msra.mxu0 0.0
    %6314 = vmatprep.subr.mxu0 0.0
    %6315 = vmatpush2.msra.mxu0 0.0
    %6316 = vmatprep.subr.mxu0 0.0
    %6317 = vmatpush2.msra.mxu0 0.0
    %6318 = vmatprep.subr.mxu0 0.0
    %6319 = vmatpush2.msra.mxu0 0.0
    %6320 = vmatprep.subr.mxu0 0.0
    %6321 = vmatpush2.msra.mxu0 0.0
    %6322 = vmatprep.subr.mxu0 0.0
    %6323 = vmatpush2.msra.mxu0 0.0
    %6324 = vmatprep.subr.mxu0 0.0
    %6325 = vmatpush2.msra.mxu0 0.0
    %6326 = vmatprep.subr.mxu0 0.0
    %6327 = vmatpush2.msra.mxu0 0.0
    %6328 = vmatprep.subr.mxu0 0.0
    %6329 = vmatpush2.msra.mxu0 0.0
    %6330 = vmatprep.subr.mxu0 0.0
    %6331 = vmatpush2.msra.mxu0 0.0
    %6332 = vmatprep.subr.mxu0 0.0
    %6333 = vmatpush2.msra.mxu0 0.0
    %6334 = vmatprep.subr.mxu0 0.0
    %6335 = vmatpush2.msra.mxu0 0.0
    %6336 = vmatprep.subr.mxu0 0.0
    %6337 = vmatpush2.msra.mxu0 0.0
    %6338 = vmatprep.subr.mxu0 0.0
    %6339 = vmatpush2.msra.mxu0 0.0
    %6340 = vmatprep.subr.mxu0 0.0
    %6341 = vmatpush2.msra.mxu0 0.0
    %6342 = vmatprep.mubr.f32.mxu0 0.0
    %6343 = vmatmul.mubr.f32.gmra.mxu0 %v6276
    %v6344 = vpop.f32.mrf.mxu0
    %v6345 = vadd.f32 0.0, %v6344
    %v6346 = vpop.f32.mrf.mxu0
    %6347 = vdwg.mxu0
    %v6348 = vadd.f32 %v6265, %v6345
    %s6349 = scalar_lea.vmem %s6, 384
    %v6350 = vld [vmem:[%s6349] sm:$0xff]
    %v6351 = vld [vmem:[%s6349 + $0x8] sm:$0xff]
    %v6352 = vld [vmem:[%s6349 + $0x10] sm:$0xff]
    %v6353 = vld [vmem:[%s6349 + $0x18] sm:$0xff]
    %v6354 = vld [vmem:[%s6349 + $0x20] sm:$0xff]
    %v6355 = vld [vmem:[%s6349 + $0x28] sm:$0xff]
    %v6356 = vld [vmem:[%s6349 + $0x30] sm:$0xff]
    %v6357 = vld [vmem:[%s6349 + $0x38] sm:$0xff]
    %v6358 = vrot.slane %v5849, 6
    %v6359 = vsel %vm5859, %v6358, 0
    %6361 = vmatprep.subr.mxu0 0.0
    %6362 = vmatpush1.msra.mxu0 0.0
    %6363 = vmatprep.subr.mxu0 0.0
    %6364 = vmatpush1.msra.mxu0 0.0
    %6365 = vmatprep.subr.mxu0 0.0
    %6366 = vmatpush1.msra.mxu0 0.0
    %6367 = vmatprep.subr.mxu0 0.0
    %6368 = vmatpush1.msra.mxu0 0.0
    %6369 = vmatprep.subr.mxu0 0.0
    %6370 = vmatpush1.msra.mxu0 0.0
    %6371 = vmatprep.subr.mxu0 0.0
    %6372 = vmatpush1.msra.mxu0 0.0
    %6373 = vmatprep.subr.mxu0 0.0
    %6374 = vmatpush1.msra.mxu0 0.0
    %6375 = vmatprep.subr.mxu0 0.0
    %6376 = vmatpush1.msra.mxu0 0.0
    %6377 = vmatprep.subr.mxu0 0.0
    %6378 = vmatpush1.msra.mxu0 %v6357
    %6379 = vmatprep.subr.mxu0 0.0
    %6380 = vmatpush1.msra.mxu0 %v6356
    %6381 = vmatprep.subr.mxu0 0.0
    %6382 = vmatpush1.msra.mxu0 %v6355
    %6383 = vmatprep.subr.mxu0 0.0
    %6384 = vmatpush1.msra.mxu0 %v6354
    %6385 = vmatprep.subr.mxu0 0.0
    %6386 = vmatpush1.msra.mxu0 %v6353
    %6387 = vmatprep.subr.mxu0 0.0
    %6388 = vmatpush1.msra.mxu0 %v6352
    %6389 = vmatprep.subr.mxu0 0.0
    %6390 = vmatpush1.msra.mxu0 %v6351
    %6391 = vmatprep.subr.mxu0 0.0
    %6392 = vmatpush1.msra.mxu0 %v6350
    %6393 = vmatprep.subr.mxu0 0.0
    %6394 = vmatpush2.msra.mxu0 0.0
    %6395 = vmatprep.subr.mxu0 0.0
    %6396 = vmatpush2.msra.mxu0 0.0
    %6397 = vmatprep.subr.mxu0 0.0
    %6398 = vmatpush2.msra.mxu0 0.0
    %6399 = vmatprep.subr.mxu0 0.0
    %6400 = vmatpush2.msra.mxu0 0.0
    %6401 = vmatprep.subr.mxu0 0.0
    %6402 = vmatpush2.msra.mxu0 0.0
    %6403 = vmatprep.subr.mxu0 0.0
    %6404 = vmatpush2.msra.mxu0 0.0
    %6405 = vmatprep.subr.mxu0 0.0
    %6406 = vmatpush2.msra.mxu0 0.0
    %6407 = vmatprep.subr.mxu0 0.0
    %6408 = vmatpush2.msra.mxu0 0.0
    %6409 = vmatprep.subr.mxu0 0.0
    %6410 = vmatpush2.msra.mxu0 0.0
    %6411 = vmatprep.subr.mxu0 0.0
    %6412 = vmatpush2.msra.mxu0 0.0
    %6413 = vmatprep.subr.mxu0 0.0
    %6414 = vmatpush2.msra.mxu0 0.0
    %6415 = vmatprep.subr.mxu0 0.0
    %6416 = vmatpush2.msra.mxu0 0.0
    %6417 = vmatprep.subr.mxu0 0.0
    %6418 = vmatpush2.msra.mxu0 0.0
    %6419 = vmatprep.subr.mxu0 0.0
    %6420 = vmatpush2.msra.mxu0 0.0
    %6421 = vmatprep.subr.mxu0 0.0
    %6422 = vmatpush2.msra.mxu0 0.0
    %6423 = vmatprep.subr.mxu0 0.0
    %6424 = vmatpush2.msra.mxu0 0.0
    %6425 = vmatprep.mubr.f32.mxu0 0.0
    %6426 = vmatmul.mubr.f32.gmra.mxu0 %v6359
    %v6427 = vpop.f32.mrf.mxu0
    %v6428 = vadd.f32 0.0, %v6427
    %v6429 = vpop.f32.mrf.mxu0
    %6430 = vdwg.mxu0
    %v6431 = vadd.f32 %v6348, %v6428
    %s6432 = scalar_lea.vmem %s6, 448
    %v6433 = vld [vmem:[%s6432] sm:$0xff]
    %v6434 = vld [vmem:[%s6432 + $0x8] sm:$0xff]
    %v6435 = vld [vmem:[%s6432 + $0x10] sm:$0xff]
    %v6436 = vld [vmem:[%s6432 + $0x18] sm:$0xff]
    %v6437 = vld [vmem:[%s6432 + $0x20] sm:$0xff]
    %v6438 = vld [vmem:[%s6432 + $0x28] sm:$0xff]
    %v6439 = vld [vmem:[%s6432 + $0x30] sm:$0xff]
    %v6440 = vld [vmem:[%s6432 + $0x38] sm:$0xff]
    %v6441 = vrot.slane %v5849, 7
    %v6442 = vsel %vm5859, %v6441, 0
    %6444 = vmatprep.subr.mxu0 0.0
    %6445 = vmatpush1.msra.mxu0 0.0
    %6446 = vmatprep.subr.mxu0 0.0
    %6447 = vmatpush1.msra.mxu0 0.0
    %6448 = vmatprep.subr.mxu0 0.0
    %6449 = vmatpush1.msra.mxu0 0.0
    %6450 = vmatprep.subr.mxu0 0.0
    %6451 = vmatpush1.msra.mxu0 0.0
    %6452 = vmatprep.subr.mxu0 0.0
    %6453 = vmatpush1.msra.mxu0 0.0
    %6454 = vmatprep.subr.mxu0 0.0
    %6455 = vmatpush1.msra.mxu0 0.0
    %6456 = vmatprep.subr.mxu0 0.0
    %6457 = vmatpush1.msra.mxu0 0.0
    %6458 = vmatprep.subr.mxu0 0.0
    %6459 = vmatpush1.msra.mxu0 0.0
    %6460 = vmatprep.subr.mxu0 0.0
    %6461 = vmatpush1.msra.mxu0 %v6440
    %6462 = vmatprep.subr.mxu0 0.0
    %6463 = vmatpush1.msra.mxu0 %v6439
    %6464 = vmatprep.subr.mxu0 0.0
    %6465 = vmatpush1.msra.mxu0 %v6438
    %6466 = vmatprep.subr.mxu0 0.0
    %6467 = vmatpush1.msra.mxu0 %v6437
    %6468 = vmatprep.subr.mxu0 0.0
    %6469 = vmatpush1.msra.mxu0 %v6436
    %6470 = vmatprep.subr.mxu0 0.0
    %6471 = vmatpush1.msra.mxu0 %v6435
    %6472 = vmatprep.subr.mxu0 0.0
    %6473 = vmatpush1.msra.mxu0 %v6434
    %6474 = vmatprep.subr.mxu0 0.0
    %6475 = vmatpush1.msra.mxu0 %v6433
    %6476 = vmatprep.subr.mxu0 0.0
    %6477 = vmatpush2.msra.mxu0 0.0
    %6478 = vmatprep.subr.mxu0 0.0
    %6479 = vmatpush2.msra.mxu0 0.0
    %6480 = vmatprep.subr.mxu0 0.0
    %6481 = vmatpush2.msra.mxu0 0.0
    %6482 = vmatprep.subr.mxu0 0.0
    %6483 = vmatpush2.msra.mxu0 0.0
    %6484 = vmatprep.subr.mxu0 0.0
    %6485 = vmatpush2.msra.mxu0 0.0
    %6486 = vmatprep.subr.mxu0 0.0
    %6487 = vmatpush2.msra.mxu0 0.0
    %6488 = vmatprep.subr.mxu0 0.0
    %6489 = vmatpush2.msra.mxu0 0.0
    %6490 = vmatprep.subr.mxu0 0.0
    %6491 = vmatpush2.msra.mxu0 0.0
    %6492 = vmatprep.subr.mxu0 0.0
    %6493 = vmatpush2.msra.mxu0 0.0
    %6494 = vmatprep.subr.mxu0 0.0
    %6495 = vmatpush2.msra.mxu0 0.0
    %6496 = vmatprep.subr.mxu0 0.0
    %6497 = vmatpush2.msra.mxu0 0.0
    %6498 = vmatprep.subr.mxu0 0.0
    %6499 = vmatpush2.msra.mxu0 0.0
    %6500 = vmatprep.subr.mxu0 0.0
    %6501 = vmatpush2.msra.mxu0 0.0
    %6502 = vmatprep.subr.mxu0 0.0
    %6503 = vmatpush2.msra.mxu0 0.0
    %6504 = vmatprep.subr.mxu0 0.0
    %6505 = vmatpush2.msra.mxu0 0.0
    %6506 = vmatprep.subr.mxu0 0.0
    %6507 = vmatpush2.msra.mxu0 0.0
    %6508 = vmatprep.mubr.f32.mxu0 0.0
    %6509 = vmatmul.mubr.f32.gmra.mxu0 %v6442
    %v6510 = vpop.f32.mrf.mxu0
    %v6511 = vadd.f32 0.0, %v6510
    %v6512 = vpop.f32.mrf.mxu0
    %6513 = vdwg.mxu0
    %v6514 = vadd.f32 %v6431, %v6511
    %v6515 = vmax.f32 %v6514, 0.0
    %6516 = vrot.lane.b32.xlu0 %v5849, 64
    %v6517 = vpop.permute.xlu0 %6516
    %v6518 = vsel %vm5859, %v6517, 0
    %6520 = vmatprep.subr.mxu0 0.0
    %6521 = vmatpush1.msra.mxu0 0.0
    %6522 = vmatprep.subr.mxu0 0.0
    %6523 = vmatpush1.msra.mxu0 0.0
    %6524 = vmatprep.subr.mxu0 0.0
    %6525 = vmatpush1.msra.mxu0 0.0
    %6526 = vmatprep.subr.mxu0 0.0
    %6527 = vmatpush1.msra.mxu0 0.0
    %6528 = vmatprep.subr.mxu0 0.0
    %6529 = vmatpush1.msra.mxu0 0.0
    %6530 = vmatprep.subr.mxu0 0.0
    %6531 = vmatpush1.msra.mxu0 0.0
    %6532 = vmatprep.subr.mxu0 0.0
    %6533 = vmatpush1.msra.mxu0 0.0
    %6534 = vmatprep.subr.mxu0 0.0
    %6535 = vmatpush1.msra.mxu0 0.0
    %6536 = vmatprep.subr.mxu0 0.0
    %6537 = vmatpush1.msra.mxu0 %v5858
    %6538 = vmatprep.subr.mxu0 0.0
    %6539 = vmatpush1.msra.mxu0 %v5857
    %6540 = vmatprep.subr.mxu0 0.0
    %6541 = vmatpush1.msra.mxu0 %v5856
    %6542 = vmatprep.subr.mxu0 0.0
    %6543 = vmatpush1.msra.mxu0 %v5855
    %6544 = vmatprep.subr.mxu0 0.0
    %6545 = vmatpush1.msra.mxu0 %v5854
    %6546 = vmatprep.subr.mxu0 0.0
    %6547 = vmatpush1.msra.mxu0 %v5853
    %6548 = vmatprep.subr.mxu0 0.0
    %6549 = vmatpush1.msra.mxu0 %v5852
    %6550 = vmatprep.subr.mxu0 0.0
    %6551 = vmatpush1.msra.mxu0 %v5851
    %6552 = vmatprep.subr.mxu0 0.0
    %6553 = vmatpush2.msra.mxu0 0.0
    %6554 = vmatprep.subr.mxu0 0.0
    %6555 = vmatpush2.msra.mxu0 0.0
    %6556 = vmatprep.subr.mxu0 0.0
    %6557 = vmatpush2.msra.mxu0 0.0
    %6558 = vmatprep.subr.mxu0 0.0
    %6559 = vmatpush2.msra.mxu0 0.0
    %6560 = vmatprep.subr.mxu0 0.0
    %6561 = vmatpush2.msra.mxu0 0.0
    %6562 = vmatprep.subr.mxu0 0.0
    %6563 = vmatpush2.msra.mxu0 0.0
    %6564 = vmatprep.subr.mxu0 0.0
    %6565 = vmatpush2.msra.mxu0 0.0
    %6566 = vmatprep.subr.mxu0 0.0
    %6567 = vmatpush2.msra.mxu0 0.0
    %6568 = vmatprep.subr.mxu0 0.0
    %6569 = vmatpush2.msra.mxu0 0.0
    %6570 = vmatprep.subr.mxu0 0.0
    %6571 = vmatpush2.msra.mxu0 0.0
    %6572 = vmatprep.subr.mxu0 0.0
    %6573 = vmatpush2.msra.mxu0 0.0
    %6574 = vmatprep.subr.mxu0 0.0
    %6575 = vmatpush2.msra.mxu0 0.0
    %6576 = vmatprep.subr.mxu0 0.0
    %6577 = vmatpush2.msra.mxu0 0.0
    %6578 = vmatprep.subr.mxu0 0.0
    %6579 = vmatpush2.msra.mxu0 0.0
    %6580 = vmatprep.subr.mxu0 0.0
    %6581 = vmatpush2.msra.mxu0 0.0
    %6582 = vmatprep.subr.mxu0 0.0
    %6583 = vmatpush2.msra.mxu0 0.0
    %6584 = vmatprep.mubr.f32.mxu0 0.0
    %6585 = vmatmul.mubr.f32.gmra.mxu0 %v6518
    %v6586 = vpop.f32.mrf.mxu0
    %v6587 = vadd.f32 0.0, %v6586
    %v6588 = vpop.f32.mrf.mxu0
    %6589 = vdwg.mxu0
    %v6590 = vadd.f32 %v5850, %v6587
    %6591 = vrot.lane.b32.xlu0 %v5943, 64
    %v6592 = vpop.permute.xlu0 %6591
    %v6593 = vsel %vm5859, %v6592, 0
    %6595 = vmatprep.subr.mxu0 0.0
    %6596 = vmatpush1.msra.mxu0 0.0
    %6597 = vmatprep.subr.mxu0 0.0
    %6598 = vmatpush1.msra.mxu0 0.0
    %6599 = vmatprep.subr.mxu0 0.0
    %6600 = vmatpush1.msra.mxu0 0.0
    %6601 = vmatprep.subr.mxu0 0.0
    %6602 = vmatpush1.msra.mxu0 0.0
    %6603 = vmatprep.subr.mxu0 0.0
    %6604 = vmatpush1.msra.mxu0 0.0
    %6605 = vmatprep.subr.mxu0 0.0
    %6606 = vmatpush1.msra.mxu0 0.0
    %6607 = vmatprep.subr.mxu0 0.0
    %6608 = vmatpush1.msra.mxu0 0.0
    %6609 = vmatprep.subr.mxu0 0.0
    %6610 = vmatpush1.msra.mxu0 0.0
    %6611 = vmatprep.subr.mxu0 0.0
    %6612 = vmatpush1.msra.mxu0 %v5942
    %6613 = vmatprep.subr.mxu0 0.0
    %6614 = vmatpush1.msra.mxu0 %v5941
    %6615 = vmatprep.subr.mxu0 0.0
    %6616 = vmatpush1.msra.mxu0 %v5940
    %6617 = vmatprep.subr.mxu0 0.0
    %6618 = vmatpush1.msra.mxu0 %v5939
    %6619 = vmatprep.subr.mxu0 0.0
    %6620 = vmatpush1.msra.mxu0 %v5938
    %6621 = vmatprep.subr.mxu0 0.0
    %6622 = vmatpush1.msra.mxu0 %v5937
    %6623 = vmatprep.subr.mxu0 0.0
    %6624 = vmatpush1.msra.mxu0 %v5936
    %6625 = vmatprep.subr.mxu0 0.0
    %6626 = vmatpush1.msra.mxu0 %v5935
    %6627 = vmatprep.subr.mxu0 0.0
    %6628 = vmatpush2.msra.mxu0 0.0
    %6629 = vmatprep.subr.mxu0 0.0
    %6630 = vmatpush2.msra.mxu0 0.0
    %6631 = vmatprep.subr.mxu0 0.0
    %6632 = vmatpush2.msra.mxu0 0.0
    %6633 = vmatprep.subr.mxu0 0.0
    %6634 = vmatpush2.msra.mxu0 0.0
    %6635 = vmatprep.subr.mxu0 0.0
    %6636 = vmatpush2.msra.mxu0 0.0
    %6637 = vmatprep.subr.mxu0 0.0
    %6638 = vmatpush2.msra.mxu0 0.0
    %6639 = vmatprep.subr.mxu0 0.0
    %6640 = vmatpush2.msra.mxu0 0.0
    %6641 = vmatprep.subr.mxu0 0.0
    %6642 = vmatpush2.msra.mxu0 0.0
    %6643 = vmatprep.subr.mxu0 0.0
    %6644 = vmatpush2.msra.mxu0 0.0
    %6645 = vmatprep.subr.mxu0 0.0
    %6646 = vmatpush2.msra.mxu0 0.0
    %6647 = vmatprep.subr.mxu0 0.0
    %6648 = vmatpush2.msra.mxu0 0.0
    %6649 = vmatprep.subr.mxu0 0.0
    %6650 = vmatpush2.msra.mxu0 0.0
    %6651 = vmatprep.subr.mxu0 0.0
    %6652 = vmatpush2.msra.mxu0 0.0
    %6653 = vmatprep.subr.mxu0 0.0
    %6654 = vmatpush2.msra.mxu0 0.0
    %6655 = vmatprep.subr.mxu0 0.0
    %6656 = vmatpush2.msra.mxu0 0.0
    %6657 = vmatprep.subr.mxu0 0.0
    %6658 = vmatpush2.msra.mxu0 0.0
    %6659 = vmatprep.mubr.f32.mxu0 0.0
    %6660 = vmatmul.mubr.f32.gmra.mxu0 %v6593
    %v6661 = vpop.f32.mrf.mxu0
    %v6662 = vadd.f32 0.0, %v6661
    %v6663 = vpop.f32.mrf.mxu0
    %6664 = vdwg.mxu0
    %v6665 = vadd.f32 %v6590, %v6662
    %6666 = vrot.lane.b32.xlu0 %v6026, 64
    %v6667 = vpop.permute.xlu0 %6666
    %v6668 = vsel %vm5859, %v6667, 0
    %6670 = vmatprep.subr.mxu0 0.0
    %6671 = vmatpush1.msra.mxu0 0.0
    %6672 = vmatprep.subr.mxu0 0.0
    %6673 = vmatpush1.msra.mxu0 0.0
    %6674 = vmatprep.subr.mxu0 0.0
    %6675 = vmatpush1.msra.mxu0 0.0
    %6676 = vmatprep.subr.mxu0 0.0
    %6677 = vmatpush1.msra.mxu0 0.0
    %6678 = vmatprep.subr.mxu0 0.0
    %6679 = vmatpush1.msra.mxu0 0.0
    %6680 = vmatprep.subr.mxu0 0.0
    %6681 = vmatpush1.msra.mxu0 0.0
    %6682 = vmatprep.subr.mxu0 0.0
    %6683 = vmatpush1.msra.mxu0 0.0
    %6684 = vmatprep.subr.mxu0 0.0
    %6685 = vmatpush1.msra.mxu0 0.0
    %6686 = vmatprep.subr.mxu0 0.0
    %6687 = vmatpush1.msra.mxu0 %v6025
    %6688 = vmatprep.subr.mxu0 0.0
    %6689 = vmatpush1.msra.mxu0 %v6024
    %6690 = vmatprep.subr.mxu0 0.0
    %6691 = vmatpush1.msra.mxu0 %v6023
    %6692 = vmatprep.subr.mxu0 0.0
    %6693 = vmatpush1.msra.mxu0 %v6022
    %6694 = vmatprep.subr.mxu0 0.0
    %6695 = vmatpush1.msra.mxu0 %v6021
    %6696 = vmatprep.subr.mxu0 0.0
    %6697 = vmatpush1.msra.mxu0 %v6020
    %6698 = vmatprep.subr.mxu0 0.0
    %6699 = vmatpush1.msra.mxu0 %v6019
    %6700 = vmatprep.subr.mxu0 0.0
    %6701 = vmatpush1.msra.mxu0 %v6018
    %6702 = vmatprep.subr.mxu0 0.0
    %6703 = vmatpush2.msra.mxu0 0.0
    %6704 = vmatprep.subr.mxu0 0.0
    %6705 = vmatpush2.msra.mxu0 0.0
    %6706 = vmatprep.subr.mxu0 0.0
    %6707 = vmatpush2.msra.mxu0 0.0
    %6708 = vmatprep.subr.mxu0 0.0
    %6709 = vmatpush2.msra.mxu0 0.0
    %6710 = vmatprep.subr.mxu0 0.0
    %6711 = vmatpush2.msra.mxu0 0.0
    %6712 = vmatprep.subr.mxu0 0.0
    %6713 = vmatpush2.msra.mxu0 0.0
    %6714 = vmatprep.subr.mxu0 0.0
    %6715 = vmatpush2.msra.mxu0 0.0
    %6716 = vmatprep.subr.mxu0 0.0
    %6717 = vmatpush2.msra.mxu0 0.0
    %6718 = vmatprep.subr.mxu0 0.0
    %6719 = vmatpush2.msra.mxu0 0.0
    %6720 = vmatprep.subr.mxu0 0.0
    %6721 = vmatpush2.msra.mxu0 0.0
    %6722 = vmatprep.subr.mxu0 0.0
    %6723 = vmatpush2.msra.mxu0 0.0
    %6724 = vmatprep.subr.mxu0 0.0
    %6725 = vmatpush2.msra.mxu0 0.0
    %6726 = vmatprep.subr.mxu0 0.0
    %6727 = vmatpush2.msra.mxu0 0.0
    %6728 = vmatprep.subr.mxu0 0.0
    %6729 = vmatpush2.msra.mxu0 0.0
    %6730 = vmatprep.subr.mxu0 0.0
    %6731 = vmatpush2.msra.mxu0 0.0
    %6732 = vmatprep.subr.mxu0 0.0
    %6733 = vmatpush2.msra.mxu0 0.0
    %6734 = vmatprep.mubr.f32.mxu0 0.0
    %6735 = vmatmul.mubr.f32.gmra.mxu0 %v6668
    %v6736 = vpop.f32.mrf.mxu0
    %v6737 = vadd.f32 0.0, %v6736
    %v6738 = vpop.f32.mrf.mxu0
    %6739 = vdwg.mxu0
    %v6740 = vadd.f32 %v6665, %v6737
    %6741 = vrot.lane.b32.xlu0 %v6109, 64
    %v6742 = vpop.permute.xlu0 %6741
    %v6743 = vsel %vm5859, %v6742, 0
    %6745 = vmatprep.subr.mxu0 0.0
    %6746 = vmatpush1.msra.mxu0 0.0
    %6747 = vmatprep.subr.mxu0 0.0
    %6748 = vmatpush1.msra.mxu0 0.0
    %6749 = vmatprep.subr.mxu0 0.0
    %6750 = vmatpush1.msra.mxu0 0.0
    %6751 = vmatprep.subr.mxu0 0.0
    %6752 = vmatpush1.msra.mxu0 0.0
    %6753 = vmatprep.subr.mxu0 0.0
    %6754 = vmatpush1.msra.mxu0 0.0
    %6755 = vmatprep.subr.mxu0 0.0
    %6756 = vmatpush1.msra.mxu0 0.0
    %6757 = vmatprep.subr.mxu0 0.0
    %6758 = vmatpush1.msra.mxu0 0.0
    %6759 = vmatprep.subr.mxu0 0.0
    %6760 = vmatpush1.msra.mxu0 0.0
    %6761 = vmatprep.subr.mxu0 0.0
    %6762 = vmatpush1.msra.mxu0 %v6108
    %6763 = vmatprep.subr.mxu0 0.0
    %6764 = vmatpush1.msra.mxu0 %v6107
    %6765 = vmatprep.subr.mxu0 0.0
    %6766 = vmatpush1.msra.mxu0 %v6106
    %6767 = vmatprep.subr.mxu0 0.0
    %6768 = vmatpush1.msra.mxu0 %v6105
    %6769 = vmatprep.subr.mxu0 0.0
    %6770 = vmatpush1.msra.mxu0 %v6104
    %6771 = vmatprep.subr.mxu0 0.0
    %6772 = vmatpush1.msra.mxu0 %v6103
    %6773 = vmatprep.subr.mxu0 0.0
    %6774 = vmatpush1.msra.mxu0 %v6102
    %6775 = vmatprep.subr.mxu0 0.0
    %6776 = vmatpush1.msra.mxu0 %v6101
    %6777 = vmatprep.subr.mxu0 0.0
    %6778 = vmatpush2.msra.mxu0 0.0
    %6779 = vmatprep.subr.mxu0 0.0
    %6780 = vmatpush2.msra.mxu0 0.0
    %6781 = vmatprep.subr.mxu0 0.0
    %6782 = vmatpush2.msra.mxu0 0.0
    %6783 = vmatprep.subr.mxu0 0.0
    %6784 = vmatpush2.msra.mxu0 0.0
    %6785 = vmatprep.subr.mxu0 0.0
    %6786 = vmatpush2.msra.mxu0 0.0
    %6787 = vmatprep.subr.mxu0 0.0
    %6788 = vmatpush2.msra.mxu0 0.0
    %6789 = vmatprep.subr.mxu0 0.0
    %6790 = vmatpush2.msra.mxu0 0.0
    %6791 = vmatprep.subr.mxu0 0.0
    %6792 = vmatpush2.msra.mxu0 0.0
    %6793 = vmatprep.subr.mxu0 0.0
    %6794 = vmatpush2.msra.mxu0 0.0
    %6795 = vmatprep.subr.mxu0 0.0
    %6796 = vmatpush2.msra.mxu0 0.0
    %6797 = vmatprep.subr.mxu0 0.0
    %6798 = vmatpush2.msra.mxu0 0.0
    %6799 = vmatprep.subr.mxu0 0.0
    %6800 = vmatpush2.msra.mxu0 0.0
    %6801 = vmatprep.subr.mxu0 0.0
    %6802 = vmatpush2.msra.mxu0 0.0
    %6803 = vmatprep.subr.mxu0 0.0
    %6804 = vmatpush2.msra.mxu0 0.0
    %6805 = vmatprep.subr.mxu0 0.0
    %6806 = vmatpush2.msra.mxu0 0.0
    %6807 = vmatprep.subr.mxu0 0.0
    %6808 = vmatpush2.msra.mxu0 0.0
    %6809 = vmatprep.mubr.f32.mxu0 0.0
    %6810 = vmatmul.mubr.f32.gmra.mxu0 %v6743
    %v6811 = vpop.f32.mrf.mxu0
    %v6812 = vadd.f32 0.0, %v6811
    %v6813 = vpop.f32.mrf.mxu0
    %6814 = vdwg.mxu0
    %v6815 = vadd.f32 %v6740, %v6812
    %6816 = vrot.lane.b32.xlu0 %v6192, 64
    %v6817 = vpop.permute.xlu0 %6816
    %v6818 = vsel %vm5859, %v6817, 0
    %6820 = vmatprep.subr.mxu0 0.0
    %6821 = vmatpush1.msra.mxu0 0.0
    %6822 = vmatprep.subr.mxu0 0.0
    %6823 = vmatpush1.msra.mxu0 0.0
    %6824 = vmatprep.subr.mxu0 0.0
    %6825 = vmatpush1.msra.mxu0 0.0
    %6826 = vmatprep.subr.mxu0 0.0
    %6827 = vmatpush1.msra.mxu0 0.0
    %6828 = vmatprep.subr.mxu0 0.0
    %6829 = vmatpush1.msra.mxu0 0.0
    %6830 = vmatprep.subr.mxu0 0.0
    %6831 = vmatpush1.msra.mxu0 0.0
    %6832 = vmatprep.subr.mxu0 0.0
    %6833 = vmatpush1.msra.mxu0 0.0
    %6834 = vmatprep.subr.mxu0 0.0
    %6835 = vmatpush1.msra.mxu0 0.0
    %6836 = vmatprep.subr.mxu0 0.0
    %6837 = vmatpush1.msra.mxu0 %v6191
    %6838 = vmatprep.subr.mxu0 0.0
    %6839 = vmatpush1.msra.mxu0 %v6190
    %6840 = vmatprep.subr.mxu0 0.0
    %6841 = vmatpush1.msra.mxu0 %v6189
    %6842 = vmatprep.subr.mxu0 0.0
    %6843 = vmatpush1.msra.mxu0 %v6188
    %6844 = vmatprep.subr.mxu0 0.0
    %6845 = vmatpush1.msra.mxu0 %v6187
    %6846 = vmatprep.subr.mxu0 0.0
    %6847 = vmatpush1.msra.mxu0 %v6186
    %6848 = vmatprep.subr.mxu0 0.0
    %6849 = vmatpush1.msra.mxu0 %v6185
    %6850 = vmatprep.subr.mxu0 0.0
    %6851 = vmatpush1.msra.mxu0 %v6184
    %6852 = vmatprep.subr.mxu0 0.0
    %6853 = vmatpush2.msra.mxu0 0.0
    %6854 = vmatprep.subr.mxu0 0.0
    %6855 = vmatpush2.msra.mxu0 0.0
    %6856 = vmatprep.subr.mxu0 0.0
    %6857 = vmatpush2.msra.mxu0 0.0
    %6858 = vmatprep.subr.mxu0 0.0
    %6859 = vmatpush2.msra.mxu0 0.0
    %6860 = vmatprep.subr.mxu0 0.0
    %6861 = vmatpush2.msra.mxu0 0.0
    %6862 = vmatprep.subr.mxu0 0.0
    %6863 = vmatpush2.msra.mxu0 0.0
    %6864 = vmatprep.subr.mxu0 0.0
    %6865 = vmatpush2.msra.mxu0 0.0
    %6866 = vmatprep.subr.mxu0 0.0
    %6867 = vmatpush2.msra.mxu0 0.0
    %6868 = vmatprep.subr.mxu0 0.0
    %6869 = vmatpush2.msra.mxu0 0.0
    %6870 = vmatprep.subr.mxu0 0.0
    %6871 = vmatpush2.msra.mxu0 0.0
    %6872 = vmatprep.subr.mxu0 0.0
    %6873 = vmatpush2.msra.mxu0 0.0
    %6874 = vmatprep.subr.mxu0 0.0
    %6875 = vmatpush2.msra.mxu0 0.0
    %6876 = vmatprep.subr.mxu0 0.0
    %6877 = vmatpush2.msra.mxu0 0.0
    %6878 = vmatprep.subr.mxu0 0.0
    %6879 = vmatpush2.msra.mxu0 0.0
    %6880 = vmatprep.subr.mxu0 0.0
    %6881 = vmatpush2.msra.mxu0 0.0
    %6882 = vmatprep.subr.mxu0 0.0
    %6883 = vmatpush2.msra.mxu0 0.0
    %6884 = vmatprep.mubr.f32.mxu0 0.0
    %6885 = vmatmul.mubr.f32.gmra.mxu0 %v6818
    %v6886 = vpop.f32.mrf.mxu0
    %v6887 = vadd.f32 0.0, %v6886
    %v6888 = vpop.f32.mrf.mxu0
    %6889 = vdwg.mxu0
    %v6890 = vadd.f32 %v6815, %v6887
    %6891 = vrot.lane.b32.xlu0 %v6275, 64
    %v6892 = vpop.permute.xlu0 %6891
    %v6893 = vsel %vm5859, %v6892, 0
    %6895 = vmatprep.subr.mxu0 0.0
    %6896 = vmatpush1.msra.mxu0 0.0
    %6897 = vmatprep.subr.mxu0 0.0
    %6898 = vmatpush1.msra.mxu0 0.0
    %6899 = vmatprep.subr.mxu0 0.0
    %6900 = vmatpush1.msra.mxu0 0.0
    %6901 = vmatprep.subr.mxu0 0.0
    %6902 = vmatpush1.msra.mxu0 0.0
    %6903 = vmatprep.subr.mxu0 0.0
    %6904 = vmatpush1.msra.mxu0 0.0
    %6905 = vmatprep.subr.mxu0 0.0
    %6906 = vmatpush1.msra.mxu0 0.0
    %6907 = vmatprep.subr.mxu0 0.0
    %6908 = vmatpush1.msra.mxu0 0.0
    %6909 = vmatprep.subr.mxu0 0.0
    %6910 = vmatpush1.msra.mxu0 0.0
    %6911 = vmatprep.subr.mxu0 0.0
    %6912 = vmatpush1.msra.mxu0 %v6274
    %6913 = vmatprep.subr.mxu0 0.0
    %6914 = vmatpush1.msra.mxu0 %v6273
    %6915 = vmatprep.subr.mxu0 0.0
    %6916 = vmatpush1.msra.mxu0 %v6272
    %6917 = vmatprep.subr.mxu0 0.0
    %6918 = vmatpush1.msra.mxu0 %v6271
    %6919 = vmatprep.subr.mxu0 0.0
    %6920 = vmatpush1.msra.mxu0 %v6270
    %6921 = vmatprep.subr.mxu0 0.0
    %6922 = vmatpush1.msra.mxu0 %v6269
    %6923 = vmatprep.subr.mxu0 0.0
    %6924 = vmatpush1.msra.mxu0 %v6268
    %6925 = vmatprep.subr.mxu0 0.0
    %6926 = vmatpush1.msra.mxu0 %v6267
    %6927 = vmatprep.subr.mxu0 0.0
    %6928 = vmatpush2.msra.mxu0 0.0
    %6929 = vmatprep.subr.mxu0 0.0
    %6930 = vmatpush2.msra.mxu0 0.0
    %6931 = vmatprep.subr.mxu0 0.0
    %6932 = vmatpush2.msra.mxu0 0.0
    %6933 = vmatprep.subr.mxu0 0.0
    %6934 = vmatpush2.msra.mxu0 0.0
    %6935 = vmatprep.subr.mxu0 0.0
    %6936 = vmatpush2.msra.mxu0 0.0
    %6937 = vmatprep.subr.mxu0 0.0
    %6938 = vmatpush2.msra.mxu0 0.0
    %6939 = vmatprep.subr.mxu0 0.0
    %6940 = vmatpush2.msra.mxu0 0.0
    %6941 = vmatprep.subr.mxu0 0.0
    %6942 = vmatpush2.msra.mxu0 0.0
    %6943 = vmatprep.subr.mxu0 0.0
    %6944 = vmatpush2.msra.mxu0 0.0
    %6945 = vmatprep.subr.mxu0 0.0
    %6946 = vmatpush2.msra.mxu0 0.0
    %6947 = vmatprep.subr.mxu0 0.0
    %6948 = vmatpush2.msra.mxu0 0.0
    %6949 = vmatprep.subr.mxu0 0.0
    %6950 = vmatpush2.msra.mxu0 0.0
    %6951 = vmatprep.subr.mxu0 0.0
    %6952 = vmatpush2.msra.mxu0 0.0
    %6953 = vmatprep.subr.mxu0 0.0
    %6954 = vmatpush2.msra.mxu0 0.0
    %6955 = vmatprep.subr.mxu0 0.0
    %6956 = vmatpush2.msra.mxu0 0.0
    %6957 = vmatprep.subr.mxu0 0.0
    %6958 = vmatpush2.msra.mxu0 0.0
    %6959 = vmatprep.mubr.f32.mxu0 0.0
    %6960 = vmatmul.mubr.f32.gmra.mxu0 %v6893
    %v6961 = vpop.f32.mrf.mxu0
    %v6962 = vadd.f32 0.0, %v6961
    %v6963 = vpop.f32.mrf.mxu0
    %6964 = vdwg.mxu0
    %v6965 = vadd.f32 %v6890, %v6962
    %6966 = vrot.lane.b32.xlu0 %v6358, 64
    %v6967 = vpop.permute.xlu0 %6966
    %v6968 = vsel %vm5859, %v6967, 0
    %6970 = vmatprep.subr.mxu0 0.0
    %6971 = vmatpush1.msra.mxu0 0.0
    %6972 = vmatprep.subr.mxu0 0.0
    %6973 = vmatpush1.msra.mxu0 0.0
    %6974 = vmatprep.subr.mxu0 0.0
    %6975 = vmatpush1.msra.mxu0 0.0
    %6976 = vmatprep.subr.mxu0 0.0
    %6977 = vmatpush1.msra.mxu0 0.0
    %6978 = vmatprep.subr.mxu0 0.0
    %6979 = vmatpush1.msra.mxu0 0.0
    %6980 = vmatprep.subr.mxu0 0.0
    %6981 = vmatpush1.msra.mxu0 0.0
    %6982 = vmatprep.subr.mxu0 0.0
    %6983 = vmatpush1.msra.mxu0 0.0
    %6984 = vmatprep.subr.mxu0 0.0
    %6985 = vmatpush1.msra.mxu0 0.0
    %6986 = vmatprep.subr.mxu0 0.0
    %6987 = vmatpush1.msra.mxu0 %v6357
    %6988 = vmatprep.subr.mxu0 0.0
    %6989 = vmatpush1.msra.mxu0 %v6356
    %6990 = vmatprep.subr.mxu0 0.0
    %6991 = vmatpush1.msra.mxu0 %v6355
    %6992 = vmatprep.subr.mxu0 0.0
    %6993 = vmatpush1.msra.mxu0 %v6354
    %6994 = vmatprep.subr.mxu0 0.0
    %6995 = vmatpush1.msra.mxu0 %v6353
    %6996 = vmatprep.subr.mxu0 0.0
    %6997 = vmatpush1.msra.mxu0 %v6352
    %6998 = vmatprep.subr.mxu0 0.0
    %6999 = vmatpush1.msra.mxu0 %v6351
    %7000 = vmatprep.subr.mxu0 0.0
    %7001 = vmatpush1.msra.mxu0 %v6350
    %7002 = vmatprep.subr.mxu0 0.0
    %7003 = vmatpush2.msra.mxu0 0.0
    %7004 = vmatprep.subr.mxu0 0.0
    %7005 = vmatpush2.msra.mxu0 0.0
    %7006 = vmatprep.subr.mxu0 0.0
    %7007 = vmatpush2.msra.mxu0 0.0
    %7008 = vmatprep.subr.mxu0 0.0
    %7009 = vmatpush2.msra.mxu0 0.0
    %7010 = vmatprep.subr.mxu0 0.0
    %7011 = vmatpush2.msra.mxu0 0.0
    %7012 = vmatprep.subr.mxu0 0.0
    %7013 = vmatpush2.msra.mxu0 0.0
    %7014 = vmatprep.subr.mxu0 0.0
    %7015 = vmatpush2.msra.mxu0 0.0
    %7016 = vmatprep.subr.mxu0 0.0
    %7017 = vmatpush2.msra.mxu0 0.0
    %7018 = vmatprep.subr.mxu0 0.0
    %7019 = vmatpush2.msra.mxu0 0.0
    %7020 = vmatprep.subr.mxu0 0.0
    %7021 = vmatpush2.msra.mxu0 0.0
    %7022 = vmatprep.subr.mxu0 0.0
    %7023 = vmatpush2.msra.mxu0 0.0
    %7024 = vmatprep.subr.mxu0 0.0
    %7025 = vmatpush2.msra.mxu0 0.0
    %7026 = vmatprep.subr.mxu0 0.0
    %7027 = vmatpush2.msra.mxu0 0.0
    %7028 = vmatprep.subr.mxu0 0.0
    %7029 = vmatpush2.msra.mxu0 0.0
    %7030 = vmatprep.subr.mxu0 0.0
    %7031 = vmatpush2.msra.mxu0 0.0
    %7032 = vmatprep.subr.mxu0 0.0
    %7033 = vmatpush2.msra.mxu0 0.0
    %7034 = vmatprep.mubr.f32.mxu0 0.0
    %7035 = vmatmul.mubr.f32.gmra.mxu0 %v6968
    %v7036 = vpop.f32.mrf.mxu0
    %v7037 = vadd.f32 0.0, %v7036
    %v7038 = vpop.f32.mrf.mxu0
    %7039 = vdwg.mxu0
    %v7040 = vadd.f32 %v6965, %v7037
    %7041 = vrot.lane.b32.xlu0 %v6441, 64
    %v7042 = vpop.permute.xlu0 %7041
    %v7043 = vsel %vm5859, %v7042, 0
    %7045 = vmatprep.subr.mxu0 0.0
    %7046 = vmatpush1.msra.mxu0 0.0
    %7047 = vmatprep.subr.mxu0 0.0
    %7048 = vmatpush1.msra.mxu0 0.0
    %7049 = vmatprep.subr.mxu0 0.0
    %7050 = vmatpush1.msra.mxu0 0.0
    %7051 = vmatprep.subr.mxu0 0.0
    %7052 = vmatpush1.msra.mxu0 0.0
    %7053 = vmatprep.subr.mxu0 0.0
    %7054 = vmatpush1.msra.mxu0 0.0
    %7055 = vmatprep.subr.mxu0 0.0
    %7056 = vmatpush1.msra.mxu0 0.0
    %7057 = vmatprep.subr.mxu0 0.0
    %7058 = vmatpush1.msra.mxu0 0.0
    %7059 = vmatprep.subr.mxu0 0.0
    %7060 = vmatpush1.msra.mxu0 0.0
    %7061 = vmatprep.subr.mxu0 0.0
    %7062 = vmatpush1.msra.mxu0 %v6440
    %7063 = vmatprep.subr.mxu0 0.0
    %7064 = vmatpush1.msra.mxu0 %v6439
    %7065 = vmatprep.subr.mxu0 0.0
    %7066 = vmatpush1.msra.mxu0 %v6438
    %7067 = vmatprep.subr.mxu0 0.0
    %7068 = vmatpush1.msra.mxu0 %v6437
    %7069 = vmatprep.subr.mxu0 0.0
    %7070 = vmatpush1.msra.mxu0 %v6436
    %7071 = vmatprep.subr.mxu0 0.0
    %7072 = vmatpush1.msra.mxu0 %v6435
    %7073 = vmatprep.subr.mxu0 0.0
    %7074 = vmatpush1.msra.mxu0 %v6434
    %7075 = vmatprep.subr.mxu0 0.0
    %7076 = vmatpush1.msra.mxu0 %v6433
    %7077 = vmatprep.subr.mxu0 0.0
    %7078 = vmatpush2.msra.mxu0 0.0
    %7079 = vmatprep.subr.mxu0 0.0
    %7080 = vmatpush2.msra.mxu0 0.0
    %7081 = vmatprep.subr.mxu0 0.0
    %7082 = vmatpush2.msra.mxu0 0.0
    %7083 = vmatprep.subr.mxu0 0.0
    %7084 = vmatpush2.msra.mxu0 0.0
    %7085 = vmatprep.subr.mxu0 0.0
    %7086 = vmatpush2.msra.mxu0 0.0
    %7087 = vmatprep.subr.mxu0 0.0
    %7088 = vmatpush2.msra.mxu0 0.0
    %7089 = vmatprep.subr.mxu0 0.0
    %7090 = vmatpush2.msra.mxu0 0.0
    %7091 = vmatprep.subr.mxu0 0.0
    %7092 = vmatpush2.msra.mxu0 0.0
    %7093 = vmatprep.subr.mxu0 0.0
    %7094 = vmatpush2.msra.mxu0 0.0
    %7095 = vmatprep.subr.mxu0 0.0
    %7096 = vmatpush2.msra.mxu0 0.0
    %7097 = vmatprep.subr.mxu0 0.0
    %7098 = vmatpush2.msra.mxu0 0.0
    %7099 = vmatprep.subr.mxu0 0.0
    %7100 = vmatpush2.msra.mxu0 0.0
    %7101 = vmatprep.subr.mxu0 0.0
    %7102 = vmatpush2.msra.mxu0 0.0
    %7103 = vmatprep.subr.mxu0 0.0
    %7104 = vmatpush2.msra.mxu0 0.0
    %7105 = vmatprep.subr.mxu0 0.0
    %7106 = vmatpush2.msra.mxu0 0.0
    %7107 = vmatprep.subr.mxu0 0.0
    %7108 = vmatpush2.msra.mxu0 0.0
    %7109 = vmatprep.mubr.f32.mxu0 0.0
    %7110 = vmatmul.mubr.f32.gmra.mxu0 %v7043
    %v7111 = vpop.f32.mrf.mxu0
    %v7112 = vadd.f32 0.0, %v7111
    %v7113 = vpop.f32.mrf.mxu0
    %7114 = vdwg.mxu0
    %v7115 = vadd.f32 %v7040, %v7112
    %v7116 = vmax.f32 %v7115, 0.0
    %v7118 = vlaneseq
    %v7119 = vshrl.u32 %v7118, 7
    %v7120 = vsub.s32 0, %v7119
    %v7121 = vrot.slane %v7116, %v7120
    %vm7123 = vcmask 1040384
    %v7124 = vsel %vm7123, %v6515, %v7121
    %v7125 = vld [vmem:[%s8] sm:$0xff]
    %v7126 = vld [vmem:[%s8 + $0x8] sm:$0xff]
    %v7127 = vld [vmem:[%s8 + $0x10] sm:$0xff]
    %v7128 = vld [vmem:[%s8 + $0x18] sm:$0xff]
    %v7129 = vld [vmem:[%s8 + $0x20] sm:$0xff]
    %v7130 = vld [vmem:[%s8 + $0x28] sm:$0xff]
    %v7131 = vld [vmem:[%s8 + $0x30] sm:$0xff]
    %v7132 = vld [vmem:[%s8 + $0x38] sm:$0xff]
    %v7133 = vld [vmem:[%s9] sm:$0x3]
    %v7135 = vsel %vm5859, %v7124, 0
    %7137 = vmatprep.subr.mxu0 0.0
    %7138 = vmatpush1.msra.mxu0 0.0
    %7139 = vmatprep.subr.mxu0 0.0
    %7140 = vmatpush1.msra.mxu0 0.0
    %7141 = vmatprep.subr.mxu0 0.0
    %7142 = vmatpush1.msra.mxu0 0.0
    %7143 = vmatprep.subr.mxu0 0.0
    %7144 = vmatpush1.msra.mxu0 0.0
    %7145 = vmatprep.subr.mxu0 0.0
    %7146 = vmatpush1.msra.mxu0 0.0
    %7147 = vmatprep.subr.mxu0 0.0
    %7148 = vmatpush1.msra.mxu0 0.0
    %7149 = vmatprep.subr.mxu0 0.0
    %7150 = vmatpush1.msra.mxu0 0.0
    %7151 = vmatprep.subr.mxu0 0.0
    %7152 = vmatpush1.msra.mxu0 0.0
    %7153 = vmatprep.subr.mxu0 0.0
    %7154 = vmatpush1.msra.mxu0 %v7132
    %7155 = vmatprep.subr.mxu0 0.0
    %7156 = vmatpush1.msra.mxu0 %v7131
    %7157 = vmatprep.subr.mxu0 0.0
    %7158 = vmatpush1.msra.mxu0 %v7130
    %7159 = vmatprep.subr.mxu0 0.0
    %7160 = vmatpush1.msra.mxu0 %v7129
    %7161 = vmatprep.subr.mxu0 0.0
    %7162 = vmatpush1.msra.mxu0 %v7128
    %7163 = vmatprep.subr.mxu0 0.0
    %7164 = vmatpush1.msra.mxu0 %v7127
    %7165 = vmatprep.subr.mxu0 0.0
    %7166 = vmatpush1.msra.mxu0 %v7126
    %7167 = vmatprep.subr.mxu0 0.0
    %7168 = vmatpush1.msra.mxu0 %v7125
    %7169 = vmatprep.subr.mxu0 0.0
    %7170 = vmatpush2.msra.mxu0 0.0
    %7171 = vmatprep.subr.mxu0 0.0
    %7172 = vmatpush2.msra.mxu0 0.0
    %7173 = vmatprep.subr.mxu0 0.0
    %7174 = vmatpush2.msra.mxu0 0.0
    %7175 = vmatprep.subr.mxu0 0.0
    %7176 = vmatpush2.msra.mxu0 0.0
    %7177 = vmatprep.subr.mxu0 0.0
    %7178 = vmatpush2.msra.mxu0 0.0
    %7179 = vmatprep.subr.mxu0 0.0
    %7180 = vmatpush2.msra.mxu0 0.0
    %7181 = vmatprep.subr.mxu0 0.0
    %7182 = vmatpush2.msra.mxu0 0.0
    %7183 = vmatprep.subr.mxu0 0.0
    %7184 = vmatpush2.msra.mxu0 0.0
    %7185 = vmatprep.subr.mxu0 0.0
    %7186 = vmatpush2.msra.mxu0 0.0
    %7187 = vmatprep.subr.mxu0 0.0
    %7188 = vmatpush2.msra.mxu0 0.0
    %7189 = vmatprep.subr.mxu0 0.0
    %7190 = vmatpush2.msra.mxu0 0.0
    %7191 = vmatprep.subr.mxu0 0.0
    %7192 = vmatpush2.msra.mxu0 0.0
    %7193 = vmatprep.subr.mxu0 0.0
    %7194 = vmatpush2.msra.mxu0 0.0
    %7195 = vmatprep.subr.mxu0 0.0
    %7196 = vmatpush2.msra.mxu0 0.0
    %7197 = vmatprep.subr.mxu0 0.0
    %7198 = vmatpush2.msra.mxu0 0.0
    %7199 = vmatprep.subr.mxu0 0.0
    %7200 = vmatpush2.msra.mxu0 0.0
    %7201 = vmatprep.mubr.f32.mxu0 0.0
    %7202 = vmatmul.mubr.f32.gmra.mxu0 %v7135
    %v7203 = vpop.f32.mrf.mxu0
    %v7204 = vadd.f32 %v7133, %v7203
    %v7205 = vpop.f32.mrf.mxu0
    %7206 = vdwg.mxu0
    %7207 = vst [vmem:[#allocation2] sm:$0x3] %v7204
    // Predicated region
    $region42: #{forward.1} parent=1 // pred_check
      _
    $region43: #{forward.1} parent=1 // pred_check_branch
      %7209 = sbr.rel (0) target = $region45
    $region44: #{forward.1} parent=1 // pred_region
      %s7211 = ssub.s32 32, 32
      %7212 = vsyncadd [#allocation3], %s7211
      %s7214 = sshll.u32 [#allocation2], 4
      %s7215 = int_to_ptr.vmem [resolvable:$true] %s7214
      %7217 = dma.vmem_to_hbm [thread:$0]  %s7215, 32, %s10, [#allocation3]
    $region45: #{forward.1} parent=1 // pred_fallthru
      _
    // Predicated region
    $region46: #{forward.1} parent=1 // pred_check
      _
    $region47: #{forward.1} parent=1 // pred_check_branch
      %7219 = sbr.rel (0) target = $region49
    $region48: #{forward.1} parent=1 // pred_region
      %7220 = dma.done [#allocation3], 32
    $region49: #{forward.1} parent=1 // pred_fallthru
      _
    %7221 = vsyncpa [#allocation3], 1

</llo_original>
